<compile_context>
chip_gen: v7x
topology: tpu7x:2x2x1
jax: 0.10.0
libtpu: 0.0.40
codegen_flags: <defaults>
</compile_context>

<pallas_src>
import jax
import jax.numpy as jnp
import numpy as np
from jax.experimental import pallas as pl
from jax.experimental.pallas import tpu as pltpu

# ---------------- config (small, consistent with the module's forward) -------
B = 2           # batch
IMG = 16        # image spatial size
CIN = 3         # image channels
C1 = 16         # hidden conv channels
VOCAB = 32      # vocab_size
EMBED = 32      # embed_size
ATT = 32        # attention_dim
DEC = 64        # decoder_dim
ENC = 32        # encoder_dim
T = 8           # caption length; seq_length = T - 1
SEQ = T - 1
NPIX = (IMG // 4) * (IMG // 4)   # num_pixels after two 2x2 pools = 16

# padded sizes (zero padding only; sliced away in the wrapper, math unchanged)
LANE = 128
DEC_P = 128                      # decoder_dim padded -> each LSTM gate slice lane-aligned
ATT_P = 128                      # attention_dim padded
VOCAB_P = 128                    # fc output padded
GATE = 4 * DEC_P                 # 512
FW = ATT_P + GATE + VOCAB_P      # 768 : fused [Ww | Whh | Wfc] width
FC_OFF = ATT_P + GATE            # 640 : column offset of the Wfc block


def _round_up(x, m):
    return (x + m - 1) // m * m


# ============================ encoder (fused conv) ============================
def _conv_pool_kernel(p_ref, w_ref, b_ref, o_ref):
    # p_ref: (4, tm, Kp) -- the 4 pool positions of a 2x2 window are the leading dim.
    # relu(maxpool(conv + b)) == relu(max_q(conv_q) + b)  (bias shared, relu monotone)
    m = jnp.dot(p_ref[0], w_ref[...], preferred_element_type=jnp.float32)
    for q in range(1, 4):
        m = jnp.maximum(m, jnp.dot(p_ref[q], w_ref[...],
                                   preferred_element_type=jnp.float32))
    o_ref[...] = jnp.maximum(m + b_ref[...], 0.0)


def conv_relu_pool_pallas(x_nhwc, wmat_p, bias_p):
    """3x3 'same' conv + bias + ReLU + 2x2 maxpool fused into one pallas_call.

    x_nhwc: (B, H, W, Cin); wmat_p: (Kp, 128) zero-padded; bias_p: (1, 128).
    Returns (B*Ho*Wo, 128) with rows in (b, h, w) order.
    """
    Bn, H, W, Cin = x_nhwc.shape
    Ho, Wo = H // 2, W // 2
    K = 9 * Cin
    Kp = wmat_p.shape[0]

    xp = jnp.pad(x_nhwc, ((0, 0), (1, 1), (1, 1), (0, 0)))
    qs = []
    for dy in range(2):
        for dx in range(2):
            taps = []
            for kh in range(3):
                for kw in range(3):
                    s = xp[:, dy + kh::2, dx + kw::2, :][:, :Ho, :Wo, :]
                    taps.append(s)                                   # (B, Ho, Wo, Cin)
            qs.append(jnp.stack(taps, axis=3).reshape(Bn * Ho * Wo, K))
    patches = jnp.stack(qs, axis=0)                                  # (4, M4, K)
    if Kp > K:
        patches = jnp.pad(patches, ((0, 0), (0, 0), (0, Kp - K)))

    M4 = Bn * Ho * Wo
    tm = M4 // 2                                                     # 2 grid steps over M
    return pl.pallas_call(
        _conv_pool_kernel,
        out_shape=jax.ShapeDtypeStruct((M4, LANE), jnp.float32),
        grid=(2,),
        in_specs=[pl.BlockSpec((4, tm, Kp), lambda i: (0, i, 0)),
                  pl.BlockSpec((Kp, LANE), lambda i: (0, 0)),
                  pl.BlockSpec((1, LANE), lambda i: (0, 0))],
        out_specs=pl.BlockSpec((tm, LANE), lambda i: (i, 0)),
        compiler_params=pltpu.CompilerParams(
            dimension_semantics=("parallel",)),
    )(patches, wmat_p, bias_p)


def encoder_forward(prep, images_nchw):
    x = jnp.transpose(images_nchw, (0, 2, 3, 1))                     # NCHW -> NHWC
    Bn = x.shape[0]
    y1 = conv_relu_pool_pallas(x, prep['conv1_wp'], prep['conv1_bp'])
    x2 = y1[:, :C1].reshape(Bn, IMG // 2, IMG // 2, C1)
    y2 = conv_relu_pool_pallas(x2, prep['conv2_wp'], prep['conv2_bp'])
    # equivalent of features.permute(0, 2, 3, 1).view(B, -1, encoder_dim)
    return y2[:, :ENC].reshape(Bn, NPIX, ENC)                        # (B, num_pixels, ENC)


# ======================= decoder (attention LSTM, fused) ======================
def _decoder_kernel(uhs_ref, fg_ref, embg_ref, hc0_ref, wfused_ref, small_ref,
                    preds_ref, alphas_ref):
    # Single invocation (no grid): whole working set (< 1 MiB) is VMEM-resident; SEQ-step
    # recurrence fully unrolled; only h/c are carried in vregs -- all matrices are read from
    # their VMEM refs at the use site (short live ranges, no spills across the unroll).
    hc0 = hc0_ref[...]                              # (B, 2*DEC_P) hoisted init
    h = hc0[:, :DEC_P]                              # padded lanes stay exactly 0
    c = hc0[:, DEC_P:]

    for t in range(SEQ):
        # ---- ONE fused MXU round trip per step: h @ [Ww | Whh | Wfc] ----
        fused = jnp.dot(h, wfused_ref[...], preferred_element_type=jnp.float32)   # (B, 768)

        # the Wfc columns are fc(h) of the PREVIOUS step's hidden state
        if t > 0:
            preds_ref[t - 1] = fused[:, FC_OFF:] + small_ref[:, ATT_P:]

        # ---- Bahdanau attention; u_hs already contains feats@Wu + bu + bw ----
        w_ah = fused[:, :ATT_P]
        combined = jnp.tanh(uhs_ref[...] + w_ah[:, None, :])                      # (B, P, ATT_P)
        scores = jnp.sum(combined * small_ref[:, :ATT_P], axis=-1)                # (B, P)
        scores = scores - jnp.max(scores, axis=-1, keepdims=True)
        e = jnp.exp(scores)
        alpha = e * pl.reciprocal(jnp.sum(e, axis=-1, keepdims=True), approx=True)

        # ---- LSTMCell: context@Wih_ctx == alpha-weighted sum of hoisted feats_gates ----
        ctx_gates = jnp.sum(alpha[:, :, None] * fg_ref[...], axis=1)              # (B, GATE)
        gates = embg_ref[t] + ctx_gates + fused[:, ATT_P:FC_OFF]
        i_g = jax.nn.sigmoid(gates[:, 0 * DEC_P:1 * DEC_P])
        f_g = jax.nn.sigmoid(gates[:, 1 * DEC_P:2 * DEC_P])
        g_g = jnp.tanh(gates[:, 2 * DEC_P:3 * DEC_P])
        o_g = jax.nn.sigmoid(gates[:, 3 * DEC_P:4 * DEC_P])
        c = f_g * c + i_g * g_g
        h = o_g * jnp.tanh(c)

        # VMEM store; HBM writeback is a single whole-array DMA at kernel end
        alphas_ref[t] = alpha

    # trailing fc for the final step's hidden state
    preds_ref[SEQ - 1] = (jnp.dot(h, wfused_ref[:, FC_OFF:],
                                  preferred_element_type=jnp.float32)
                          + small_ref[:, ATT_P:])


def decoder_forward(prep, feats, emb_seq):
    # feats: (B, P, ENC); emb_seq: (SEQ, B, EMBED)
    Bn, P, _ = feats.shape
    f2 = feats.reshape(Bn * P, ENC)

    # Hoisted, time-invariant projections (outside the recurrence; plain XLA matmuls)
    u_hs = (f2 @ prep['Wu'] + prep['bu_bw']).reshape(Bn, P, ATT_P)
    fg = (f2 @ prep['Wih_ctx']).reshape(Bn, P, GATE)
    embg = (emb_seq.reshape(SEQ * Bn, EMBED) @ prep['Wih_emb']
            + prep['bih_bhh']).reshape(SEQ, Bn, GATE)
    hc0 = feats.mean(axis=1) @ prep['W_init'] + prep['b_init']       # (B, 2*DEC_P)

    preds_p, alphas = pl.pallas_call(
        _decoder_kernel,
        out_shape=(jax.ShapeDtypeStruct((SEQ, Bn, VOCAB_P), jnp.float32),
                   jax.ShapeDtypeStruct((SEQ, Bn, NPIX), jnp.float32)),
    )(u_hs, fg, embg, hc0, prep['W_fused'], prep['small'])

    # back to PyTorch layout: (batch, seq, vocab), (batch, seq, num_pixels)
    preds = jnp.transpose(preds_p[:, :, :VOCAB], (1, 0, 2))
    alphas = jnp.transpose(alphas, (1, 0, 2))
    return preds, alphas


def encoder_decoder_forward(prep, images, captions):
    feats = encoder_forward(prep, images)                            # (B, P, ENC)
    emb = jnp.take(prep['emb'], captions[:, :SEQ], axis=0)           # (B, SEQ, EMBED)
    emb_seq = jnp.transpose(emb, (1, 0, 2))                          # (SEQ, B, EMBED)
    return decoder_forward(prep, feats, emb_seq)


# ===================== one-time parameter preparation =========================
def _pad2(x, rows, cols):
    return jnp.pad(x, ((0, rows - x.shape[0]), (0, cols - x.shape[1])))


def _pad_gate_cols(w):
    """(R, 4*DEC) -> (R, 4*DEC_P): pad each gate's DEC columns up to DEC_P with zeros."""
    R = w.shape[0]
    w = w.reshape(R, 4, DEC)
    w = jnp.pad(w, ((0, 0), (0, 0), (0, DEC_P - DEC)))
    return w.reshape(R, 4 * DEC_P)


def prepare_params(p):
    """Pad / gate-align / fuse all weights ONCE, outside the jitted per-call path."""
    prep = {'emb': p['emb']}
    # encoder: im2col weight matrices, K padded to x8, Cout padded to 128
    for name, wk, bk, cin in (('conv1', 'conv1_w', 'conv1_b', CIN),
                              ('conv2', 'conv2_w', 'conv2_b', C1)):
        K = 9 * cin
        Kp = _round_up(K, 8)
        cout = p[wk].shape[-1]
        prep[name + '_wp'] = jnp.pad(p[wk].reshape(K, cout),
                                     ((0, Kp - K), (0, LANE - cout)))
        prep[name + '_bp'] = jnp.pad(p[bk].reshape(1, cout),
                                     ((0, 0), (0, LANE - cout)))
    # decoder hoist weights
    prep['Wu'] = _pad2(p['Wu'], ENC, ATT_P)
    prep['bu_bw'] = _pad2(p['bu'] + p['bw'], 1, ATT_P)               # bw folded into u_hs
    prep['Wih_ctx'] = _pad_gate_cols(p['Wih'][EMBED:])               # (ENC, GATE)
    prep['Wih_emb'] = _pad_gate_cols(p['Wih'][:EMBED])               # (EMBED, GATE)
    prep['bih_bhh'] = _pad_gate_cols(p['bih'] + p['bhh'])            # (1, GATE)
    prep['W_init'] = jnp.concatenate([_pad2(p['Wh0'], ENC, DEC_P),
                                      _pad2(p['Wc0'], ENC, DEC_P)], axis=1)
    prep['b_init'] = jnp.concatenate([_pad2(p['bh0'], 1, DEC_P),
                                      _pad2(p['bc0'], 1, DEC_P)], axis=1)
    # fused per-step weight [Ww | Whh | Wfc] : (DEC_P, 768)
    prep['W_fused'] = jnp.concatenate([
        _pad2(p['Ww'], DEC_P, ATT_P),
        _pad2(_pad_gate_cols(p['Whh']), DEC_P, GATE),
        _pad2(p['Wfc'], DEC_P, VOCAB_P)], axis=1)
    # packed tiny vectors: [wa | bfc]  (attention bias 'ba' dropped: softmax shift-invariant)
    prep['small'] = jnp.concatenate([_pad2(p['Wa'].T, 1, ATT_P),
                                     _pad2(p['bfc'], 1, VOCAB_P)], axis=1)
    return prep


# ============================ pure-JAX reference ==============================
def _maxpool2(x):
    Bn, H, W, C = x.shape
    return x.reshape(Bn, H // 2, 2, W // 2, 2, C).max(axis=(2, 4))


def reference_forward(params, images, captions):
    HP = jax.lax.Precision.HIGHEST
    x = jnp.transpose(images, (0, 2, 3, 1))
    for wk, bk in (('conv1_w', 'conv1_b'), ('conv2_w', 'conv2_b')):
        x = jnp.maximum(
            jax.lax.conv_general_dilated(
                x, params[wk], (1, 1), 'SAME',
                dimension_numbers=('NHWC', 'HWIO', 'NHWC'), precision=HP)
            + params[bk], 0.0)
        x = _maxpool2(x)
    feats = x.reshape(x.shape[0], -1, ENC)
    emb = jnp.take(params['emb'], captions[:, :SEQ], axis=0)

    mean_f = feats.mean(axis=1)
    h = jnp.dot(mean_f, params['Wh0'], precision=HP) + params['bh0']
    c = jnp.dot(mean_f, params['Wc0'], precision=HP) + params['bc0']
    preds, alphas = [], []
    for s in range(SEQ):
        u_hs = jnp.einsum('bpe,ea->bpa', feats, params['Wu'], precision=HP) + params['bu']
        w_ah = jnp.dot(h, params['Ww'], precision=HP) + params['bw']
        comb = jnp.tanh(u_hs + w_ah[:, None, :])
        scores = (jnp.einsum('bpa,ao->bpo', comb, params['Wa'], precision=HP)
                  + params['ba'])[..., 0]
        alpha = jax.nn.softmax(scores, axis=-1)
        context = jnp.sum(feats * alpha[:, :, None], axis=1)
        lstm_in = jnp.concatenate([emb[:, s], context], axis=-1)
        gates = (jnp.dot(lstm_in, params['Wih'], precision=HP) + params['bih']
                 + jnp.dot(h, params['Whh'], precision=HP) + params['bhh'])
        i_g = jax.nn.sigmoid(gates[:, 0:DEC])
        f_g = jax.nn.sigmoid(gates[:, DEC:2 * DEC])
        g_g = jnp.tanh(gates[:, 2 * DEC:3 * DEC])
        o_g = jax.nn.sigmoid(gates[:, 3 * DEC:4 * DEC])
        c = f_g * c + i_g * g_g
        h = o_g * jnp.tanh(c)
        preds.append(jnp.dot(h, params['Wfc'], precision=HP) + params['bfc'])
        alphas.append(alpha)
    return jnp.stack(preds, axis=1), jnp.stack(alphas, axis=1)


# ============================ parameter init ==================================
def init_params(key):
    ks = jax.random.split(key, 20)
    r = lambda k, shp, s=0.1: (s * jax.random.normal(k, shp)).astype(jnp.float32)
    return {
        'conv1_w': r(ks[0], (3, 3, CIN, C1)),   'conv1_b': r(ks[1], (C1,)),
        'conv2_w': r(ks[2], (3, 3, C1, ENC)),   'conv2_b': r(ks[3], (ENC,)),
        'emb':     r(ks[4], (VOCAB, EMBED)),
        'Wu': r(ks[5], (ENC, ATT)),  'bu': r(ks[6], (1, ATT)),
        'Ww': r(ks[7], (DEC, ATT)),  'bw': r(ks[8], (1, ATT)),
        'Wa': r(ks[9], (ATT, 1)),    'ba': r(ks[10], (1, 1)),
        'Wh0': r(ks[11], (ENC, DEC)), 'bh0': r(ks[12], (1, DEC)),
        'Wc0': r(ks[13], (ENC, DEC)), 'bc0': r(ks[14], (1, DEC)),
        'Wih': r(ks[15], (EMBED + ENC, 4 * DEC)), 'bih': r(ks[16], (1, 4 * DEC)),
        'Whh': r(ks[17], (DEC, 4 * DEC)),         'bhh': r(ks[18], (1, 4 * DEC)),
        'Wfc': r(ks[19], (DEC, VOCAB)),
        'bfc': jnp.zeros((1, VOCAB), jnp.float32),
    }


if __name__ == "__main__":
    key = jax.random.PRNGKey(0)
    k_p, k_img, k_cap = jax.random.split(key, 3)
    params = init_params(k_p)
    images = jax.random.normal(k_img, (B, CIN, IMG, IMG), dtype=jnp.float32)
    captions = jax.random.randint(k_cap, (B, T), 0, VOCAB, dtype=jnp.int32)

    prep = prepare_params(params)                 # one-time, outside the per-call jit path
    fwd = jax.jit(encoder_decoder_forward)
    preds, alphas = fwd(prep, images, captions)
    jax.block_until_ready((preds, alphas))

    assert preds.shape == (B, SEQ, VOCAB) and alphas.shape == (B, SEQ, NPIX)

    ref_preds, ref_alphas = reference_forward(params, images, captions)
    # Reference uses HIGHEST-precision matmuls; kernels use native MXU precision, so the
    # tolerance accounts for bf16-input truncation (~0.4% relative per matmul).
    np.testing.assert_allclose(np.asarray(preds), np.asarray(ref_preds),
                               rtol=2e-2, atol=2e-2)
    np.testing.assert_allclose(np.asarray(alphas), np.asarray(ref_alphas),
                               rtol=2e-2, atol=2e-2)
    print("KERNEL_OK")
</pallas_src>

<mosaic_0001>
module attributes {stable_mosaic.version = 11 : i64} {
  func.func @_conv_pool_kernel(%arg0: i32, %arg1: memref<4x64x32xf32, #tpu.memory_space<vmem>>, %arg2: memref<32x128xf32, #tpu.memory_space<vmem>>, %arg3: memref<1x128xf32, #tpu.memory_space<vmem>>, %arg4: memref<64x128xf32, #tpu.memory_space<vmem>>) attributes {dimension_semantics = [#tpu.dimension_semantics<parallel>], iteration_bounds = array<i64: 2>, scalar_prefetch = 0 : i64, scratch_operands = 0 : i64, tpu.core_type = #tpu.core_type<tc>, window_params = [{transform_indices = @transform_0, window_bounds = array<i64: 4, 64, 32>}, {pipeline_mode = #tpu.pipeline_mode<synchronous>, transform_indices = @transform_1, window_bounds = array<i64: 32, 128>}, {pipeline_mode = #tpu.pipeline_mode<synchronous>, transform_indices = @transform_2, window_bounds = array<i64: 1, 128>}, {transform_indices = @transform_3, window_bounds = array<i64: 64, 128>}]} {
    %c0 = arith.constant 0 : index
    %c0_0 = arith.constant 0 : index
    %c0_1 = arith.constant 0 : index
    %0 = vector.load %arg1[%c0, %c0_0, %c0_1] : memref<4x64x32xf32, #tpu.memory_space<vmem>>, vector<1x64x32xf32>
    %1 = vector.shape_cast %0 : vector<1x64x32xf32> to vector<64x32xf32>
    %c0_2 = arith.constant 0 : index
    %c0_3 = arith.constant 0 : index
    %2 = vector.load %arg2[%c0_2, %c0_3] : memref<32x128xf32, #tpu.memory_space<vmem>>, vector<32x128xf32>
    %cst = arith.constant dense<0.000000e+00> : vector<64x128xf32>
    %3 = tpu.matmul %1, %2, %cst {dimension_numbers = #tpu.dot_dimension_numbers<[1], [0], [0], [1], [0, 0, 1, 1], [], []>} : vector<64x32xf32>, vector<32x128xf32>, vector<64x128xf32> -> vector<64x128xf32>
    %c1 = arith.constant 1 : index
    %c0_4 = arith.constant 0 : index
    %c0_5 = arith.constant 0 : index
    %4 = vector.load %arg1[%c1, %c0_4, %c0_5] : memref<4x64x32xf32, #tpu.memory_space<vmem>>, vector<1x64x32xf32>
    %5 = vector.shape_cast %4 : vector<1x64x32xf32> to vector<64x32xf32>
    %c0_6 = arith.constant 0 : index
    %c0_7 = arith.constant 0 : index
    %6 = vector.load %arg2[%c0_6, %c0_7] : memref<32x128xf32, #tpu.memory_space<vmem>>, vector<32x128xf32>
    %cst_8 = arith.constant dense<0.000000e+00> : vector<64x128xf32>
    %7 = tpu.matmul %5, %6, %cst_8 {dimension_numbers = #tpu.dot_dimension_numbers<[1], [0], [0], [1], [0, 0, 1, 1], [], []>} : vector<64x32xf32>, vector<32x128xf32>, vector<64x128xf32> -> vector<64x128xf32>
    %8 = arith.maximumf %3, %7 : vector<64x128xf32>
    %c2 = arith.constant 2 : index
    %c0_9 = arith.constant 0 : index
    %c0_10 = arith.constant 0 : index
    %9 = vector.load %arg1[%c2, %c0_9, %c0_10] : memref<4x64x32xf32, #tpu.memory_space<vmem>>, vector<1x64x32xf32>
    %10 = vector.shape_cast %9 : vector<1x64x32xf32> to vector<64x32xf32>
    %c0_11 = arith.constant 0 : index
    %c0_12 = arith.constant 0 : index
    %11 = vector.load %arg2[%c0_11, %c0_12] : memref<32x128xf32, #tpu.memory_space<vmem>>, vector<32x128xf32>
    %cst_13 = arith.constant dense<0.000000e+00> : vector<64x128xf32>
    %12 = tpu.matmul %10, %11, %cst_13 {dimension_numbers = #tpu.dot_dimension_numbers<[1], [0], [0], [1], [0, 0, 1, 1], [], []>} : vector<64x32xf32>, vector<32x128xf32>, vector<64x128xf32> -> vector<64x128xf32>
    %13 = arith.maximumf %8, %12 : vector<64x128xf32>
    %c3 = arith.constant 3 : index
    %c0_14 = arith.constant 0 : index
    %c0_15 = arith.constant 0 : index
    %14 = vector.load %arg1[%c3, %c0_14, %c0_15] : memref<4x64x32xf32, #tpu.memory_space<vmem>>, vector<1x64x32xf32>
    %15 = vector.shape_cast %14 : vector<1x64x32xf32> to vector<64x32xf32>
    %c0_16 = arith.constant 0 : index
    %c0_17 = arith.constant 0 : index
    %16 = vector.load %arg2[%c0_16, %c0_17] : memref<32x128xf32, #tpu.memory_space<vmem>>, vector<32x128xf32>
    %cst_18 = arith.constant dense<0.000000e+00> : vector<64x128xf32>
    %17 = tpu.matmul %15, %16, %cst_18 {dimension_numbers = #tpu.dot_dimension_numbers<[1], [0], [0], [1], [0, 0, 1, 1], [], []>} : vector<64x32xf32>, vector<32x128xf32>, vector<64x128xf32> -> vector<64x128xf32>
    %18 = arith.maximumf %13, %17 : vector<64x128xf32>
    %c0_19 = arith.constant 0 : index
    %c0_20 = arith.constant 0 : index
    %19 = vector.load %arg3[%c0_19, %c0_20] : memref<1x128xf32, #tpu.memory_space<vmem>>, vector<1x128xf32>
    %20 = vector.broadcast %19 : vector<1x128xf32> to vector<64x128xf32>
    %21 = arith.addf %18, %20 : vector<64x128xf32>
    %cst_21 = arith.constant 0.000000e+00 : f32
    %22 = vector.broadcast %cst_21 : f32 to vector<64x128xf32>
    %23 = arith.maximumf %21, %22 : vector<64x128xf32>
    %c0_22 = arith.constant 0 : index
    %c0_23 = arith.constant 0 : index
    %24 = vector.load %arg4[%c0_22, %c0_23] : memref<64x128xf32, #tpu.memory_space<vmem>>, vector<64x128xf32>
    tpu.vector_store %arg4[%c0_22, %c0_23], %23 {strides = array<i32>} : memref<64x128xf32, #tpu.memory_space<vmem>>, vector<64x128xf32>,
    return
  }
  func.func @transform_0(%arg0: i32) -> (i32, i32, i32) {
    %c0_i32 = arith.constant 0 : i32
    %c0_i32_0 = arith.constant 0 : i32
    %c0_i32_1 = arith.constant 0 : i32
    return %c0_i32, %arg0, %c0_i32_0 : i32, i32, i32
  }
  func.func @transform_1(%arg0: i32) -> (i32, i32) {
    %c0_i32 = arith.constant 0 : i32
    %c0_i32_0 = arith.constant 0 : i32
    %c0_i32_1 = arith.constant 0 : i32
    return %c0_i32, %c0_i32_0 : i32, i32
  }
  func.func @transform_2(%arg0: i32) -> (i32, i32) {
    %c0_i32 = arith.constant 0 : i32
    %c0_i32_0 = arith.constant 0 : i32
    %c0_i32_1 = arith.constant 0 : i32
    return %c0_i32, %c0_i32_0 : i32, i32
  }
  func.func @transform_3(%arg0: i32) -> (i32, i32) {
    %c0_i32 = arith.constant 0 : i32
    %c0_i32_0 = arith.constant 0 : i32
    return %arg0, %c0_i32 : i32, i32
  }
}

module attributes {stable_mosaic.version = 11 : i64} {
  func.func @_conv_pool_kernel(%arg0: i32, %arg1: memref<4x16x144xf32, #tpu.memory_space<vmem>>, %arg2: memref<144x128xf32, #tpu.memory_space<vmem>>, %arg3: memref<1x128xf32, #tpu.memory_space<vmem>>, %arg4: memref<16x128xf32, #tpu.memory_space<vmem>>) attributes {dimension_semantics = [#tpu.dimension_semantics<parallel>], iteration_bounds = array<i64: 2>, scalar_prefetch = 0 : i64, scratch_operands = 0 : i64, tpu.core_type = #tpu.core_type<tc>, window_params = [{transform_indices = @transform_0, window_bounds = array<i64: 4, 16, 144>}, {pipeline_mode = #tpu.pipeline_mode<synchronous>, transform_indices = @transform_1, window_bounds = array<i64: 144, 128>}, {pipeline_mode = #tpu.pipeline_mode<synchronous>, transform_indices = @transform_2, window_bounds = array<i64: 1, 128>}, {transform_indices = @transform_3, window_bounds = array<i64: 16, 128>}]} {
    %c0 = arith.constant 0 : index
    %c0_0 = arith.constant 0 : index
    %c0_1 = arith.constant 0 : index
    %0 = vector.load %arg1[%c0, %c0_0, %c0_1] : memref<4x16x144xf32, #tpu.memory_space<vmem>>, vector<1x16x144xf32>
    %1 = vector.shape_cast %0 : vector<1x16x144xf32> to vector<16x144xf32>
    %c0_2 = arith.constant 0 : index
    %c0_3 = arith.constant 0 : index
    %2 = vector.load %arg2[%c0_2, %c0_3] : memref<144x128xf32, #tpu.memory_space<vmem>>, vector<144x128xf32>
    %cst = arith.constant dense<0.000000e+00> : vector<16x128xf32>
    %3 = tpu.matmul %1, %2, %cst {dimension_numbers = #tpu.dot_dimension_numbers<[1], [0], [0], [1], [0, 0, 1, 1], [], []>} : vector<16x144xf32>, vector<144x128xf32>, vector<16x128xf32> -> vector<16x128xf32>
    %c1 = arith.constant 1 : index
    %c0_4 = arith.constant 0 : index
    %c0_5 = arith.constant 0 : index
    %4 = vector.load %arg1[%c1, %c0_4, %c0_5] : memref<4x16x144xf32, #tpu.memory_space<vmem>>, vector<1x16x144xf32>
    %5 = vector.shape_cast %4 : vector<1x16x144xf32> to vector<16x144xf32>
    %c0_6 = arith.constant 0 : index
    %c0_7 = arith.constant 0 : index
    %6 = vector.load %arg2[%c0_6, %c0_7] : memref<144x128xf32, #tpu.memory_space<vmem>>, vector<144x128xf32>
    %cst_8 = arith.constant dense<0.000000e+00> : vector<16x128xf32>
    %7 = tpu.matmul %5, %6, %cst_8 {dimension_numbers = #tpu.dot_dimension_numbers<[1], [0], [0], [1], [0, 0, 1, 1], [], []>} : vector<16x144xf32>, vector<144x128xf32>, vector<16x128xf32> -> vector<16x128xf32>
    %8 = arith.maximumf %3, %7 : vector<16x128xf32>
    %c2 = arith.constant 2 : index
    %c0_9 = arith.constant 0 : index
    %c0_10 = arith.constant 0 : index
    %9 = vector.load %arg1[%c2, %c0_9, %c0_10] : memref<4x16x144xf32, #tpu.memory_space<vmem>>, vector<1x16x144xf32>
    %10 = vector.shape_cast %9 : vector<1x16x144xf32> to vector<16x144xf32>
    %c0_11 = arith.constant 0 : index
    %c0_12 = arith.constant 0 : index
    %11 = vector.load %arg2[%c0_11, %c0_12] : memref<144x128xf32, #tpu.memory_space<vmem>>, vector<144x128xf32>
    %cst_13 = arith.constant dense<0.000000e+00> : vector<16x128xf32>
    %12 = tpu.matmul %10, %11, %cst_13 {dimension_numbers = #tpu.dot_dimension_numbers<[1], [0], [0], [1], [0, 0, 1, 1], [], []>} : vector<16x144xf32>, vector<144x128xf32>, vector<16x128xf32> -> vector<16x128xf32>
    %13 = arith.maximumf %8, %12 : vector<16x128xf32>
    %c3 = arith.constant 3 : index
    %c0_14 = arith.constant 0 : index
    %c0_15 = arith.constant 0 : index
    %14 = vector.load %arg1[%c3, %c0_14, %c0_15] : memref<4x16x144xf32, #tpu.memory_space<vmem>>, vector<1x16x144xf32>
    %15 = vector.shape_cast %14 : vector<1x16x144xf32> to vector<16x144xf32>
    %c0_16 = arith.constant 0 : index
    %c0_17 = arith.constant 0 : index
    %16 = vector.load %arg2[%c0_16, %c0_17] : memref<144x128xf32, #tpu.memory_space<vmem>>, vector<144x128xf32>
    %cst_18 = arith.constant dense<0.000000e+00> : vector<16x128xf32>
    %17 = tpu.matmul %15, %16, %cst_18 {dimension_numbers = #tpu.dot_dimension_numbers<[1], [0], [0], [1], [0, 0, 1, 1], [], []>} : vector<16x144xf32>, vector<144x128xf32>, vector<16x128xf32> -> vector<16x128xf32>
    %18 = arith.maximumf %13, %17 : vector<16x128xf32>
    %c0_19 = arith.constant 0 : index
    %c0_20 = arith.constant 0 : index
    %19 = vector.load %arg3[%c0_19, %c0_20] : memref<1x128xf32, #tpu.memory_space<vmem>>, vector<1x128xf32>
    %20 = vector.broadcast %19 : vector<1x128xf32> to vector<16x128xf32>
    %21 = arith.addf %18, %20 : vector<16x128xf32>
    %cst_21 = arith.constant 0.000000e+00 : f32
    %22 = vector.broadcast %cst_21 : f32 to vector<16x128xf32>
    %23 = arith.maximumf %21, %22 : vector<16x128xf32>
    %c0_22 = arith.constant 0 : index
    %c0_23 = arith.constant 0 : index
    %24 = vector.load %arg4[%c0_22, %c0_23] : memref<16x128xf32, #tpu.memory_space<vmem>>, vector<16x128xf32>
    tpu.vector_store %arg4[%c0_22, %c0_23], %23 {strides = array<i32>} : memref<16x128xf32, #tpu.memory_space<vmem>>, vector<16x128xf32>,
    return
  }
  func.func @transform_0(%arg0: i32) -> (i32, i32, i32) {
    %c0_i32 = arith.constant 0 : i32
    %c0_i32_0 = arith.constant 0 : i32
    %c0_i32_1 = arith.constant 0 : i32
    return %c0_i32, %arg0, %c0_i32_0 : i32, i32, i32
  }
  func.func @transform_1(%arg0: i32) -> (i32, i32) {
    %c0_i32 = arith.constant 0 : i32
    %c0_i32_0 = arith.constant 0 : i32
    %c0_i32_1 = arith.constant 0 : i32
    return %c0_i32, %c0_i32_0 : i32, i32
  }
  func.func @transform_2(%arg0: i32) -> (i32, i32) {
    %c0_i32 = arith.constant 0 : i32
    %c0_i32_0 = arith.constant 0 : i32
    %c0_i32_1 = arith.constant 0 : i32
    return %c0_i32, %c0_i32_0 : i32, i32
  }
  func.func @transform_3(%arg0: i32) -> (i32, i32) {
    %c0_i32 = arith.constant 0 : i32
    %c0_i32_0 = arith.constant 0 : i32
    return %arg0, %c0_i32 : i32, i32
  }
}

module attributes {stable_mosaic.version = 11 : i64} {
  func.func @_decoder_kernel(%arg0: memref<2x16x128xf32, #tpu.memory_space<vmem>>, %arg1: memref<2x16x512xf32, #tpu.memory_space<vmem>>, %arg2: memref<7x2x512xf32, #tpu.memory_space<vmem>>, %arg3: memref<2x256xf32, #tpu.memory_space<vmem>>, %arg4: memref<128x768xf32, #tpu.memory_space<vmem>>, %arg5: memref<1x256xf32, #tpu.memory_space<vmem>>, %arg6: memref<7x2x128xf32, #tpu.memory_space<vmem>>, %arg7: memref<7x2x16xf32, #tpu.memory_space<vmem>>) attributes {dimension_semantics = [], scalar_prefetch = 0 : i64, scratch_operands = 0 : i64, tpu.core_type = #tpu.core_type<tc>} {
    %c0 = arith.constant 0 : index
    %c0_0 = arith.constant 0 : index
    %0 = vector.load %arg3[%c0, %c0_0] : memref<2x256xf32, #tpu.memory_space<vmem>>, vector<2x256xf32>
    %1 = vector.extract_strided_slice %0 {offsets = [0, 0], sizes = [2, 128], strides = [1, 1]} : vector<2x256xf32> to vector<2x128xf32>
    %2 = vector.extract_strided_slice %0 {offsets = [0, 128], sizes = [2, 128], strides = [1, 1]} : vector<2x256xf32> to vector<2x128xf32>
    %c0_1 = arith.constant 0 : index
    %c0_2 = arith.constant 0 : index
    %3 = vector.load %arg4[%c0_1, %c0_2] : memref<128x768xf32, #tpu.memory_space<vmem>>, vector<128x768xf32>
    %cst = arith.constant dense<0.000000e+00> : vector<2x768xf32>
    %4 = tpu.matmul %1, %3, %cst {dimension_numbers = #tpu.dot_dimension_numbers<[1], [0], [0], [1], [0, 0, 1, 1], [], []>} : vector<2x128xf32>, vector<128x768xf32>, vector<2x768xf32> -> vector<2x768xf32>
    %5 = vector.extract_strided_slice %4 {offsets = [0, 0], sizes = [2, 128], strides = [1, 1]} : vector<2x768xf32> to vector<2x128xf32>
    %c0_3 = arith.constant 0 : index
    %c0_4 = arith.constant 0 : index
    %c0_5 = arith.constant 0 : index
    %6 = vector.load %arg0[%c0_3, %c0_4, %c0_5] : memref<2x16x128xf32, #tpu.memory_space<vmem>>, vector<2x16x128xf32>
    %7 = vector.shape_cast %5 : vector<2x128xf32> to vector<2x1x128xf32>
    %8 = vector.broadcast %7 : vector<2x1x128xf32> to vector<2x16x128xf32>
    %9 = arith.addf %6, %8 : vector<2x16x128xf32>
    %10 = math.tanh %9 : vector<2x16x128xf32>
    %c0_6 = arith.constant 0 : index
    %c0_7 = arith.constant 0 : index
    %11 = vector.load %arg5[%c0_6, %c0_7] : memref<1x256xf32, #tpu.memory_space<vmem>>, vector<1x128xf32>
    %12 = vector.shape_cast %11 : vector<1x128xf32> to vector<1x1x128xf32>
    %13 = vector.broadcast %12 : vector<1x1x128xf32> to vector<2x16x128xf32>
    %14 = arith.mulf %10, %13 : vector<2x16x128xf32>
    %cst_8 = arith.constant dense<0.000000e+00> : vector<2x16xf32>
    %15 = vector.multi_reduction <add>, %14, %cst_8 [2] : vector<2x16x128xf32> to vector<2x16xf32>
    %cst_9 = arith.constant dense<0xFF800000> : vector<2xf32>
    %16 = vector.multi_reduction <maximumf>, %15, %cst_9 [1] : vector<2x16xf32> to vector<2xf32>
    %17 = vector.shape_cast %16 : vector<2xf32> to vector<2x1xf32>
    %18 = vector.broadcast %17 : vector<2x1xf32> to vector<2x16xf32>
    %19 = arith.subf %15, %18 : vector<2x16xf32>
    %20 = math.exp %19 : vector<2x16xf32>
    %cst_10 = arith.constant dense<0.000000e+00> : vector<2xf32>
    %21 = vector.multi_reduction <add>, %20, %cst_10 [1] : vector<2x16xf32> to vector<2xf32>
    %22 = vector.shape_cast %21 : vector<2xf32> to vector<2x1xf32>
    %23 = tpu.reciprocal %22 {approx = true} : vector<2x1xf32> -> vector<2x1xf32>
    %24 = vector.broadcast %23 : vector<2x1xf32> to vector<2x16xf32>
    %25 = arith.mulf %20, %24 : vector<2x16xf32>
    %26 = vector.shape_cast %25 : vector<2x16xf32> to vector<2x16x1xf32>
    %c0_11 = arith.constant 0 : index
    %c0_12 = arith.constant 0 : index
    %c0_13 = arith.constant 0 : index
    %27 = vector.load %arg1[%c0_11, %c0_12, %c0_13] : memref<2x16x512xf32, #tpu.memory_space<vmem>>, vector<2x16x512xf32>
    %28 = vector.broadcast %26 : vector<2x16x1xf32> to vector<2x16x512xf32>
    %29 = arith.mulf %28, %27 : vector<2x16x512xf32>
    %cst_14 = arith.constant dense<0.000000e+00> : vector<2x512xf32>
    %30 = vector.multi_reduction <add>, %29, %cst_14 [1] : vector<2x16x512xf32> to vector<2x512xf32>
    %c0_15 = arith.constant 0 : index
    %c0_16 = arith.constant 0 : index
    %c0_17 = arith.constant 0 : index
    %31 = vector.load %arg2[%c0_15, %c0_16, %c0_17] : memref<7x2x512xf32, #tpu.memory_space<vmem>>, vector<1x2x512xf32>
    %32 = vector.shape_cast %31 : vector<1x2x512xf32> to vector<2x512xf32>
    %33 = arith.addf %32, %30 : vector<2x512xf32>
    %34 = vector.extract_strided_slice %4 {offsets = [0, 128], sizes = [2, 512], strides = [1, 1]} : vector<2x768xf32> to vector<2x512xf32>
    %35 = arith.addf %33, %34 : vector<2x512xf32>
    %36 = vector.extract_strided_slice %35 {offsets = [0, 0], sizes = [2, 128], strides = [1, 1]} : vector<2x512xf32> to vector<2x128xf32>
    %37 = arith.negf %36 : vector<2x128xf32>
    %38 = math.exp %37 : vector<2x128xf32>
    %cst_18 = arith.constant 1.000000e+00 : f32
    %39 = vector.broadcast %cst_18 : f32 to vector<2x128xf32>
    %40 = arith.addf %39, %38 : vector<2x128xf32>
    %41 = arith.divf %39, %40 : vector<2x128xf32>
    %42 = vector.extract_strided_slice %35 {offsets = [0, 128], sizes = [2, 128], strides = [1, 1]} : vector<2x512xf32> to vector<2x128xf32>
    %43 = arith.negf %42 : vector<2x128xf32>
    %44 = math.exp %43 : vector<2x128xf32>
    %cst_19 = arith.constant 1.000000e+00 : f32
    %45 = vector.broadcast %cst_19 : f32 to vector<2x128xf32>
    %46 = arith.addf %45, %44 : vector<2x128xf32>
    %47 = arith.divf %45, %46 : vector<2x128xf32>
    %48 = vector.extract_strided_slice %35 {offsets = [0, 256], sizes = [2, 128], strides = [1, 1]} : vector<2x512xf32> to vector<2x128xf32>
    %49 = math.tanh %48 : vector<2x128xf32>
    %50 = vector.extract_strided_slice %35 {offsets = [0, 384], sizes = [2, 128], strides = [1, 1]} : vector<2x512xf32> to vector<2x128xf32>
    %51 = arith.negf %50 : vector<2x128xf32>
    %52 = math.exp %51 : vector<2x128xf32>
    %cst_20 = arith.constant 1.000000e+00 : f32
    %53 = vector.broadcast %cst_20 : f32 to vector<2x128xf32>
    %54 = arith.addf %53, %52 : vector<2x128xf32>
    %55 = arith.divf %53, %54 : vector<2x128xf32>
    %56 = arith.mulf %47, %2 : vector<2x128xf32>
    %57 = arith.mulf %41, %49 : vector<2x128xf32>
    %58 = arith.addf %56, %57 : vector<2x128xf32>
    %59 = math.tanh %58 : vector<2x128xf32>
    %60 = arith.mulf %55, %59 : vector<2x128xf32>
    %c0_21 = arith.constant 0 : index
    %c0_22 = arith.constant 0 : index
    %c0_23 = arith.constant 0 : index
    %61 = vector.load %arg7[%c0_21, %c0_22, %c0_23] : memref<7x2x16xf32, #tpu.memory_space<vmem>>, vector<1x2x16xf32>
    %62 = vector.shape_cast %61 : vector<1x2x16xf32> to vector<2x16xf32>
    %63 = vector.shape_cast %25 : vector<2x16xf32> to vector<1x2x16xf32>
    tpu.vector_store %arg7[%c0_21, %c0_22, %c0_23], %63 {strides = array<i32>} : memref<7x2x16xf32, #tpu.memory_space<vmem>>, vector<1x2x16xf32>,
    %c0_24 = arith.constant 0 : index
    %c0_25 = arith.constant 0 : index
    %64 = vector.load %arg4[%c0_24, %c0_25] : memref<128x768xf32, #tpu.memory_space<vmem>>, vector<128x768xf32>
    %cst_26 = arith.constant dense<0.000000e+00> : vector<2x768xf32>
    %65 = tpu.matmul %60, %64, %cst_26 {dimension_numbers = #tpu.dot_dimension_numbers<[1], [0], [0], [1], [0, 0, 1, 1], [], []>} : vector<2x128xf32>, vector<128x768xf32>, vector<2x768xf32> -> vector<2x768xf32>
    %66 = vector.extract_strided_slice %65 {offsets = [0, 640], sizes = [2, 128], strides = [1, 1]} : vector<2x768xf32> to vector<2x128xf32>
    %c0_27 = arith.constant 0 : index
    %c128 = arith.constant 128 : index
    %67 = vector.load %arg5[%c0_27, %c128] : memref<1x256xf32, #tpu.memory_space<vmem>>, vector<1x128xf32>
    %68 = vector.broadcast %67 : vector<1x128xf32> to vector<2x128xf32>
    %69 = arith.addf %66, %68 : vector<2x128xf32>
    %c0_28 = arith.constant 0 : index
    %c0_29 = arith.constant 0 : index
    %c0_30 = arith.constant 0 : index
    %70 = vector.load %arg6[%c0_28, %c0_29, %c0_30] : memref<7x2x128xf32, #tpu.memory_space<vmem>>, vector<1x2x128xf32>
    %71 = vector.shape_cast %70 : vector<1x2x128xf32> to vector<2x128xf32>
    %72 = vector.shape_cast %69 : vector<2x128xf32> to vector<1x2x128xf32>
    tpu.vector_store %arg6[%c0_28, %c0_29, %c0_30], %72 {strides = array<i32>} : memref<7x2x128xf32, #tpu.memory_space<vmem>>, vector<1x2x128xf32>,
    %73 = vector.extract_strided_slice %65 {offsets = [0, 0], sizes = [2, 128], strides = [1, 1]} : vector<2x768xf32> to vector<2x128xf32>
    %c0_31 = arith.constant 0 : index
    %c0_32 = arith.constant 0 : index
    %c0_33 = arith.constant 0 : index
    %74 = vector.load %arg0[%c0_31, %c0_32, %c0_33] : memref<2x16x128xf32, #tpu.memory_space<vmem>>, vector<2x16x128xf32>
    %75 = vector.shape_cast %73 : vector<2x128xf32> to vector<2x1x128xf32>
    %76 = vector.broadcast %75 : vector<2x1x128xf32> to vector<2x16x128xf32>
    %77 = arith.addf %74, %76 : vector<2x16x128xf32>
    %78 = math.tanh %77 : vector<2x16x128xf32>
    %c0_34 = arith.constant 0 : index
    %c0_35 = arith.constant 0 : index
    %79 = vector.load %arg5[%c0_34, %c0_35] : memref<1x256xf32, #tpu.memory_space<vmem>>, vector<1x128xf32>
    %80 = vector.shape_cast %79 : vector<1x128xf32> to vector<1x1x128xf32>
    %81 = vector.broadcast %80 : vector<1x1x128xf32> to vector<2x16x128xf32>
    %82 = arith.mulf %78, %81 : vector<2x16x128xf32>
    %cst_36 = arith.constant dense<0.000000e+00> : vector<2x16xf32>
    %83 = vector.multi_reduction <add>, %82, %cst_36 [2] : vector<2x16x128xf32> to vector<2x16xf32>
    %cst_37 = arith.constant dense<0xFF800000> : vector<2xf32>
    %84 = vector.multi_reduction <maximumf>, %83, %cst_37 [1] : vector<2x16xf32> to vector<2xf32>
    %85 = vector.shape_cast %84 : vector<2xf32> to vector<2x1xf32>
    %86 = vector.broadcast %85 : vector<2x1xf32> to vector<2x16xf32>
    %87 = arith.subf %83, %86 : vector<2x16xf32>
    %88 = math.exp %87 : vector<2x16xf32>
    %cst_38 = arith.constant dense<0.000000e+00> : vector<2xf32>
    %89 = vector.multi_reduction <add>, %88, %cst_38 [1] : vector<2x16xf32> to vector<2xf32>
    %90 = vector.shape_cast %89 : vector<2xf32> to vector<2x1xf32>
    %91 = tpu.reciprocal %90 {approx = true} : vector<2x1xf32> -> vector<2x1xf32>
    %92 = vector.broadcast %91 : vector<2x1xf32> to vector<2x16xf32>
    %93 = arith.mulf %88, %92 : vector<2x16xf32>
    %94 = vector.shape_cast %93 : vector<2x16xf32> to vector<2x16x1xf32>
    %c0_39 = arith.constant 0 : index
    %c0_40 = arith.constant 0 : index
    %c0_41 = arith.constant 0 : index
    %95 = vector.load %arg1[%c0_39, %c0_40, %c0_41] : memref<2x16x512xf32, #tpu.memory_space<vmem>>, vector<2x16x512xf32>
    %96 = vector.broadcast %94 : vector<2x16x1xf32> to vector<2x16x512xf32>
    %97 = arith.mulf %96, %95 : vector<2x16x512xf32>
    %cst_42 = arith.constant dense<0.000000e+00> : vector<2x512xf32>
    %98 = vector.multi_reduction <add>, %97, %cst_42 [1] : vector<2x16x512xf32> to vector<2x512xf32>
    %c1 = arith.constant 1 : index
    %c0_43 = arith.constant 0 : index
    %c0_44 = arith.constant 0 : index
    %99 = vector.load %arg2[%c1, %c0_43, %c0_44] : memref<7x2x512xf32, #tpu.memory_space<vmem>>, vector<1x2x512xf32>
    %100 = vector.shape_cast %99 : vector<1x2x512xf32> to vector<2x512xf32>
    %101 = arith.addf %100, %98 : vector<2x512xf32>
    %102 = vector.extract_strided_slice %65 {offsets = [0, 128], sizes = [2, 512], strides = [1, 1]} : vector<2x768xf32> to vector<2x512xf32>
    %103 = arith.addf %101, %102 : vector<2x512xf32>
    %104 = vector.extract_strided_slice %103 {offsets = [0, 0], sizes = [2, 128], strides = [1, 1]} : vector<2x512xf32> to vector<2x128xf32>
    %105 = arith.negf %104 : vector<2x128xf32>
    %106 = math.exp %105 : vector<2x128xf32>
    %cst_45 = arith.constant 1.000000e+00 : f32
    %107 = vector.broadcast %cst_45 : f32 to vector<2x128xf32>
    %108 = arith.addf %107, %106 : vector<2x128xf32>
    %109 = arith.divf %107, %108 : vector<2x128xf32>
    %110 = vector.extract_strided_slice %103 {offsets = [0, 128], sizes = [2, 128], strides = [1, 1]} : vector<2x512xf32> to vector<2x128xf32>
    %111 = arith.negf %110 : vector<2x128xf32>
    %112 = math.exp %111 : vector<2x128xf32>
    %cst_46 = arith.constant 1.000000e+00 : f32
    %113 = vector.broadcast %cst_46 : f32 to vector<2x128xf32>
    %114 = arith.addf %113, %112 : vector<2x128xf32>
    %115 = arith.divf %113, %114 : vector<2x128xf32>
    %116 = vector.extract_strided_slice %103 {offsets = [0, 256], sizes = [2, 128], strides = [1, 1]} : vector<2x512xf32> to vector<2x128xf32>
    %117 = math.tanh %116 : vector<2x128xf32>
    %118 = vector.extract_strided_slice %103 {offsets = [0, 384], sizes = [2, 128], strides = [1, 1]} : vector<2x512xf32> to vector<2x128xf32>
    %119 = arith.negf %118 : vector<2x128xf32>
    %120 = math.exp %119 : vector<2x128xf32>
    %cst_47 = arith.constant 1.000000e+00 : f32
    %121 = vector.broadcast %cst_47 : f32 to vector<2x128xf32>
    %122 = arith.addf %121, %120 : vector<2x128xf32>
    %123 = arith.divf %121, %122 : vector<2x128xf32>
    %124 = arith.mulf %115, %58 : vector<2x128xf32>
    %125 = arith.mulf %109, %117 : vector<2x128xf32>
    %126 = arith.addf %124, %125 : vector<2x128xf32>
    %127 = math.tanh %126 : vector<2x128xf32>
    %128 = arith.mulf %123, %127 : vector<2x128xf32>
    %c1_48 = arith.constant 1 : index
    %c0_49 = arith.constant 0 : index
    %c0_50 = arith.constant 0 : index
    %129 = vector.load %arg7[%c1_48, %c0_49, %c0_50] : memref<7x2x16xf32, #tpu.memory_space<vmem>>, vector<1x2x16xf32>
    %130 = vector.shape_cast %129 : vector<1x2x16xf32> to vector<2x16xf32>
    %131 = vector.shape_cast %93 : vector<2x16xf32> to vector<1x2x16xf32>
    tpu.vector_store %arg7[%c1_48, %c0_49, %c0_50], %131 {strides = array<i32>} : memref<7x2x16xf32, #tpu.memory_space<vmem>>, vector<1x2x16xf32>,
    %c0_51 = arith.constant 0 : index
    %c0_52 = arith.constant 0 : index
    %132 = vector.load %arg4[%c0_51, %c0_52] : memref<128x768xf32, #tpu.memory_space<vmem>>, vector<128x768xf32>
    %cst_53 = arith.constant dense<0.000000e+00> : vector<2x768xf32>
    %133 = tpu.matmul %128, %132, %cst_53 {dimension_numbers = #tpu.dot_dimension_numbers<[1], [0], [0], [1], [0, 0, 1, 1], [], []>} : vector<2x128xf32>, vector<128x768xf32>, vector<2x768xf32> -> vector<2x768xf32>
    %134 = vector.extract_strided_slice %133 {offsets = [0, 640], sizes = [2, 128], strides = [1, 1]} : vector<2x768xf32> to vector<2x128xf32>
    %c0_54 = arith.constant 0 : index
    %c128_55 = arith.constant 128 : index
    %135 = vector.load %arg5[%c0_54, %c128_55] : memref<1x256xf32, #tpu.memory_space<vmem>>, vector<1x128xf32>
    %136 = vector.broadcast %135 : vector<1x128xf32> to vector<2x128xf32>
    %137 = arith.addf %134, %136 : vector<2x128xf32>
    %c1_56 = arith.constant 1 : index
    %c0_57 = arith.constant 0 : index
    %c0_58 = arith.constant 0 : index
    %138 = vector.load %arg6[%c1_56, %c0_57, %c0_58] : memref<7x2x128xf32, #tpu.memory_space<vmem>>, vector<1x2x128xf32>
    %139 = vector.shape_cast %138 : vector<1x2x128xf32> to vector<2x128xf32>
    %140 = vector.shape_cast %137 : vector<2x128xf32> to vector<1x2x128xf32>
    tpu.vector_store %arg6[%c1_56, %c0_57, %c0_58], %140 {strides = array<i32>} : memref<7x2x128xf32, #tpu.memory_space<vmem>>, vector<1x2x128xf32>,
    %141 = vector.extract_strided_slice %133 {offsets = [0, 0], sizes = [2, 128], strides = [1, 1]} : vector<2x768xf32> to vector<2x128xf32>
    %c0_59 = arith.constant 0 : index
    %c0_60 = arith.constant 0 : index
    %c0_61 = arith.constant 0 : index
    %142 = vector.load %arg0[%c0_59, %c0_60, %c0_61] : memref<2x16x128xf32, #tpu.memory_space<vmem>>, vector<2x16x128xf32>
    %143 = vector.shape_cast %141 : vector<2x128xf32> to vector<2x1x128xf32>
    %144 = vector.broadcast %143 : vector<2x1x128xf32> to vector<2x16x128xf32>
    %145 = arith.addf %142, %144 : vector<2x16x128xf32>
    %146 = math.tanh %145 : vector<2x16x128xf32>
    %c0_62 = arith.constant 0 : index
    %c0_63 = arith.constant 0 : index
    %147 = vector.load %arg5[%c0_62, %c0_63] : memref<1x256xf32, #tpu.memory_space<vmem>>, vector<1x128xf32>
    %148 = vector.shape_cast %147 : vector<1x128xf32> to vector<1x1x128xf32>
    %149 = vector.broadcast %148 : vector<1x1x128xf32> to vector<2x16x128xf32>
    %150 = arith.mulf %146, %149 : vector<2x16x128xf32>
    %cst_64 = arith.constant dense<0.000000e+00> : vector<2x16xf32>
    %151 = vector.multi_reduction <add>, %150, %cst_64 [2] : vector<2x16x128xf32> to vector<2x16xf32>
    %cst_65 = arith.constant dense<0xFF800000> : vector<2xf32>
    %152 = vector.multi_reduction <maximumf>, %151, %cst_65 [1] : vector<2x16xf32> to vector<2xf32>
    %153 = vector.shape_cast %152 : vector<2xf32> to vector<2x1xf32>
    %154 = vector.broadcast %153 : vector<2x1xf32> to vector<2x16xf32>
    %155 = arith.subf %151, %154 : vector<2x16xf32>
    %156 = math.exp %155 : vector<2x16xf32>
    %cst_66 = arith.constant dense<0.000000e+00> : vector<2xf32>
    %157 = vector.multi_reduction <add>, %156, %cst_66 [1] : vector<2x16xf32> to vector<2xf32>
    %158 = vector.shape_cast %157 : vector<2xf32> to vector<2x1xf32>
    %159 = tpu.reciprocal %158 {approx = true} : vector<2x1xf32> -> vector<2x1xf32>
    %160 = vector.broadcast %159 : vector<2x1xf32> to vector<2x16xf32>
    %161 = arith.mulf %156, %160 : vector<2x16xf32>
    %162 = vector.shape_cast %161 : vector<2x16xf32> to vector<2x16x1xf32>
    %c0_67 = arith.constant 0 : index
    %c0_68 = arith.constant 0 : index
    %c0_69 = arith.constant 0 : index
    %163 = vector.load %arg1[%c0_67, %c0_68, %c0_69] : memref<2x16x512xf32, #tpu.memory_space<vmem>>, vector<2x16x512xf32>
    %164 = vector.broadcast %162 : vector<2x16x1xf32> to vector<2x16x512xf32>
    %165 = arith.mulf %164, %163 : vector<2x16x512xf32>
    %cst_70 = arith.constant dense<0.000000e+00> : vector<2x512xf32>
    %166 = vector.multi_reduction <add>, %165, %cst_70 [1] : vector<2x16x512xf32> to vector<2x512xf32>
    %c2 = arith.constant 2 : index
    %c0_71 = arith.constant 0 : index
    %c0_72 = arith.constant 0 : index
    %167 = vector.load %arg2[%c2, %c0_71, %c0_72] : memref<7x2x512xf32, #tpu.memory_space<vmem>>, vector<1x2x512xf32>
    %168 = vector.shape_cast %167 : vector<1x2x512xf32> to vector<2x512xf32>
    %169 = arith.addf %168, %166 : vector<2x512xf32>
    %170 = vector.extract_strided_slice %133 {offsets = [0, 128], sizes = [2, 512], strides = [1, 1]} : vector<2x768xf32> to vector<2x512xf32>
    %171 = arith.addf %169, %170 : vector<2x512xf32>
    %172 = vector.extract_strided_slice %171 {offsets = [0, 0], sizes = [2, 128], strides = [1, 1]} : vector<2x512xf32> to vector<2x128xf32>
    %173 = arith.negf %172 : vector<2x128xf32>
    %174 = math.exp %173 : vector<2x128xf32>
    %cst_73 = arith.constant 1.000000e+00 : f32
    %175 = vector.broadcast %cst_73 : f32 to vector<2x128xf32>
    %176 = arith.addf %175, %174 : vector<2x128xf32>
    %177 = arith.divf %175, %176 : vector<2x128xf32>
    %178 = vector.extract_strided_slice %171 {offsets = [0, 128], sizes = [2, 128], strides = [1, 1]} : vector<2x512xf32> to vector<2x128xf32>
    %179 = arith.negf %178 : vector<2x128xf32>
    %180 = math.exp %179 : vector<2x128xf32>
    %cst_74 = arith.constant 1.000000e+00 : f32
    %181 = vector.broadcast %cst_74 : f32 to vector<2x128xf32>
    %182 = arith.addf %181, %180 : vector<2x128xf32>
    %183 = arith.divf %181, %182 : vector<2x128xf32>
    %184 = vector.extract_strided_slice %171 {offsets = [0, 256], sizes = [2, 128], strides = [1, 1]} : vector<2x512xf32> to vector<2x128xf32>
    %185 = math.tanh %184 : vector<2x128xf32>
    %186 = vector.extract_strided_slice %171 {offsets = [0, 384], sizes = [2, 128], strides = [1, 1]} : vector<2x512xf32> to vector<2x128xf32>
    %187 = arith.negf %186 : vector<2x128xf32>
    %188 = math.exp %187 : vector<2x128xf32>
    %cst_75 = arith.constant 1.000000e+00 : f32
    %189 = vector.broadcast %cst_75 : f32 to vector<2x128xf32>
    %190 = arith.addf %189, %188 : vector<2x128xf32>
    %191 = arith.divf %189, %190 : vector<2x128xf32>
    %192 = arith.mulf %183, %126 : vector<2x128xf32>
    %193 = arith.mulf %177, %185 : vector<2x128xf32>
    %194 = arith.addf %192, %193 : vector<2x128xf32>
    %195 = math.tanh %194 : vector<2x128xf32>
    %196 = arith.mulf %191, %195 : vector<2x128xf32>
    %c2_76 = arith.constant 2 : index
    %c0_77 = arith.constant 0 : index
    %c0_78 = arith.constant 0 : index
    %197 = vector.load %arg7[%c2_76, %c0_77, %c0_78] : memref<7x2x16xf32, #tpu.memory_space<vmem>>, vector<1x2x16xf32>
    %198 = vector.shape_cast %197 : vector<1x2x16xf32> to vector<2x16xf32>
    %199 = vector.shape_cast %161 : vector<2x16xf32> to vector<1x2x16xf32>
    tpu.vector_store %arg7[%c2_76, %c0_77, %c0_78], %199 {strides = array<i32>} : memref<7x2x16xf32, #tpu.memory_space<vmem>>, vector<1x2x16xf32>,
    %c0_79 = arith.constant 0 : index
    %c0_80 = arith.constant 0 : index
    %200 = vector.load %arg4[%c0_79, %c0_80] : memref<128x768xf32, #tpu.memory_space<vmem>>, vector<128x768xf32>
    %cst_81 = arith.constant dense<0.000000e+00> : vector<2x768xf32>
    %201 = tpu.matmul %196, %200, %cst_81 {dimension_numbers = #tpu.dot_dimension_numbers<[1], [0], [0], [1], [0, 0, 1, 1], [], []>} : vector<2x128xf32>, vector<128x768xf32>, vector<2x768xf32> -> vector<2x768xf32>
    %202 = vector.extract_strided_slice %201 {offsets = [0, 640], sizes = [2, 128], strides = [1, 1]} : vector<2x768xf32> to vector<2x128xf32>
    %c0_82 = arith.constant 0 : index
    %c128_83 = arith.constant 128 : index
    %203 = vector.load %arg5[%c0_82, %c128_83] : memref<1x256xf32, #tpu.memory_space<vmem>>, vector<1x128xf32>
    %204 = vector.broadcast %203 : vector<1x128xf32> to vector<2x128xf32>
    %205 = arith.addf %202, %204 : vector<2x128xf32>
    %c2_84 = arith.constant 2 : index
    %c0_85 = arith.constant 0 : index
    %c0_86 = arith.constant 0 : index
    %206 = vector.load %arg6[%c2_84, %c0_85, %c0_86] : memref<7x2x128xf32, #tpu.memory_space<vmem>>, vector<1x2x128xf32>
    %207 = vector.shape_cast %206 : vector<1x2x128xf32> to vector<2x128xf32>
    %208 = vector.shape_cast %205 : vector<2x128xf32> to vector<1x2x128xf32>
    tpu.vector_store %arg6[%c2_84, %c0_85, %c0_86], %208 {strides = array<i32>} : memref<7x2x128xf32, #tpu.memory_space<vmem>>, vector<1x2x128xf32>,
    %209 = vector.extract_strided_slice %201 {offsets = [0, 0], sizes = [2, 128], strides = [1, 1]} : vector<2x768xf32> to vector<2x128xf32>
    %c0_87 = arith.constant 0 : index
    %c0_88 = arith.constant 0 : index
    %c0_89 = arith.constant 0 : index
    %210 = vector.load %arg0[%c0_87, %c0_88, %c0_89] : memref<2x16x128xf32, #tpu.memory_space<vmem>>, vector<2x16x128xf32>
    %211 = vector.shape_cast %209 : vector<2x128xf32> to vector<2x1x128xf32>
    %212 = vector.broadcast %211 : vector<2x1x128xf32> to vector<2x16x128xf32>
    %213 = arith.addf %210, %212 : vector<2x16x128xf32>
    %214 = math.tanh %213 : vector<2x16x128xf32>
    %c0_90 = arith.constant 0 : index
    %c0_91 = arith.constant 0 : index
    %215 = vector.load %arg5[%c0_90, %c0_91] : memref<1x256xf32, #tpu.memory_space<vmem>>, vector<1x128xf32>
    %216 = vector.shape_cast %215 : vector<1x128xf32> to vector<1x1x128xf32>
    %217 = vector.broadcast %216 : vector<1x1x128xf32> to vector<2x16x128xf32>
    %218 = arith.mulf %214, %217 : vector<2x16x128xf32>
    %cst_92 = arith.constant dense<0.000000e+00> : vector<2x16xf32>
    %219 = vector.multi_reduction <add>, %218, %cst_92 [2] : vector<2x16x128xf32> to vector<2x16xf32>
    %cst_93 = arith.constant dense<0xFF800000> : vector<2xf32>
    %220 = vector.multi_reduction <maximumf>, %219, %cst_93 [1] : vector<2x16xf32> to vector<2xf32>
    %221 = vector.shape_cast %220 : vector<2xf32> to vector<2x1xf32>
    %222 = vector.broadcast %221 : vector<2x1xf32> to vector<2x16xf32>
    %223 = arith.subf %219, %222 : vector<2x16xf32>
    %224 = math.exp %223 : vector<2x16xf32>
    %cst_94 = arith.constant dense<0.000000e+00> : vector<2xf32>
    %225 = vector.multi_reduction <add>, %224, %cst_94 [1] : vector<2x16xf32> to vector<2xf32>
    %226 = vector.shape_cast %225 : vector<2xf32> to vector<2x1xf32>
    %227 = tpu.reciprocal %226 {approx = true} : vector<2x1xf32> -> vector<2x1xf32>
    %228 = vector.broadcast %227 : vector<2x1xf32> to vector<2x16xf32>
    %229 = arith.mulf %224, %228 : vector<2x16xf32>
    %230 = vector.shape_cast %229 : vector<2x16xf32> to vector<2x16x1xf32>
    %c0_95 = arith.constant 0 : index
    %c0_96 = arith.constant 0 : index
    %c0_97 = arith.constant 0 : index
    %231 = vector.load %arg1[%c0_95, %c0_96, %c0_97] : memref<2x16x512xf32, #tpu.memory_space<vmem>>, vector<2x16x512xf32>
    %232 = vector.broadcast %230 : vector<2x16x1xf32> to vector<2x16x512xf32>
    %233 = arith.mulf %232, %231 : vector<2x16x512xf32>
    %cst_98 = arith.constant dense<0.000000e+00> : vector<2x512xf32>
    %234 = vector.multi_reduction <add>, %233, %cst_98 [1] : vector<2x16x512xf32> to vector<2x512xf32>
    %c3 = arith.constant 3 : index
    %c0_99 = arith.constant 0 : index
    %c0_100 = arith.constant 0 : index
    %235 = vector.load %arg2[%c3, %c0_99, %c0_100] : memref<7x2x512xf32, #tpu.memory_space<vmem>>, vector<1x2x512xf32>
    %236 = vector.shape_cast %235 : vector<1x2x512xf32> to vector<2x512xf32>
    %237 = arith.addf %236, %234 : vector<2x512xf32>
    %238 = vector.extract_strided_slice %201 {offsets = [0, 128], sizes = [2, 512], strides = [1, 1]} : vector<2x768xf32> to vector<2x512xf32>
    %239 = arith.addf %237, %238 : vector<2x512xf32>
    %240 = vector.extract_strided_slice %239 {offsets = [0, 0], sizes = [2, 128], strides = [1, 1]} : vector<2x512xf32> to vector<2x128xf32>
    %241 = arith.negf %240 : vector<2x128xf32>
    %242 = math.exp %241 : vector<2x128xf32>
    %cst_101 = arith.constant 1.000000e+00 : f32
    %243 = vector.broadcast %cst_101 : f32 to vector<2x128xf32>
    %244 = arith.addf %243, %242 : vector<2x128xf32>
    %245 = arith.divf %243, %244 : vector<2x128xf32>
    %246 = vector.extract_strided_slice %239 {offsets = [0, 128], sizes = [2, 128], strides = [1, 1]} : vector<2x512xf32> to vector<2x128xf32>
    %247 = arith.negf %246 : vector<2x128xf32>
    %248 = math.exp %247 : vector<2x128xf32>
    %cst_102 = arith.constant 1.000000e+00 : f32
    %249 = vector.broadcast %cst_102 : f32 to vector<2x128xf32>
    %250 = arith.addf %249, %248 : vector<2x128xf32>
    %251 = arith.divf %249, %250 : vector<2x128xf32>
    %252 = vector.extract_strided_slice %239 {offsets = [0, 256], sizes = [2, 128], strides = [1, 1]} : vector<2x512xf32> to vector<2x128xf32>
    %253 = math.tanh %252 : vector<2x128xf32>
    %254 = vector.extract_strided_slice %239 {offsets = [0, 384], sizes = [2, 128], strides = [1, 1]} : vector<2x512xf32> to vector<2x128xf32>
    %255 = arith.negf %254 : vector<2x128xf32>
    %256 = math.exp %255 : vector<2x128xf32>
    %cst_103 = arith.constant 1.000000e+00 : f32
    %257 = vector.broadcast %cst_103 : f32 to vector<2x128xf32>
    %258 = arith.addf %257, %256 : vector<2x128xf32>
    %259 = arith.divf %257, %258 : vector<2x128xf32>
    %260 = arith.mulf %251, %194 : vector<2x128xf32>
    %261 = arith.mulf %245, %253 : vector<2x128xf32>
    %262 = arith.addf %260, %261 : vector<2x128xf32>
    %263 = math.tanh %262 : vector<2x128xf32>
    %264 = arith.mulf %259, %263 : vector<2x128xf32>
    %c3_104 = arith.constant 3 : index
    %c0_105 = arith.constant 0 : index
    %c0_106 = arith.constant 0 : index
    %265 = vector.load %arg7[%c3_104, %c0_105, %c0_106] : memref<7x2x16xf32, #tpu.memory_space<vmem>>, vector<1x2x16xf32>
    %266 = vector.shape_cast %265 : vector<1x2x16xf32> to vector<2x16xf32>
    %267 = vector.shape_cast %229 : vector<2x16xf32> to vector<1x2x16xf32>
    tpu.vector_store %arg7[%c3_104, %c0_105, %c0_106], %267 {strides = array<i32>} : memref<7x2x16xf32, #tpu.memory_space<vmem>>, vector<1x2x16xf32>,
    %c0_107 = arith.constant 0 : index
    %c0_108 = arith.constant 0 : index
    %268 = vector.load %arg4[%c0_107, %c0_108] : memref<128x768xf32, #tpu.memory_space<vmem>>, vector<128x768xf32>
    %cst_109 = arith.constant dense<0.000000e+00> : vector<2x768xf32>
    %269 = tpu.matmul %264, %268, %cst_109 {dimension_numbers = #tpu.dot_dimension_numbers<[1], [0], [0], [1], [0, 0, 1, 1], [], []>} : vector<2x128xf32>, vector<128x768xf32>, vector<2x768xf32> -> vector<2x768xf32>
    %270 = vector.extract_strided_slice %269 {offsets = [0, 640], sizes = [2, 128], strides = [1, 1]} : vector<2x768xf32> to vector<2x128xf32>
    %c0_110 = arith.constant 0 : index
    %c128_111 = arith.constant 128 : index
    %271 = vector.load %arg5[%c0_110, %c128_111] : memref<1x256xf32, #tpu.memory_space<vmem>>, vector<1x128xf32>
    %272 = vector.broadcast %271 : vector<1x128xf32> to vector<2x128xf32>
    %273 = arith.addf %270, %272 : vector<2x128xf32>
    %c3_112 = arith.constant 3 : index
    %c0_113 = arith.constant 0 : index
    %c0_114 = arith.constant 0 : index
    %274 = vector.load %arg6[%c3_112, %c0_113, %c0_114] : memref<7x2x128xf32, #tpu.memory_space<vmem>>, vector<1x2x128xf32>
    %275 = vector.shape_cast %274 : vector<1x2x128xf32> to vector<2x128xf32>
    %276 = vector.shape_cast %273 : vector<2x128xf32> to vector<1x2x128xf32>
    tpu.vector_store %arg6[%c3_112, %c0_113, %c0_114], %276 {strides = array<i32>} : memref<7x2x128xf32, #tpu.memory_space<vmem>>, vector<1x2x128xf32>,
    %277 = vector.extract_strided_slice %269 {offsets = [0, 0], sizes = [2, 128], strides = [1, 1]} : vector<2x768xf32> to vector<2x128xf32>
    %c0_115 = arith.constant 0 : index
    %c0_116 = arith.constant 0 : index
    %c0_117 = arith.constant 0 : index
    %278 = vector.load %arg0[%c0_115, %c0_116, %c0_117] : memref<2x16x128xf32, #tpu.memory_space<vmem>>, vector<2x16x128xf32>
    %279 = vector.shape_cast %277 : vector<2x128xf32> to vector<2x1x128xf32>
    %280 = vector.broadcast %279 : vector<2x1x128xf32> to vector<2x16x128xf32>
    %281 = arith.addf %278, %280 : vector<2x16x128xf32>
    %282 = math.tanh %281 : vector<2x16x128xf32>
    %c0_118 = arith.constant 0 : index
    %c0_119 = arith.constant 0 : index
    %283 = vector.load %arg5[%c0_118, %c0_119] : memref<1x256xf32, #tpu.memory_space<vmem>>, vector<1x128xf32>
    %284 = vector.shape_cast %283 : vector<1x128xf32> to vector<1x1x128xf32>
    %285 = vector.broadcast %284 : vector<1x1x128xf32> to vector<2x16x128xf32>
    %286 = arith.mulf %282, %285 : vector<2x16x128xf32>
    %cst_120 = arith.constant dense<0.000000e+00> : vector<2x16xf32>
    %287 = vector.multi_reduction <add>, %286, %cst_120 [2] : vector<2x16x128xf32> to vector<2x16xf32>
    %cst_121 = arith.constant dense<0xFF800000> : vector<2xf32>
    %288 = vector.multi_reduction <maximumf>, %287, %cst_121 [1] : vector<2x16xf32> to vector<2xf32>
    %289 = vector.shape_cast %288 : vector<2xf32> to vector<2x1xf32>
    %290 = vector.broadcast %289 : vector<2x1xf32> to vector<2x16xf32>
    %291 = arith.subf %287, %290 : vector<2x16xf32>
    %292 = math.exp %291 : vector<2x16xf32>
    %cst_122 = arith.constant dense<0.000000e+00> : vector<2xf32>
    %293 = vector.multi_reduction <add>, %292, %cst_122 [1] : vector<2x16xf32> to vector<2xf32>
    %294 = vector.shape_cast %293 : vector<2xf32> to vector<2x1xf32>
    %295 = tpu.reciprocal %294 {approx = true} : vector<2x1xf32> -> vector<2x1xf32>
    %296 = vector.broadcast %295 : vector<2x1xf32> to vector<2x16xf32>
    %297 = arith.mulf %292, %296 : vector<2x16xf32>
    %298 = vector.shape_cast %297 : vector<2x16xf32> to vector<2x16x1xf32>
    %c0_123 = arith.constant 0 : index
    %c0_124 = arith.constant 0 : index
    %c0_125 = arith.constant 0 : index
    %299 = vector.load %arg1[%c0_123, %c0_124, %c0_125] : memref<2x16x512xf32, #tpu.memory_space<vmem>>, vector<2x16x512xf32>
    %300 = vector.broadcast %298 : vector<2x16x1xf32> to vector<2x16x512xf32>
    %301 = arith.mulf %300, %299 : vector<2x16x512xf32>
    %cst_126 = arith.constant dense<0.000000e+00> : vector<2x512xf32>
    %302 = vector.multi_reduction <add>, %301, %cst_126 [1] : vector<2x16x512xf32> to vector<2x512xf32>
    %c4 = arith.constant 4 : index
    %c0_127 = arith.constant 0 : index
    %c0_128 = arith.constant 0 : index
    %303 = vector.load %arg2[%c4, %c0_127, %c0_128] : memref<7x2x512xf32, #tpu.memory_space<vmem>>, vector<1x2x512xf32>
    %304 = vector.shape_cast %303 : vector<1x2x512xf32> to vector<2x512xf32>
    %305 = arith.addf %304, %302 : vector<2x512xf32>
    %306 = vector.extract_strided_slice %269 {offsets = [0, 128], sizes = [2, 512], strides = [1, 1]} : vector<2x768xf32> to vector<2x512xf32>
    %307 = arith.addf %305, %306 : vector<2x512xf32>
    %308 = vector.extract_strided_slice %307 {offsets = [0, 0], sizes = [2, 128], strides = [1, 1]} : vector<2x512xf32> to vector<2x128xf32>
    %309 = arith.negf %308 : vector<2x128xf32>
    %310 = math.exp %309 : vector<2x128xf32>
    %cst_129 = arith.constant 1.000000e+00 : f32
    %311 = vector.broadcast %cst_129 : f32 to vector<2x128xf32>
    %312 = arith.addf %311, %310 : vector<2x128xf32>
    %313 = arith.divf %311, %312 : vector<2x128xf32>
    %314 = vector.extract_strided_slice %307 {offsets = [0, 128], sizes = [2, 128], strides = [1, 1]} : vector<2x512xf32> to vector<2x128xf32>
    %315 = arith.negf %314 : vector<2x128xf32>
    %316 = math.exp %315 : vector<2x128xf32>
    %cst_130 = arith.constant 1.000000e+00 : f32
    %317 = vector.broadcast %cst_130 : f32 to vector<2x128xf32>
    %318 = arith.addf %317, %316 : vector<2x128xf32>
    %319 = arith.divf %317, %318 : vector<2x128xf32>
    %320 = vector.extract_strided_slice %307 {offsets = [0, 256], sizes = [2, 128], strides = [1, 1]} : vector<2x512xf32> to vector<2x128xf32>
    %321 = math.tanh %320 : vector<2x128xf32>
    %322 = vector.extract_strided_slice %307 {offsets = [0, 384], sizes = [2, 128], strides = [1, 1]} : vector<2x512xf32> to vector<2x128xf32>
    %323 = arith.negf %322 : vector<2x128xf32>
    %324 = math.exp %323 : vector<2x128xf32>
    %cst_131 = arith.constant 1.000000e+00 : f32
    %325 = vector.broadcast %cst_131 : f32 to vector<2x128xf32>
    %326 = arith.addf %325, %324 : vector<2x128xf32>
    %327 = arith.divf %325, %326 : vector<2x128xf32>
    %328 = arith.mulf %319, %262 : vector<2x128xf32>
    %329 = arith.mulf %313, %321 : vector<2x128xf32>
    %330 = arith.addf %328, %329 : vector<2x128xf32>
    %331 = math.tanh %330 : vector<2x128xf32>
    %332 = arith.mulf %327, %331 : vector<2x128xf32>
    %c4_132 = arith.constant 4 : index
    %c0_133 = arith.constant 0 : index
    %c0_134 = arith.constant 0 : index
    %333 = vector.load %arg7[%c4_132, %c0_133, %c0_134] : memref<7x2x16xf32, #tpu.memory_space<vmem>>, vector<1x2x16xf32>
    %334 = vector.shape_cast %333 : vector<1x2x16xf32> to vector<2x16xf32>
    %335 = vector.shape_cast %297 : vector<2x16xf32> to vector<1x2x16xf32>
    tpu.vector_store %arg7[%c4_132, %c0_133, %c0_134], %335 {strides = array<i32>} : memref<7x2x16xf32, #tpu.memory_space<vmem>>, vector<1x2x16xf32>,
    %c0_135 = arith.constant 0 : index
    %c0_136 = arith.constant 0 : index
    %336 = vector.load %arg4[%c0_135, %c0_136] : memref<128x768xf32, #tpu.memory_space<vmem>>, vector<128x768xf32>
    %cst_137 = arith.constant dense<0.000000e+00> : vector<2x768xf32>
    %337 = tpu.matmul %332, %336, %cst_137 {dimension_numbers = #tpu.dot_dimension_numbers<[1], [0], [0], [1], [0, 0, 1, 1], [], []>} : vector<2x128xf32>, vector<128x768xf32>, vector<2x768xf32> -> vector<2x768xf32>
    %338 = vector.extract_strided_slice %337 {offsets = [0, 640], sizes = [2, 128], strides = [1, 1]} : vector<2x768xf32> to vector<2x128xf32>
    %c0_138 = arith.constant 0 : index
    %c128_139 = arith.constant 128 : index
    %339 = vector.load %arg5[%c0_138, %c128_139] : memref<1x256xf32, #tpu.memory_space<vmem>>, vector<1x128xf32>
    %340 = vector.broadcast %339 : vector<1x128xf32> to vector<2x128xf32>
    %341 = arith.addf %338, %340 : vector<2x128xf32>
    %c4_140 = arith.constant 4 : index
    %c0_141 = arith.constant 0 : index
    %c0_142 = arith.constant 0 : index
    %342 = vector.load %arg6[%c4_140, %c0_141, %c0_142] : memref<7x2x128xf32, #tpu.memory_space<vmem>>, vector<1x2x128xf32>
    %343 = vector.shape_cast %342 : vector<1x2x128xf32> to vector<2x128xf32>
    %344 = vector.shape_cast %341 : vector<2x128xf32> to vector<1x2x128xf32>
    tpu.vector_store %arg6[%c4_140, %c0_141, %c0_142], %344 {strides = array<i32>} : memref<7x2x128xf32, #tpu.memory_space<vmem>>, vector<1x2x128xf32>,
    %345 = vector.extract_strided_slice %337 {offsets = [0, 0], sizes = [2, 128], strides = [1, 1]} : vector<2x768xf32> to vector<2x128xf32>
    %c0_143 = arith.constant 0 : index
    %c0_144 = arith.constant 0 : index
    %c0_145 = arith.constant 0 : index
    %346 = vector.load %arg0[%c0_143, %c0_144, %c0_145] : memref<2x16x128xf32, #tpu.memory_space<vmem>>, vector<2x16x128xf32>
    %347 = vector.shape_cast %345 : vector<2x128xf32> to vector<2x1x128xf32>
    %348 = vector.broadcast %347 : vector<2x1x128xf32> to vector<2x16x128xf32>
    %349 = arith.addf %346, %348 : vector<2x16x128xf32>
    %350 = math.tanh %349 : vector<2x16x128xf32>
    %c0_146 = arith.constant 0 : index
    %c0_147 = arith.constant 0 : index
    %351 = vector.load %arg5[%c0_146, %c0_147] : memref<1x256xf32, #tpu.memory_space<vmem>>, vector<1x128xf32>
    %352 = vector.shape_cast %351 : vector<1x128xf32> to vector<1x1x128xf32>
    %353 = vector.broadcast %352 : vector<1x1x128xf32> to vector<2x16x128xf32>
    %354 = arith.mulf %350, %353 : vector<2x16x128xf32>
    %cst_148 = arith.constant dense<0.000000e+00> : vector<2x16xf32>
    %355 = vector.multi_reduction <add>, %354, %cst_148 [2] : vector<2x16x128xf32> to vector<2x16xf32>
    %cst_149 = arith.constant dense<0xFF800000> : vector<2xf32>
    %356 = vector.multi_reduction <maximumf>, %355, %cst_149 [1] : vector<2x16xf32> to vector<2xf32>
    %357 = vector.shape_cast %356 : vector<2xf32> to vector<2x1xf32>
    %358 = vector.broadcast %357 : vector<2x1xf32> to vector<2x16xf32>
    %359 = arith.subf %355, %358 : vector<2x16xf32>
    %360 = math.exp %359 : vector<2x16xf32>
    %cst_150 = arith.constant dense<0.000000e+00> : vector<2xf32>
    %361 = vector.multi_reduction <add>, %360, %cst_150 [1] : vector<2x16xf32> to vector<2xf32>
    %362 = vector.shape_cast %361 : vector<2xf32> to vector<2x1xf32>
    %363 = tpu.reciprocal %362 {approx = true} : vector<2x1xf32> -> vector<2x1xf32>
    %364 = vector.broadcast %363 : vector<2x1xf32> to vector<2x16xf32>
    %365 = arith.mulf %360, %364 : vector<2x16xf32>
    %366 = vector.shape_cast %365 : vector<2x16xf32> to vector<2x16x1xf32>
    %c0_151 = arith.constant 0 : index
    %c0_152 = arith.constant 0 : index
    %c0_153 = arith.constant 0 : index
    %367 = vector.load %arg1[%c0_151, %c0_152, %c0_153] : memref<2x16x512xf32, #tpu.memory_space<vmem>>, vector<2x16x512xf32>
    %368 = vector.broadcast %366 : vector<2x16x1xf32> to vector<2x16x512xf32>
    %369 = arith.mulf %368, %367 : vector<2x16x512xf32>
    %cst_154 = arith.constant dense<0.000000e+00> : vector<2x512xf32>
    %370 = vector.multi_reduction <add>, %369, %cst_154 [1] : vector<2x16x512xf32> to vector<2x512xf32>
    %c5 = arith.constant 5 : index
    %c0_155 = arith.constant 0 : index
    %c0_156 = arith.constant 0 : index
    %371 = vector.load %arg2[%c5, %c0_155, %c0_156] : memref<7x2x512xf32, #tpu.memory_space<vmem>>, vector<1x2x512xf32>
    %372 = vector.shape_cast %371 : vector<1x2x512xf32> to vector<2x512xf32>
    %373 = arith.addf %372, %370 : vector<2x512xf32>
    %374 = vector.extract_strided_slice %337 {offsets = [0, 128], sizes = [2, 512], strides = [1, 1]} : vector<2x768xf32> to vector<2x512xf32>
    %375 = arith.addf %373, %374 : vector<2x512xf32>
    %376 = vector.extract_strided_slice %375 {offsets = [0, 0], sizes = [2, 128], strides = [1, 1]} : vector<2x512xf32> to vector<2x128xf32>
    %377 = arith.negf %376 : vector<2x128xf32>
    %378 = math.exp %377 : vector<2x128xf32>
    %cst_157 = arith.constant 1.000000e+00 : f32
    %379 = vector.broadcast %cst_157 : f32 to vector<2x128xf32>
    %380 = arith.addf %379, %378 : vector<2x128xf32>
    %381 = arith.divf %379, %380 : vector<2x128xf32>
    %382 = vector.extract_strided_slice %375 {offsets = [0, 128], sizes = [2, 128], strides = [1, 1]} : vector<2x512xf32> to vector<2x128xf32>
    %383 = arith.negf %382 : vector<2x128xf32>
    %384 = math.exp %383 : vector<2x128xf32>
    %cst_158 = arith.constant 1.000000e+00 : f32
    %385 = vector.broadcast %cst_158 : f32 to vector<2x128xf32>
    %386 = arith.addf %385, %384 : vector<2x128xf32>
    %387 = arith.divf %385, %386 : vector<2x128xf32>
    %388 = vector.extract_strided_slice %375 {offsets = [0, 256], sizes = [2, 128], strides = [1, 1]} : vector<2x512xf32> to vector<2x128xf32>
    %389 = math.tanh %388 : vector<2x128xf32>
    %390 = vector.extract_strided_slice %375 {offsets = [0, 384], sizes = [2, 128], strides = [1, 1]} : vector<2x512xf32> to vector<2x128xf32>
    %391 = arith.negf %390 : vector<2x128xf32>
    %392 = math.exp %391 : vector<2x128xf32>
    %cst_159 = arith.constant 1.000000e+00 : f32
    %393 = vector.broadcast %cst_159 : f32 to vector<2x128xf32>
    %394 = arith.addf %393, %392 : vector<2x128xf32>
    %395 = arith.divf %393, %394 : vector<2x128xf32>
    %396 = arith.mulf %387, %330 : vector<2x128xf32>
    %397 = arith.mulf %381, %389 : vector<2x128xf32>
    %398 = arith.addf %396, %397 : vector<2x128xf32>
    %399 = math.tanh %398 : vector<2x128xf32>
    %400 = arith.mulf %395, %399 : vector<2x128xf32>
    %c5_160 = arith.constant 5 : index
    %c0_161 = arith.constant 0 : index
    %c0_162 = arith.constant 0 : index
    %401 = vector.load %arg7[%c5_160, %c0_161, %c0_162] : memref<7x2x16xf32, #tpu.memory_space<vmem>>, vector<1x2x16xf32>
    %402 = vector.shape_cast %401 : vector<1x2x16xf32> to vector<2x16xf32>
    %403 = vector.shape_cast %365 : vector<2x16xf32> to vector<1x2x16xf32>
    tpu.vector_store %arg7[%c5_160, %c0_161, %c0_162], %403 {strides = array<i32>} : memref<7x2x16xf32, #tpu.memory_space<vmem>>, vector<1x2x16xf32>,
    %c0_163 = arith.constant 0 : index
    %c0_164 = arith.constant 0 : index
    %404 = vector.load %arg4[%c0_163, %c0_164] : memref<128x768xf32, #tpu.memory_space<vmem>>, vector<128x768xf32>
    %cst_165 = arith.constant dense<0.000000e+00> : vector<2x768xf32>
    %405 = tpu.matmul %400, %404, %cst_165 {dimension_numbers = #tpu.dot_dimension_numbers<[1], [0], [0], [1], [0, 0, 1, 1], [], []>} : vector<2x128xf32>, vector<128x768xf32>, vector<2x768xf32> -> vector<2x768xf32>
    %406 = vector.extract_strided_slice %405 {offsets = [0, 640], sizes = [2, 128], strides = [1, 1]} : vector<2x768xf32> to vector<2x128xf32>
    %c0_166 = arith.constant 0 : index
    %c128_167 = arith.constant 128 : index
    %407 = vector.load %arg5[%c0_166, %c128_167] : memref<1x256xf32, #tpu.memory_space<vmem>>, vector<1x128xf32>
    %408 = vector.broadcast %407 : vector<1x128xf32> to vector<2x128xf32>
    %409 = arith.addf %406, %408 : vector<2x128xf32>
    %c5_168 = arith.constant 5 : index
    %c0_169 = arith.constant 0 : index
    %c0_170 = arith.constant 0 : index
    %410 = vector.load %arg6[%c5_168, %c0_169, %c0_170] : memref<7x2x128xf32, #tpu.memory_space<vmem>>, vector<1x2x128xf32>
    %411 = vector.shape_cast %410 : vector<1x2x128xf32> to vector<2x128xf32>
    %412 = vector.shape_cast %409 : vector<2x128xf32> to vector<1x2x128xf32>
    tpu.vector_store %arg6[%c5_168, %c0_169, %c0_170], %412 {strides = array<i32>} : memref<7x2x128xf32, #tpu.memory_space<vmem>>, vector<1x2x128xf32>,
    %413 = vector.extract_strided_slice %405 {offsets = [0, 0], sizes = [2, 128], strides = [1, 1]} : vector<2x768xf32> to vector<2x128xf32>
    %c0_171 = arith.constant 0 : index
    %c0_172 = arith.constant 0 : index
    %c0_173 = arith.constant 0 : index
    %414 = vector.load %arg0[%c0_171, %c0_172, %c0_173] : memref<2x16x128xf32, #tpu.memory_space<vmem>>, vector<2x16x128xf32>
    %415 = vector.shape_cast %413 : vector<2x128xf32> to vector<2x1x128xf32>
    %416 = vector.broadcast %415 : vector<2x1x128xf32> to vector<2x16x128xf32>
    %417 = arith.addf %414, %416 : vector<2x16x128xf32>
    %418 = math.tanh %417 : vector<2x16x128xf32>
    %c0_174 = arith.constant 0 : index
    %c0_175 = arith.constant 0 : index
    %419 = vector.load %arg5[%c0_174, %c0_175] : memref<1x256xf32, #tpu.memory_space<vmem>>, vector<1x128xf32>
    %420 = vector.shape_cast %419 : vector<1x128xf32> to vector<1x1x128xf32>
    %421 = vector.broadcast %420 : vector<1x1x128xf32> to vector<2x16x128xf32>
    %422 = arith.mulf %418, %421 : vector<2x16x128xf32>
    %cst_176 = arith.constant dense<0.000000e+00> : vector<2x16xf32>
    %423 = vector.multi_reduction <add>, %422, %cst_176 [2] : vector<2x16x128xf32> to vector<2x16xf32>
    %cst_177 = arith.constant dense<0xFF800000> : vector<2xf32>
    %424 = vector.multi_reduction <maximumf>, %423, %cst_177 [1] : vector<2x16xf32> to vector<2xf32>
    %425 = vector.shape_cast %424 : vector<2xf32> to vector<2x1xf32>
    %426 = vector.broadcast %425 : vector<2x1xf32> to vector<2x16xf32>
    %427 = arith.subf %423, %426 : vector<2x16xf32>
    %428 = math.exp %427 : vector<2x16xf32>
    %cst_178 = arith.constant dense<0.000000e+00> : vector<2xf32>
    %429 = vector.multi_reduction <add>, %428, %cst_178 [1] : vector<2x16xf32> to vector<2xf32>
    %430 = vector.shape_cast %429 : vector<2xf32> to vector<2x1xf32>
    %431 = tpu.reciprocal %430 {approx = true} : vector<2x1xf32> -> vector<2x1xf32>
    %432 = vector.broadcast %431 : vector<2x1xf32> to vector<2x16xf32>
    %433 = arith.mulf %428, %432 : vector<2x16xf32>
    %434 = vector.shape_cast %433 : vector<2x16xf32> to vector<2x16x1xf32>
    %c0_179 = arith.constant 0 : index
    %c0_180 = arith.constant 0 : index
    %c0_181 = arith.constant 0 : index
    %435 = vector.load %arg1[%c0_179, %c0_180, %c0_181] : memref<2x16x512xf32, #tpu.memory_space<vmem>>, vector<2x16x512xf32>
    %436 = vector.broadcast %434 : vector<2x16x1xf32> to vector<2x16x512xf32>
    %437 = arith.mulf %436, %435 : vector<2x16x512xf32>
    %cst_182 = arith.constant dense<0.000000e+00> : vector<2x512xf32>
    %438 = vector.multi_reduction <add>, %437, %cst_182 [1] : vector<2x16x512xf32> to vector<2x512xf32>
    %c6 = arith.constant 6 : index
    %c0_183 = arith.constant 0 : index
    %c0_184 = arith.constant 0 : index
    %439 = vector.load %arg2[%c6, %c0_183, %c0_184] : memref<7x2x512xf32, #tpu.memory_space<vmem>>, vector<1x2x512xf32>
    %440 = vector.shape_cast %439 : vector<1x2x512xf32> to vector<2x512xf32>
    %441 = arith.addf %440, %438 : vector<2x512xf32>
    %442 = vector.extract_strided_slice %405 {offsets = [0, 128], sizes = [2, 512], strides = [1, 1]} : vector<2x768xf32> to vector<2x512xf32>
    %443 = arith.addf %441, %442 : vector<2x512xf32>
    %444 = vector.extract_strided_slice %443 {offsets = [0, 0], sizes = [2, 128], strides = [1, 1]} : vector<2x512xf32> to vector<2x128xf32>
    %445 = arith.negf %444 : vector<2x128xf32>
    %446 = math.exp %445 : vector<2x128xf32>
    %cst_185 = arith.constant 1.000000e+00 : f32
    %447 = vector.broadcast %cst_185 : f32 to vector<2x128xf32>
    %448 = arith.addf %447, %446 : vector<2x128xf32>
    %449 = arith.divf %447, %448 : vector<2x128xf32>
    %450 = vector.extract_strided_slice %443 {offsets = [0, 128], sizes = [2, 128], strides = [1, 1]} : vector<2x512xf32> to vector<2x128xf32>
    %451 = arith.negf %450 : vector<2x128xf32>
    %452 = math.exp %451 : vector<2x128xf32>
    %cst_186 = arith.constant 1.000000e+00 : f32
    %453 = vector.broadcast %cst_186 : f32 to vector<2x128xf32>
    %454 = arith.addf %453, %452 : vector<2x128xf32>
    %455 = arith.divf %453, %454 : vector<2x128xf32>
    %456 = vector.extract_strided_slice %443 {offsets = [0, 256], sizes = [2, 128], strides = [1, 1]} : vector<2x512xf32> to vector<2x128xf32>
    %457 = math.tanh %456 : vector<2x128xf32>
    %458 = vector.extract_strided_slice %443 {offsets = [0, 384], sizes = [2, 128], strides = [1, 1]} : vector<2x512xf32> to vector<2x128xf32>
    %459 = arith.negf %458 : vector<2x128xf32>
    %460 = math.exp %459 : vector<2x128xf32>
    %cst_187 = arith.constant 1.000000e+00 : f32
    %461 = vector.broadcast %cst_187 : f32 to vector<2x128xf32>
    %462 = arith.addf %461, %460 : vector<2x128xf32>
    %463 = arith.divf %461, %462 : vector<2x128xf32>
    %464 = arith.mulf %455, %398 : vector<2x128xf32>
    %465 = arith.mulf %449, %457 : vector<2x128xf32>
    %466 = arith.addf %464, %465 : vector<2x128xf32>
    %467 = math.tanh %466 : vector<2x128xf32>
    %468 = arith.mulf %463, %467 : vector<2x128xf32>
    %c6_188 = arith.constant 6 : index
    %c0_189 = arith.constant 0 : index
    %c0_190 = arith.constant 0 : index
    %469 = vector.load %arg7[%c6_188, %c0_189, %c0_190] : memref<7x2x16xf32, #tpu.memory_space<vmem>>, vector<1x2x16xf32>
    %470 = vector.shape_cast %469 : vector<1x2x16xf32> to vector<2x16xf32>
    %471 = vector.shape_cast %433 : vector<2x16xf32> to vector<1x2x16xf32>
    tpu.vector_store %arg7[%c6_188, %c0_189, %c0_190], %471 {strides = array<i32>} : memref<7x2x16xf32, #tpu.memory_space<vmem>>, vector<1x2x16xf32>,
    %c0_191 = arith.constant 0 : index
    %c640 = arith.constant 640 : index
    %472 = vector.load %arg4[%c0_191, %c640] : memref<128x768xf32, #tpu.memory_space<vmem>>, vector<128x128xf32>
    %cst_192 = arith.constant dense<0.000000e+00> : vector<2x128xf32>
    %473 = tpu.matmul %468, %472, %cst_192 {dimension_numbers = #tpu.dot_dimension_numbers<[1], [0], [0], [1], [0, 0, 1, 1], [], []>} : vector<2x128xf32>, vector<128x128xf32>, vector<2x128xf32> -> vector<2x128xf32>
    %c0_193 = arith.constant 0 : index
    %c128_194 = arith.constant 128 : index
    %474 = vector.load %arg5[%c0_193, %c128_194] : memref<1x256xf32, #tpu.memory_space<vmem>>, vector<1x128xf32>
    %475 = vector.broadcast %474 : vector<1x128xf32> to vector<2x128xf32>
    %476 = arith.addf %473, %475 : vector<2x128xf32>
    %c6_195 = arith.constant 6 : index
    %c0_196 = arith.constant 0 : index
    %c0_197 = arith.constant 0 : index
    %477 = vector.load %arg6[%c6_195, %c0_196, %c0_197] : memref<7x2x128xf32, #tpu.memory_space<vmem>>, vector<1x2x128xf32>
    %478 = vector.shape_cast %477 : vector<1x2x128xf32> to vector<2x128xf32>
    %479 = vector.shape_cast %476 : vector<2x128xf32> to vector<1x2x128xf32>
    tpu.vector_store %arg6[%c6_195, %c0_196, %c0_197], %479 {strides = array<i32>} : memref<7x2x128xf32, #tpu.memory_space<vmem>>, vector<1x2x128xf32>,
    return
  }
}

</mosaic_0001>

<llo_original>
// kernel: encoder_decoder_forward.3
$region0: #{encoder_decoder_forward.3}
  #allocation0 [shape = 'u32[]', space=smem, size = 0x4, offset = 0x4, fixed_abs, tag = 'smem constant byte address 0x4 - core index']
  #allocation1 [shape = 'u32[144,128]{1,0:T(1,128)}', space=vmem, size = 0x12000, scoped, tag = 'internal scratch']
  %s0 = inlined_call_operand.vmem [shape: f32[4,128,32], index: 0, kind: input, shape index: {}]
  %s1 = inlined_call_operand.vmem [shape: f32[32,128], index: 1, kind: input, shape index: {}]
  %s2 = inlined_call_operand.vmem [shape: f32[1,128], index: 2, kind: input, shape index: {}]
  %s3 = inlined_call_operand.vmem [shape: f32[128,128], index: 3, kind: output, shape index: {}]
  %s4 = sld [smem:[#allocation0]]
  $region83: #{encoder_decoder_forward.3} parent=0
    _
  %s6 = ssub.s32 1, %s4
  %s7 = scalar_select 0, %s6, %s4
  $region1: #{encoder_decoder_forward.3} parent=0
    #allocation2 [shape = 'u8[262144]{0}', space=vmem, size = 0x40000, scoped, tag = 'input window, operand 0']
    loop: start=0, step=1, limit=4
    $region2: #{encoder_decoder_forward.3} parent=1 // loop_pre_header
      _
    $region3: #{encoder_decoder_forward.3} parent=1 // loop_header
      %s9 = sphi 0, %s13
      %p10 = scmp.ge.s32.totalorder %s9, 4
      %s19 = sphi 0, %s21
      %s22 = sphi 0, %s19
      %s23 = sphi 0, %s22
      %s39 = sphi 0, %s23
      %s43 = sphi 0, %s43
      %s45 = sphi 0, %s43
      %s46 = sphi 0, %s45
      %s60 = sphi 0, %s46
      %s64 = sphi 0, %s64
      %s66 = sphi 0, %s64
      %s67 = sphi 0, %s66
      %s81 = sphi 0, %s67
      %s87 = sphi 0, %s89
      %s90 = sphi 0, %s87
      %s91 = sphi 0, %s90
      %s107 = sphi 0, %s91
    $region4: #{encoder_decoder_forward.3} parent=1 // loop_header_branch
      %12 = sbr.rel (%p10) target = $region8
    $region5: #{encoder_decoder_forward.3} parent=1 // loop_body
      %s14 = ssub.s32 %s9, 1
      %s15 = ssub.s32 %s9, 2
      %s16 = sadd.s32 %s9, 1
      %s17 = ssub.s32 %s9, %s16
      %p18 = scmp.eq.s32.totalorder %s17, 0
      %s20 = sadd.s32 %s19, 1
      %s21 = scalar_select %p18, %s19, %s20
      %p24 = pneg %p18
      %p25 = scmp.eq.s32.totalorder %s9, 1
      %p26 = por %p24, %p25
      %p27 = scmp.ne.s32.totalorder %s19, %s22
      %p28 = scmp.eq.s32.totalorder %s9, 0
      %p29 = por %p27, %p28
      %p30 = scmp.ne.s32.totalorder %s19, %s22
      %p31 = scmp.eq.s32.totalorder %s14, 1
      %p32 = por %p30, %p31
      %p33 = scmp.ne.s32.totalorder %s22, %s23
      %p34 = scmp.eq.s32.totalorder %s14, 0
      %p35 = por %p33, %p34
      %p36 = scmp.ne.s32.totalorder %s22, %s23
      %p37 = scmp.eq.s32.totalorder %s15, 1
      %p38 = por %p36, %p37
      %p40 = scmp.ne.s32.totalorder %s23, %s39
      %p41 = scmp.eq.s32.totalorder %s15, 0
      %p42 = por %p40, %p41
      %s44 = sadd.s32 %s43, 1
      %p47 = scmp.eq.s32.totalorder %s9, 1
      %p48 = scmp.ne.s32.totalorder %s43, %s45
      %p49 = scmp.eq.s32.totalorder %s9, 0
      %p50 = por %p48, %p49
      %p51 = scmp.ne.s32.totalorder %s43, %s45
      %p52 = scmp.eq.s32.totalorder %s14, 1
      %p53 = por %p51, %p52
      %p54 = scmp.ne.s32.totalorder %s45, %s46
      %p55 = scmp.eq.s32.totalorder %s14, 0
      %p56 = por %p54, %p55
      %p57 = scmp.ne.s32.totalorder %s45, %s46
      %p58 = scmp.eq.s32.totalorder %s15, 1
      %p59 = por %p57, %p58
      %p61 = scmp.ne.s32.totalorder %s46, %s60
      %p62 = scmp.eq.s32.totalorder %s15, 0
      %p63 = por %p61, %p62
      %s65 = sadd.s32 %s64, 1
      %p68 = scmp.eq.s32.totalorder %s9, 1
      %p69 = scmp.ne.s32.totalorder %s64, %s66
      %p70 = scmp.eq.s32.totalorder %s9, 0
      %p71 = por %p69, %p70
      %p72 = scmp.ne.s32.totalorder %s64, %s66
      %p73 = scmp.eq.s32.totalorder %s14, 1
      %p74 = por %p72, %p73
      %p75 = scmp.ne.s32.totalorder %s66, %s67
      %p76 = scmp.eq.s32.totalorder %s14, 0
      %p77 = por %p75, %p76
      %p78 = scmp.ne.s32.totalorder %s66, %s67
      %p79 = scmp.eq.s32.totalorder %s15, 1
      %p80 = por %p78, %p79
      %p82 = scmp.ne.s32.totalorder %s67, %s81
      %p83 = scmp.eq.s32.totalorder %s15, 0
      %p84 = por %p82, %p83
      %s85 = ssub.s32 %s9, %s16
      %p86 = scmp.eq.s32.totalorder %s85, 0
      %s88 = sadd.s32 %s87, 1
      %s89 = scalar_select %p86, %s87, %s88
      %p92 = pneg %p86
      %p93 = scmp.eq.s32.totalorder %s9, 1
      %p94 = por %p92, %p93
      %p95 = scmp.ne.s32.totalorder %s87, %s90
      %p96 = scmp.eq.s32.totalorder %s9, 0
      %p97 = por %p95, %p96
      %p98 = scmp.ne.s32.totalorder %s87, %s90
      %p99 = scmp.eq.s32.totalorder %s14, 1
      %p100 = por %p98, %p99
      %p101 = scmp.ne.s32.totalorder %s90, %s91
      %p102 = scmp.eq.s32.totalorder %s14, 0
      %p103 = por %p101, %p102
      %p104 = scmp.ne.s32.totalorder %s90, %s91
      %p105 = scmp.eq.s32.totalorder %s15, 1
      %p106 = por %p104, %p105
      %p108 = scmp.ne.s32.totalorder %s91, %s107
      %p109 = scmp.eq.s32.totalorder %s15, 0
      %p110 = por %p108, %p109
      %p111 = scmp.le.s32.totalorder 1, %s9
      %p112 = scmp.lt.s32.totalorder %s9, 3
      %p113 = pnand %p111, %p112
      %p114 = pneg %p113
      // Predicated region
      $region9: #{encoder_decoder_forward.3} parent=5 // pred_check
        _
      $region10: #{encoder_decoder_forward.3} parent=5 // pred_check_branch
        %116 = sbr.rel (%p113) target = $region12
      $region11: #{encoder_decoder_forward.3} parent=5 // pred_region
        %s117 = ssub.s32 %s9, 1
        // Predicated region
        $region13: #{encoder_decoder_forward.3} parent=11 // pred_check
          %p118 = pneg %p56
        $region14: #{encoder_decoder_forward.3} parent=11 // pred_check_branch
          %120 = sbr.rel (%p118) target = $region16
        $region15: #{encoder_decoder_forward.3} parent=11 // pred_region
          _
        $region16: #{encoder_decoder_forward.3} parent=11 // pred_fallthru
          _
        // Predicated region
        $region17: #{encoder_decoder_forward.3} parent=11 // pred_check
          %p121 = pneg %p77
        $region18: #{encoder_decoder_forward.3} parent=11 // pred_check_branch
          %123 = sbr.rel (%p121) target = $region20
        $region19: #{encoder_decoder_forward.3} parent=11 // pred_region
          _
        $region20: #{encoder_decoder_forward.3} parent=11 // pred_fallthru
          _
      $region12: #{encoder_decoder_forward.3} parent=5 // pred_fallthru
        _
      %p124 = scmp.lt.s32.totalorder %s9, 2
      // Predicated region
      $region21: #{encoder_decoder_forward.3} parent=5 // pred_check
        %p125 = pneg %p124
      $region22: #{encoder_decoder_forward.3} parent=5 // pred_check_branch
        %127 = sbr.rel (%p125) target = $region24
      $region23: #{encoder_decoder_forward.3} parent=5 // pred_region
        // Predicated region
        $region25: #{encoder_decoder_forward.3} parent=23 // pred_check
          %p128 = pneg %p29
        $region26: #{encoder_decoder_forward.3} parent=23 // pred_check_branch
          %130 = sbr.rel (%p128) target = $region28
        $region27: #{encoder_decoder_forward.3} parent=23 // pred_region
          %s131 = sand.u32 %s19, 1
          %s132 = sand.u32 %s19, 1
          %s133 = smul.addr %s132, 256
          %s134 = scalar_lea.vmem [#allocation2], %s133
          %s135 = smul.u32 8, %s9
          %s136 = smul.addr %s135, 8
          %s137 = scalar_lea.vmem %s0, %s136
          // Predicated region
          $region29: #{encoder_decoder_forward.3} parent=27 // pred_check
            _
          $region30: #{encoder_decoder_forward.3} parent=27 // pred_check_branch
            %139 = sbr.rel (0) target = $region32
          $region31: #{encoder_decoder_forward.3} parent=27 // pred_region
            // Predicated region
            $region33: #{encoder_decoder_forward.3} parent=31 // pred_check
              _
            $region34: #{encoder_decoder_forward.3} parent=31 // pred_check_branch
              %141 = sbr.rel (0) target = $region36
            $region35: #{encoder_decoder_forward.3} parent=31 // pred_region
              // Predicated region
              $region48: #{encoder_decoder_forward.3} parent=35 // pred_check
                _
              $region49: #{encoder_decoder_forward.3} parent=35 // pred_check_branch
                %218 = sbr.rel (0) target = $region51
              $region50: #{encoder_decoder_forward.3} parent=35 // pred_region
                loop: start=0, step=1, limit=1
                $region52: #{encoder_decoder_forward.3} parent=50 // loop_pre_header
                  _
                $region53: #{encoder_decoder_forward.3} parent=50 // loop_header
                  %s220 = sphi 0, %s224
                  %p221 = scmp.ge.s32.totalorder %s220, 1
                  %s225 = sphi %s137, %s137
                  %s226 = sphi %s134, %s134
                $region54: #{encoder_decoder_forward.3} parent=50 // loop_header_branch
                  %223 = sbr.rel (%p221) target = $region58
                $region55: #{encoder_decoder_forward.3} parent=50 // loop_body
                  %v227 = vld [vmem:[%s225] sm:$0xff]
                  %228 = vst [vmem:[%s226] sm:$0xff] %v227
                  %v229 = vld [vmem:[%s225 + $0x8] sm:$0xff]
                  %230 = vst [vmem:[%s226 + $0x8] sm:$0xff] %v229
                  %v231 = vld [vmem:[%s225 + $0x10] sm:$0xff]
                  %232 = vst [vmem:[%s226 + $0x10] sm:$0xff] %v231
                  %v233 = vld [vmem:[%s225 + $0x18] sm:$0xff]
                  %234 = vst [vmem:[%s226 + $0x18] sm:$0xff] %v233
                  %v235 = vld [vmem:[%s225 + $0x20] sm:$0xff]
                  %236 = vst [vmem:[%s226 + $0x20] sm:$0xff] %v235
                  %v237 = vld [vmem:[%s225 + $0x28] sm:$0xff]
                  %238 = vst [vmem:[%s226 + $0x28] sm:$0xff] %v237
                  %v239 = vld [vmem:[%s225 + $0x30] sm:$0xff]
                  %240 = vst [vmem:[%s226 + $0x30] sm:$0xff] %v239
                  %v241 = vld [vmem:[%s225 + $0x38] sm:$0xff]
                  %242 = vst [vmem:[%s226 + $0x38] sm:$0xff] %v241
                  %v243 = vld [vmem:[%s225 + $0x80] sm:$0xff]
                  %244 = vst [vmem:[%s226 + $0x40] sm:$0xff] %v243
                  %v245 = vld [vmem:[%s225 + $0x88] sm:$0xff]
                  %246 = vst [vmem:[%s226 + $0x48] sm:$0xff] %v245
                  %v247 = vld [vmem:[%s225 + $0x90] sm:$0xff]
                  %248 = vst [vmem:[%s226 + $0x50] sm:$0xff] %v247
                  %v249 = vld [vmem:[%s225 + $0x98] sm:$0xff]
                  %250 = vst [vmem:[%s226 + $0x58] sm:$0xff] %v249
                  %v251 = vld [vmem:[%s225 + $0xa0] sm:$0xff]
                  %252 = vst [vmem:[%s226 + $0x60] sm:$0xff] %v251
                  %v253 = vld [vmem:[%s225 + $0xa8] sm:$0xff]
                  %254 = vst [vmem:[%s226 + $0x68] sm:$0xff] %v253
                  %v255 = vld [vmem:[%s225 + $0xb0] sm:$0xff]
                  %256 = vst [vmem:[%s226 + $0x70] sm:$0xff] %v255
                  %v257 = vld [vmem:[%s225 + $0xb8] sm:$0xff]
                  %258 = vst [vmem:[%s226 + $0x78] sm:$0xff] %v257
                  %v259 = vld [vmem:[%s225 + $0x100] sm:$0xff]
                  %260 = vst [vmem:[%s226 + $0x80] sm:$0xff] %v259
                  %v261 = vld [vmem:[%s225 + $0x108] sm:$0xff]
                  %262 = vst [vmem:[%s226 + $0x88] sm:$0xff] %v261
                  %v263 = vld [vmem:[%s225 + $0x110] sm:$0xff]
                  %264 = vst [vmem:[%s226 + $0x90] sm:$0xff] %v263
                  %v265 = vld [vmem:[%s225 + $0x118] sm:$0xff]
                  %266 = vst [vmem:[%s226 + $0x98] sm:$0xff] %v265
                  %v267 = vld [vmem:[%s225 + $0x120] sm:$0xff]
                  %268 = vst [vmem:[%s226 + $0xa0] sm:$0xff] %v267
                  %v269 = vld [vmem:[%s225 + $0x128] sm:$0xff]
                  %270 = vst [vmem:[%s226 + $0xa8] sm:$0xff] %v269
                  %v271 = vld [vmem:[%s225 + $0x130] sm:$0xff]
                  %272 = vst [vmem:[%s226 + $0xb0] sm:$0xff] %v271
                  %v273 = vld [vmem:[%s225 + $0x138] sm:$0xff]
                  %274 = vst [vmem:[%s226 + $0xb8] sm:$0xff] %v273
                  %v275 = vld [vmem:[%s225 + $0x180] sm:$0xff]
                  %276 = vst [vmem:[%s226 + $0xc0] sm:$0xff] %v275
                  %v277 = vld [vmem:[%s225 + $0x188] sm:$0xff]
                  %278 = vst [vmem:[%s226 + $0xc8] sm:$0xff] %v277
                  %v279 = vld [vmem:[%s225 + $0x190] sm:$0xff]
                  %280 = vst [vmem:[%s226 + $0xd0] sm:$0xff] %v279
                  %v281 = vld [vmem:[%s225 + $0x198] sm:$0xff]
                  %282 = vst [vmem:[%s226 + $0xd8] sm:$0xff] %v281
                  %v283 = vld [vmem:[%s225 + $0x1a0] sm:$0xff]
                  %284 = vst [vmem:[%s226 + $0xe0] sm:$0xff] %v283
                  %v285 = vld [vmem:[%s225 + $0x1a8] sm:$0xff]
                  %286 = vst [vmem:[%s226 + $0xe8] sm:$0xff] %v285
                  %v287 = vld [vmem:[%s225 + $0x1b0] sm:$0xff]
                  %288 = vst [vmem:[%s226 + $0xf0] sm:$0xff] %v287
                  %v289 = vld [vmem:[%s225 + $0x1b8] sm:$0xff]
                  %290 = vst [vmem:[%s226 + $0xf8] sm:$0xff] %v289
                $region56: #{encoder_decoder_forward.3} parent=50 // loop_footer
                  %s224 = sadd.s32 1, %s220
                $region57: #{encoder_decoder_forward.3} parent=50 // loop_footer_branch
                  %219 = sbr.rel target = $region53
                $region58: #{encoder_decoder_forward.3} parent=50 // loop_exit
                  _
              $region51: #{encoder_decoder_forward.3} parent=35 // pred_fallthru
                _
              // Predicated region
              $region59: #{encoder_decoder_forward.3} parent=35 // pred_check
                _
              $region60: #{encoder_decoder_forward.3} parent=35 // pred_check_branch
                %292 = sbr.rel target = $region62
              $region61: #{encoder_decoder_forward.3} parent=35 // pred_region
                _
              $region62: #{encoder_decoder_forward.3} parent=35 // pred_fallthru
                _
            $region36: #{encoder_decoder_forward.3} parent=31 // pred_fallthru
              _
            // Predicated region
            $region37: #{encoder_decoder_forward.3} parent=31 // pred_check
              _
            $region38: #{encoder_decoder_forward.3} parent=31 // pred_check_branch
              %143 = sbr.rel target = $region40
            $region39: #{encoder_decoder_forward.3} parent=31 // pred_region
              loop: start=0, step=1, limit=1
              $region41: #{encoder_decoder_forward.3} parent=39 // loop_pre_header
                _
              $region42: #{encoder_decoder_forward.3} parent=39 // loop_header
                %s146 = sphi 0, %s150
                %p147 = scmp.ge.s32.totalorder %s146, 1
                %s151 = sphi %s137, %s137
                %s152 = sphi %s134, %s134
              $region43: #{encoder_decoder_forward.3} parent=39 // loop_header_branch
                %149 = sbr.rel (%p147) target = $region47
              $region44: #{encoder_decoder_forward.3} parent=39 // loop_body
                %v153 = vld [vmem:[%s151] sm:$0xff]
                %154 = vst [vmem:[%s152] sm:$0xff] %v153
                %v155 = vld [vmem:[%s151 + $0x8] sm:$0xff]
                %156 = vst [vmem:[%s152 + $0x8] sm:$0xff] %v155
                %v157 = vld [vmem:[%s151 + $0x10] sm:$0xff]
                %158 = vst [vmem:[%s152 + $0x10] sm:$0xff] %v157
                %v159 = vld [vmem:[%s151 + $0x18] sm:$0xff]
                %160 = vst [vmem:[%s152 + $0x18] sm:$0xff] %v159
                %v161 = vld [vmem:[%s151 + $0x20] sm:$0xff]
                %162 = vst [vmem:[%s152 + $0x20] sm:$0xff] %v161
                %v163 = vld [vmem:[%s151 + $0x28] sm:$0xff]
                %164 = vst [vmem:[%s152 + $0x28] sm:$0xff] %v163
                %v165 = vld [vmem:[%s151 + $0x30] sm:$0xff]
                %166 = vst [vmem:[%s152 + $0x30] sm:$0xff] %v165
                %v167 = vld [vmem:[%s151 + $0x38] sm:$0xff]
                %168 = vst [vmem:[%s152 + $0x38] sm:$0xff] %v167
                %v169 = vld [vmem:[%s151 + $0x80] sm:$0xff]
                %170 = vst [vmem:[%s152 + $0x40] sm:$0xff] %v169
                %v171 = vld [vmem:[%s151 + $0x88] sm:$0xff]
                %172 = vst [vmem:[%s152 + $0x48] sm:$0xff] %v171
                %v173 = vld [vmem:[%s151 + $0x90] sm:$0xff]
                %174 = vst [vmem:[%s152 + $0x50] sm:$0xff] %v173
                %v175 = vld [vmem:[%s151 + $0x98] sm:$0xff]
                %176 = vst [vmem:[%s152 + $0x58] sm:$0xff] %v175
                %v177 = vld [vmem:[%s151 + $0xa0] sm:$0xff]
                %178 = vst [vmem:[%s152 + $0x60] sm:$0xff] %v177
                %v179 = vld [vmem:[%s151 + $0xa8] sm:$0xff]
                %180 = vst [vmem:[%s152 + $0x68] sm:$0xff] %v179
                %v181 = vld [vmem:[%s151 + $0xb0] sm:$0xff]
                %182 = vst [vmem:[%s152 + $0x70] sm:$0xff] %v181
                %v183 = vld [vmem:[%s151 + $0xb8] sm:$0xff]
                %184 = vst [vmem:[%s152 + $0x78] sm:$0xff] %v183
                %v185 = vld [vmem:[%s151 + $0x100] sm:$0xff]
                %186 = vst [vmem:[%s152 + $0x80] sm:$0xff] %v185
                %v187 = vld [vmem:[%s151 + $0x108] sm:$0xff]
                %188 = vst [vmem:[%s152 + $0x88] sm:$0xff] %v187
                %v189 = vld [vmem:[%s151 + $0x110] sm:$0xff]
                %190 = vst [vmem:[%s152 + $0x90] sm:$0xff] %v189
                %v191 = vld [vmem:[%s151 + $0x118] sm:$0xff]
                %192 = vst [vmem:[%s152 + $0x98] sm:$0xff] %v191
                %v193 = vld [vmem:[%s151 + $0x120] sm:$0xff]
                %194 = vst [vmem:[%s152 + $0xa0] sm:$0xff] %v193
                %v195 = vld [vmem:[%s151 + $0x128] sm:$0xff]
                %196 = vst [vmem:[%s152 + $0xa8] sm:$0xff] %v195
                %v197 = vld [vmem:[%s151 + $0x130] sm:$0xff]
                %198 = vst [vmem:[%s152 + $0xb0] sm:$0xff] %v197
                %v199 = vld [vmem:[%s151 + $0x138] sm:$0xff]
                %200 = vst [vmem:[%s152 + $0xb8] sm:$0xff] %v199
                %v201 = vld [vmem:[%s151 + $0x180] sm:$0xff]
                %202 = vst [vmem:[%s152 + $0xc0] sm:$0xff] %v201
                %v203 = vld [vmem:[%s151 + $0x188] sm:$0xff]
                %204 = vst [vmem:[%s152 + $0xc8] sm:$0xff] %v203
                %v205 = vld [vmem:[%s151 + $0x190] sm:$0xff]
                %206 = vst [vmem:[%s152 + $0xd0] sm:$0xff] %v205
                %v207 = vld [vmem:[%s151 + $0x198] sm:$0xff]
                %208 = vst [vmem:[%s152 + $0xd8] sm:$0xff] %v207
                %v209 = vld [vmem:[%s151 + $0x1a0] sm:$0xff]
                %210 = vst [vmem:[%s152 + $0xe0] sm:$0xff] %v209
                %v211 = vld [vmem:[%s151 + $0x1a8] sm:$0xff]
                %212 = vst [vmem:[%s152 + $0xe8] sm:$0xff] %v211
                %v213 = vld [vmem:[%s151 + $0x1b0] sm:$0xff]
                %214 = vst [vmem:[%s152 + $0xf0] sm:$0xff] %v213
                %v215 = vld [vmem:[%s151 + $0x1b8] sm:$0xff]
                %216 = vst [vmem:[%s152 + $0xf8] sm:$0xff] %v215
              $region45: #{encoder_decoder_forward.3} parent=39 // loop_footer
                %s150 = sadd.s32 1, %s146
              $region46: #{encoder_decoder_forward.3} parent=39 // loop_footer_branch
                %145 = sbr.rel target = $region42
              $region47: #{encoder_decoder_forward.3} parent=39 // loop_exit
                _
            $region40: #{encoder_decoder_forward.3} parent=31 // pred_fallthru
              _
          $region32: #{encoder_decoder_forward.3} parent=27 // pred_fallthru
            _
          %293 = vnop
        $region28: #{encoder_decoder_forward.3} parent=23 // pred_fallthru
          _
      $region24: #{encoder_decoder_forward.3} parent=5 // pred_fallthru
        _
      %p294 = scmp.le.s32.totalorder 1, %s9
      %p295 = scmp.lt.s32.totalorder %s9, 3
      %p296 = pnand %p294, %p295
      %p297 = pneg %p296
      // Predicated region
      $region63: #{encoder_decoder_forward.3} parent=5 // pred_check
        _
      $region64: #{encoder_decoder_forward.3} parent=5 // pred_check_branch
        %299 = sbr.rel (%p296) target = $region66
      $region65: #{encoder_decoder_forward.3} parent=5 // pred_region
        %s300 = ssub.s32 %s9, 1
        %s301 = sand.u32 %s22, 1
        %s302 = sand.u32 %s22, 1
        %s303 = smul.addr %s302, 256
        %s304 = scalar_lea.vmem [#allocation2], %s303
        // Predicated region
        $region67: #{encoder_decoder_forward.3} parent=65 // pred_check
          %p305 = pneg %p35
        $region68: #{encoder_decoder_forward.3} parent=65 // pred_check_branch
          %307 = sbr.rel (%p305) target = $region70
        $region69: #{encoder_decoder_forward.3} parent=65 // pred_region
          _
        $region70: #{encoder_decoder_forward.3} parent=65 // pred_fallthru
          _
        %s308 = sand.u32 %s22, 1
        %s309 = sand.u32 %s22, 1
        %s310 = smul.addr %s309, 256
        %s311 = scalar_lea.vmem [#allocation2], %s310
        %p312 = pneg %p35
        %p313 = pneg %p32
        %p314 = pneg %p56
        %p315 = pneg %p53
        %p316 = pneg %p77
        %p317 = pneg %p74
        %p318 = pneg %p103
        %p319 = pneg %p100
        %s320 = smul.u32 8, %s14
        %p321 = scmp.lt.s32.totalorder %s320, 15
        %s322 = scalar_select %p321, %s320, 15
        %s323 = smul.addr %s322, 8
        %s324 = scalar_lea.vmem %s3, %s323
        %s325 = smul.u32 8, %s14
        %s326 = smul.u32 8, %s14
        %p327 = scmp.lt.s32.totalorder %s326, 15
        %s328 = scalar_select %p327, %s326, 15
        %s329 = smul.addr %s328, 8
        %s330 = scalar_lea.vmem %s3, %s329
        %s331 = smul.u32 8, %s14
        %v332 = vld [vmem:[%s304] sm:$0xff]
        %v333 = vld [vmem:[%s304 + $0x8] sm:$0xff]
        %v334 = vld [vmem:[%s304 + $0x10] sm:$0xff]
        %v335 = vld [vmem:[%s304 + $0x18] sm:$0xff]
        %v336 = vld [vmem:[%s304 + $0x20] sm:$0xff]
        %v337 = vld [vmem:[%s304 + $0x28] sm:$0xff]
        %v338 = vld [vmem:[%s304 + $0x30] sm:$0xff]
        %v339 = vld [vmem:[%s304 + $0x38] sm:$0xff]
        %v340 = vld [vmem:[%s1] sm:$0xff]
        %v341 = vld [vmem:[%s1 + $0x8] sm:$0xff]
        %v342 = vld [vmem:[%s1 + $0x10] sm:$0xff]
        %v343 = vld [vmem:[%s1 + $0x18] sm:$0xff]
        %vm344 = vcmask 261120
        %v346 = vsel %vm344, %v332, 0
        %v349 = vsel %vm344, %v333, 0
        %v352 = vsel %vm344, %v334, 0
        %v355 = vsel %vm344, %v335, 0
        %v358 = vsel %vm344, %v336, 0
        %v361 = vsel %vm344, %v337, 0
        %v364 = vsel %vm344, %v338, 0
        %v367 = vsel %vm344, %v339, 0
        %369 = vmatprep.subr.mxu0 0.0
        %370 = vmatpush1.msra.mxu0 %v340
        %371 = vmatprep.subr.mxu0 0.0
        %372 = vmatpush1.msra.mxu0 %v341
        %373 = vmatprep.subr.mxu0 0.0
        %374 = vmatpush1.msra.mxu0 %v342
        %375 = vmatprep.subr.mxu0 0.0
        %376 = vmatpush1.msra.mxu0 %v343
        %377 = vmatprep.subr.mxu0 0.0
        %378 = vmatpush1.msra.mxu0 0.0
        %379 = vmatprep.subr.mxu0 0.0
        %380 = vmatpush1.msra.mxu0 0.0
        %381 = vmatprep.subr.mxu0 0.0
        %382 = vmatpush1.msra.mxu0 0.0
        %383 = vmatprep.subr.mxu0 0.0
        %384 = vmatpush1.msra.mxu0 0.0
        %385 = vmatprep.subr.mxu0 0.0
        %386 = vmatpush1.msra.mxu0 0.0
        %387 = vmatprep.subr.mxu0 0.0
        %388 = vmatpush1.msra.mxu0 0.0
        %389 = vmatprep.subr.mxu0 0.0
        %390 = vmatpush1.msra.mxu0 0.0
        %391 = vmatprep.subr.mxu0 0.0
        %392 = vmatpush1.msra.mxu0 0.0
        %393 = vmatprep.subr.mxu0 0.0
        %394 = vmatpush1.msra.mxu0 0.0
        %395 = vmatprep.subr.mxu0 0.0
        %396 = vmatpush1.msra.mxu0 0.0
        %397 = vmatprep.subr.mxu0 0.0
        %398 = vmatpush1.msra.mxu0 0.0
        %399 = vmatprep.subr.mxu0 0.0
        %400 = vmatpush1.msra.mxu0 0.0
        %401 = vmatprep.subr.mxu0 0.0
        %402 = vmatpush1.msra.mxu0 0.0
        %403 = vmatprep.subr.mxu0 0.0
        %404 = vmatpush1.msra.mxu0 0.0
        %405 = vmatprep.subr.mxu0 0.0
        %406 = vmatpush1.msra.mxu0 0.0
        %407 = vmatprep.subr.mxu0 0.0
        %408 = vmatpush1.msra.mxu0 0.0
        %409 = vmatprep.subr.mxu0 0.0
        %410 = vmatpush1.msra.mxu0 0.0
        %411 = vmatprep.subr.mxu0 0.0
        %412 = vmatpush1.msra.mxu0 0.0
        %413 = vmatprep.subr.mxu0 0.0
        %414 = vmatpush1.msra.mxu0 0.0
        %415 = vmatprep.subr.mxu0 0.0
        %416 = vmatpush1.msra.mxu0 0.0
        %417 = vmatprep.subr.mxu0 0.0
        %418 = vmatpush1.msra.mxu0 0.0
        %419 = vmatprep.subr.mxu0 0.0
        %420 = vmatpush1.msra.mxu0 0.0
        %421 = vmatprep.subr.mxu0 0.0
        %422 = vmatpush1.msra.mxu0 0.0
        %423 = vmatprep.subr.mxu0 0.0
        %424 = vmatpush1.msra.mxu0 0.0
        %425 = vmatprep.subr.mxu0 0.0
        %426 = vmatpush1.msra.mxu0 0.0
        %427 = vmatprep.subr.mxu0 0.0
        %428 = vmatpush1.msra.mxu0 0.0
        %429 = vmatprep.subr.mxu0 0.0
        %430 = vmatpush1.msra.mxu0 0.0
        %431 = vmatprep.subr.mxu0 0.0
        %432 = vmatpush1.msra.mxu0 0.0
        %433 = vmatprep.mubr.f32.mxu0 0.0
        %434 = vmatmul.mubr.f32.gmra.mrb[0].mxu0 %v346
        %v435 = vpop.f32.mrb[0].mxu0
        %v436 = vadd.f32 0.0, %v435
        %v437 = vpop.f32.mrb[0].mxu0
        %438 = vmatprep.mubr.f32.mxu0 0.0
        %439 = vmatmul.mubr.f32.gmra.mrb[0].mxu0 %v349
        %v440 = vpop.f32.mrb[0].mxu0
        %v441 = vadd.f32 0.0, %v440
        %v442 = vpop.f32.mrb[0].mxu0
        %443 = vmatprep.mubr.f32.mxu0 0.0
        %444 = vmatmul.mubr.f32.gmra.mrb[0].mxu0 %v352
        %v445 = vpop.f32.mrb[0].mxu0
        %v446 = vadd.f32 0.0, %v445
        %v447 = vpop.f32.mrb[0].mxu0
        %448 = vmatprep.mubr.f32.mxu0 0.0
        %449 = vmatmul.mubr.f32.gmra.mrb[0].mxu0 %v355
        %v450 = vpop.f32.mrb[0].mxu0
        %v451 = vadd.f32 0.0, %v450
        %v452 = vpop.f32.mrb[0].mxu0
        %453 = vmatprep.mubr.f32.mxu0 0.0
        %454 = vmatmul.mubr.f32.gmra.mrb[0].mxu0 %v358
        %v455 = vpop.f32.mrb[0].mxu0
        %v456 = vadd.f32 0.0, %v455
        %v457 = vpop.f32.mrb[0].mxu0
        %458 = vmatprep.mubr.f32.mxu0 0.0
        %459 = vmatmul.mubr.f32.gmra.mrb[0].mxu0 %v361
        %v460 = vpop.f32.mrb[0].mxu0
        %v461 = vadd.f32 0.0, %v460
        %v462 = vpop.f32.mrb[0].mxu0
        %463 = vmatprep.mubr.f32.mxu0 0.0
        %464 = vmatmul.mubr.f32.gmra.mrb[0].mxu0 %v364
        %v465 = vpop.f32.mrb[0].mxu0
        %v466 = vadd.f32 0.0, %v465
        %v467 = vpop.f32.mrb[0].mxu0
        %468 = vmatprep.mubr.f32.mxu0 0.0
        %469 = vmatmul.mubr.f32.gmra.mrb[0].mxu0 %v367
        %v470 = vpop.f32.mrb[0].mxu0
        %v471 = vadd.f32 0.0, %v470
        %v472 = vpop.f32.mrb[0].mxu0
        %473 = vdwg.mxu0
        %s474 = scalar_lea.vmem %s304, 64 [#allocation2]
        %v475 = vld [vmem:[%s474] sm:$0xff]
        %v476 = vld [vmem:[%s474 + $0x8] sm:$0xff]
        %v477 = vld [vmem:[%s474 + $0x10] sm:$0xff]
        %v478 = vld [vmem:[%s474 + $0x18] sm:$0xff]
        %v479 = vld [vmem:[%s474 + $0x20] sm:$0xff]
        %v480 = vld [vmem:[%s474 + $0x28] sm:$0xff]
        %v481 = vld [vmem:[%s474 + $0x30] sm:$0xff]
        %v482 = vld [vmem:[%s474 + $0x38] sm:$0xff]
        %v484 = vsel %vm344, %v475, 0
        %v487 = vsel %vm344, %v476, 0
        %v490 = vsel %vm344, %v477, 0
        %v493 = vsel %vm344, %v478, 0
        %v496 = vsel %vm344, %v479, 0
        %v499 = vsel %vm344, %v480, 0
        %v502 = vsel %vm344, %v481, 0
        %v505 = vsel %vm344, %v482, 0
        %507 = vmatprep.subr.mxu0 0.0
        %508 = vmatpush1.msra.mxu0 %v340
        %509 = vmatprep.subr.mxu0 0.0
        %510 = vmatpush1.msra.mxu0 %v341
        %511 = vmatprep.subr.mxu0 0.0
        %512 = vmatpush1.msra.mxu0 %v342
        %513 = vmatprep.subr.mxu0 0.0
        %514 = vmatpush1.msra.mxu0 %v343
        %515 = vmatprep.subr.mxu0 0.0
        %516 = vmatpush1.msra.mxu0 0.0
        %517 = vmatprep.subr.mxu0 0.0
        %518 = vmatpush1.msra.mxu0 0.0
        %519 = vmatprep.subr.mxu0 0.0
        %520 = vmatpush1.msra.mxu0 0.0
        %521 = vmatprep.subr.mxu0 0.0
        %522 = vmatpush1.msra.mxu0 0.0
        %523 = vmatprep.subr.mxu0 0.0
        %524 = vmatpush1.msra.mxu0 0.0
        %525 = vmatprep.subr.mxu0 0.0
        %526 = vmatpush1.msra.mxu0 0.0
        %527 = vmatprep.subr.mxu0 0.0
        %528 = vmatpush1.msra.mxu0 0.0
        %529 = vmatprep.subr.mxu0 0.0
        %530 = vmatpush1.msra.mxu0 0.0
        %531 = vmatprep.subr.mxu0 0.0
        %532 = vmatpush1.msra.mxu0 0.0
        %533 = vmatprep.subr.mxu0 0.0
        %534 = vmatpush1.msra.mxu0 0.0
        %535 = vmatprep.subr.mxu0 0.0
        %536 = vmatpush1.msra.mxu0 0.0
        %537 = vmatprep.subr.mxu0 0.0
        %538 = vmatpush1.msra.mxu0 0.0
        %539 = vmatprep.subr.mxu0 0.0
        %540 = vmatpush1.msra.mxu0 0.0
        %541 = vmatprep.subr.mxu0 0.0
        %542 = vmatpush1.msra.mxu0 0.0
        %543 = vmatprep.subr.mxu0 0.0
        %544 = vmatpush1.msra.mxu0 0.0
        %545 = vmatprep.subr.mxu0 0.0
        %546 = vmatpush1.msra.mxu0 0.0
        %547 = vmatprep.subr.mxu0 0.0
        %548 = vmatpush1.msra.mxu0 0.0
        %549 = vmatprep.subr.mxu0 0.0
        %550 = vmatpush1.msra.mxu0 0.0
        %551 = vmatprep.subr.mxu0 0.0
        %552 = vmatpush1.msra.mxu0 0.0
        %553 = vmatprep.subr.mxu0 0.0
        %554 = vmatpush1.msra.mxu0 0.0
        %555 = vmatprep.subr.mxu0 0.0
        %556 = vmatpush1.msra.mxu0 0.0
        %557 = vmatprep.subr.mxu0 0.0
        %558 = vmatpush1.msra.mxu0 0.0
        %559 = vmatprep.subr.mxu0 0.0
        %560 = vmatpush1.msra.mxu0 0.0
        %561 = vmatprep.subr.mxu0 0.0
        %562 = vmatpush1.msra.mxu0 0.0
        %563 = vmatprep.subr.mxu0 0.0
        %564 = vmatpush1.msra.mxu0 0.0
        %565 = vmatprep.subr.mxu0 0.0
        %566 = vmatpush1.msra.mxu0 0.0
        %567 = vmatprep.subr.mxu0 0.0
        %568 = vmatpush1.msra.mxu0 0.0
        %569 = vmatprep.subr.mxu0 0.0
        %570 = vmatpush1.msra.mxu0 0.0
        %571 = vmatprep.mubr.f32.mxu0 0.0
        %572 = vmatmul.mubr.f32.gmra.mrb[0].mxu0 %v484
        %v573 = vpop.f32.mrb[0].mxu0
        %v574 = vadd.f32 0.0, %v573
        %v575 = vpop.f32.mrb[0].mxu0
        %576 = vmatprep.mubr.f32.mxu0 0.0
        %577 = vmatmul.mubr.f32.gmra.mrb[0].mxu0 %v487
        %v578 = vpop.f32.mrb[0].mxu0
        %v579 = vadd.f32 0.0, %v578
        %v580 = vpop.f32.mrb[0].mxu0
        %581 = vmatprep.mubr.f32.mxu0 0.0
        %582 = vmatmul.mubr.f32.gmra.mrb[0].mxu0 %v490
        %v583 = vpop.f32.mrb[0].mxu0
        %v584 = vadd.f32 0.0, %v583
        %v585 = vpop.f32.mrb[0].mxu0
        %586 = vmatprep.mubr.f32.mxu0 0.0
        %587 = vmatmul.mubr.f32.gmra.mrb[0].mxu0 %v493
        %v588 = vpop.f32.mrb[0].mxu0
        %v589 = vadd.f32 0.0, %v588
        %v590 = vpop.f32.mrb[0].mxu0
        %591 = vmatprep.mubr.f32.mxu0 0.0
        %592 = vmatmul.mubr.f32.gmra.mrb[0].mxu0 %v496
        %v593 = vpop.f32.mrb[0].mxu0
        %v594 = vadd.f32 0.0, %v593
        %v595 = vpop.f32.mrb[0].mxu0
        %596 = vmatprep.mubr.f32.mxu0 0.0
        %597 = vmatmul.mubr.f32.gmra.mrb[0].mxu0 %v499
        %v598 = vpop.f32.mrb[0].mxu0
        %v599 = vadd.f32 0.0, %v598
        %v600 = vpop.f32.mrb[0].mxu0
        %601 = vmatprep.mubr.f32.mxu0 0.0
        %602 = vmatmul.mubr.f32.gmra.mrb[0].mxu0 %v502
        %v603 = vpop.f32.mrb[0].mxu0
        %v604 = vadd.f32 0.0, %v603
        %v605 = vpop.f32.mrb[0].mxu0
        %606 = vmatprep.mubr.f32.mxu0 0.0
        %607 = vmatmul.mubr.f32.gmra.mrb[0].mxu0 %v505
        %v608 = vpop.f32.mrb[0].mxu0
        %v609 = vadd.f32 0.0, %v608
        %v610 = vpop.f32.mrb[0].mxu0
        %611 = vdwg.mxu0
        %v612 = vmax.f32 %v436, %v574
        %v613 = vmax.f32 %v441, %v579
        %v614 = vmax.f32 %v446, %v584
        %v615 = vmax.f32 %v451, %v589
        %v616 = vmax.f32 %v456, %v594
        %v617 = vmax.f32 %v461, %v599
        %v618 = vmax.f32 %v466, %v604
        %v619 = vmax.f32 %v471, %v609
        %s620 = scalar_lea.vmem %s304, 128 [#allocation2]
        %v621 = vld [vmem:[%s620] sm:$0xff]
        %v622 = vld [vmem:[%s620 + $0x8] sm:$0xff]
        %v623 = vld [vmem:[%s620 + $0x10] sm:$0xff]
        %v624 = vld [vmem:[%s620 + $0x18] sm:$0xff]
        %v625 = vld [vmem:[%s620 + $0x20] sm:$0xff]
        %v626 = vld [vmem:[%s620 + $0x28] sm:$0xff]
        %v627 = vld [vmem:[%s620 + $0x30] sm:$0xff]
        %v628 = vld [vmem:[%s620 + $0x38] sm:$0xff]
        %v630 = vsel %vm344, %v621, 0
        %v633 = vsel %vm344, %v622, 0
        %v636 = vsel %vm344, %v623, 0
        %v639 = vsel %vm344, %v624, 0
        %v642 = vsel %vm344, %v625, 0
        %v645 = vsel %vm344, %v626, 0
        %v648 = vsel %vm344, %v627, 0
        %v651 = vsel %vm344, %v628, 0
        %653 = vmatprep.subr.mxu0 0.0
        %654 = vmatpush1.msra.mxu0 %v340
        %655 = vmatprep.subr.mxu0 0.0
        %656 = vmatpush1.msra.mxu0 %v341
        %657 = vmatprep.subr.mxu0 0.0
        %658 = vmatpush1.msra.mxu0 %v342
        %659 = vmatprep.subr.mxu0 0.0
        %660 = vmatpush1.msra.mxu0 %v343
        %661 = vmatprep.subr.mxu0 0.0
        %662 = vmatpush1.msra.mxu0 0.0
        %663 = vmatprep.subr.mxu0 0.0
        %664 = vmatpush1.msra.mxu0 0.0
        %665 = vmatprep.subr.mxu0 0.0
        %666 = vmatpush1.msra.mxu0 0.0
        %667 = vmatprep.subr.mxu0 0.0
        %668 = vmatpush1.msra.mxu0 0.0
        %669 = vmatprep.subr.mxu0 0.0
        %670 = vmatpush1.msra.mxu0 0.0
        %671 = vmatprep.subr.mxu0 0.0
        %672 = vmatpush1.msra.mxu0 0.0
        %673 = vmatprep.subr.mxu0 0.0
        %674 = vmatpush1.msra.mxu0 0.0
        %675 = vmatprep.subr.mxu0 0.0
        %676 = vmatpush1.msra.mxu0 0.0
        %677 = vmatprep.subr.mxu0 0.0
        %678 = vmatpush1.msra.mxu0 0.0
        %679 = vmatprep.subr.mxu0 0.0
        %680 = vmatpush1.msra.mxu0 0.0
        %681 = vmatprep.subr.mxu0 0.0
        %682 = vmatpush1.msra.mxu0 0.0
        %683 = vmatprep.subr.mxu0 0.0
        %684 = vmatpush1.msra.mxu0 0.0
        %685 = vmatprep.subr.mxu0 0.0
        %686 = vmatpush1.msra.mxu0 0.0
        %687 = vmatprep.subr.mxu0 0.0
        %688 = vmatpush1.msra.mxu0 0.0
        %689 = vmatprep.subr.mxu0 0.0
        %690 = vmatpush1.msra.mxu0 0.0
        %691 = vmatprep.subr.mxu0 0.0
        %692 = vmatpush1.msra.mxu0 0.0
        %693 = vmatprep.subr.mxu0 0.0
        %694 = vmatpush1.msra.mxu0 0.0
        %695 = vmatprep.subr.mxu0 0.0
        %696 = vmatpush1.msra.mxu0 0.0
        %697 = vmatprep.subr.mxu0 0.0
        %698 = vmatpush1.msra.mxu0 0.0
        %699 = vmatprep.subr.mxu0 0.0
        %700 = vmatpush1.msra.mxu0 0.0
        %701 = vmatprep.subr.mxu0 0.0
        %702 = vmatpush1.msra.mxu0 0.0
        %703 = vmatprep.subr.mxu0 0.0
        %704 = vmatpush1.msra.mxu0 0.0
        %705 = vmatprep.subr.mxu0 0.0
        %706 = vmatpush1.msra.mxu0 0.0
        %707 = vmatprep.subr.mxu0 0.0
        %708 = vmatpush1.msra.mxu0 0.0
        %709 = vmatprep.subr.mxu0 0.0
        %710 = vmatpush1.msra.mxu0 0.0
        %711 = vmatprep.subr.mxu0 0.0
        %712 = vmatpush1.msra.mxu0 0.0
        %713 = vmatprep.subr.mxu0 0.0
        %714 = vmatpush1.msra.mxu0 0.0
        %715 = vmatprep.subr.mxu0 0.0
        %716 = vmatpush1.msra.mxu0 0.0
        %717 = vmatprep.mubr.f32.mxu0 0.0
        %718 = vmatmul.mubr.f32.gmra.mrb[0].mxu0 %v630
        %v719 = vpop.f32.mrb[0].mxu0
        %v720 = vadd.f32 0.0, %v719
        %v721 = vpop.f32.mrb[0].mxu0
        %722 = vmatprep.mubr.f32.mxu0 0.0
        %723 = vmatmul.mubr.f32.gmra.mrb[0].mxu0 %v633
        %v724 = vpop.f32.mrb[0].mxu0
        %v725 = vadd.f32 0.0, %v724
        %v726 = vpop.f32.mrb[0].mxu0
        %727 = vmatprep.mubr.f32.mxu0 0.0
        %728 = vmatmul.mubr.f32.gmra.mrb[0].mxu0 %v636
        %v729 = vpop.f32.mrb[0].mxu0
        %v730 = vadd.f32 0.0, %v729
        %v731 = vpop.f32.mrb[0].mxu0
        %732 = vmatprep.mubr.f32.mxu0 0.0
        %733 = vmatmul.mubr.f32.gmra.mrb[0].mxu0 %v639
        %v734 = vpop.f32.mrb[0].mxu0
        %v735 = vadd.f32 0.0, %v734
        %v736 = vpop.f32.mrb[0].mxu0
        %737 = vmatprep.mubr.f32.mxu0 0.0
        %738 = vmatmul.mubr.f32.gmra.mrb[0].mxu0 %v642
        %v739 = vpop.f32.mrb[0].mxu0
        %v740 = vadd.f32 0.0, %v739
        %v741 = vpop.f32.mrb[0].mxu0
        %742 = vmatprep.mubr.f32.mxu0 0.0
        %743 = vmatmul.mubr.f32.gmra.mrb[0].mxu0 %v645
        %v744 = vpop.f32.mrb[0].mxu0
        %v745 = vadd.f32 0.0, %v744
        %v746 = vpop.f32.mrb[0].mxu0
        %747 = vmatprep.mubr.f32.mxu0 0.0
        %748 = vmatmul.mubr.f32.gmra.mrb[0].mxu0 %v648
        %v749 = vpop.f32.mrb[0].mxu0
        %v750 = vadd.f32 0.0, %v749
        %v751 = vpop.f32.mrb[0].mxu0
        %752 = vmatprep.mubr.f32.mxu0 0.0
        %753 = vmatmul.mubr.f32.gmra.mrb[0].mxu0 %v651
        %v754 = vpop.f32.mrb[0].mxu0
        %v755 = vadd.f32 0.0, %v754
        %v756 = vpop.f32.mrb[0].mxu0
        %757 = vdwg.mxu0
        %v758 = vmax.f32 %v612, %v720
        %v759 = vmax.f32 %v613, %v725
        %v760 = vmax.f32 %v614, %v730
        %v761 = vmax.f32 %v615, %v735
        %v762 = vmax.f32 %v616, %v740
        %v763 = vmax.f32 %v617, %v745
        %v764 = vmax.f32 %v618, %v750
        %v765 = vmax.f32 %v619, %v755
        %s766 = scalar_lea.vmem %s304, 192 [#allocation2]
        %v767 = vld [vmem:[%s766] sm:$0xff]
        %v768 = vld [vmem:[%s766 + $0x8] sm:$0xff]
        %v769 = vld [vmem:[%s766 + $0x10] sm:$0xff]
        %v770 = vld [vmem:[%s766 + $0x18] sm:$0xff]
        %v771 = vld [vmem:[%s766 + $0x20] sm:$0xff]
        %v772 = vld [vmem:[%s766 + $0x28] sm:$0xff]
        %v773 = vld [vmem:[%s766 + $0x30] sm:$0xff]
        %v774 = vld [vmem:[%s766 + $0x38] sm:$0xff]
        %v776 = vsel %vm344, %v767, 0
        %v779 = vsel %vm344, %v768, 0
        %v782 = vsel %vm344, %v769, 0
        %v785 = vsel %vm344, %v770, 0
        %v788 = vsel %vm344, %v771, 0
        %v791 = vsel %vm344, %v772, 0
        %v794 = vsel %vm344, %v773, 0
        %v797 = vsel %vm344, %v774, 0
        %799 = vmatprep.subr.mxu0 0.0
        %800 = vmatpush1.msra.mxu0 %v340
        %801 = vmatprep.subr.mxu0 0.0
        %802 = vmatpush1.msra.mxu0 %v341
        %803 = vmatprep.subr.mxu0 0.0
        %804 = vmatpush1.msra.mxu0 %v342
        %805 = vmatprep.subr.mxu0 0.0
        %806 = vmatpush1.msra.mxu0 %v343
        %807 = vmatprep.subr.mxu0 0.0
        %808 = vmatpush1.msra.mxu0 0.0
        %809 = vmatprep.subr.mxu0 0.0
        %810 = vmatpush1.msra.mxu0 0.0
        %811 = vmatprep.subr.mxu0 0.0
        %812 = vmatpush1.msra.mxu0 0.0
        %813 = vmatprep.subr.mxu0 0.0
        %814 = vmatpush1.msra.mxu0 0.0
        %815 = vmatprep.subr.mxu0 0.0
        %816 = vmatpush1.msra.mxu0 0.0
        %817 = vmatprep.subr.mxu0 0.0
        %818 = vmatpush1.msra.mxu0 0.0
        %819 = vmatprep.subr.mxu0 0.0
        %820 = vmatpush1.msra.mxu0 0.0
        %821 = vmatprep.subr.mxu0 0.0
        %822 = vmatpush1.msra.mxu0 0.0
        %823 = vmatprep.subr.mxu0 0.0
        %824 = vmatpush1.msra.mxu0 0.0
        %825 = vmatprep.subr.mxu0 0.0
        %826 = vmatpush1.msra.mxu0 0.0
        %827 = vmatprep.subr.mxu0 0.0
        %828 = vmatpush1.msra.mxu0 0.0
        %829 = vmatprep.subr.mxu0 0.0
        %830 = vmatpush1.msra.mxu0 0.0
        %831 = vmatprep.subr.mxu0 0.0
        %832 = vmatpush1.msra.mxu0 0.0
        %833 = vmatprep.subr.mxu0 0.0
        %834 = vmatpush1.msra.mxu0 0.0
        %835 = vmatprep.subr.mxu0 0.0
        %836 = vmatpush1.msra.mxu0 0.0
        %837 = vmatprep.subr.mxu0 0.0
        %838 = vmatpush1.msra.mxu0 0.0
        %839 = vmatprep.subr.mxu0 0.0
        %840 = vmatpush1.msra.mxu0 0.0
        %841 = vmatprep.subr.mxu0 0.0
        %842 = vmatpush1.msra.mxu0 0.0
        %843 = vmatprep.subr.mxu0 0.0
        %844 = vmatpush1.msra.mxu0 0.0
        %845 = vmatprep.subr.mxu0 0.0
        %846 = vmatpush1.msra.mxu0 0.0
        %847 = vmatprep.subr.mxu0 0.0
        %848 = vmatpush1.msra.mxu0 0.0
        %849 = vmatprep.subr.mxu0 0.0
        %850 = vmatpush1.msra.mxu0 0.0
        %851 = vmatprep.subr.mxu0 0.0
        %852 = vmatpush1.msra.mxu0 0.0
        %853 = vmatprep.subr.mxu0 0.0
        %854 = vmatpush1.msra.mxu0 0.0
        %855 = vmatprep.subr.mxu0 0.0
        %856 = vmatpush1.msra.mxu0 0.0
        %857 = vmatprep.subr.mxu0 0.0
        %858 = vmatpush1.msra.mxu0 0.0
        %859 = vmatprep.subr.mxu0 0.0
        %860 = vmatpush1.msra.mxu0 0.0
        %861 = vmatprep.subr.mxu0 0.0
        %862 = vmatpush1.msra.mxu0 0.0
        %863 = vmatprep.mubr.f32.mxu0 0.0
        %864 = vmatmul.mubr.f32.gmra.mrb[0].mxu0 %v776
        %v865 = vpop.f32.mrb[0].mxu0
        %v866 = vadd.f32 0.0, %v865
        %v867 = vpop.f32.mrb[0].mxu0
        %868 = vmatprep.mubr.f32.mxu0 0.0
        %869 = vmatmul.mubr.f32.gmra.mrb[0].mxu0 %v779
        %v870 = vpop.f32.mrb[0].mxu0
        %v871 = vadd.f32 0.0, %v870
        %v872 = vpop.f32.mrb[0].mxu0
        %873 = vmatprep.mubr.f32.mxu0 0.0
        %874 = vmatmul.mubr.f32.gmra.mrb[0].mxu0 %v782
        %v875 = vpop.f32.mrb[0].mxu0
        %v876 = vadd.f32 0.0, %v875
        %v877 = vpop.f32.mrb[0].mxu0
        %878 = vmatprep.mubr.f32.mxu0 0.0
        %879 = vmatmul.mubr.f32.gmra.mrb[0].mxu0 %v785
        %v880 = vpop.f32.mrb[0].mxu0
        %v881 = vadd.f32 0.0, %v880
        %v882 = vpop.f32.mrb[0].mxu0
        %883 = vmatprep.mubr.f32.mxu0 0.0
        %884 = vmatmul.mubr.f32.gmra.mrb[0].mxu0 %v788
        %v885 = vpop.f32.mrb[0].mxu0
        %v886 = vadd.f32 0.0, %v885
        %v887 = vpop.f32.mrb[0].mxu0
        %888 = vmatprep.mubr.f32.mxu0 0.0
        %889 = vmatmul.mubr.f32.gmra.mrb[0].mxu0 %v791
        %v890 = vpop.f32.mrb[0].mxu0
        %v891 = vadd.f32 0.0, %v890
        %v892 = vpop.f32.mrb[0].mxu0
        %893 = vmatprep.mubr.f32.mxu0 0.0
        %894 = vmatmul.mubr.f32.gmra.mrb[0].mxu0 %v794
        %v895 = vpop.f32.mrb[0].mxu0
        %v896 = vadd.f32 0.0, %v895
        %v897 = vpop.f32.mrb[0].mxu0
        %898 = vmatprep.mubr.f32.mxu0 0.0
        %899 = vmatmul.mubr.f32.gmra.mrb[0].mxu0 %v797
        %v900 = vpop.f32.mrb[0].mxu0
        %v901 = vadd.f32 0.0, %v900
        %v902 = vpop.f32.mrb[0].mxu0
        %903 = vdwg.mxu0
        %v904 = vmax.f32 %v758, %v866
        %v905 = vmax.f32 %v759, %v871
        %v906 = vmax.f32 %v760, %v876
        %v907 = vmax.f32 %v761, %v881
        %v908 = vmax.f32 %v762, %v886
        %v909 = vmax.f32 %v763, %v891
        %v910 = vmax.f32 %v764, %v896
        %v911 = vmax.f32 %v765, %v901
        %v912 = vld [vmem:[%s2] sm:$0x1]
        %v914 = vlaneseq
        %v915 = vshrl.u32 %v914, 7
        %v916 = vsub.s32 0, %v915
        %v917 = vrot.slane %v912, %v916
        %v919 = vadd.f32 %v904, %v917
        %v920 = vadd.f32 %v905, %v917
        %v921 = vadd.f32 %v906, %v917
        %v922 = vadd.f32 %v907, %v917
        %v923 = vadd.f32 %v908, %v917
        %v924 = vadd.f32 %v909, %v917
        %v925 = vadd.f32 %v910, %v917
        %v926 = vadd.f32 %v911, %v917
        %v927 = vmax.f32 %v919, 0.0
        %v928 = vmax.f32 %v920, 0.0
        %v929 = vmax.f32 %v921, 0.0
        %v930 = vmax.f32 %v922, 0.0
        %v931 = vmax.f32 %v923, 0.0
        %v932 = vmax.f32 %v924, 0.0
        %v933 = vmax.f32 %v925, 0.0
        %v934 = vmax.f32 %v926, 0.0
        %935 = vst [vmem:[%s330] sm:$0xff] %v927
        %936 = vst [vmem:[%s330 + $0x8] sm:$0xff] %v928
        %937 = vst [vmem:[%s330 + $0x10] sm:$0xff] %v929
        %938 = vst [vmem:[%s330 + $0x18] sm:$0xff] %v930
        %939 = vst [vmem:[%s330 + $0x20] sm:$0xff] %v931
        %940 = vst [vmem:[%s330 + $0x28] sm:$0xff] %v932
        %941 = vst [vmem:[%s330 + $0x30] sm:$0xff] %v933
        %942 = vst [vmem:[%s330 + $0x38] sm:$0xff] %v934
        %s943 = smul.u32 8, %s14
        %p944 = scmp.lt.s32.totalorder %s943, 15
        %s945 = scalar_select %p944, %s943, 15
        %s946 = smul.addr %s945, 8
        %s947 = scalar_lea.vmem %s3, %s946
        // Predicated region
        $region71: #{encoder_decoder_forward.3} parent=65 // pred_check
          %p948 = pneg %p100
        $region72: #{encoder_decoder_forward.3} parent=65 // pred_check_branch
          %950 = sbr.rel (%p948) target = $region74
        $region73: #{encoder_decoder_forward.3} parent=65 // pred_region
          %s951 = smul.u32 8, %s14
        $region74: #{encoder_decoder_forward.3} parent=65 // pred_fallthru
          _
      $region66: #{encoder_decoder_forward.3} parent=5 // pred_fallthru
        _
      %p952 = scmp.le.s32.totalorder 2, %s9
      // Predicated region
      $region75: #{encoder_decoder_forward.3} parent=5 // pred_check
        %p953 = pneg %p952
      $region76: #{encoder_decoder_forward.3} parent=5 // pred_check_branch
        %955 = sbr.rel (%p953) target = $region78
      $region77: #{encoder_decoder_forward.3} parent=5 // pred_region
        %s956 = ssub.s32 %s9, 2
        // Predicated region
        $region79: #{encoder_decoder_forward.3} parent=77 // pred_check
          %p957 = pneg %p106
        $region80: #{encoder_decoder_forward.3} parent=77 // pred_check_branch
          %959 = sbr.rel (%p957) target = $region82
        $region81: #{encoder_decoder_forward.3} parent=77 // pred_region
          %s960 = smul.u32 8, %s15
          %p961 = scmp.lt.s32.totalorder %s960, 15
          %s962 = scalar_select %p961, %s960, 15
          %s963 = smul.addr %s962, 8
          %s964 = scalar_lea.vmem %s3, %s963
        $region82: #{encoder_decoder_forward.3} parent=77 // pred_fallthru
          _
      $region78: #{encoder_decoder_forward.3} parent=5 // pred_fallthru
        _
    $region6: #{encoder_decoder_forward.3} parent=1 // loop_footer
      %s13 = sadd.s32 1, %s9
    $region7: #{encoder_decoder_forward.3} parent=1 // loop_footer_branch
      %8 = sbr.rel target = $region3
    $region8: #{encoder_decoder_forward.3} parent=1 // loop_exit
      _

// kernel: encoder_decoder_forward.4
$region0: #{encoder_decoder_forward.4}
  #allocation0 [shape = 'u32[]', space=smem, size = 0x4, offset = 0x4, fixed_abs, tag = 'smem constant byte address 0x4 - core index']
  #allocation1 [shape = 'u32[144,128]{1,0:T(1,128)}', space=vmem, size = 0x12000, scoped, tag = 'internal scratch']
  %s0 = inlined_call_operand.vmem [shape: f32[4,32,144], index: 0, kind: input, shape index: {}]
  %s1 = inlined_call_operand.vmem [shape: f32[144,128], index: 1, kind: input, shape index: {}]
  %s2 = inlined_call_operand.vmem [shape: f32[1,128], index: 2, kind: input, shape index: {}]
  %s3 = inlined_call_operand.vmem [shape: f32[32,128], index: 3, kind: output, shape index: {}]
  %s4 = sld [smem:[#allocation0]]
  $region68: #{encoder_decoder_forward.4} parent=0
    _
  %s6 = ssub.s32 1, %s4
  %s7 = scalar_select 0, %s6, %s4
  $region1: #{encoder_decoder_forward.4} parent=0
    #allocation2 [shape = 'u8[131072]{0}', space=vmem, size = 0x20000, scoped, tag = 'input window, operand 0']
    loop: start=0, step=1, limit=4
    $region2: #{encoder_decoder_forward.4} parent=1 // loop_pre_header
      _
    $region3: #{encoder_decoder_forward.4} parent=1 // loop_header
      %s9 = sphi 0, %s13
      %p10 = scmp.ge.s32.totalorder %s9, 4
      %s19 = sphi 0, %s21
      %s22 = sphi 0, %s19
      %s23 = sphi 0, %s22
      %s39 = sphi 0, %s23
      %s43 = sphi 0, %s43
      %s45 = sphi 0, %s43
      %s46 = sphi 0, %s45
      %s60 = sphi 0, %s46
      %s64 = sphi 0, %s64
      %s66 = sphi 0, %s64
      %s67 = sphi 0, %s66
      %s81 = sphi 0, %s67
      %s87 = sphi 0, %s89
      %s90 = sphi 0, %s87
      %s91 = sphi 0, %s90
      %s107 = sphi 0, %s91
    $region4: #{encoder_decoder_forward.4} parent=1 // loop_header_branch
      %12 = sbr.rel (%p10) target = $region8
    $region5: #{encoder_decoder_forward.4} parent=1 // loop_body
      %s14 = ssub.s32 %s9, 1
      %s15 = ssub.s32 %s9, 2
      %s16 = sadd.s32 %s9, 1
      %s17 = ssub.s32 %s9, %s16
      %p18 = scmp.eq.s32.totalorder %s17, 0
      %s20 = sadd.s32 %s19, 1
      %s21 = scalar_select %p18, %s19, %s20
      %p24 = pneg %p18
      %p25 = scmp.eq.s32.totalorder %s9, 1
      %p26 = por %p24, %p25
      %p27 = scmp.ne.s32.totalorder %s19, %s22
      %p28 = scmp.eq.s32.totalorder %s9, 0
      %p29 = por %p27, %p28
      %p30 = scmp.ne.s32.totalorder %s19, %s22
      %p31 = scmp.eq.s32.totalorder %s14, 1
      %p32 = por %p30, %p31
      %p33 = scmp.ne.s32.totalorder %s22, %s23
      %p34 = scmp.eq.s32.totalorder %s14, 0
      %p35 = por %p33, %p34
      %p36 = scmp.ne.s32.totalorder %s22, %s23
      %p37 = scmp.eq.s32.totalorder %s15, 1
      %p38 = por %p36, %p37
      %p40 = scmp.ne.s32.totalorder %s23, %s39
      %p41 = scmp.eq.s32.totalorder %s15, 0
      %p42 = por %p40, %p41
      %s44 = sadd.s32 %s43, 1
      %p47 = scmp.eq.s32.totalorder %s9, 1
      %p48 = scmp.ne.s32.totalorder %s43, %s45
      %p49 = scmp.eq.s32.totalorder %s9, 0
      %p50 = por %p48, %p49
      %p51 = scmp.ne.s32.totalorder %s43, %s45
      %p52 = scmp.eq.s32.totalorder %s14, 1
      %p53 = por %p51, %p52
      %p54 = scmp.ne.s32.totalorder %s45, %s46
      %p55 = scmp.eq.s32.totalorder %s14, 0
      %p56 = por %p54, %p55
      %p57 = scmp.ne.s32.totalorder %s45, %s46
      %p58 = scmp.eq.s32.totalorder %s15, 1
      %p59 = por %p57, %p58
      %p61 = scmp.ne.s32.totalorder %s46, %s60
      %p62 = scmp.eq.s32.totalorder %s15, 0
      %p63 = por %p61, %p62
      %s65 = sadd.s32 %s64, 1
      %p68 = scmp.eq.s32.totalorder %s9, 1
      %p69 = scmp.ne.s32.totalorder %s64, %s66
      %p70 = scmp.eq.s32.totalorder %s9, 0
      %p71 = por %p69, %p70
      %p72 = scmp.ne.s32.totalorder %s64, %s66
      %p73 = scmp.eq.s32.totalorder %s14, 1
      %p74 = por %p72, %p73
      %p75 = scmp.ne.s32.totalorder %s66, %s67
      %p76 = scmp.eq.s32.totalorder %s14, 0
      %p77 = por %p75, %p76
      %p78 = scmp.ne.s32.totalorder %s66, %s67
      %p79 = scmp.eq.s32.totalorder %s15, 1
      %p80 = por %p78, %p79
      %p82 = scmp.ne.s32.totalorder %s67, %s81
      %p83 = scmp.eq.s32.totalorder %s15, 0
      %p84 = por %p82, %p83
      %s85 = ssub.s32 %s9, %s16
      %p86 = scmp.eq.s32.totalorder %s85, 0
      %s88 = sadd.s32 %s87, 1
      %s89 = scalar_select %p86, %s87, %s88
      %p92 = pneg %p86
      %p93 = scmp.eq.s32.totalorder %s9, 1
      %p94 = por %p92, %p93
      %p95 = scmp.ne.s32.totalorder %s87, %s90
      %p96 = scmp.eq.s32.totalorder %s9, 0
      %p97 = por %p95, %p96
      %p98 = scmp.ne.s32.totalorder %s87, %s90
      %p99 = scmp.eq.s32.totalorder %s14, 1
      %p100 = por %p98, %p99
      %p101 = scmp.ne.s32.totalorder %s90, %s91
      %p102 = scmp.eq.s32.totalorder %s14, 0
      %p103 = por %p101, %p102
      %p104 = scmp.ne.s32.totalorder %s90, %s91
      %p105 = scmp.eq.s32.totalorder %s15, 1
      %p106 = por %p104, %p105
      %p108 = scmp.ne.s32.totalorder %s91, %s107
      %p109 = scmp.eq.s32.totalorder %s15, 0
      %p110 = por %p108, %p109
      %p111 = scmp.le.s32.totalorder 1, %s9
      %p112 = scmp.lt.s32.totalorder %s9, 3
      %p113 = pnand %p111, %p112
      %p114 = pneg %p113
      // Predicated region
      $region9: #{encoder_decoder_forward.4} parent=5 // pred_check
        _
      $region10: #{encoder_decoder_forward.4} parent=5 // pred_check_branch
        %116 = sbr.rel (%p113) target = $region12
      $region11: #{encoder_decoder_forward.4} parent=5 // pred_region
        %s117 = ssub.s32 %s9, 1
        // Predicated region
        $region13: #{encoder_decoder_forward.4} parent=11 // pred_check
          %p118 = pneg %p56
        $region14: #{encoder_decoder_forward.4} parent=11 // pred_check_branch
          %120 = sbr.rel (%p118) target = $region16
        $region15: #{encoder_decoder_forward.4} parent=11 // pred_region
          _
        $region16: #{encoder_decoder_forward.4} parent=11 // pred_fallthru
          _
        // Predicated region
        $region17: #{encoder_decoder_forward.4} parent=11 // pred_check
          %p121 = pneg %p77
        $region18: #{encoder_decoder_forward.4} parent=11 // pred_check_branch
          %123 = sbr.rel (%p121) target = $region20
        $region19: #{encoder_decoder_forward.4} parent=11 // pred_region
          _
        $region20: #{encoder_decoder_forward.4} parent=11 // pred_fallthru
          _
      $region12: #{encoder_decoder_forward.4} parent=5 // pred_fallthru
        _
      %p124 = scmp.lt.s32.totalorder %s9, 2
      // Predicated region
      $region21: #{encoder_decoder_forward.4} parent=5 // pred_check
        %p125 = pneg %p124
      $region22: #{encoder_decoder_forward.4} parent=5 // pred_check_branch
        %127 = sbr.rel (%p125) target = $region24
      $region23: #{encoder_decoder_forward.4} parent=5 // pred_region
        // Predicated region
        $region25: #{encoder_decoder_forward.4} parent=23 // pred_check
          %p128 = pneg %p29
        $region26: #{encoder_decoder_forward.4} parent=23 // pred_check_branch
          %130 = sbr.rel (%p128) target = $region28
        $region27: #{encoder_decoder_forward.4} parent=23 // pred_region
          %s131 = sand.u32 %s19, 1
          %s132 = sand.u32 %s19, 1
          %s133 = smul.addr %s132, 128
          %s134 = scalar_lea.vmem [#allocation2], %s133
          %s135 = smul.u32 2, %s9
          %s136 = smul.addr %s135, 2
          %s137 = smul.addr %s136, 8
          %s138 = scalar_lea.vmem %s0, %s137
          // Predicated region
          $region29: #{encoder_decoder_forward.4} parent=27 // pred_check
            _
          $region30: #{encoder_decoder_forward.4} parent=27 // pred_check_branch
            %140 = sbr.rel (0) target = $region32
          $region31: #{encoder_decoder_forward.4} parent=27 // pred_region
            // Predicated region
            $region33: #{encoder_decoder_forward.4} parent=31 // pred_check
              _
            $region34: #{encoder_decoder_forward.4} parent=31 // pred_check_branch
              %142 = sbr.rel (0) target = $region36
            $region35: #{encoder_decoder_forward.4} parent=31 // pred_region
              loop: start=0, step=1, limit=1
              $region37: #{encoder_decoder_forward.4} parent=35 // loop_pre_header
                _
              $region38: #{encoder_decoder_forward.4} parent=35 // loop_header
                %s144 = sphi 0, %s148
                %p145 = scmp.ge.s32.totalorder %s144, 1
                %s149 = sphi %s138, %s138
                %s150 = sphi %s134, %s134
              $region39: #{encoder_decoder_forward.4} parent=35 // loop_header_branch
                %147 = sbr.rel (%p145) target = $region43
              $region40: #{encoder_decoder_forward.4} parent=35 // loop_body
                %v151 = vld [vmem:[%s149] sm:$0xff]
                %152 = vst [vmem:[%s150] sm:$0xff] %v151
                %v153 = vld [vmem:[%s149 + $0x8] sm:$0xff]
                %154 = vst [vmem:[%s150 + $0x8] sm:$0xff] %v153
                %v155 = vld [vmem:[%s149 + $0x10] sm:$0xff]
                %156 = vst [vmem:[%s150 + $0x10] sm:$0xff] %v155
                %v157 = vld [vmem:[%s149 + $0x18] sm:$0xff]
                %158 = vst [vmem:[%s150 + $0x18] sm:$0xff] %v157
                %v159 = vld [vmem:[%s149 + $0x40] sm:$0xff]
                %160 = vst [vmem:[%s150 + $0x20] sm:$0xff] %v159
                %v161 = vld [vmem:[%s149 + $0x48] sm:$0xff]
                %162 = vst [vmem:[%s150 + $0x28] sm:$0xff] %v161
                %v163 = vld [vmem:[%s149 + $0x50] sm:$0xff]
                %164 = vst [vmem:[%s150 + $0x30] sm:$0xff] %v163
                %v165 = vld [vmem:[%s149 + $0x58] sm:$0xff]
                %166 = vst [vmem:[%s150 + $0x38] sm:$0xff] %v165
                %v167 = vld [vmem:[%s149 + $0x80] sm:$0xff]
                %168 = vst [vmem:[%s150 + $0x40] sm:$0xff] %v167
                %v169 = vld [vmem:[%s149 + $0x88] sm:$0xff]
                %170 = vst [vmem:[%s150 + $0x48] sm:$0xff] %v169
                %v171 = vld [vmem:[%s149 + $0x90] sm:$0xff]
                %172 = vst [vmem:[%s150 + $0x50] sm:$0xff] %v171
                %v173 = vld [vmem:[%s149 + $0x98] sm:$0xff]
                %174 = vst [vmem:[%s150 + $0x58] sm:$0xff] %v173
                %v175 = vld [vmem:[%s149 + $0xc0] sm:$0xff]
                %176 = vst [vmem:[%s150 + $0x60] sm:$0xff] %v175
                %v177 = vld [vmem:[%s149 + $0xc8] sm:$0xff]
                %178 = vst [vmem:[%s150 + $0x68] sm:$0xff] %v177
                %v179 = vld [vmem:[%s149 + $0xd0] sm:$0xff]
                %180 = vst [vmem:[%s150 + $0x70] sm:$0xff] %v179
                %v181 = vld [vmem:[%s149 + $0xd8] sm:$0xff]
                %182 = vst [vmem:[%s150 + $0x78] sm:$0xff] %v181
              $region41: #{encoder_decoder_forward.4} parent=35 // loop_footer
                %s148 = sadd.s32 1, %s144
              $region42: #{encoder_decoder_forward.4} parent=35 // loop_footer_branch
                %143 = sbr.rel target = $region38
              $region43: #{encoder_decoder_forward.4} parent=35 // loop_exit
                _
            $region36: #{encoder_decoder_forward.4} parent=31 // pred_fallthru
              _
            // Predicated region
            $region44: #{encoder_decoder_forward.4} parent=31 // pred_check
              _
            $region45: #{encoder_decoder_forward.4} parent=31 // pred_check_branch
              %184 = sbr.rel target = $region47
            $region46: #{encoder_decoder_forward.4} parent=31 // pred_region
              _
            $region47: #{encoder_decoder_forward.4} parent=31 // pred_fallthru
              _
          $region32: #{encoder_decoder_forward.4} parent=27 // pred_fallthru
            _
          %185 = vnop
        $region28: #{encoder_decoder_forward.4} parent=23 // pred_fallthru
          _
      $region24: #{encoder_decoder_forward.4} parent=5 // pred_fallthru
        _
      %p186 = scmp.le.s32.totalorder 1, %s9
      %p187 = scmp.lt.s32.totalorder %s9, 3
      %p188 = pnand %p186, %p187
      %p189 = pneg %p188
      // Predicated region
      $region48: #{encoder_decoder_forward.4} parent=5 // pred_check
        _
      $region49: #{encoder_decoder_forward.4} parent=5 // pred_check_branch
        %191 = sbr.rel (%p188) target = $region51
      $region50: #{encoder_decoder_forward.4} parent=5 // pred_region
        %s192 = ssub.s32 %s9, 1
        %s193 = sand.u32 %s22, 1
        %s194 = sand.u32 %s22, 1
        %s195 = smul.addr %s194, 128
        %s196 = scalar_lea.vmem [#allocation2], %s195
        // Predicated region
        $region52: #{encoder_decoder_forward.4} parent=50 // pred_check
          %p197 = pneg %p35
        $region53: #{encoder_decoder_forward.4} parent=50 // pred_check_branch
          %199 = sbr.rel (%p197) target = $region55
        $region54: #{encoder_decoder_forward.4} parent=50 // pred_region
          _
        $region55: #{encoder_decoder_forward.4} parent=50 // pred_fallthru
          _
        %s200 = sand.u32 %s22, 1
        %s201 = sand.u32 %s22, 1
        %s202 = smul.addr %s201, 128
        %s203 = scalar_lea.vmem [#allocation2], %s202
        %p204 = pneg %p35
        %p205 = pneg %p32
        %p206 = pneg %p56
        %p207 = pneg %p53
        %p208 = pneg %p77
        %p209 = pneg %p74
        %p210 = pneg %p103
        %p211 = pneg %p100
        %s212 = smul.u32 2, %s14
        %p213 = scmp.lt.s32.totalorder %s212, 3
        %s214 = scalar_select %p213, %s212, 3
        %s215 = smul.addr %s214, 8
        %s216 = scalar_lea.vmem %s3, %s215
        %s217 = smul.u32 2, %s14
        %s218 = smul.u32 2, %s14
        %p219 = scmp.lt.s32.totalorder %s218, 3
        %s220 = scalar_select %p219, %s218, 3
        %s221 = smul.addr %s220, 8
        %s222 = scalar_lea.vmem %s3, %s221
        %s223 = smul.u32 2, %s14
        %v224 = vld [vmem:[%s196] sm:$0xff]
        %v225 = vld [vmem:[%s196 + $0x8] sm:$0xff]
        %v226 = vld [vmem:[%s196 + $0x10] sm:$0xff]
        %v227 = vld [vmem:[%s196 + $0x18] sm:$0xff]
        %v228 = vld [vmem:[%s1] sm:$0xff]
        %v229 = vld [vmem:[%s1 + $0x8] sm:$0xff]
        %v230 = vld [vmem:[%s1 + $0x10] sm:$0xff]
        %v231 = vld [vmem:[%s1 + $0x18] sm:$0xff]
        %v232 = vld [vmem:[%s1 + $0x20] sm:$0xff]
        %v233 = vld [vmem:[%s1 + $0x28] sm:$0xff]
        %v234 = vld [vmem:[%s1 + $0x30] sm:$0xff]
        %v235 = vld [vmem:[%s1 + $0x38] sm:$0xff]
        %v236 = vld [vmem:[%s1 + $0x40] sm:$0xff]
        %v237 = vld [vmem:[%s1 + $0x48] sm:$0xff]
        %v238 = vld [vmem:[%s1 + $0x50] sm:$0xff]
        %v239 = vld [vmem:[%s1 + $0x58] sm:$0xff]
        %v240 = vld [vmem:[%s1 + $0x60] sm:$0xff]
        %v241 = vld [vmem:[%s1 + $0x68] sm:$0xff]
        %v242 = vld [vmem:[%s1 + $0x70] sm:$0xff]
        %v243 = vld [vmem:[%s1 + $0x78] sm:$0xff]
        %v244 = vld [vmem:[%s1 + $0x80] sm:$0xff]
        %v245 = vld [vmem:[%s1 + $0x88] sm:$0xff]
        %vm246 = vcmask 130048
        %v248 = vsel %vm246, %v225, 0
        %v251 = vsel %vm246, %v227, 0
        %253 = vmatprep.subr.mxu0 0.0
        %254 = vmatpush1.msra.mxu0 %v228
        %255 = vmatprep.subr.mxu0 0.0
        %256 = vmatpush1.msra.mxu0 %v229
        %257 = vmatprep.subr.mxu0 0.0
        %258 = vmatpush1.msra.mxu0 %v230
        %259 = vmatprep.subr.mxu0 0.0
        %260 = vmatpush1.msra.mxu0 %v231
        %261 = vmatprep.subr.mxu0 0.0
        %262 = vmatpush1.msra.mxu0 %v232
        %263 = vmatprep.subr.mxu0 0.0
        %264 = vmatpush1.msra.mxu0 %v233
        %265 = vmatprep.subr.mxu0 0.0
        %266 = vmatpush1.msra.mxu0 %v234
        %267 = vmatprep.subr.mxu0 0.0
        %268 = vmatpush1.msra.mxu0 %v235
        %269 = vmatprep.subr.mxu0 0.0
        %270 = vmatpush1.msra.mxu0 %v236
        %271 = vmatprep.subr.mxu0 0.0
        %272 = vmatpush1.msra.mxu0 %v237
        %273 = vmatprep.subr.mxu0 0.0
        %274 = vmatpush1.msra.mxu0 %v238
        %275 = vmatprep.subr.mxu0 0.0
        %276 = vmatpush1.msra.mxu0 %v239
        %277 = vmatprep.subr.mxu0 0.0
        %278 = vmatpush1.msra.mxu0 %v240
        %279 = vmatprep.subr.mxu0 0.0
        %280 = vmatpush1.msra.mxu0 %v241
        %281 = vmatprep.subr.mxu0 0.0
        %282 = vmatpush1.msra.mxu0 %v242
        %283 = vmatprep.subr.mxu0 0.0
        %284 = vmatpush1.msra.mxu0 %v243
        %285 = vmatprep.subr.mxu0 0.0
        %286 = vmatpush1.msra.mxu0 %v244
        %287 = vmatprep.subr.mxu0 0.0
        %288 = vmatpush1.msra.mxu0 %v245
        %289 = vmatprep.subr.mxu0 0.0
        %290 = vmatpush1.msra.mxu0 0.0
        %291 = vmatprep.subr.mxu0 0.0
        %292 = vmatpush1.msra.mxu0 0.0
        %293 = vmatprep.subr.mxu0 0.0
        %294 = vmatpush1.msra.mxu0 0.0
        %295 = vmatprep.subr.mxu0 0.0
        %296 = vmatpush1.msra.mxu0 0.0
        %297 = vmatprep.subr.mxu0 0.0
        %298 = vmatpush1.msra.mxu0 0.0
        %299 = vmatprep.subr.mxu0 0.0
        %300 = vmatpush1.msra.mxu0 0.0
        %301 = vmatprep.subr.mxu0 0.0
        %302 = vmatpush1.msra.mxu0 0.0
        %303 = vmatprep.subr.mxu0 0.0
        %304 = vmatpush1.msra.mxu0 0.0
        %305 = vmatprep.subr.mxu0 0.0
        %306 = vmatpush1.msra.mxu0 0.0
        %307 = vmatprep.subr.mxu0 0.0
        %308 = vmatpush1.msra.mxu0 0.0
        %309 = vmatprep.subr.mxu0 0.0
        %310 = vmatpush1.msra.mxu0 0.0
        %311 = vmatprep.subr.mxu0 0.0
        %312 = vmatpush1.msra.mxu0 0.0
        %313 = vmatprep.subr.mxu0 0.0
        %314 = vmatpush1.msra.mxu0 0.0
        %315 = vmatprep.subr.mxu0 0.0
        %316 = vmatpush1.msra.mxu0 0.0
        %317 = vmatprep.mubr.f32.mxu0 %v248
        %318 = vmatmul.mubr.f32.gmra.mrb[0].mxu0 %v224
        %v319 = vpop.f32.mrb[0].mxu0
        %v320 = vadd.f32 0.0, %v319
        %v321 = vpop.f32.mrb[0].mxu0
        %322 = vmatprep.mubr.f32.mxu0 %v251
        %323 = vmatmul.mubr.f32.gmra.mrb[0].mxu0 %v226
        %v324 = vpop.f32.mrb[0].mxu0
        %v325 = vadd.f32 0.0, %v324
        %v326 = vpop.f32.mrb[0].mxu0
        %327 = vdwg.mxu0
        %s328 = scalar_lea.vmem %s196, 32 [#allocation2]
        %v329 = vld [vmem:[%s328] sm:$0xff]
        %v330 = vld [vmem:[%s328 + $0x8] sm:$0xff]
        %v331 = vld [vmem:[%s328 + $0x10] sm:$0xff]
        %v332 = vld [vmem:[%s328 + $0x18] sm:$0xff]
        %v334 = vsel %vm246, %v330, 0
        %v337 = vsel %vm246, %v332, 0
        %339 = vmatprep.subr.mxu0 0.0
        %340 = vmatpush1.msra.mxu0 %v228
        %341 = vmatprep.subr.mxu0 0.0
        %342 = vmatpush1.msra.mxu0 %v229
        %343 = vmatprep.subr.mxu0 0.0
        %344 = vmatpush1.msra.mxu0 %v230
        %345 = vmatprep.subr.mxu0 0.0
        %346 = vmatpush1.msra.mxu0 %v231
        %347 = vmatprep.subr.mxu0 0.0
        %348 = vmatpush1.msra.mxu0 %v232
        %349 = vmatprep.subr.mxu0 0.0
        %350 = vmatpush1.msra.mxu0 %v233
        %351 = vmatprep.subr.mxu0 0.0
        %352 = vmatpush1.msra.mxu0 %v234
        %353 = vmatprep.subr.mxu0 0.0
        %354 = vmatpush1.msra.mxu0 %v235
        %355 = vmatprep.subr.mxu0 0.0
        %356 = vmatpush1.msra.mxu0 %v236
        %357 = vmatprep.subr.mxu0 0.0
        %358 = vmatpush1.msra.mxu0 %v237
        %359 = vmatprep.subr.mxu0 0.0
        %360 = vmatpush1.msra.mxu0 %v238
        %361 = vmatprep.subr.mxu0 0.0
        %362 = vmatpush1.msra.mxu0 %v239
        %363 = vmatprep.subr.mxu0 0.0
        %364 = vmatpush1.msra.mxu0 %v240
        %365 = vmatprep.subr.mxu0 0.0
        %366 = vmatpush1.msra.mxu0 %v241
        %367 = vmatprep.subr.mxu0 0.0
        %368 = vmatpush1.msra.mxu0 %v242
        %369 = vmatprep.subr.mxu0 0.0
        %370 = vmatpush1.msra.mxu0 %v243
        %371 = vmatprep.subr.mxu0 0.0
        %372 = vmatpush1.msra.mxu0 %v244
        %373 = vmatprep.subr.mxu0 0.0
        %374 = vmatpush1.msra.mxu0 %v245
        %375 = vmatprep.subr.mxu0 0.0
        %376 = vmatpush1.msra.mxu0 0.0
        %377 = vmatprep.subr.mxu0 0.0
        %378 = vmatpush1.msra.mxu0 0.0
        %379 = vmatprep.subr.mxu0 0.0
        %380 = vmatpush1.msra.mxu0 0.0
        %381 = vmatprep.subr.mxu0 0.0
        %382 = vmatpush1.msra.mxu0 0.0
        %383 = vmatprep.subr.mxu0 0.0
        %384 = vmatpush1.msra.mxu0 0.0
        %385 = vmatprep.subr.mxu0 0.0
        %386 = vmatpush1.msra.mxu0 0.0
        %387 = vmatprep.subr.mxu0 0.0
        %388 = vmatpush1.msra.mxu0 0.0
        %389 = vmatprep.subr.mxu0 0.0
        %390 = vmatpush1.msra.mxu0 0.0
        %391 = vmatprep.subr.mxu0 0.0
        %392 = vmatpush1.msra.mxu0 0.0
        %393 = vmatprep.subr.mxu0 0.0
        %394 = vmatpush1.msra.mxu0 0.0
        %395 = vmatprep.subr.mxu0 0.0
        %396 = vmatpush1.msra.mxu0 0.0
        %397 = vmatprep.subr.mxu0 0.0
        %398 = vmatpush1.msra.mxu0 0.0
        %399 = vmatprep.subr.mxu0 0.0
        %400 = vmatpush1.msra.mxu0 0.0
        %401 = vmatprep.subr.mxu0 0.0
        %402 = vmatpush1.msra.mxu0 0.0
        %403 = vmatprep.mubr.f32.mxu0 %v334
        %404 = vmatmul.mubr.f32.gmra.mrb[0].mxu0 %v329
        %v405 = vpop.f32.mrb[0].mxu0
        %v406 = vadd.f32 0.0, %v405
        %v407 = vpop.f32.mrb[0].mxu0
        %408 = vmatprep.mubr.f32.mxu0 %v337
        %409 = vmatmul.mubr.f32.gmra.mrb[0].mxu0 %v331
        %v410 = vpop.f32.mrb[0].mxu0
        %v411 = vadd.f32 0.0, %v410
        %v412 = vpop.f32.mrb[0].mxu0
        %413 = vdwg.mxu0
        %v414 = vmax.f32 %v320, %v406
        %v415 = vmax.f32 %v325, %v411
        %s416 = scalar_lea.vmem %s196, 64 [#allocation2]
        %v417 = vld [vmem:[%s416] sm:$0xff]
        %v418 = vld [vmem:[%s416 + $0x8] sm:$0xff]
        %v419 = vld [vmem:[%s416 + $0x10] sm:$0xff]
        %v420 = vld [vmem:[%s416 + $0x18] sm:$0xff]
        %v422 = vsel %vm246, %v418, 0
        %v425 = vsel %vm246, %v420, 0
        %427 = vmatprep.subr.mxu0 0.0
        %428 = vmatpush1.msra.mxu0 %v228
        %429 = vmatprep.subr.mxu0 0.0
        %430 = vmatpush1.msra.mxu0 %v229
        %431 = vmatprep.subr.mxu0 0.0
        %432 = vmatpush1.msra.mxu0 %v230
        %433 = vmatprep.subr.mxu0 0.0
        %434 = vmatpush1.msra.mxu0 %v231
        %435 = vmatprep.subr.mxu0 0.0
        %436 = vmatpush1.msra.mxu0 %v232
        %437 = vmatprep.subr.mxu0 0.0
        %438 = vmatpush1.msra.mxu0 %v233
        %439 = vmatprep.subr.mxu0 0.0
        %440 = vmatpush1.msra.mxu0 %v234
        %441 = vmatprep.subr.mxu0 0.0
        %442 = vmatpush1.msra.mxu0 %v235
        %443 = vmatprep.subr.mxu0 0.0
        %444 = vmatpush1.msra.mxu0 %v236
        %445 = vmatprep.subr.mxu0 0.0
        %446 = vmatpush1.msra.mxu0 %v237
        %447 = vmatprep.subr.mxu0 0.0
        %448 = vmatpush1.msra.mxu0 %v238
        %449 = vmatprep.subr.mxu0 0.0
        %450 = vmatpush1.msra.mxu0 %v239
        %451 = vmatprep.subr.mxu0 0.0
        %452 = vmatpush1.msra.mxu0 %v240
        %453 = vmatprep.subr.mxu0 0.0
        %454 = vmatpush1.msra.mxu0 %v241
        %455 = vmatprep.subr.mxu0 0.0
        %456 = vmatpush1.msra.mxu0 %v242
        %457 = vmatprep.subr.mxu0 0.0
        %458 = vmatpush1.msra.mxu0 %v243
        %459 = vmatprep.subr.mxu0 0.0
        %460 = vmatpush1.msra.mxu0 %v244
        %461 = vmatprep.subr.mxu0 0.0
        %462 = vmatpush1.msra.mxu0 %v245
        %463 = vmatprep.subr.mxu0 0.0
        %464 = vmatpush1.msra.mxu0 0.0
        %465 = vmatprep.subr.mxu0 0.0
        %466 = vmatpush1.msra.mxu0 0.0
        %467 = vmatprep.subr.mxu0 0.0
        %468 = vmatpush1.msra.mxu0 0.0
        %469 = vmatprep.subr.mxu0 0.0
        %470 = vmatpush1.msra.mxu0 0.0
        %471 = vmatprep.subr.mxu0 0.0
        %472 = vmatpush1.msra.mxu0 0.0
        %473 = vmatprep.subr.mxu0 0.0
        %474 = vmatpush1.msra.mxu0 0.0
        %475 = vmatprep.subr.mxu0 0.0
        %476 = vmatpush1.msra.mxu0 0.0
        %477 = vmatprep.subr.mxu0 0.0
        %478 = vmatpush1.msra.mxu0 0.0
        %479 = vmatprep.subr.mxu0 0.0
        %480 = vmatpush1.msra.mxu0 0.0
        %481 = vmatprep.subr.mxu0 0.0
        %482 = vmatpush1.msra.mxu0 0.0
        %483 = vmatprep.subr.mxu0 0.0
        %484 = vmatpush1.msra.mxu0 0.0
        %485 = vmatprep.subr.mxu0 0.0
        %486 = vmatpush1.msra.mxu0 0.0
        %487 = vmatprep.subr.mxu0 0.0
        %488 = vmatpush1.msra.mxu0 0.0
        %489 = vmatprep.subr.mxu0 0.0
        %490 = vmatpush1.msra.mxu0 0.0
        %491 = vmatprep.mubr.f32.mxu0 %v422
        %492 = vmatmul.mubr.f32.gmra.mrb[0].mxu0 %v417
        %v493 = vpop.f32.mrb[0].mxu0
        %v494 = vadd.f32 0.0, %v493
        %v495 = vpop.f32.mrb[0].mxu0
        %496 = vmatprep.mubr.f32.mxu0 %v425
        %497 = vmatmul.mubr.f32.gmra.mrb[0].mxu0 %v419
        %v498 = vpop.f32.mrb[0].mxu0
        %v499 = vadd.f32 0.0, %v498
        %v500 = vpop.f32.mrb[0].mxu0
        %501 = vdwg.mxu0
        %v502 = vmax.f32 %v414, %v494
        %v503 = vmax.f32 %v415, %v499
        %s504 = scalar_lea.vmem %s196, 96 [#allocation2]
        %v505 = vld [vmem:[%s504] sm:$0xff]
        %v506 = vld [vmem:[%s504 + $0x8] sm:$0xff]
        %v507 = vld [vmem:[%s504 + $0x10] sm:$0xff]
        %v508 = vld [vmem:[%s504 + $0x18] sm:$0xff]
        %v510 = vsel %vm246, %v506, 0
        %v513 = vsel %vm246, %v508, 0
        %515 = vmatprep.subr.mxu0 0.0
        %516 = vmatpush1.msra.mxu0 %v228
        %517 = vmatprep.subr.mxu0 0.0
        %518 = vmatpush1.msra.mxu0 %v229
        %519 = vmatprep.subr.mxu0 0.0
        %520 = vmatpush1.msra.mxu0 %v230
        %521 = vmatprep.subr.mxu0 0.0
        %522 = vmatpush1.msra.mxu0 %v231
        %523 = vmatprep.subr.mxu0 0.0
        %524 = vmatpush1.msra.mxu0 %v232
        %525 = vmatprep.subr.mxu0 0.0
        %526 = vmatpush1.msra.mxu0 %v233
        %527 = vmatprep.subr.mxu0 0.0
        %528 = vmatpush1.msra.mxu0 %v234
        %529 = vmatprep.subr.mxu0 0.0
        %530 = vmatpush1.msra.mxu0 %v235
        %531 = vmatprep.subr.mxu0 0.0
        %532 = vmatpush1.msra.mxu0 %v236
        %533 = vmatprep.subr.mxu0 0.0
        %534 = vmatpush1.msra.mxu0 %v237
        %535 = vmatprep.subr.mxu0 0.0
        %536 = vmatpush1.msra.mxu0 %v238
        %537 = vmatprep.subr.mxu0 0.0
        %538 = vmatpush1.msra.mxu0 %v239
        %539 = vmatprep.subr.mxu0 0.0
        %540 = vmatpush1.msra.mxu0 %v240
        %541 = vmatprep.subr.mxu0 0.0
        %542 = vmatpush1.msra.mxu0 %v241
        %543 = vmatprep.subr.mxu0 0.0
        %544 = vmatpush1.msra.mxu0 %v242
        %545 = vmatprep.subr.mxu0 0.0
        %546 = vmatpush1.msra.mxu0 %v243
        %547 = vmatprep.subr.mxu0 0.0
        %548 = vmatpush1.msra.mxu0 %v244
        %549 = vmatprep.subr.mxu0 0.0
        %550 = vmatpush1.msra.mxu0 %v245
        %551 = vmatprep.subr.mxu0 0.0
        %552 = vmatpush1.msra.mxu0 0.0
        %553 = vmatprep.subr.mxu0 0.0
        %554 = vmatpush1.msra.mxu0 0.0
        %555 = vmatprep.subr.mxu0 0.0
        %556 = vmatpush1.msra.mxu0 0.0
        %557 = vmatprep.subr.mxu0 0.0
        %558 = vmatpush1.msra.mxu0 0.0
        %559 = vmatprep.subr.mxu0 0.0
        %560 = vmatpush1.msra.mxu0 0.0
        %561 = vmatprep.subr.mxu0 0.0
        %562 = vmatpush1.msra.mxu0 0.0
        %563 = vmatprep.subr.mxu0 0.0
        %564 = vmatpush1.msra.mxu0 0.0
        %565 = vmatprep.subr.mxu0 0.0
        %566 = vmatpush1.msra.mxu0 0.0
        %567 = vmatprep.subr.mxu0 0.0
        %568 = vmatpush1.msra.mxu0 0.0
        %569 = vmatprep.subr.mxu0 0.0
        %570 = vmatpush1.msra.mxu0 0.0
        %571 = vmatprep.subr.mxu0 0.0
        %572 = vmatpush1.msra.mxu0 0.0
        %573 = vmatprep.subr.mxu0 0.0
        %574 = vmatpush1.msra.mxu0 0.0
        %575 = vmatprep.subr.mxu0 0.0
        %576 = vmatpush1.msra.mxu0 0.0
        %577 = vmatprep.subr.mxu0 0.0
        %578 = vmatpush1.msra.mxu0 0.0
        %579 = vmatprep.mubr.f32.mxu0 %v510
        %580 = vmatmul.mubr.f32.gmra.mrb[0].mxu0 %v505
        %v581 = vpop.f32.mrb[0].mxu0
        %v582 = vadd.f32 0.0, %v581
        %v583 = vpop.f32.mrb[0].mxu0
        %584 = vmatprep.mubr.f32.mxu0 %v513
        %585 = vmatmul.mubr.f32.gmra.mrb[0].mxu0 %v507
        %v586 = vpop.f32.mrb[0].mxu0
        %v587 = vadd.f32 0.0, %v586
        %v588 = vpop.f32.mrb[0].mxu0
        %589 = vdwg.mxu0
        %v590 = vmax.f32 %v502, %v582
        %v591 = vmax.f32 %v503, %v587
        %v592 = vld [vmem:[%s2] sm:$0x1]
        %v594 = vlaneseq
        %v595 = vshrl.u32 %v594, 7
        %v596 = vsub.s32 0, %v595
        %v597 = vrot.slane %v592, %v596
        %v599 = vadd.f32 %v590, %v597
        %v600 = vadd.f32 %v591, %v597
        %v601 = vmax.f32 %v599, 0.0
        %v602 = vmax.f32 %v600, 0.0
        %603 = vst [vmem:[%s222] sm:$0xff] %v601
        %604 = vst [vmem:[%s222 + $0x8] sm:$0xff] %v602
        %s605 = smul.u32 2, %s14
        %p606 = scmp.lt.s32.totalorder %s605, 3
        %s607 = scalar_select %p606, %s605, 3
        %s608 = smul.addr %s607, 8
        %s609 = scalar_lea.vmem %s3, %s608
        // Predicated region
        $region56: #{encoder_decoder_forward.4} parent=50 // pred_check
          %p610 = pneg %p100
        $region57: #{encoder_decoder_forward.4} parent=50 // pred_check_branch
          %612 = sbr.rel (%p610) target = $region59
        $region58: #{encoder_decoder_forward.4} parent=50 // pred_region
          %s613 = smul.u32 2, %s14
        $region59: #{encoder_decoder_forward.4} parent=50 // pred_fallthru
          _
      $region51: #{encoder_decoder_forward.4} parent=5 // pred_fallthru
        _
      %p614 = scmp.le.s32.totalorder 2, %s9
      // Predicated region
      $region60: #{encoder_decoder_forward.4} parent=5 // pred_check
        %p615 = pneg %p614
      $region61: #{encoder_decoder_forward.4} parent=5 // pred_check_branch
        %617 = sbr.rel (%p615) target = $region63
      $region62: #{encoder_decoder_forward.4} parent=5 // pred_region
        %s618 = ssub.s32 %s9, 2
        // Predicated region
        $region64: #{encoder_decoder_forward.4} parent=62 // pred_check
          %p619 = pneg %p106
        $region65: #{encoder_decoder_forward.4} parent=62 // pred_check_branch
          %621 = sbr.rel (%p619) target = $region67
        $region66: #{encoder_decoder_forward.4} parent=62 // pred_region
          %s622 = smul.u32 2, %s15
          %p623 = scmp.lt.s32.totalorder %s622, 3
          %s624 = scalar_select %p623, %s622, 3
          %s625 = smul.addr %s624, 8
          %s626 = scalar_lea.vmem %s3, %s625
        $region67: #{encoder_decoder_forward.4} parent=62 // pred_fallthru
          _
      $region63: #{encoder_decoder_forward.4} parent=5 // pred_fallthru
        _
    $region6: #{encoder_decoder_forward.4} parent=1 // loop_footer
      %s13 = sadd.s32 1, %s9
    $region7: #{encoder_decoder_forward.4} parent=1 // loop_footer_branch
      %8 = sbr.rel target = $region3
    $region8: #{encoder_decoder_forward.4} parent=1 // loop_exit
      _

// kernel: encoder_decoder_forward.5
$region0: #{encoder_decoder_forward.5}
  #allocation0 [shape = 'u32[]', space=smem, size = 0x4, offset = 0x4, fixed_abs, tag = 'smem constant byte address 0x4 - core index']
  #allocation1 [shape = 'u32[144,128]{1,0:T(1,128)}', space=vmem, size = 0x12000, scoped, tag = 'internal scratch']
  %s0 = inlined_call_operand.vmem [shape: f32[2,16,128], index: 0, kind: input, shape index: {}]
  %s1 = inlined_call_operand.vmem [shape: f32[2,16,512], index: 1, kind: input, shape index: {}]
  %s2 = inlined_call_operand.vmem [shape: f32[7,2,512], index: 2, kind: input, shape index: {}]
  %s3 = inlined_call_operand.vmem [shape: f32[2,256], index: 3, kind: input, shape index: {}]
  %s4 = inlined_call_operand.vmem [shape: f32[128,768], index: 4, kind: input, shape index: {}]
  %s5 = inlined_call_operand.vmem [shape: f32[1,256], index: 5, kind: input, shape index: {}]
  %s6 = inlined_call_operand.vmem [shape: f32[7,2,128], index: 6, kind: output, shape index: {0}]
  %s7 = inlined_call_operand.hbm [shape: f32[7,2,16], index: 7, kind: output, shape index: {1}]
  %8 = xla_tuple %s6, %s7
  %s9 = sld [smem:[#allocation0]]
  $region42: #{encoder_decoder_forward.5} parent=0
    _
  %s11 = ssub.s32 1, %s9
  %s12 = scalar_select 0, %s11, %s9
  $region1: #{encoder_decoder_forward.5} parent=0
    #allocation2 [shape = 'u8[7168]{0}', space=vmem, size = 0x1c00, scoped, tag = 'output window, operand 1, single buffered']
    #allocation3 [shape = 's32[1]{0}', space=sflag, size = 0x4, scoped, tag = 'scoped memory for encoder_decoder_forward.5']
    %13 = vsyncpa [#allocation3], 0
    // Predicated region
    $region2: #{encoder_decoder_forward.5} parent=1 // pred_check
      _
    $region3: #{encoder_decoder_forward.5} parent=1 // pred_check_branch
      %15 = sbr.rel (0) target = $region5
    $region4: #{encoder_decoder_forward.5} parent=1 // pred_region
      _
    $region5: #{encoder_decoder_forward.5} parent=1 // pred_fallthru
      _
    // Predicated region
    $region6: #{encoder_decoder_forward.5} parent=1 // pred_check
      _
    $region7: #{encoder_decoder_forward.5} parent=1 // pred_check_branch
      %17 = sbr.rel (0) target = $region9
    $region8: #{encoder_decoder_forward.5} parent=1 // pred_region
      _
    $region9: #{encoder_decoder_forward.5} parent=1 // pred_fallthru
      _
    // Predicated region
    $region10: #{encoder_decoder_forward.5} parent=1 // pred_check
      _
    $region11: #{encoder_decoder_forward.5} parent=1 // pred_check_branch
      %19 = sbr.rel (0) target = $region13
    $region12: #{encoder_decoder_forward.5} parent=1 // pred_region
      _
    $region13: #{encoder_decoder_forward.5} parent=1 // pred_fallthru
      _
    // Predicated region
    $region14: #{encoder_decoder_forward.5} parent=1 // pred_check
      _
    $region15: #{encoder_decoder_forward.5} parent=1 // pred_check_branch
      %21 = sbr.rel (0) target = $region17
    $region16: #{encoder_decoder_forward.5} parent=1 // pred_region
      _
    $region17: #{encoder_decoder_forward.5} parent=1 // pred_fallthru
      _
    // Predicated region
    $region18: #{encoder_decoder_forward.5} parent=1 // pred_check
      _
    $region19: #{encoder_decoder_forward.5} parent=1 // pred_check_branch
      %23 = sbr.rel (0) target = $region21
    $region20: #{encoder_decoder_forward.5} parent=1 // pred_region
      _
    $region21: #{encoder_decoder_forward.5} parent=1 // pred_fallthru
      _
    // Predicated region
    $region22: #{encoder_decoder_forward.5} parent=1 // pred_check
      _
    $region23: #{encoder_decoder_forward.5} parent=1 // pred_check_branch
      %25 = sbr.rel (0) target = $region25
    $region24: #{encoder_decoder_forward.5} parent=1 // pred_region
      _
    $region25: #{encoder_decoder_forward.5} parent=1 // pred_fallthru
      _
    %v26 = vld [vmem:[%s3] sm:$0xf]
    %v27 = vld [vmem:[%s4] sm:$0xff]
    %v28 = vld [vmem:[%s4 + $0x8] sm:$0xff]
    %v29 = vld [vmem:[%s4 + $0x10] sm:$0xff]
    %v30 = vld [vmem:[%s4 + $0x18] sm:$0xff]
    %v31 = vld [vmem:[%s4 + $0x20] sm:$0xff]
    %v32 = vld [vmem:[%s4 + $0x28] sm:$0xff]
    %v33 = vld [vmem:[%s4 + $0x30] sm:$0xff]
    %v34 = vld [vmem:[%s4 + $0x38] sm:$0xff]
    %v35 = vld [vmem:[%s4 + $0x40] sm:$0xff]
    %v36 = vld [vmem:[%s4 + $0x48] sm:$0xff]
    %v37 = vld [vmem:[%s4 + $0x50] sm:$0xff]
    %v38 = vld [vmem:[%s4 + $0x58] sm:$0xff]
    %v39 = vld [vmem:[%s4 + $0x60] sm:$0xff]
    %v40 = vld [vmem:[%s4 + $0x68] sm:$0xff]
    %v41 = vld [vmem:[%s4 + $0x70] sm:$0xff]
    %v42 = vld [vmem:[%s4 + $0x78] sm:$0xff]
    %v43 = vld [vmem:[%s4 + $0x80] sm:$0xff]
    %v44 = vld [vmem:[%s4 + $0x88] sm:$0xff]
    %v45 = vld [vmem:[%s4 + $0x90] sm:$0xff]
    %v46 = vld [vmem:[%s4 + $0x98] sm:$0xff]
    %v47 = vld [vmem:[%s4 + $0xa0] sm:$0xff]
    %v48 = vld [vmem:[%s4 + $0xa8] sm:$0xff]
    %v49 = vld [vmem:[%s4 + $0xb0] sm:$0xff]
    %v50 = vld [vmem:[%s4 + $0xb8] sm:$0xff]
    %v51 = vld [vmem:[%s4 + $0xc0] sm:$0xff]
    %v52 = vld [vmem:[%s4 + $0xc8] sm:$0xff]
    %v53 = vld [vmem:[%s4 + $0xd0] sm:$0xff]
    %v54 = vld [vmem:[%s4 + $0xd8] sm:$0xff]
    %v55 = vld [vmem:[%s4 + $0xe0] sm:$0xff]
    %v56 = vld [vmem:[%s4 + $0xe8] sm:$0xff]
    %v57 = vld [vmem:[%s4 + $0xf0] sm:$0xff]
    %v58 = vld [vmem:[%s4 + $0xf8] sm:$0xff]
    %v59 = vld [vmem:[%s4 + $0x100] sm:$0xff]
    %v60 = vld [vmem:[%s4 + $0x108] sm:$0xff]
    %v61 = vld [vmem:[%s4 + $0x110] sm:$0xff]
    %v62 = vld [vmem:[%s4 + $0x118] sm:$0xff]
    %v63 = vld [vmem:[%s4 + $0x120] sm:$0xff]
    %v64 = vld [vmem:[%s4 + $0x128] sm:$0xff]
    %v65 = vld [vmem:[%s4 + $0x130] sm:$0xff]
    %v66 = vld [vmem:[%s4 + $0x138] sm:$0xff]
    %v67 = vld [vmem:[%s4 + $0x140] sm:$0xff]
    %v68 = vld [vmem:[%s4 + $0x148] sm:$0xff]
    %v69 = vld [vmem:[%s4 + $0x150] sm:$0xff]
    %v70 = vld [vmem:[%s4 + $0x158] sm:$0xff]
    %v71 = vld [vmem:[%s4 + $0x160] sm:$0xff]
    %v72 = vld [vmem:[%s4 + $0x168] sm:$0xff]
    %v73 = vld [vmem:[%s4 + $0x170] sm:$0xff]
    %v74 = vld [vmem:[%s4 + $0x178] sm:$0xff]
    %v75 = vld [vmem:[%s4 + $0x180] sm:$0xff]
    %v76 = vld [vmem:[%s4 + $0x188] sm:$0xff]
    %v77 = vld [vmem:[%s4 + $0x190] sm:$0xff]
    %v78 = vld [vmem:[%s4 + $0x198] sm:$0xff]
    %v79 = vld [vmem:[%s4 + $0x1a0] sm:$0xff]
    %v80 = vld [vmem:[%s4 + $0x1a8] sm:$0xff]
    %v81 = vld [vmem:[%s4 + $0x1b0] sm:$0xff]
    %v82 = vld [vmem:[%s4 + $0x1b8] sm:$0xff]
    %v83 = vld [vmem:[%s4 + $0x1c0] sm:$0xff]
    %v84 = vld [vmem:[%s4 + $0x1c8] sm:$0xff]
    %v85 = vld [vmem:[%s4 + $0x1d0] sm:$0xff]
    %v86 = vld [vmem:[%s4 + $0x1d8] sm:$0xff]
    %v87 = vld [vmem:[%s4 + $0x1e0] sm:$0xff]
    %v88 = vld [vmem:[%s4 + $0x1e8] sm:$0xff]
    %v89 = vld [vmem:[%s4 + $0x1f0] sm:$0xff]
    %v90 = vld [vmem:[%s4 + $0x1f8] sm:$0xff]
    %v91 = vld [vmem:[%s4 + $0x200] sm:$0xff]
    %v92 = vld [vmem:[%s4 + $0x208] sm:$0xff]
    %v93 = vld [vmem:[%s4 + $0x210] sm:$0xff]
    %v94 = vld [vmem:[%s4 + $0x218] sm:$0xff]
    %v95 = vld [vmem:[%s4 + $0x220] sm:$0xff]
    %v96 = vld [vmem:[%s4 + $0x228] sm:$0xff]
    %v97 = vld [vmem:[%s4 + $0x230] sm:$0xff]
    %v98 = vld [vmem:[%s4 + $0x238] sm:$0xff]
    %v99 = vld [vmem:[%s4 + $0x240] sm:$0xff]
    %v100 = vld [vmem:[%s4 + $0x248] sm:$0xff]
    %v101 = vld [vmem:[%s4 + $0x250] sm:$0xff]
    %v102 = vld [vmem:[%s4 + $0x258] sm:$0xff]
    %v103 = vld [vmem:[%s4 + $0x260] sm:$0xff]
    %v104 = vld [vmem:[%s4 + $0x268] sm:$0xff]
    %v105 = vld [vmem:[%s4 + $0x270] sm:$0xff]
    %v106 = vld [vmem:[%s4 + $0x278] sm:$0xff]
    %v107 = vld [vmem:[%s4 + $0x280] sm:$0xff]
    %v108 = vld [vmem:[%s4 + $0x288] sm:$0xff]
    %v109 = vld [vmem:[%s4 + $0x290] sm:$0xff]
    %v110 = vld [vmem:[%s4 + $0x298] sm:$0xff]
    %v111 = vld [vmem:[%s4 + $0x2a0] sm:$0xff]
    %v112 = vld [vmem:[%s4 + $0x2a8] sm:$0xff]
    %v113 = vld [vmem:[%s4 + $0x2b0] sm:$0xff]
    %v114 = vld [vmem:[%s4 + $0x2b8] sm:$0xff]
    %v115 = vld [vmem:[%s4 + $0x2c0] sm:$0xff]
    %v116 = vld [vmem:[%s4 + $0x2c8] sm:$0xff]
    %v117 = vld [vmem:[%s4 + $0x2d0] sm:$0xff]
    %v118 = vld [vmem:[%s4 + $0x2d8] sm:$0xff]
    %v119 = vld [vmem:[%s4 + $0x2e0] sm:$0xff]
    %v120 = vld [vmem:[%s4 + $0x2e8] sm:$0xff]
    %v121 = vld [vmem:[%s4 + $0x2f0] sm:$0xff]
    %v122 = vld [vmem:[%s4 + $0x2f8] sm:$0xff]
    %123 = vmatprep.subr.mxu0 %v28
    %124 = vmatpush1.msra.mxu0 %v27
    %125 = vmatprep.subr.mxu0 %v34
    %126 = vmatpush1.msra.mxu0 %v33
    %127 = vmatprep.subr.mxu0 %v40
    %128 = vmatpush1.msra.mxu0 %v39
    %129 = vmatprep.subr.mxu0 %v46
    %130 = vmatpush1.msra.mxu0 %v45
    %131 = vmatprep.subr.mxu0 %v52
    %132 = vmatpush1.msra.mxu0 %v51
    %133 = vmatprep.subr.mxu0 %v58
    %134 = vmatpush1.msra.mxu0 %v57
    %135 = vmatprep.subr.mxu0 %v64
    %136 = vmatpush1.msra.mxu0 %v63
    %137 = vmatprep.subr.mxu0 %v70
    %138 = vmatpush1.msra.mxu0 %v69
    %139 = vmatprep.subr.mxu0 %v76
    %140 = vmatpush1.msra.mxu0 %v75
    %141 = vmatprep.subr.mxu0 %v82
    %142 = vmatpush1.msra.mxu0 %v81
    %143 = vmatprep.subr.mxu0 %v88
    %144 = vmatpush1.msra.mxu0 %v87
    %145 = vmatprep.subr.mxu0 %v94
    %146 = vmatpush1.msra.mxu0 %v93
    %147 = vmatprep.subr.mxu0 %v100
    %148 = vmatpush1.msra.mxu0 %v99
    %149 = vmatprep.subr.mxu0 %v106
    %150 = vmatpush1.msra.mxu0 %v105
    %151 = vmatprep.subr.mxu0 %v112
    %152 = vmatpush1.msra.mxu0 %v111
    %153 = vmatprep.subr.mxu0 %v118
    %154 = vmatpush1.msra.mxu0 %v117
    %155 = vmatprep.subr.mxu0 0.0
    %156 = vmatpush1.msra.mxu0 0.0
    %157 = vmatprep.subr.mxu0 0.0
    %158 = vmatpush1.msra.mxu0 0.0
    %159 = vmatprep.subr.mxu0 0.0
    %160 = vmatpush1.msra.mxu0 0.0
    %161 = vmatprep.subr.mxu0 0.0
    %162 = vmatpush1.msra.mxu0 0.0
    %163 = vmatprep.subr.mxu0 0.0
    %164 = vmatpush1.msra.mxu0 0.0
    %165 = vmatprep.subr.mxu0 0.0
    %166 = vmatpush1.msra.mxu0 0.0
    %167 = vmatprep.subr.mxu0 0.0
    %168 = vmatpush1.msra.mxu0 0.0
    %169 = vmatprep.subr.mxu0 0.0
    %170 = vmatpush1.msra.mxu0 0.0
    %171 = vmatprep.subr.mxu0 0.0
    %172 = vmatpush1.msra.mxu0 0.0
    %173 = vmatprep.subr.mxu0 0.0
    %174 = vmatpush1.msra.mxu0 0.0
    %175 = vmatprep.subr.mxu0 0.0
    %176 = vmatpush1.msra.mxu0 0.0
    %177 = vmatprep.subr.mxu0 0.0
    %178 = vmatpush1.msra.mxu0 0.0
    %179 = vmatprep.subr.mxu0 0.0
    %180 = vmatpush1.msra.mxu0 0.0
    %181 = vmatprep.subr.mxu0 0.0
    %182 = vmatpush1.msra.mxu0 0.0
    %183 = vmatprep.subr.mxu0 0.0
    %184 = vmatpush1.msra.mxu0 0.0
    %185 = vmatprep.subr.mxu0 0.0
    %186 = vmatpush1.msra.mxu0 0.0
    %187 = vmatprep.mubr.f32.mxu0 0.0
    %188 = vmatmul.mubr.f32.gmra.mrb[0].mxu0 %v26
    %v189 = vpop.f32.mrb[0].mxu0
    %v190 = vadd.f32 0.0, %v189
    %v191 = vpop.f32.mrb[0].mxu0
    %v192 = vadd.f32 0.0, %v191
    %193 = vdwg.mxu0
    %194 = vmatprep.subr.mxu0 %v30
    %195 = vmatpush1.msra.mxu0 %v29
    %196 = vmatprep.subr.mxu0 %v36
    %197 = vmatpush1.msra.mxu0 %v35
    %198 = vmatprep.subr.mxu0 %v42
    %199 = vmatpush1.msra.mxu0 %v41
    %200 = vmatprep.subr.mxu0 %v48
    %201 = vmatpush1.msra.mxu0 %v47
    %202 = vmatprep.subr.mxu0 %v54
    %203 = vmatpush1.msra.mxu0 %v53
    %204 = vmatprep.subr.mxu0 %v60
    %205 = vmatpush1.msra.mxu0 %v59
    %206 = vmatprep.subr.mxu0 %v66
    %207 = vmatpush1.msra.mxu0 %v65
    %208 = vmatprep.subr.mxu0 %v72
    %209 = vmatpush1.msra.mxu0 %v71
    %210 = vmatprep.subr.mxu0 %v78
    %211 = vmatpush1.msra.mxu0 %v77
    %212 = vmatprep.subr.mxu0 %v84
    %213 = vmatpush1.msra.mxu0 %v83
    %214 = vmatprep.subr.mxu0 %v90
    %215 = vmatpush1.msra.mxu0 %v89
    %216 = vmatprep.subr.mxu0 %v96
    %217 = vmatpush1.msra.mxu0 %v95
    %218 = vmatprep.subr.mxu0 %v102
    %219 = vmatpush1.msra.mxu0 %v101
    %220 = vmatprep.subr.mxu0 %v108
    %221 = vmatpush1.msra.mxu0 %v107
    %222 = vmatprep.subr.mxu0 %v114
    %223 = vmatpush1.msra.mxu0 %v113
    %224 = vmatprep.subr.mxu0 %v120
    %225 = vmatpush1.msra.mxu0 %v119
    %226 = vmatprep.subr.mxu0 0.0
    %227 = vmatpush1.msra.mxu0 0.0
    %228 = vmatprep.subr.mxu0 0.0
    %229 = vmatpush1.msra.mxu0 0.0
    %230 = vmatprep.subr.mxu0 0.0
    %231 = vmatpush1.msra.mxu0 0.0
    %232 = vmatprep.subr.mxu0 0.0
    %233 = vmatpush1.msra.mxu0 0.0
    %234 = vmatprep.subr.mxu0 0.0
    %235 = vmatpush1.msra.mxu0 0.0
    %236 = vmatprep.subr.mxu0 0.0
    %237 = vmatpush1.msra.mxu0 0.0
    %238 = vmatprep.subr.mxu0 0.0
    %239 = vmatpush1.msra.mxu0 0.0
    %240 = vmatprep.subr.mxu0 0.0
    %241 = vmatpush1.msra.mxu0 0.0
    %242 = vmatprep.subr.mxu0 0.0
    %243 = vmatpush1.msra.mxu0 0.0
    %244 = vmatprep.subr.mxu0 0.0
    %245 = vmatpush1.msra.mxu0 0.0
    %246 = vmatprep.subr.mxu0 0.0
    %247 = vmatpush1.msra.mxu0 0.0
    %248 = vmatprep.subr.mxu0 0.0
    %249 = vmatpush1.msra.mxu0 0.0
    %250 = vmatprep.subr.mxu0 0.0
    %251 = vmatpush1.msra.mxu0 0.0
    %252 = vmatprep.subr.mxu0 0.0
    %253 = vmatpush1.msra.mxu0 0.0
    %254 = vmatprep.subr.mxu0 0.0
    %255 = vmatpush1.msra.mxu0 0.0
    %256 = vmatprep.subr.mxu0 0.0
    %257 = vmatpush1.msra.mxu0 0.0
    %258 = vmatprep.mubr.f32.mxu0 0.0
    %259 = vmatmul.mubr.f32.gmra.mrb[0].mxu0 %v26
    %v260 = vpop.f32.mrb[0].mxu0
    %v261 = vadd.f32 0.0, %v260
    %v262 = vpop.f32.mrb[0].mxu0
    %v263 = vadd.f32 0.0, %v262
    %264 = vdwg.mxu0
    %265 = vmatprep.subr.mxu0 %v32
    %266 = vmatpush1.msra.mxu0 %v31
    %267 = vmatprep.subr.mxu0 %v38
    %268 = vmatpush1.msra.mxu0 %v37
    %269 = vmatprep.subr.mxu0 %v44
    %270 = vmatpush1.msra.mxu0 %v43
    %271 = vmatprep.subr.mxu0 %v50
    %272 = vmatpush1.msra.mxu0 %v49
    %273 = vmatprep.subr.mxu0 %v56
    %274 = vmatpush1.msra.mxu0 %v55
    %275 = vmatprep.subr.mxu0 %v62
    %276 = vmatpush1.msra.mxu0 %v61
    %277 = vmatprep.subr.mxu0 %v68
    %278 = vmatpush1.msra.mxu0 %v67
    %279 = vmatprep.subr.mxu0 %v74
    %280 = vmatpush1.msra.mxu0 %v73
    %281 = vmatprep.subr.mxu0 %v80
    %282 = vmatpush1.msra.mxu0 %v79
    %283 = vmatprep.subr.mxu0 %v86
    %284 = vmatpush1.msra.mxu0 %v85
    %285 = vmatprep.subr.mxu0 %v92
    %286 = vmatpush1.msra.mxu0 %v91
    %287 = vmatprep.subr.mxu0 %v98
    %288 = vmatpush1.msra.mxu0 %v97
    %289 = vmatprep.subr.mxu0 %v104
    %290 = vmatpush1.msra.mxu0 %v103
    %291 = vmatprep.subr.mxu0 %v110
    %292 = vmatpush1.msra.mxu0 %v109
    %293 = vmatprep.subr.mxu0 %v116
    %294 = vmatpush1.msra.mxu0 %v115
    %295 = vmatprep.subr.mxu0 %v122
    %296 = vmatpush1.msra.mxu0 %v121
    %297 = vmatprep.subr.mxu0 0.0
    %298 = vmatpush1.msra.mxu0 0.0
    %299 = vmatprep.subr.mxu0 0.0
    %300 = vmatpush1.msra.mxu0 0.0
    %301 = vmatprep.subr.mxu0 0.0
    %302 = vmatpush1.msra.mxu0 0.0
    %303 = vmatprep.subr.mxu0 0.0
    %304 = vmatpush1.msra.mxu0 0.0
    %305 = vmatprep.subr.mxu0 0.0
    %306 = vmatpush1.msra.mxu0 0.0
    %307 = vmatprep.subr.mxu0 0.0
    %308 = vmatpush1.msra.mxu0 0.0
    %309 = vmatprep.subr.mxu0 0.0
    %310 = vmatpush1.msra.mxu0 0.0
    %311 = vmatprep.subr.mxu0 0.0
    %312 = vmatpush1.msra.mxu0 0.0
    %313 = vmatprep.subr.mxu0 0.0
    %314 = vmatpush1.msra.mxu0 0.0
    %315 = vmatprep.subr.mxu0 0.0
    %316 = vmatpush1.msra.mxu0 0.0
    %317 = vmatprep.subr.mxu0 0.0
    %318 = vmatpush1.msra.mxu0 0.0
    %319 = vmatprep.subr.mxu0 0.0
    %320 = vmatpush1.msra.mxu0 0.0
    %321 = vmatprep.subr.mxu0 0.0
    %322 = vmatpush1.msra.mxu0 0.0
    %323 = vmatprep.subr.mxu0 0.0
    %324 = vmatpush1.msra.mxu0 0.0
    %325 = vmatprep.subr.mxu0 0.0
    %326 = vmatpush1.msra.mxu0 0.0
    %327 = vmatprep.subr.mxu0 0.0
    %328 = vmatpush1.msra.mxu0 0.0
    %329 = vmatprep.mubr.f32.mxu0 0.0
    %330 = vmatmul.mubr.f32.gmra.mrb[0].mxu0 %v26
    %v331 = vpop.f32.mrb[0].mxu0
    %v332 = vadd.f32 0.0, %v331
    %v333 = vpop.f32.mrb[0].mxu0
    %334 = vdwg.mxu0
    %v335 = vld [vmem:[%s0] sm:$0xff]
    %v336 = vld [vmem:[%s0 + $0x8] sm:$0xff]
    %v337 = vld [vmem:[%s0 + $0x10] sm:$0xff]
    %v338 = vld [vmem:[%s0 + $0x18] sm:$0xff]
    %v341 = vunpack.c.l.s4 1966171168
    %v342 = vunpack.c.0.s8 %v341
    %v343 = vlaneseq
    %v344 = vshrl.u32 %v343, 7
    %v345 = vsub.s32 %v342, %v344
    %v346 = vrot.slane %v190, %v345
    %v347 = vcombine.high %v346, %v346
    %v349 = vunpack.c.l.s4 1966171168
    %v350 = vunpack.c.0.s8 %v349
    %v351 = vlaneseq
    %v352 = vshrl.u32 %v351, 7
    %v353 = vsub.s32 %v350, %v352
    %v354 = vrot.slane %v346, %v353
    %v356 = vunpack.c.l.s4 1966171168
    %v357 = vunpack.c.0.s8 %v356
    %v358 = vlaneseq
    %v359 = vshrl.u32 %v358, 7
    %v360 = vsub.s32 %v357, %v359
    %v361 = vrot.slane %v347, %v360
    %v362 = vlaneseq
    %v363 = vshrl.u32 %v362, 7
    %v364 = vsub.s32 0, %v363
    %v365 = vrot.slane %v354, %v364
    %v366 = vlaneseq
    %v367 = vshrl.u32 %v366, 7
    %v368 = vsub.s32 0, %v367
    %v369 = vrot.slane %v361, %v368
    %v372 = vadd.f32 %v335, %v365
    %v373 = vadd.f32 %v336, %v365
    %v374 = vadd.f32 %v337, %v369
    %v375 = vadd.f32 %v338, %v369
    %v376 = vtanh.pop %v372
    %v377 = vtanh.pop %v373
    %v378 = vtanh.pop %v374
    %v379 = vtanh.pop %v375
    %v380 = vld [vmem:[%s5] sm:$0x1]
    %v382 = vlaneseq
    %v383 = vshrl.u32 %v382, 7
    %v384 = vsub.s32 0, %v383
    %v385 = vrot.slane %v380, %v384
    %v387 = vmul.f32 %v376, %v385
    %v388 = vmul.f32 %v377, %v385
    %v389 = vmul.f32 %v378, %v385
    %v390 = vmul.f32 %v379, %v385
    %391 = vadd.xlane.f32.xlu0 %v387
    %v392 = vpop.xlane.xlu0 %391
    %393 = vadd.xlane.f32.xlu0 %v388
    %v394 = vpop.xlane.xlu0 %393
    %395 = vadd.xlane.f32.xlu0 %v389
    %v396 = vpop.xlane.xlu0 %395
    %397 = vadd.xlane.f32.xlu0 %v390
    %v398 = vpop.xlane.xlu0 %397
    %v403 = vlaneseq
    %v404 = vand.u32 %v403, 127
    %v405 = vlaneseq
    %v406 = vshrl.u32 %v405, 7
    %v407 = vsub.s32 %v404, %v406
    %v408 = vrot.slane %v392, %v407
    %v409 = vadd.s32 %v404, 4294967288
    %v410 = vlaneseq
    %v411 = vshrl.u32 %v410, 7
    %v412 = vsub.s32 %v409, %v411
    %v413 = vrot.slane %v394, %v412
    %vm414 = vcmask 130112
    %v415 = vsel %vm414, %v413, %v408
    %v416 = vlaneseq
    %v417 = vshrl.u32 %v416, 7
    %v418 = vsub.s32 %v404, %v417
    %v419 = vrot.slane %v396, %v418
    %v420 = vlaneseq
    %v421 = vshrl.u32 %v420, 7
    %v422 = vsub.s32 %v409, %v421
    %v423 = vrot.slane %v398, %v422
    %v424 = vsel %vm414, %v423, %v419
    %vm425 = vcmask 1041409
    %v426 = vsel %vm425, %v424, %v415
    %vm428 = vcmask 123904
    %v429 = vsel %vm428, %v426, -inf
    %430 = vmax.xlane.f32.xlu0 %v429
    %v431 = vpop.xlane.xlu0 %430
    %v433 = vlaneseq
    %v434 = vshrl.u32 %v433, 7
    %v435 = vsub.s32 0, %v434
    %v436 = vrot.slane %v431, %v435
    %v437 = vlaneseq
    %v438 = vshrl.u32 %v437, 7
    %v439 = vsub.s32 1, %v438
    %v440 = vrot.slane %v431, %v439
    %v443 = vsub.f32 %v392, %v436
    %v444 = vsub.f32 %v394, %v436
    %v445 = vsub.f32 %v396, %v440
    %v446 = vsub.f32 %v398, %v440
    %v447 = vmul.f32 %v443, 1.442695
    %v448 = vpow.pop %v447
    %v449 = vmul.f32 %v444, 1.442695
    %v450 = vpow.pop %v449
    %v451 = vmul.f32 %v445, 1.442695
    %v452 = vpow.pop %v451
    %v453 = vmul.f32 %v446, 1.442695
    %v454 = vpow.pop %v453
    %459 = vset.pattern.permute.xlu0 0
    %460 = vperm.xlu0 %459, %v448
    %v461 = vpop.permute.xlu0 %460
    %462 = vset.pattern.permute.xlu0 0
    %463 = vperm.xlu0 %462, %v450
    %v464 = vpop.permute.xlu0 %463
    %465 = vset.pattern.permute.xlu0 0
    %466 = vperm.xlu0 %465, %v452
    %v467 = vpop.permute.xlu0 %466
    %468 = vset.pattern.permute.xlu0 0
    %469 = vperm.xlu0 %468, %v454
    %v470 = vpop.permute.xlu0 %469
    %v471 = vlaneseq
    %v472 = vshrl.u32 %v471, 7
    %v473 = vsub.s32 %v404, %v472
    %v474 = vrot.slane %v461, %v473
    %v475 = vlaneseq
    %v476 = vshrl.u32 %v475, 7
    %v477 = vsub.s32 %v409, %v476
    %v478 = vrot.slane %v464, %v477
    %v479 = vsel %vm414, %v478, %v474
    %v480 = vlaneseq
    %v481 = vshrl.u32 %v480, 7
    %v482 = vsub.s32 %v404, %v481
    %v483 = vrot.slane %v467, %v482
    %v484 = vlaneseq
    %v485 = vshrl.u32 %v484, 7
    %v486 = vsub.s32 %v409, %v485
    %v487 = vrot.slane %v470, %v486
    %v488 = vsel %vm414, %v487, %v483
    %v489 = vsel %vm425, %v488, %v479
    %v491 = vsel %vm428, %v489, 0.0
    %492 = vadd.xlane.f32.xlu0 %v491
    %v493 = vpop.xlane.xlu0 %492
    %v494 = vrcp.pop %v493
    %v496 = vlaneseq
    %v497 = vshrl.u32 %v496, 7
    %v498 = vsub.s32 0, %v497
    %v499 = vrot.slane %v494, %v498
    %v500 = vlaneseq
    %v501 = vshrl.u32 %v500, 7
    %v502 = vsub.s32 1, %v501
    %v503 = vrot.slane %v494, %v502
    %v506 = vmul.f32 %v448, %v499
    %v507 = vmul.f32 %v450, %v499
    %v508 = vmul.f32 %v452, %v503
    %v509 = vmul.f32 %v454, %v503
    %v510 = vld [vmem:[%s1] sm:$0xff]
    %v511 = vld [vmem:[%s1 + $0x8] sm:$0xff]
    %v512 = vld [vmem:[%s1 + $0x10] sm:$0xff]
    %v513 = vld [vmem:[%s1 + $0x18] sm:$0xff]
    %v514 = vld [vmem:[%s1 + $0x20] sm:$0xff]
    %v515 = vld [vmem:[%s1 + $0x28] sm:$0xff]
    %v516 = vld [vmem:[%s1 + $0x30] sm:$0xff]
    %v517 = vld [vmem:[%s1 + $0x38] sm:$0xff]
    %v518 = vld [vmem:[%s1 + $0x40] sm:$0xff]
    %v519 = vld [vmem:[%s1 + $0x48] sm:$0xff]
    %v520 = vld [vmem:[%s1 + $0x50] sm:$0xff]
    %v521 = vld [vmem:[%s1 + $0x58] sm:$0xff]
    %v522 = vld [vmem:[%s1 + $0x60] sm:$0xff]
    %v523 = vld [vmem:[%s1 + $0x68] sm:$0xff]
    %v524 = vld [vmem:[%s1 + $0x70] sm:$0xff]
    %v525 = vld [vmem:[%s1 + $0x78] sm:$0xff]
    %527 = vset.pattern.permute.xlu0 0
    %528 = vperm.xlu0 %527, %v506
    %v529 = vpop.permute.xlu0 %528
    %532 = vset.pattern.permute.xlu0 0
    %533 = vperm.xlu0 %532, %v507
    %v534 = vpop.permute.xlu0 %533
    %537 = vset.pattern.permute.xlu0 0
    %538 = vperm.xlu0 %537, %v508
    %v539 = vpop.permute.xlu0 %538
    %542 = vset.pattern.permute.xlu0 0
    %543 = vperm.xlu0 %542, %v509
    %v544 = vpop.permute.xlu0 %543
    %v546 = vmul.f32 %v529, %v510
    %v547 = vmul.f32 %v529, %v511
    %v548 = vmul.f32 %v529, %v512
    %v549 = vmul.f32 %v529, %v513
    %v550 = vmul.f32 %v534, %v514
    %v551 = vmul.f32 %v534, %v515
    %v552 = vmul.f32 %v534, %v516
    %v553 = vmul.f32 %v534, %v517
    %v554 = vmul.f32 %v539, %v518
    %v555 = vmul.f32 %v539, %v519
    %v556 = vmul.f32 %v539, %v520
    %v557 = vmul.f32 %v539, %v521
    %v558 = vmul.f32 %v544, %v522
    %v559 = vmul.f32 %v544, %v523
    %v560 = vmul.f32 %v544, %v524
    %v561 = vmul.f32 %v544, %v525
    %v562 = vadd.f32 %v546, %v550
    %v563 = vrot.slane %v562, 4
    %v564 = vadd.f32 %v562, %v563
    %v565 = vrot.slane %v564, 2
    %v566 = vadd.f32 %v564, %v565
    %v567 = vrot.slane %v566, 1
    %v568 = vadd.f32 %v566, %v567
    %v569 = vadd.f32 %v547, %v551
    %v570 = vrot.slane %v569, 4
    %v571 = vadd.f32 %v569, %v570
    %v572 = vrot.slane %v571, 2
    %v573 = vadd.f32 %v571, %v572
    %v574 = vrot.slane %v573, 1
    %v575 = vadd.f32 %v573, %v574
    %v576 = vadd.f32 %v548, %v552
    %v577 = vrot.slane %v576, 4
    %v578 = vadd.f32 %v576, %v577
    %v579 = vrot.slane %v578, 2
    %v580 = vadd.f32 %v578, %v579
    %v581 = vrot.slane %v580, 1
    %v582 = vadd.f32 %v580, %v581
    %v583 = vadd.f32 %v549, %v553
    %v584 = vrot.slane %v583, 4
    %v585 = vadd.f32 %v583, %v584
    %v586 = vrot.slane %v585, 2
    %v587 = vadd.f32 %v585, %v586
    %v588 = vrot.slane %v587, 1
    %v589 = vadd.f32 %v587, %v588
    %v590 = vadd.f32 %v554, %v558
    %v591 = vrot.slane %v590, 4
    %v592 = vadd.f32 %v590, %v591
    %v593 = vrot.slane %v592, 2
    %v594 = vadd.f32 %v592, %v593
    %v595 = vrot.slane %v594, 1
    %v596 = vadd.f32 %v594, %v595
    %v597 = vadd.f32 %v555, %v559
    %v598 = vrot.slane %v597, 4
    %v599 = vadd.f32 %v597, %v598
    %v600 = vrot.slane %v599, 2
    %v601 = vadd.f32 %v599, %v600
    %v602 = vrot.slane %v601, 1
    %v603 = vadd.f32 %v601, %v602
    %v604 = vadd.f32 %v556, %v560
    %v605 = vrot.slane %v604, 4
    %v606 = vadd.f32 %v604, %v605
    %v607 = vrot.slane %v606, 2
    %v608 = vadd.f32 %v606, %v607
    %v609 = vrot.slane %v608, 1
    %v610 = vadd.f32 %v608, %v609
    %v611 = vadd.f32 %v557, %v561
    %v612 = vrot.slane %v611, 4
    %v613 = vadd.f32 %v611, %v612
    %v614 = vrot.slane %v613, 2
    %v615 = vadd.f32 %v613, %v614
    %v616 = vrot.slane %v615, 1
    %v617 = vadd.f32 %v615, %v616
    %v618 = vld [vmem:[%s2] sm:$0xff]
    %v627 = vcombine.low %v568, %v575
    %v628 = vcombine.low %v582, %v589
    %v630 = vunpack.c.l.s4 1983009808
    %v631 = vunpack.c.0.s8 %v630
    %v632 = vlaneseq
    %v633 = vshrl.u32 %v632, 7
    %v634 = vsub.s32 %v631, %v633
    %v635 = vrot.slane %v627, %v634
    %v637 = vunpack.c.l.s4 1983009808
    %v638 = vunpack.c.0.s8 %v637
    %v639 = vlaneseq
    %v640 = vshrl.u32 %v639, 7
    %v641 = vsub.s32 %v638, %v640
    %v642 = vrot.slane %v628, %v641
    %v643 = vcombine.low %v635, %v642
    %v644 = vcombine.low %v596, %v603
    %v645 = vcombine.low %v610, %v617
    %v647 = vunpack.c.l.s4 1983009808
    %v648 = vunpack.c.0.s8 %v647
    %v649 = vlaneseq
    %v650 = vshrl.u32 %v649, 7
    %v651 = vsub.s32 %v648, %v650
    %v652 = vrot.slane %v644, %v651
    %v654 = vunpack.c.l.s4 1983009808
    %v655 = vunpack.c.0.s8 %v654
    %v656 = vlaneseq
    %v657 = vshrl.u32 %v656, 7
    %v658 = vsub.s32 %v655, %v657
    %v659 = vrot.slane %v645, %v658
    %v660 = vcombine.low %v652, %v659
    %vm661 = vcmask 1044484
    %v662 = vsel %vm661, %v643, %v643
    %vm663 = vcmask 1046534
    %v664 = vsel %vm663, %v643, %v662
    %v665 = vrot.slane %v660, 7
    %v666 = vsel %vm425, %v665, %v664
    %vm667 = vcmask 1043459
    %v668 = vsel %vm667, %v665, %v666
    %vm669 = vcmask 1045509
    %v670 = vsel %vm669, %v665, %v668
    %vm671 = vcmask 1047559
    %v672 = vsel %vm671, %v665, %v670
    %v674 = vadd.f32 %v618, %v672
    %v679 = vcombine.low %v192, %v261
    %v680 = vcombine.low %v263, %v332
    %v682 = vunpack.c.l.s4 1983009808
    %v683 = vunpack.c.0.s8 %v682
    %v684 = vlaneseq
    %v685 = vshrl.u32 %v684, 7
    %v686 = vsub.s32 %v683, %v685
    %v687 = vrot.slane %v679, %v686
    %v689 = vunpack.c.l.s4 1983009808
    %v690 = vunpack.c.0.s8 %v689
    %v691 = vlaneseq
    %v692 = vshrl.u32 %v691, 7
    %v693 = vsub.s32 %v690, %v692
    %v694 = vrot.slane %v680, %v693
    %v695 = vcombine.low %v687, %v694
    %v697 = vadd.f32 %v674, %v695
    %v698 = vxor.u32 %v697, 2147483648
    %v699 = vmul.f32 %v698, 1.442695
    %v700 = vpow.pop %v699
    %v701 = vadd.f32 %v700, 1.0
    %v702 = vrcp.pop %v701
    %v703 = vmul.f32 1.0, %v702
    %v705 = vrot.slane %v697, 2
    %v707 = vxor.u32 %v705, 2147483648
    %v708 = vmul.f32 %v707, 1.442695
    %v709 = vpow.pop %v708
    %v710 = vadd.f32 %v709, 1.0
    %v711 = vrcp.pop %v710
    %v712 = vmul.f32 1.0, %v711
    %v713 = vrot.slane %v697, 4
    %v715 = vtanh.pop %v713
    %v716 = vrot.slane %v697, 6
    %v718 = vxor.u32 %v716, 2147483648
    %v719 = vmul.f32 %v718, 1.442695
    %v720 = vpow.pop %v719
    %v721 = vadd.f32 %v720, 1.0
    %v722 = vrcp.pop %v721
    %v723 = vmul.f32 1.0, %v722
    %v725 = vrot.slane %v26, 2
    %v727 = vmul.f32 %v712, %v725
    %v728 = vmul.f32 %v703, %v715
    %v729 = vadd.f32 %v727, %v728
    %v730 = vtanh.pop %v729
    %v731 = vmul.f32 %v723, %v730
    %v732 = vlaneseq
    %v733 = vshrl.u32 %v732, 7
    %v734 = vsub.s32 %v404, %v733
    %v735 = vrot.slane %v529, %v734
    %v736 = vlaneseq
    %v737 = vshrl.u32 %v736, 7
    %v738 = vsub.s32 %v409, %v737
    %v739 = vrot.slane %v534, %v738
    %v740 = vsel %vm414, %v739, %v735
    %v741 = vlaneseq
    %v742 = vshrl.u32 %v741, 7
    %v743 = vsub.s32 %v404, %v742
    %v744 = vrot.slane %v539, %v743
    %v745 = vlaneseq
    %v746 = vshrl.u32 %v745, 7
    %v747 = vsub.s32 %v409, %v746
    %v748 = vrot.slane %v544, %v747
    %v749 = vsel %vm414, %v748, %v744
    %v750 = vsel %vm425, %v749, %v740
    %752 = vst.msk [vmem:[#allocation2] sm:$0x3] %vm428, %v750
    %v753 = vld [vmem:[%s4] sm:$0xff]
    %v754 = vld [vmem:[%s4 + $0x8] sm:$0xff]
    %v755 = vld [vmem:[%s4 + $0x10] sm:$0xff]
    %v756 = vld [vmem:[%s4 + $0x18] sm:$0xff]
    %v757 = vld [vmem:[%s4 + $0x20] sm:$0xff]
    %v758 = vld [vmem:[%s4 + $0x28] sm:$0xff]
    %v759 = vld [vmem:[%s4 + $0x30] sm:$0xff]
    %v760 = vld [vmem:[%s4 + $0x38] sm:$0xff]
    %v761 = vld [vmem:[%s4 + $0x40] sm:$0xff]
    %v762 = vld [vmem:[%s4 + $0x48] sm:$0xff]
    %v763 = vld [vmem:[%s4 + $0x50] sm:$0xff]
    %v764 = vld [vmem:[%s4 + $0x58] sm:$0xff]
    %v765 = vld [vmem:[%s4 + $0x60] sm:$0xff]
    %v766 = vld [vmem:[%s4 + $0x68] sm:$0xff]
    %v767 = vld [vmem:[%s4 + $0x70] sm:$0xff]
    %v768 = vld [vmem:[%s4 + $0x78] sm:$0xff]
    %v769 = vld [vmem:[%s4 + $0x80] sm:$0xff]
    %v770 = vld [vmem:[%s4 + $0x88] sm:$0xff]
    %v771 = vld [vmem:[%s4 + $0x90] sm:$0xff]
    %v772 = vld [vmem:[%s4 + $0x98] sm:$0xff]
    %v773 = vld [vmem:[%s4 + $0xa0] sm:$0xff]
    %v774 = vld [vmem:[%s4 + $0xa8] sm:$0xff]
    %v775 = vld [vmem:[%s4 + $0xb0] sm:$0xff]
    %v776 = vld [vmem:[%s4 + $0xb8] sm:$0xff]
    %v777 = vld [vmem:[%s4 + $0xc0] sm:$0xff]
    %v778 = vld [vmem:[%s4 + $0xc8] sm:$0xff]
    %v779 = vld [vmem:[%s4 + $0xd0] sm:$0xff]
    %v780 = vld [vmem:[%s4 + $0xd8] sm:$0xff]
    %v781 = vld [vmem:[%s4 + $0xe0] sm:$0xff]
    %v782 = vld [vmem:[%s4 + $0xe8] sm:$0xff]
    %v783 = vld [vmem:[%s4 + $0xf0] sm:$0xff]
    %v784 = vld [vmem:[%s4 + $0xf8] sm:$0xff]
    %v785 = vld [vmem:[%s4 + $0x100] sm:$0xff]
    %v786 = vld [vmem:[%s4 + $0x108] sm:$0xff]
    %v787 = vld [vmem:[%s4 + $0x110] sm:$0xff]
    %v788 = vld [vmem:[%s4 + $0x118] sm:$0xff]
    %v789 = vld [vmem:[%s4 + $0x120] sm:$0xff]
    %v790 = vld [vmem:[%s4 + $0x128] sm:$0xff]
    %v791 = vld [vmem:[%s4 + $0x130] sm:$0xff]
    %v792 = vld [vmem:[%s4 + $0x138] sm:$0xff]
    %v793 = vld [vmem:[%s4 + $0x140] sm:$0xff]
    %v794 = vld [vmem:[%s4 + $0x148] sm:$0xff]
    %v795 = vld [vmem:[%s4 + $0x150] sm:$0xff]
    %v796 = vld [vmem:[%s4 + $0x158] sm:$0xff]
    %v797 = vld [vmem:[%s4 + $0x160] sm:$0xff]
    %v798 = vld [vmem:[%s4 + $0x168] sm:$0xff]
    %v799 = vld [vmem:[%s4 + $0x170] sm:$0xff]
    %v800 = vld [vmem:[%s4 + $0x178] sm:$0xff]
    %v801 = vld [vmem:[%s4 + $0x180] sm:$0xff]
    %v802 = vld [vmem:[%s4 + $0x188] sm:$0xff]
    %v803 = vld [vmem:[%s4 + $0x190] sm:$0xff]
    %v804 = vld [vmem:[%s4 + $0x198] sm:$0xff]
    %v805 = vld [vmem:[%s4 + $0x1a0] sm:$0xff]
    %v806 = vld [vmem:[%s4 + $0x1a8] sm:$0xff]
    %v807 = vld [vmem:[%s4 + $0x1b0] sm:$0xff]
    %v808 = vld [vmem:[%s4 + $0x1b8] sm:$0xff]
    %v809 = vld [vmem:[%s4 + $0x1c0] sm:$0xff]
    %v810 = vld [vmem:[%s4 + $0x1c8] sm:$0xff]
    %v811 = vld [vmem:[%s4 + $0x1d0] sm:$0xff]
    %v812 = vld [vmem:[%s4 + $0x1d8] sm:$0xff]
    %v813 = vld [vmem:[%s4 + $0x1e0] sm:$0xff]
    %v814 = vld [vmem:[%s4 + $0x1e8] sm:$0xff]
    %v815 = vld [vmem:[%s4 + $0x1f0] sm:$0xff]
    %v816 = vld [vmem:[%s4 + $0x1f8] sm:$0xff]
    %v817 = vld [vmem:[%s4 + $0x200] sm:$0xff]
    %v818 = vld [vmem:[%s4 + $0x208] sm:$0xff]
    %v819 = vld [vmem:[%s4 + $0x210] sm:$0xff]
    %v820 = vld [vmem:[%s4 + $0x218] sm:$0xff]
    %v821 = vld [vmem:[%s4 + $0x220] sm:$0xff]
    %v822 = vld [vmem:[%s4 + $0x228] sm:$0xff]
    %v823 = vld [vmem:[%s4 + $0x230] sm:$0xff]
    %v824 = vld [vmem:[%s4 + $0x238] sm:$0xff]
    %v825 = vld [vmem:[%s4 + $0x240] sm:$0xff]
    %v826 = vld [vmem:[%s4 + $0x248] sm:$0xff]
    %v827 = vld [vmem:[%s4 + $0x250] sm:$0xff]
    %v828 = vld [vmem:[%s4 + $0x258] sm:$0xff]
    %v829 = vld [vmem:[%s4 + $0x260] sm:$0xff]
    %v830 = vld [vmem:[%s4 + $0x268] sm:$0xff]
    %v831 = vld [vmem:[%s4 + $0x270] sm:$0xff]
    %v832 = vld [vmem:[%s4 + $0x278] sm:$0xff]
    %v833 = vld [vmem:[%s4 + $0x280] sm:$0xff]
    %v834 = vld [vmem:[%s4 + $0x288] sm:$0xff]
    %v835 = vld [vmem:[%s4 + $0x290] sm:$0xff]
    %v836 = vld [vmem:[%s4 + $0x298] sm:$0xff]
    %v837 = vld [vmem:[%s4 + $0x2a0] sm:$0xff]
    %v838 = vld [vmem:[%s4 + $0x2a8] sm:$0xff]
    %v839 = vld [vmem:[%s4 + $0x2b0] sm:$0xff]
    %v840 = vld [vmem:[%s4 + $0x2b8] sm:$0xff]
    %v841 = vld [vmem:[%s4 + $0x2c0] sm:$0xff]
    %v842 = vld [vmem:[%s4 + $0x2c8] sm:$0xff]
    %v843 = vld [vmem:[%s4 + $0x2d0] sm:$0xff]
    %v844 = vld [vmem:[%s4 + $0x2d8] sm:$0xff]
    %v845 = vld [vmem:[%s4 + $0x2e0] sm:$0xff]
    %v846 = vld [vmem:[%s4 + $0x2e8] sm:$0xff]
    %v847 = vld [vmem:[%s4 + $0x2f0] sm:$0xff]
    %v848 = vld [vmem:[%s4 + $0x2f8] sm:$0xff]
    %849 = vmatprep.subr.mxu0 %v754
    %850 = vmatpush1.msra.mxu0 %v753
    %851 = vmatprep.subr.mxu0 %v760
    %852 = vmatpush1.msra.mxu0 %v759
    %853 = vmatprep.subr.mxu0 %v766
    %854 = vmatpush1.msra.mxu0 %v765
    %855 = vmatprep.subr.mxu0 %v772
    %856 = vmatpush1.msra.mxu0 %v771
    %857 = vmatprep.subr.mxu0 %v778
    %858 = vmatpush1.msra.mxu0 %v777
    %859 = vmatprep.subr.mxu0 %v784
    %860 = vmatpush1.msra.mxu0 %v783
    %861 = vmatprep.subr.mxu0 %v790
    %862 = vmatpush1.msra.mxu0 %v789
    %863 = vmatprep.subr.mxu0 %v796
    %864 = vmatpush1.msra.mxu0 %v795
    %865 = vmatprep.subr.mxu0 %v802
    %866 = vmatpush1.msra.mxu0 %v801
    %867 = vmatprep.subr.mxu0 %v808
    %868 = vmatpush1.msra.mxu0 %v807
    %869 = vmatprep.subr.mxu0 %v814
    %870 = vmatpush1.msra.mxu0 %v813
    %871 = vmatprep.subr.mxu0 %v820
    %872 = vmatpush1.msra.mxu0 %v819
    %873 = vmatprep.subr.mxu0 %v826
    %874 = vmatpush1.msra.mxu0 %v825
    %875 = vmatprep.subr.mxu0 %v832
    %876 = vmatpush1.msra.mxu0 %v831
    %877 = vmatprep.subr.mxu0 %v838
    %878 = vmatpush1.msra.mxu0 %v837
    %879 = vmatprep.subr.mxu0 %v844
    %880 = vmatpush1.msra.mxu0 %v843
    %881 = vmatprep.subr.mxu0 0.0
    %882 = vmatpush1.msra.mxu0 0.0
    %883 = vmatprep.subr.mxu0 0.0
    %884 = vmatpush1.msra.mxu0 0.0
    %885 = vmatprep.subr.mxu0 0.0
    %886 = vmatpush1.msra.mxu0 0.0
    %887 = vmatprep.subr.mxu0 0.0
    %888 = vmatpush1.msra.mxu0 0.0
    %889 = vmatprep.subr.mxu0 0.0
    %890 = vmatpush1.msra.mxu0 0.0
    %891 = vmatprep.subr.mxu0 0.0
    %892 = vmatpush1.msra.mxu0 0.0
    %893 = vmatprep.subr.mxu0 0.0
    %894 = vmatpush1.msra.mxu0 0.0
    %895 = vmatprep.subr.mxu0 0.0
    %896 = vmatpush1.msra.mxu0 0.0
    %897 = vmatprep.subr.mxu0 0.0
    %898 = vmatpush1.msra.mxu0 0.0
    %899 = vmatprep.subr.mxu0 0.0
    %900 = vmatpush1.msra.mxu0 0.0
    %901 = vmatprep.subr.mxu0 0.0
    %902 = vmatpush1.msra.mxu0 0.0
    %903 = vmatprep.subr.mxu0 0.0
    %904 = vmatpush1.msra.mxu0 0.0
    %905 = vmatprep.subr.mxu0 0.0
    %906 = vmatpush1.msra.mxu0 0.0
    %907 = vmatprep.subr.mxu0 0.0
    %908 = vmatpush1.msra.mxu0 0.0
    %909 = vmatprep.subr.mxu0 0.0
    %910 = vmatpush1.msra.mxu0 0.0
    %911 = vmatprep.subr.mxu0 0.0
    %912 = vmatpush1.msra.mxu0 0.0
    %913 = vmatprep.mubr.f32.mxu0 0.0
    %914 = vmatmul.mubr.f32.gmra.mrb[0].mxu0 %v731
    %v915 = vpop.f32.mrb[0].mxu0
    %v916 = vadd.f32 0.0, %v915
    %v917 = vpop.f32.mrb[0].mxu0
    %v918 = vadd.f32 0.0, %v917
    %919 = vdwg.mxu0
    %920 = vmatprep.subr.mxu0 %v756
    %921 = vmatpush1.msra.mxu0 %v755
    %922 = vmatprep.subr.mxu0 %v762
    %923 = vmatpush1.msra.mxu0 %v761
    %924 = vmatprep.subr.mxu0 %v768
    %925 = vmatpush1.msra.mxu0 %v767
    %926 = vmatprep.subr.mxu0 %v774
    %927 = vmatpush1.msra.mxu0 %v773
    %928 = vmatprep.subr.mxu0 %v780
    %929 = vmatpush1.msra.mxu0 %v779
    %930 = vmatprep.subr.mxu0 %v786
    %931 = vmatpush1.msra.mxu0 %v785
    %932 = vmatprep.subr.mxu0 %v792
    %933 = vmatpush1.msra.mxu0 %v791
    %934 = vmatprep.subr.mxu0 %v798
    %935 = vmatpush1.msra.mxu0 %v797
    %936 = vmatprep.subr.mxu0 %v804
    %937 = vmatpush1.msra.mxu0 %v803
    %938 = vmatprep.subr.mxu0 %v810
    %939 = vmatpush1.msra.mxu0 %v809
    %940 = vmatprep.subr.mxu0 %v816
    %941 = vmatpush1.msra.mxu0 %v815
    %942 = vmatprep.subr.mxu0 %v822
    %943 = vmatpush1.msra.mxu0 %v821
    %944 = vmatprep.subr.mxu0 %v828
    %945 = vmatpush1.msra.mxu0 %v827
    %946 = vmatprep.subr.mxu0 %v834
    %947 = vmatpush1.msra.mxu0 %v833
    %948 = vmatprep.subr.mxu0 %v840
    %949 = vmatpush1.msra.mxu0 %v839
    %950 = vmatprep.subr.mxu0 %v846
    %951 = vmatpush1.msra.mxu0 %v845
    %952 = vmatprep.subr.mxu0 0.0
    %953 = vmatpush1.msra.mxu0 0.0
    %954 = vmatprep.subr.mxu0 0.0
    %955 = vmatpush1.msra.mxu0 0.0
    %956 = vmatprep.subr.mxu0 0.0
    %957 = vmatpush1.msra.mxu0 0.0
    %958 = vmatprep.subr.mxu0 0.0
    %959 = vmatpush1.msra.mxu0 0.0
    %960 = vmatprep.subr.mxu0 0.0
    %961 = vmatpush1.msra.mxu0 0.0
    %962 = vmatprep.subr.mxu0 0.0
    %963 = vmatpush1.msra.mxu0 0.0
    %964 = vmatprep.subr.mxu0 0.0
    %965 = vmatpush1.msra.mxu0 0.0
    %966 = vmatprep.subr.mxu0 0.0
    %967 = vmatpush1.msra.mxu0 0.0
    %968 = vmatprep.subr.mxu0 0.0
    %969 = vmatpush1.msra.mxu0 0.0
    %970 = vmatprep.subr.mxu0 0.0
    %971 = vmatpush1.msra.mxu0 0.0
    %972 = vmatprep.subr.mxu0 0.0
    %973 = vmatpush1.msra.mxu0 0.0
    %974 = vmatprep.subr.mxu0 0.0
    %975 = vmatpush1.msra.mxu0 0.0
    %976 = vmatprep.subr.mxu0 0.0
    %977 = vmatpush1.msra.mxu0 0.0
    %978 = vmatprep.subr.mxu0 0.0
    %979 = vmatpush1.msra.mxu0 0.0
    %980 = vmatprep.subr.mxu0 0.0
    %981 = vmatpush1.msra.mxu0 0.0
    %982 = vmatprep.subr.mxu0 0.0
    %983 = vmatpush1.msra.mxu0 0.0
    %984 = vmatprep.mubr.f32.mxu0 0.0
    %985 = vmatmul.mubr.f32.gmra.mrb[0].mxu0 %v731
    %v986 = vpop.f32.mrb[0].mxu0
    %v987 = vadd.f32 0.0, %v986
    %v988 = vpop.f32.mrb[0].mxu0
    %v989 = vadd.f32 0.0, %v988
    %990 = vdwg.mxu0
    %991 = vmatprep.subr.mxu0 %v758
    %992 = vmatpush1.msra.mxu0 %v757
    %993 = vmatprep.subr.mxu0 %v764
    %994 = vmatpush1.msra.mxu0 %v763
    %995 = vmatprep.subr.mxu0 %v770
    %996 = vmatpush1.msra.mxu0 %v769
    %997 = vmatprep.subr.mxu0 %v776
    %998 = vmatpush1.msra.mxu0 %v775
    %999 = vmatprep.subr.mxu0 %v782
    %1000 = vmatpush1.msra.mxu0 %v781
    %1001 = vmatprep.subr.mxu0 %v788
    %1002 = vmatpush1.msra.mxu0 %v787
    %1003 = vmatprep.subr.mxu0 %v794
    %1004 = vmatpush1.msra.mxu0 %v793
    %1005 = vmatprep.subr.mxu0 %v800
    %1006 = vmatpush1.msra.mxu0 %v799
    %1007 = vmatprep.subr.mxu0 %v806
    %1008 = vmatpush1.msra.mxu0 %v805
    %1009 = vmatprep.subr.mxu0 %v812
    %1010 = vmatpush1.msra.mxu0 %v811
    %1011 = vmatprep.subr.mxu0 %v818
    %1012 = vmatpush1.msra.mxu0 %v817
    %1013 = vmatprep.subr.mxu0 %v824
    %1014 = vmatpush1.msra.mxu0 %v823
    %1015 = vmatprep.subr.mxu0 %v830
    %1016 = vmatpush1.msra.mxu0 %v829
    %1017 = vmatprep.subr.mxu0 %v836
    %1018 = vmatpush1.msra.mxu0 %v835
    %1019 = vmatprep.subr.mxu0 %v842
    %1020 = vmatpush1.msra.mxu0 %v841
    %1021 = vmatprep.subr.mxu0 %v848
    %1022 = vmatpush1.msra.mxu0 %v847
    %1023 = vmatprep.subr.mxu0 0.0
    %1024 = vmatpush1.msra.mxu0 0.0
    %1025 = vmatprep.subr.mxu0 0.0
    %1026 = vmatpush1.msra.mxu0 0.0
    %1027 = vmatprep.subr.mxu0 0.0
    %1028 = vmatpush1.msra.mxu0 0.0
    %1029 = vmatprep.subr.mxu0 0.0
    %1030 = vmatpush1.msra.mxu0 0.0
    %1031 = vmatprep.subr.mxu0 0.0
    %1032 = vmatpush1.msra.mxu0 0.0
    %1033 = vmatprep.subr.mxu0 0.0
    %1034 = vmatpush1.msra.mxu0 0.0
    %1035 = vmatprep.subr.mxu0 0.0
    %1036 = vmatpush1.msra.mxu0 0.0
    %1037 = vmatprep.subr.mxu0 0.0
    %1038 = vmatpush1.msra.mxu0 0.0
    %1039 = vmatprep.subr.mxu0 0.0
    %1040 = vmatpush1.msra.mxu0 0.0
    %1041 = vmatprep.subr.mxu0 0.0
    %1042 = vmatpush1.msra.mxu0 0.0
    %1043 = vmatprep.subr.mxu0 0.0
    %1044 = vmatpush1.msra.mxu0 0.0
    %1045 = vmatprep.subr.mxu0 0.0
    %1046 = vmatpush1.msra.mxu0 0.0
    %1047 = vmatprep.subr.mxu0 0.0
    %1048 = vmatpush1.msra.mxu0 0.0
    %1049 = vmatprep.subr.mxu0 0.0
    %1050 = vmatpush1.msra.mxu0 0.0
    %1051 = vmatprep.subr.mxu0 0.0
    %1052 = vmatpush1.msra.mxu0 0.0
    %1053 = vmatprep.subr.mxu0 0.0
    %1054 = vmatpush1.msra.mxu0 0.0
    %1055 = vmatprep.mubr.f32.mxu0 0.0
    %1056 = vmatmul.mubr.f32.gmra.mrb[0].mxu0 %v731
    %v1057 = vpop.f32.mrb[0].mxu0
    %v1058 = vadd.f32 0.0, %v1057
    %v1059 = vpop.f32.mrb[0].mxu0
    %v1060 = vadd.f32 0.0, %v1059
    %1061 = vdwg.mxu0
    %v1062 = vld [vmem:[%s5 + $0x1] sm:$0x1]
    %v1064 = vlaneseq
    %v1065 = vshrl.u32 %v1064, 7
    %v1066 = vsub.s32 0, %v1065
    %v1067 = vrot.slane %v1062, %v1066
    %v1069 = vadd.f32 %v1060, %v1067
    %1070 = vst [vmem:[%s6] sm:$0x3] %v1069
    %v1071 = vld [vmem:[%s0] sm:$0xff]
    %v1072 = vld [vmem:[%s0 + $0x8] sm:$0xff]
    %v1073 = vld [vmem:[%s0 + $0x10] sm:$0xff]
    %v1074 = vld [vmem:[%s0 + $0x18] sm:$0xff]
    %v1077 = vunpack.c.l.s4 1966171168
    %v1078 = vunpack.c.0.s8 %v1077
    %v1079 = vlaneseq
    %v1080 = vshrl.u32 %v1079, 7
    %v1081 = vsub.s32 %v1078, %v1080
    %v1082 = vrot.slane %v916, %v1081
    %v1083 = vcombine.high %v1082, %v1082
    %v1085 = vunpack.c.l.s4 1966171168
    %v1086 = vunpack.c.0.s8 %v1085
    %v1087 = vlaneseq
    %v1088 = vshrl.u32 %v1087, 7
    %v1089 = vsub.s32 %v1086, %v1088
    %v1090 = vrot.slane %v1082, %v1089
    %v1092 = vunpack.c.l.s4 1966171168
    %v1093 = vunpack.c.0.s8 %v1092
    %v1094 = vlaneseq
    %v1095 = vshrl.u32 %v1094, 7
    %v1096 = vsub.s32 %v1093, %v1095
    %v1097 = vrot.slane %v1083, %v1096
    %v1098 = vlaneseq
    %v1099 = vshrl.u32 %v1098, 7
    %v1100 = vsub.s32 0, %v1099
    %v1101 = vrot.slane %v1090, %v1100
    %v1102 = vlaneseq
    %v1103 = vshrl.u32 %v1102, 7
    %v1104 = vsub.s32 0, %v1103
    %v1105 = vrot.slane %v1097, %v1104
    %v1108 = vadd.f32 %v1071, %v1101
    %v1109 = vadd.f32 %v1072, %v1101
    %v1110 = vadd.f32 %v1073, %v1105
    %v1111 = vadd.f32 %v1074, %v1105
    %v1112 = vtanh.pop %v1108
    %v1113 = vtanh.pop %v1109
    %v1114 = vtanh.pop %v1110
    %v1115 = vtanh.pop %v1111
    %v1116 = vld [vmem:[%s5] sm:$0x1]
    %v1118 = vlaneseq
    %v1119 = vshrl.u32 %v1118, 7
    %v1120 = vsub.s32 0, %v1119
    %v1121 = vrot.slane %v1116, %v1120
    %v1123 = vmul.f32 %v1112, %v1121
    %v1124 = vmul.f32 %v1113, %v1121
    %v1125 = vmul.f32 %v1114, %v1121
    %v1126 = vmul.f32 %v1115, %v1121
    %1127 = vadd.xlane.f32.xlu0 %v1123
    %v1128 = vpop.xlane.xlu0 %1127
    %1129 = vadd.xlane.f32.xlu0 %v1124
    %v1130 = vpop.xlane.xlu0 %1129
    %1131 = vadd.xlane.f32.xlu0 %v1125
    %v1132 = vpop.xlane.xlu0 %1131
    %1133 = vadd.xlane.f32.xlu0 %v1126
    %v1134 = vpop.xlane.xlu0 %1133
    %v1139 = vlaneseq
    %v1140 = vshrl.u32 %v1139, 7
    %v1141 = vsub.s32 %v404, %v1140
    %v1142 = vrot.slane %v1128, %v1141
    %v1143 = vlaneseq
    %v1144 = vshrl.u32 %v1143, 7
    %v1145 = vsub.s32 %v409, %v1144
    %v1146 = vrot.slane %v1130, %v1145
    %v1147 = vsel %vm414, %v1146, %v1142
    %v1148 = vlaneseq
    %v1149 = vshrl.u32 %v1148, 7
    %v1150 = vsub.s32 %v404, %v1149
    %v1151 = vrot.slane %v1132, %v1150
    %v1152 = vlaneseq
    %v1153 = vshrl.u32 %v1152, 7
    %v1154 = vsub.s32 %v409, %v1153
    %v1155 = vrot.slane %v1134, %v1154
    %v1156 = vsel %vm414, %v1155, %v1151
    %v1157 = vsel %vm425, %v1156, %v1147
    %v1159 = vsel %vm428, %v1157, -inf
    %1160 = vmax.xlane.f32.xlu0 %v1159
    %v1161 = vpop.xlane.xlu0 %1160
    %v1163 = vlaneseq
    %v1164 = vshrl.u32 %v1163, 7
    %v1165 = vsub.s32 0, %v1164
    %v1166 = vrot.slane %v1161, %v1165
    %v1167 = vlaneseq
    %v1168 = vshrl.u32 %v1167, 7
    %v1169 = vsub.s32 1, %v1168
    %v1170 = vrot.slane %v1161, %v1169
    %v1173 = vsub.f32 %v1128, %v1166
    %v1174 = vsub.f32 %v1130, %v1166
    %v1175 = vsub.f32 %v1132, %v1170
    %v1176 = vsub.f32 %v1134, %v1170
    %v1177 = vmul.f32 %v1173, 1.442695
    %v1178 = vpow.pop %v1177
    %v1179 = vmul.f32 %v1174, 1.442695
    %v1180 = vpow.pop %v1179
    %v1181 = vmul.f32 %v1175, 1.442695
    %v1182 = vpow.pop %v1181
    %v1183 = vmul.f32 %v1176, 1.442695
    %v1184 = vpow.pop %v1183
    %1189 = vset.pattern.permute.xlu0 0
    %1190 = vperm.xlu0 %1189, %v1178
    %v1191 = vpop.permute.xlu0 %1190
    %1192 = vset.pattern.permute.xlu0 0
    %1193 = vperm.xlu0 %1192, %v1180
    %v1194 = vpop.permute.xlu0 %1193
    %1195 = vset.pattern.permute.xlu0 0
    %1196 = vperm.xlu0 %1195, %v1182
    %v1197 = vpop.permute.xlu0 %1196
    %1198 = vset.pattern.permute.xlu0 0
    %1199 = vperm.xlu0 %1198, %v1184
    %v1200 = vpop.permute.xlu0 %1199
    %v1201 = vlaneseq
    %v1202 = vshrl.u32 %v1201, 7
    %v1203 = vsub.s32 %v404, %v1202
    %v1204 = vrot.slane %v1191, %v1203
    %v1205 = vlaneseq
    %v1206 = vshrl.u32 %v1205, 7
    %v1207 = vsub.s32 %v409, %v1206
    %v1208 = vrot.slane %v1194, %v1207
    %v1209 = vsel %vm414, %v1208, %v1204
    %v1210 = vlaneseq
    %v1211 = vshrl.u32 %v1210, 7
    %v1212 = vsub.s32 %v404, %v1211
    %v1213 = vrot.slane %v1197, %v1212
    %v1214 = vlaneseq
    %v1215 = vshrl.u32 %v1214, 7
    %v1216 = vsub.s32 %v409, %v1215
    %v1217 = vrot.slane %v1200, %v1216
    %v1218 = vsel %vm414, %v1217, %v1213
    %v1219 = vsel %vm425, %v1218, %v1209
    %v1221 = vsel %vm428, %v1219, 0.0
    %1222 = vadd.xlane.f32.xlu0 %v1221
    %v1223 = vpop.xlane.xlu0 %1222
    %v1224 = vrcp.pop %v1223
    %v1226 = vlaneseq
    %v1227 = vshrl.u32 %v1226, 7
    %v1228 = vsub.s32 0, %v1227
    %v1229 = vrot.slane %v1224, %v1228
    %v1230 = vlaneseq
    %v1231 = vshrl.u32 %v1230, 7
    %v1232 = vsub.s32 1, %v1231
    %v1233 = vrot.slane %v1224, %v1232
    %v1236 = vmul.f32 %v1178, %v1229
    %v1237 = vmul.f32 %v1180, %v1229
    %v1238 = vmul.f32 %v1182, %v1233
    %v1239 = vmul.f32 %v1184, %v1233
    %v1240 = vld [vmem:[%s1] sm:$0xff]
    %v1241 = vld [vmem:[%s1 + $0x8] sm:$0xff]
    %v1242 = vld [vmem:[%s1 + $0x10] sm:$0xff]
    %v1243 = vld [vmem:[%s1 + $0x18] sm:$0xff]
    %v1244 = vld [vmem:[%s1 + $0x20] sm:$0xff]
    %v1245 = vld [vmem:[%s1 + $0x28] sm:$0xff]
    %v1246 = vld [vmem:[%s1 + $0x30] sm:$0xff]
    %v1247 = vld [vmem:[%s1 + $0x38] sm:$0xff]
    %v1248 = vld [vmem:[%s1 + $0x40] sm:$0xff]
    %v1249 = vld [vmem:[%s1 + $0x48] sm:$0xff]
    %v1250 = vld [vmem:[%s1 + $0x50] sm:$0xff]
    %v1251 = vld [vmem:[%s1 + $0x58] sm:$0xff]
    %v1252 = vld [vmem:[%s1 + $0x60] sm:$0xff]
    %v1253 = vld [vmem:[%s1 + $0x68] sm:$0xff]
    %v1254 = vld [vmem:[%s1 + $0x70] sm:$0xff]
    %v1255 = vld [vmem:[%s1 + $0x78] sm:$0xff]
    %1257 = vset.pattern.permute.xlu0 0
    %1258 = vperm.xlu0 %1257, %v1236
    %v1259 = vpop.permute.xlu0 %1258
    %1262 = vset.pattern.permute.xlu0 0
    %1263 = vperm.xlu0 %1262, %v1237
    %v1264 = vpop.permute.xlu0 %1263
    %1267 = vset.pattern.permute.xlu0 0
    %1268 = vperm.xlu0 %1267, %v1238
    %v1269 = vpop.permute.xlu0 %1268
    %1272 = vset.pattern.permute.xlu0 0
    %1273 = vperm.xlu0 %1272, %v1239
    %v1274 = vpop.permute.xlu0 %1273
    %v1276 = vmul.f32 %v1259, %v1240
    %v1277 = vmul.f32 %v1259, %v1241
    %v1278 = vmul.f32 %v1259, %v1242
    %v1279 = vmul.f32 %v1259, %v1243
    %v1280 = vmul.f32 %v1264, %v1244
    %v1281 = vmul.f32 %v1264, %v1245
    %v1282 = vmul.f32 %v1264, %v1246
    %v1283 = vmul.f32 %v1264, %v1247
    %v1284 = vmul.f32 %v1269, %v1248
    %v1285 = vmul.f32 %v1269, %v1249
    %v1286 = vmul.f32 %v1269, %v1250
    %v1287 = vmul.f32 %v1269, %v1251
    %v1288 = vmul.f32 %v1274, %v1252
    %v1289 = vmul.f32 %v1274, %v1253
    %v1290 = vmul.f32 %v1274, %v1254
    %v1291 = vmul.f32 %v1274, %v1255
    %v1292 = vadd.f32 %v1276, %v1280
    %v1293 = vrot.slane %v1292, 4
    %v1294 = vadd.f32 %v1292, %v1293
    %v1295 = vrot.slane %v1294, 2
    %v1296 = vadd.f32 %v1294, %v1295
    %v1297 = vrot.slane %v1296, 1
    %v1298 = vadd.f32 %v1296, %v1297
    %v1299 = vadd.f32 %v1277, %v1281
    %v1300 = vrot.slane %v1299, 4
    %v1301 = vadd.f32 %v1299, %v1300
    %v1302 = vrot.slane %v1301, 2
    %v1303 = vadd.f32 %v1301, %v1302
    %v1304 = vrot.slane %v1303, 1
    %v1305 = vadd.f32 %v1303, %v1304
    %v1306 = vadd.f32 %v1278, %v1282
    %v1307 = vrot.slane %v1306, 4
    %v1308 = vadd.f32 %v1306, %v1307
    %v1309 = vrot.slane %v1308, 2
    %v1310 = vadd.f32 %v1308, %v1309
    %v1311 = vrot.slane %v1310, 1
    %v1312 = vadd.f32 %v1310, %v1311
    %v1313 = vadd.f32 %v1279, %v1283
    %v1314 = vrot.slane %v1313, 4
    %v1315 = vadd.f32 %v1313, %v1314
    %v1316 = vrot.slane %v1315, 2
    %v1317 = vadd.f32 %v1315, %v1316
    %v1318 = vrot.slane %v1317, 1
    %v1319 = vadd.f32 %v1317, %v1318
    %v1320 = vadd.f32 %v1284, %v1288
    %v1321 = vrot.slane %v1320, 4
    %v1322 = vadd.f32 %v1320, %v1321
    %v1323 = vrot.slane %v1322, 2
    %v1324 = vadd.f32 %v1322, %v1323
    %v1325 = vrot.slane %v1324, 1
    %v1326 = vadd.f32 %v1324, %v1325
    %v1327 = vadd.f32 %v1285, %v1289
    %v1328 = vrot.slane %v1327, 4
    %v1329 = vadd.f32 %v1327, %v1328
    %v1330 = vrot.slane %v1329, 2
    %v1331 = vadd.f32 %v1329, %v1330
    %v1332 = vrot.slane %v1331, 1
    %v1333 = vadd.f32 %v1331, %v1332
    %v1334 = vadd.f32 %v1286, %v1290
    %v1335 = vrot.slane %v1334, 4
    %v1336 = vadd.f32 %v1334, %v1335
    %v1337 = vrot.slane %v1336, 2
    %v1338 = vadd.f32 %v1336, %v1337
    %v1339 = vrot.slane %v1338, 1
    %v1340 = vadd.f32 %v1338, %v1339
    %v1341 = vadd.f32 %v1287, %v1291
    %v1342 = vrot.slane %v1341, 4
    %v1343 = vadd.f32 %v1341, %v1342
    %v1344 = vrot.slane %v1343, 2
    %v1345 = vadd.f32 %v1343, %v1344
    %v1346 = vrot.slane %v1345, 1
    %v1347 = vadd.f32 %v1345, %v1346
    %s1348 = scalar_lea.vmem %s2, 8
    %v1349 = vld [vmem:[%s1348] sm:$0xff]
    %v1358 = vcombine.low %v1298, %v1305
    %v1359 = vcombine.low %v1312, %v1319
    %v1361 = vunpack.c.l.s4 1983009808
    %v1362 = vunpack.c.0.s8 %v1361
    %v1363 = vlaneseq
    %v1364 = vshrl.u32 %v1363, 7
    %v1365 = vsub.s32 %v1362, %v1364
    %v1366 = vrot.slane %v1358, %v1365
    %v1368 = vunpack.c.l.s4 1983009808
    %v1369 = vunpack.c.0.s8 %v1368
    %v1370 = vlaneseq
    %v1371 = vshrl.u32 %v1370, 7
    %v1372 = vsub.s32 %v1369, %v1371
    %v1373 = vrot.slane %v1359, %v1372
    %v1374 = vcombine.low %v1366, %v1373
    %v1375 = vcombine.low %v1326, %v1333
    %v1376 = vcombine.low %v1340, %v1347
    %v1378 = vunpack.c.l.s4 1983009808
    %v1379 = vunpack.c.0.s8 %v1378
    %v1380 = vlaneseq
    %v1381 = vshrl.u32 %v1380, 7
    %v1382 = vsub.s32 %v1379, %v1381
    %v1383 = vrot.slane %v1375, %v1382
    %v1385 = vunpack.c.l.s4 1983009808
    %v1386 = vunpack.c.0.s8 %v1385
    %v1387 = vlaneseq
    %v1388 = vshrl.u32 %v1387, 7
    %v1389 = vsub.s32 %v1386, %v1388
    %v1390 = vrot.slane %v1376, %v1389
    %v1391 = vcombine.low %v1383, %v1390
    %v1392 = vsel %vm661, %v1374, %v1374
    %v1393 = vsel %vm663, %v1374, %v1392
    %v1394 = vrot.slane %v1391, 7
    %v1395 = vsel %vm425, %v1394, %v1393
    %v1396 = vsel %vm667, %v1394, %v1395
    %v1397 = vsel %vm669, %v1394, %v1396
    %v1398 = vsel %vm671, %v1394, %v1397
    %v1400 = vadd.f32 %v1349, %v1398
    %v1405 = vcombine.low %v918, %v987
    %v1406 = vcombine.low %v989, %v1058
    %v1408 = vunpack.c.l.s4 1983009808
    %v1409 = vunpack.c.0.s8 %v1408
    %v1410 = vlaneseq
    %v1411 = vshrl.u32 %v1410, 7
    %v1412 = vsub.s32 %v1409, %v1411
    %v1413 = vrot.slane %v1405, %v1412
    %v1415 = vunpack.c.l.s4 1983009808
    %v1416 = vunpack.c.0.s8 %v1415
    %v1417 = vlaneseq
    %v1418 = vshrl.u32 %v1417, 7
    %v1419 = vsub.s32 %v1416, %v1418
    %v1420 = vrot.slane %v1406, %v1419
    %v1421 = vcombine.low %v1413, %v1420
    %v1423 = vadd.f32 %v1400, %v1421
    %v1424 = vxor.u32 %v1423, 2147483648
    %v1425 = vmul.f32 %v1424, 1.442695
    %v1426 = vpow.pop %v1425
    %v1427 = vadd.f32 %v1426, 1.0
    %v1428 = vrcp.pop %v1427
    %v1429 = vmul.f32 1.0, %v1428
    %v1431 = vrot.slane %v1423, 2
    %v1433 = vxor.u32 %v1431, 2147483648
    %v1434 = vmul.f32 %v1433, 1.442695
    %v1435 = vpow.pop %v1434
    %v1436 = vadd.f32 %v1435, 1.0
    %v1437 = vrcp.pop %v1436
    %v1438 = vmul.f32 1.0, %v1437
    %v1439 = vrot.slane %v1423, 4
    %v1441 = vtanh.pop %v1439
    %v1442 = vrot.slane %v1423, 6
    %v1444 = vxor.u32 %v1442, 2147483648
    %v1445 = vmul.f32 %v1444, 1.442695
    %v1446 = vpow.pop %v1445
    %v1447 = vadd.f32 %v1446, 1.0
    %v1448 = vrcp.pop %v1447
    %v1449 = vmul.f32 1.0, %v1448
    %v1450 = vmul.f32 %v1438, %v729
    %v1451 = vmul.f32 %v1429, %v1441
    %v1452 = vadd.f32 %v1450, %v1451
    %v1453 = vtanh.pop %v1452
    %v1454 = vmul.f32 %v1449, %v1453
    %v1455 = vlaneseq
    %v1456 = vshrl.u32 %v1455, 7
    %v1457 = vsub.s32 %v404, %v1456
    %v1458 = vrot.slane %v1259, %v1457
    %v1459 = vlaneseq
    %v1460 = vshrl.u32 %v1459, 7
    %v1461 = vsub.s32 %v409, %v1460
    %v1462 = vrot.slane %v1264, %v1461
    %v1463 = vsel %vm414, %v1462, %v1458
    %v1464 = vlaneseq
    %v1465 = vshrl.u32 %v1464, 7
    %v1466 = vsub.s32 %v404, %v1465
    %v1467 = vrot.slane %v1269, %v1466
    %v1468 = vlaneseq
    %v1469 = vshrl.u32 %v1468, 7
    %v1470 = vsub.s32 %v409, %v1469
    %v1471 = vrot.slane %v1274, %v1470
    %v1472 = vsel %vm414, %v1471, %v1467
    %v1473 = vsel %vm425, %v1472, %v1463
    %s1475 = scalar_lea.vmem [#allocation2], 2
    %1476 = vst.msk [vmem:[%s1475] sm:$0x3] %vm428, %v1473
    %v1477 = vld [vmem:[%s4] sm:$0xff]
    %v1478 = vld [vmem:[%s4 + $0x8] sm:$0xff]
    %v1479 = vld [vmem:[%s4 + $0x10] sm:$0xff]
    %v1480 = vld [vmem:[%s4 + $0x18] sm:$0xff]
    %v1481 = vld [vmem:[%s4 + $0x20] sm:$0xff]
    %v1482 = vld [vmem:[%s4 + $0x28] sm:$0xff]
    %v1483 = vld [vmem:[%s4 + $0x30] sm:$0xff]
    %v1484 = vld [vmem:[%s4 + $0x38] sm:$0xff]
    %v1485 = vld [vmem:[%s4 + $0x40] sm:$0xff]
    %v1486 = vld [vmem:[%s4 + $0x48] sm:$0xff]
    %v1487 = vld [vmem:[%s4 + $0x50] sm:$0xff]
    %v1488 = vld [vmem:[%s4 + $0x58] sm:$0xff]
    %v1489 = vld [vmem:[%s4 + $0x60] sm:$0xff]
    %v1490 = vld [vmem:[%s4 + $0x68] sm:$0xff]
    %v1491 = vld [vmem:[%s4 + $0x70] sm:$0xff]
    %v1492 = vld [vmem:[%s4 + $0x78] sm:$0xff]
    %v1493 = vld [vmem:[%s4 + $0x80] sm:$0xff]
    %v1494 = vld [vmem:[%s4 + $0x88] sm:$0xff]
    %v1495 = vld [vmem:[%s4 + $0x90] sm:$0xff]
    %v1496 = vld [vmem:[%s4 + $0x98] sm:$0xff]
    %v1497 = vld [vmem:[%s4 + $0xa0] sm:$0xff]
    %v1498 = vld [vmem:[%s4 + $0xa8] sm:$0xff]
    %v1499 = vld [vmem:[%s4 + $0xb0] sm:$0xff]
    %v1500 = vld [vmem:[%s4 + $0xb8] sm:$0xff]
    %v1501 = vld [vmem:[%s4 + $0xc0] sm:$0xff]
    %v1502 = vld [vmem:[%s4 + $0xc8] sm:$0xff]
    %v1503 = vld [vmem:[%s4 + $0xd0] sm:$0xff]
    %v1504 = vld [vmem:[%s4 + $0xd8] sm:$0xff]
    %v1505 = vld [vmem:[%s4 + $0xe0] sm:$0xff]
    %v1506 = vld [vmem:[%s4 + $0xe8] sm:$0xff]
    %v1507 = vld [vmem:[%s4 + $0xf0] sm:$0xff]
    %v1508 = vld [vmem:[%s4 + $0xf8] sm:$0xff]
    %v1509 = vld [vmem:[%s4 + $0x100] sm:$0xff]
    %v1510 = vld [vmem:[%s4 + $0x108] sm:$0xff]
    %v1511 = vld [vmem:[%s4 + $0x110] sm:$0xff]
    %v1512 = vld [vmem:[%s4 + $0x118] sm:$0xff]
    %v1513 = vld [vmem:[%s4 + $0x120] sm:$0xff]
    %v1514 = vld [vmem:[%s4 + $0x128] sm:$0xff]
    %v1515 = vld [vmem:[%s4 + $0x130] sm:$0xff]
    %v1516 = vld [vmem:[%s4 + $0x138] sm:$0xff]
    %v1517 = vld [vmem:[%s4 + $0x140] sm:$0xff]
    %v1518 = vld [vmem:[%s4 + $0x148] sm:$0xff]
    %v1519 = vld [vmem:[%s4 + $0x150] sm:$0xff]
    %v1520 = vld [vmem:[%s4 + $0x158] sm:$0xff]
    %v1521 = vld [vmem:[%s4 + $0x160] sm:$0xff]
    %v1522 = vld [vmem:[%s4 + $0x168] sm:$0xff]
    %v1523 = vld [vmem:[%s4 + $0x170] sm:$0xff]
    %v1524 = vld [vmem:[%s4 + $0x178] sm:$0xff]
    %v1525 = vld [vmem:[%s4 + $0x180] sm:$0xff]
    %v1526 = vld [vmem:[%s4 + $0x188] sm:$0xff]
    %v1527 = vld [vmem:[%s4 + $0x190] sm:$0xff]
    %v1528 = vld [vmem:[%s4 + $0x198] sm:$0xff]
    %v1529 = vld [vmem:[%s4 + $0x1a0] sm:$0xff]
    %v1530 = vld [vmem:[%s4 + $0x1a8] sm:$0xff]
    %v1531 = vld [vmem:[%s4 + $0x1b0] sm:$0xff]
    %v1532 = vld [vmem:[%s4 + $0x1b8] sm:$0xff]
    %v1533 = vld [vmem:[%s4 + $0x1c0] sm:$0xff]
    %v1534 = vld [vmem:[%s4 + $0x1c8] sm:$0xff]
    %v1535 = vld [vmem:[%s4 + $0x1d0] sm:$0xff]
    %v1536 = vld [vmem:[%s4 + $0x1d8] sm:$0xff]
    %v1537 = vld [vmem:[%s4 + $0x1e0] sm:$0xff]
    %v1538 = vld [vmem:[%s4 + $0x1e8] sm:$0xff]
    %v1539 = vld [vmem:[%s4 + $0x1f0] sm:$0xff]
    %v1540 = vld [vmem:[%s4 + $0x1f8] sm:$0xff]
    %v1541 = vld [vmem:[%s4 + $0x200] sm:$0xff]
    %v1542 = vld [vmem:[%s4 + $0x208] sm:$0xff]
    %v1543 = vld [vmem:[%s4 + $0x210] sm:$0xff]
    %v1544 = vld [vmem:[%s4 + $0x218] sm:$0xff]
    %v1545 = vld [vmem:[%s4 + $0x220] sm:$0xff]
    %v1546 = vld [vmem:[%s4 + $0x228] sm:$0xff]
    %v1547 = vld [vmem:[%s4 + $0x230] sm:$0xff]
    %v1548 = vld [vmem:[%s4 + $0x238] sm:$0xff]
    %v1549 = vld [vmem:[%s4 + $0x240] sm:$0xff]
    %v1550 = vld [vmem:[%s4 + $0x248] sm:$0xff]
    %v1551 = vld [vmem:[%s4 + $0x250] sm:$0xff]
    %v1552 = vld [vmem:[%s4 + $0x258] sm:$0xff]
    %v1553 = vld [vmem:[%s4 + $0x260] sm:$0xff]
    %v1554 = vld [vmem:[%s4 + $0x268] sm:$0xff]
    %v1555 = vld [vmem:[%s4 + $0x270] sm:$0xff]
    %v1556 = vld [vmem:[%s4 + $0x278] sm:$0xff]
    %v1557 = vld [vmem:[%s4 + $0x280] sm:$0xff]
    %v1558 = vld [vmem:[%s4 + $0x288] sm:$0xff]
    %v1559 = vld [vmem:[%s4 + $0x290] sm:$0xff]
    %v1560 = vld [vmem:[%s4 + $0x298] sm:$0xff]
    %v1561 = vld [vmem:[%s4 + $0x2a0] sm:$0xff]
    %v1562 = vld [vmem:[%s4 + $0x2a8] sm:$0xff]
    %v1563 = vld [vmem:[%s4 + $0x2b0] sm:$0xff]
    %v1564 = vld [vmem:[%s4 + $0x2b8] sm:$0xff]
    %v1565 = vld [vmem:[%s4 + $0x2c0] sm:$0xff]
    %v1566 = vld [vmem:[%s4 + $0x2c8] sm:$0xff]
    %v1567 = vld [vmem:[%s4 + $0x2d0] sm:$0xff]
    %v1568 = vld [vmem:[%s4 + $0x2d8] sm:$0xff]
    %v1569 = vld [vmem:[%s4 + $0x2e0] sm:$0xff]
    %v1570 = vld [vmem:[%s4 + $0x2e8] sm:$0xff]
    %v1571 = vld [vmem:[%s4 + $0x2f0] sm:$0xff]
    %v1572 = vld [vmem:[%s4 + $0x2f8] sm:$0xff]
    %1573 = vmatprep.subr.mxu0 %v1478
    %1574 = vmatpush1.msra.mxu0 %v1477
    %1575 = vmatprep.subr.mxu0 %v1484
    %1576 = vmatpush1.msra.mxu0 %v1483
    %1577 = vmatprep.subr.mxu0 %v1490
    %1578 = vmatpush1.msra.mxu0 %v1489
    %1579 = vmatprep.subr.mxu0 %v1496
    %1580 = vmatpush1.msra.mxu0 %v1495
    %1581 = vmatprep.subr.mxu0 %v1502
    %1582 = vmatpush1.msra.mxu0 %v1501
    %1583 = vmatprep.subr.mxu0 %v1508
    %1584 = vmatpush1.msra.mxu0 %v1507
    %1585 = vmatprep.subr.mxu0 %v1514
    %1586 = vmatpush1.msra.mxu0 %v1513
    %1587 = vmatprep.subr.mxu0 %v1520
    %1588 = vmatpush1.msra.mxu0 %v1519
    %1589 = vmatprep.subr.mxu0 %v1526
    %1590 = vmatpush1.msra.mxu0 %v1525
    %1591 = vmatprep.subr.mxu0 %v1532
    %1592 = vmatpush1.msra.mxu0 %v1531
    %1593 = vmatprep.subr.mxu0 %v1538
    %1594 = vmatpush1.msra.mxu0 %v1537
    %1595 = vmatprep.subr.mxu0 %v1544
    %1596 = vmatpush1.msra.mxu0 %v1543
    %1597 = vmatprep.subr.mxu0 %v1550
    %1598 = vmatpush1.msra.mxu0 %v1549
    %1599 = vmatprep.subr.mxu0 %v1556
    %1600 = vmatpush1.msra.mxu0 %v1555
    %1601 = vmatprep.subr.mxu0 %v1562
    %1602 = vmatpush1.msra.mxu0 %v1561
    %1603 = vmatprep.subr.mxu0 %v1568
    %1604 = vmatpush1.msra.mxu0 %v1567
    %1605 = vmatprep.subr.mxu0 0.0
    %1606 = vmatpush1.msra.mxu0 0.0
    %1607 = vmatprep.subr.mxu0 0.0
    %1608 = vmatpush1.msra.mxu0 0.0
    %1609 = vmatprep.subr.mxu0 0.0
    %1610 = vmatpush1.msra.mxu0 0.0
    %1611 = vmatprep.subr.mxu0 0.0
    %1612 = vmatpush1.msra.mxu0 0.0
    %1613 = vmatprep.subr.mxu0 0.0
    %1614 = vmatpush1.msra.mxu0 0.0
    %1615 = vmatprep.subr.mxu0 0.0
    %1616 = vmatpush1.msra.mxu0 0.0
    %1617 = vmatprep.subr.mxu0 0.0
    %1618 = vmatpush1.msra.mxu0 0.0
    %1619 = vmatprep.subr.mxu0 0.0
    %1620 = vmatpush1.msra.mxu0 0.0
    %1621 = vmatprep.subr.mxu0 0.0
    %1622 = vmatpush1.msra.mxu0 0.0
    %1623 = vmatprep.subr.mxu0 0.0
    %1624 = vmatpush1.msra.mxu0 0.0
    %1625 = vmatprep.subr.mxu0 0.0
    %1626 = vmatpush1.msra.mxu0 0.0
    %1627 = vmatprep.subr.mxu0 0.0
    %1628 = vmatpush1.msra.mxu0 0.0
    %1629 = vmatprep.subr.mxu0 0.0
    %1630 = vmatpush1.msra.mxu0 0.0
    %1631 = vmatprep.subr.mxu0 0.0
    %1632 = vmatpush1.msra.mxu0 0.0
    %1633 = vmatprep.subr.mxu0 0.0
    %1634 = vmatpush1.msra.mxu0 0.0
    %1635 = vmatprep.subr.mxu0 0.0
    %1636 = vmatpush1.msra.mxu0 0.0
    %1637 = vmatprep.mubr.f32.mxu0 0.0
    %1638 = vmatmul.mubr.f32.gmra.mrb[0].mxu0 %v1454
    %v1639 = vpop.f32.mrb[0].mxu0
    %v1640 = vadd.f32 0.0, %v1639
    %v1641 = vpop.f32.mrb[0].mxu0
    %v1642 = vadd.f32 0.0, %v1641
    %1643 = vdwg.mxu0
    %1644 = vmatprep.subr.mxu0 %v1480
    %1645 = vmatpush1.msra.mxu0 %v1479
    %1646 = vmatprep.subr.mxu0 %v1486
    %1647 = vmatpush1.msra.mxu0 %v1485
    %1648 = vmatprep.subr.mxu0 %v1492
    %1649 = vmatpush1.msra.mxu0 %v1491
    %1650 = vmatprep.subr.mxu0 %v1498
    %1651 = vmatpush1.msra.mxu0 %v1497
    %1652 = vmatprep.subr.mxu0 %v1504
    %1653 = vmatpush1.msra.mxu0 %v1503
    %1654 = vmatprep.subr.mxu0 %v1510
    %1655 = vmatpush1.msra.mxu0 %v1509
    %1656 = vmatprep.subr.mxu0 %v1516
    %1657 = vmatpush1.msra.mxu0 %v1515
    %1658 = vmatprep.subr.mxu0 %v1522
    %1659 = vmatpush1.msra.mxu0 %v1521
    %1660 = vmatprep.subr.mxu0 %v1528
    %1661 = vmatpush1.msra.mxu0 %v1527
    %1662 = vmatprep.subr.mxu0 %v1534
    %1663 = vmatpush1.msra.mxu0 %v1533
    %1664 = vmatprep.subr.mxu0 %v1540
    %1665 = vmatpush1.msra.mxu0 %v1539
    %1666 = vmatprep.subr.mxu0 %v1546
    %1667 = vmatpush1.msra.mxu0 %v1545
    %1668 = vmatprep.subr.mxu0 %v1552
    %1669 = vmatpush1.msra.mxu0 %v1551
    %1670 = vmatprep.subr.mxu0 %v1558
    %1671 = vmatpush1.msra.mxu0 %v1557
    %1672 = vmatprep.subr.mxu0 %v1564
    %1673 = vmatpush1.msra.mxu0 %v1563
    %1674 = vmatprep.subr.mxu0 %v1570
    %1675 = vmatpush1.msra.mxu0 %v1569
    %1676 = vmatprep.subr.mxu0 0.0
    %1677 = vmatpush1.msra.mxu0 0.0
    %1678 = vmatprep.subr.mxu0 0.0
    %1679 = vmatpush1.msra.mxu0 0.0
    %1680 = vmatprep.subr.mxu0 0.0
    %1681 = vmatpush1.msra.mxu0 0.0
    %1682 = vmatprep.subr.mxu0 0.0
    %1683 = vmatpush1.msra.mxu0 0.0
    %1684 = vmatprep.subr.mxu0 0.0
    %1685 = vmatpush1.msra.mxu0 0.0
    %1686 = vmatprep.subr.mxu0 0.0
    %1687 = vmatpush1.msra.mxu0 0.0
    %1688 = vmatprep.subr.mxu0 0.0
    %1689 = vmatpush1.msra.mxu0 0.0
    %1690 = vmatprep.subr.mxu0 0.0
    %1691 = vmatpush1.msra.mxu0 0.0
    %1692 = vmatprep.subr.mxu0 0.0
    %1693 = vmatpush1.msra.mxu0 0.0
    %1694 = vmatprep.subr.mxu0 0.0
    %1695 = vmatpush1.msra.mxu0 0.0
    %1696 = vmatprep.subr.mxu0 0.0
    %1697 = vmatpush1.msra.mxu0 0.0
    %1698 = vmatprep.subr.mxu0 0.0
    %1699 = vmatpush1.msra.mxu0 0.0
    %1700 = vmatprep.subr.mxu0 0.0
    %1701 = vmatpush1.msra.mxu0 0.0
    %1702 = vmatprep.subr.mxu0 0.0
    %1703 = vmatpush1.msra.mxu0 0.0
    %1704 = vmatprep.subr.mxu0 0.0
    %1705 = vmatpush1.msra.mxu0 0.0
    %1706 = vmatprep.subr.mxu0 0.0
    %1707 = vmatpush1.msra.mxu0 0.0
    %1708 = vmatprep.mubr.f32.mxu0 0.0
    %1709 = vmatmul.mubr.f32.gmra.mrb[0].mxu0 %v1454
    %v1710 = vpop.f32.mrb[0].mxu0
    %v1711 = vadd.f32 0.0, %v1710
    %v1712 = vpop.f32.mrb[0].mxu0
    %v1713 = vadd.f32 0.0, %v1712
    %1714 = vdwg.mxu0
    %1715 = vmatprep.subr.mxu0 %v1482
    %1716 = vmatpush1.msra.mxu0 %v1481
    %1717 = vmatprep.subr.mxu0 %v1488
    %1718 = vmatpush1.msra.mxu0 %v1487
    %1719 = vmatprep.subr.mxu0 %v1494
    %1720 = vmatpush1.msra.mxu0 %v1493
    %1721 = vmatprep.subr.mxu0 %v1500
    %1722 = vmatpush1.msra.mxu0 %v1499
    %1723 = vmatprep.subr.mxu0 %v1506
    %1724 = vmatpush1.msra.mxu0 %v1505
    %1725 = vmatprep.subr.mxu0 %v1512
    %1726 = vmatpush1.msra.mxu0 %v1511
    %1727 = vmatprep.subr.mxu0 %v1518
    %1728 = vmatpush1.msra.mxu0 %v1517
    %1729 = vmatprep.subr.mxu0 %v1524
    %1730 = vmatpush1.msra.mxu0 %v1523
    %1731 = vmatprep.subr.mxu0 %v1530
    %1732 = vmatpush1.msra.mxu0 %v1529
    %1733 = vmatprep.subr.mxu0 %v1536
    %1734 = vmatpush1.msra.mxu0 %v1535
    %1735 = vmatprep.subr.mxu0 %v1542
    %1736 = vmatpush1.msra.mxu0 %v1541
    %1737 = vmatprep.subr.mxu0 %v1548
    %1738 = vmatpush1.msra.mxu0 %v1547
    %1739 = vmatprep.subr.mxu0 %v1554
    %1740 = vmatpush1.msra.mxu0 %v1553
    %1741 = vmatprep.subr.mxu0 %v1560
    %1742 = vmatpush1.msra.mxu0 %v1559
    %1743 = vmatprep.subr.mxu0 %v1566
    %1744 = vmatpush1.msra.mxu0 %v1565
    %1745 = vmatprep.subr.mxu0 %v1572
    %1746 = vmatpush1.msra.mxu0 %v1571
    %1747 = vmatprep.subr.mxu0 0.0
    %1748 = vmatpush1.msra.mxu0 0.0
    %1749 = vmatprep.subr.mxu0 0.0
    %1750 = vmatpush1.msra.mxu0 0.0
    %1751 = vmatprep.subr.mxu0 0.0
    %1752 = vmatpush1.msra.mxu0 0.0
    %1753 = vmatprep.subr.mxu0 0.0
    %1754 = vmatpush1.msra.mxu0 0.0
    %1755 = vmatprep.subr.mxu0 0.0
    %1756 = vmatpush1.msra.mxu0 0.0
    %1757 = vmatprep.subr.mxu0 0.0
    %1758 = vmatpush1.msra.mxu0 0.0
    %1759 = vmatprep.subr.mxu0 0.0
    %1760 = vmatpush1.msra.mxu0 0.0
    %1761 = vmatprep.subr.mxu0 0.0
    %1762 = vmatpush1.msra.mxu0 0.0
    %1763 = vmatprep.subr.mxu0 0.0
    %1764 = vmatpush1.msra.mxu0 0.0
    %1765 = vmatprep.subr.mxu0 0.0
    %1766 = vmatpush1.msra.mxu0 0.0
    %1767 = vmatprep.subr.mxu0 0.0
    %1768 = vmatpush1.msra.mxu0 0.0
    %1769 = vmatprep.subr.mxu0 0.0
    %1770 = vmatpush1.msra.mxu0 0.0
    %1771 = vmatprep.subr.mxu0 0.0
    %1772 = vmatpush1.msra.mxu0 0.0
    %1773 = vmatprep.subr.mxu0 0.0
    %1774 = vmatpush1.msra.mxu0 0.0
    %1775 = vmatprep.subr.mxu0 0.0
    %1776 = vmatpush1.msra.mxu0 0.0
    %1777 = vmatprep.subr.mxu0 0.0
    %1778 = vmatpush1.msra.mxu0 0.0
    %1779 = vmatprep.mubr.f32.mxu0 0.0
    %1780 = vmatmul.mubr.f32.gmra.mrb[0].mxu0 %v1454
    %v1781 = vpop.f32.mrb[0].mxu0
    %v1782 = vadd.f32 0.0, %v1781
    %v1783 = vpop.f32.mrb[0].mxu0
    %v1784 = vadd.f32 0.0, %v1783
    %1785 = vdwg.mxu0
    %v1786 = vld [vmem:[%s5 + $0x1] sm:$0x1]
    %v1788 = vlaneseq
    %v1789 = vshrl.u32 %v1788, 7
    %v1790 = vsub.s32 0, %v1789
    %v1791 = vrot.slane %v1786, %v1790
    %v1793 = vadd.f32 %v1784, %v1791
    %s1794 = scalar_lea.vmem %s6, 2
    %1795 = vst [vmem:[%s1794] sm:$0x3] %v1793
    %v1796 = vld [vmem:[%s0] sm:$0xff]
    %v1797 = vld [vmem:[%s0 + $0x8] sm:$0xff]
    %v1798 = vld [vmem:[%s0 + $0x10] sm:$0xff]
    %v1799 = vld [vmem:[%s0 + $0x18] sm:$0xff]
    %v1802 = vunpack.c.l.s4 1966171168
    %v1803 = vunpack.c.0.s8 %v1802
    %v1804 = vlaneseq
    %v1805 = vshrl.u32 %v1804, 7
    %v1806 = vsub.s32 %v1803, %v1805
    %v1807 = vrot.slane %v1640, %v1806
    %v1808 = vcombine.high %v1807, %v1807
    %v1810 = vunpack.c.l.s4 1966171168
    %v1811 = vunpack.c.0.s8 %v1810
    %v1812 = vlaneseq
    %v1813 = vshrl.u32 %v1812, 7
    %v1814 = vsub.s32 %v1811, %v1813
    %v1815 = vrot.slane %v1807, %v1814
    %v1817 = vunpack.c.l.s4 1966171168
    %v1818 = vunpack.c.0.s8 %v1817
    %v1819 = vlaneseq
    %v1820 = vshrl.u32 %v1819, 7
    %v1821 = vsub.s32 %v1818, %v1820
    %v1822 = vrot.slane %v1808, %v1821
    %v1823 = vlaneseq
    %v1824 = vshrl.u32 %v1823, 7
    %v1825 = vsub.s32 0, %v1824
    %v1826 = vrot.slane %v1815, %v1825
    %v1827 = vlaneseq
    %v1828 = vshrl.u32 %v1827, 7
    %v1829 = vsub.s32 0, %v1828
    %v1830 = vrot.slane %v1822, %v1829
    %v1833 = vadd.f32 %v1796, %v1826
    %v1834 = vadd.f32 %v1797, %v1826
    %v1835 = vadd.f32 %v1798, %v1830
    %v1836 = vadd.f32 %v1799, %v1830
    %v1837 = vtanh.pop %v1833
    %v1838 = vtanh.pop %v1834
    %v1839 = vtanh.pop %v1835
    %v1840 = vtanh.pop %v1836
    %v1841 = vld [vmem:[%s5] sm:$0x1]
    %v1843 = vlaneseq
    %v1844 = vshrl.u32 %v1843, 7
    %v1845 = vsub.s32 0, %v1844
    %v1846 = vrot.slane %v1841, %v1845
    %v1848 = vmul.f32 %v1837, %v1846
    %v1849 = vmul.f32 %v1838, %v1846
    %v1850 = vmul.f32 %v1839, %v1846
    %v1851 = vmul.f32 %v1840, %v1846
    %1852 = vadd.xlane.f32.xlu0 %v1848
    %v1853 = vpop.xlane.xlu0 %1852
    %1854 = vadd.xlane.f32.xlu0 %v1849
    %v1855 = vpop.xlane.xlu0 %1854
    %1856 = vadd.xlane.f32.xlu0 %v1850
    %v1857 = vpop.xlane.xlu0 %1856
    %1858 = vadd.xlane.f32.xlu0 %v1851
    %v1859 = vpop.xlane.xlu0 %1858
    %v1864 = vlaneseq
    %v1865 = vshrl.u32 %v1864, 7
    %v1866 = vsub.s32 %v404, %v1865
    %v1867 = vrot.slane %v1853, %v1866
    %v1868 = vlaneseq
    %v1869 = vshrl.u32 %v1868, 7
    %v1870 = vsub.s32 %v409, %v1869
    %v1871 = vrot.slane %v1855, %v1870
    %v1872 = vsel %vm414, %v1871, %v1867
    %v1873 = vlaneseq
    %v1874 = vshrl.u32 %v1873, 7
    %v1875 = vsub.s32 %v404, %v1874
    %v1876 = vrot.slane %v1857, %v1875
    %v1877 = vlaneseq
    %v1878 = vshrl.u32 %v1877, 7
    %v1879 = vsub.s32 %v409, %v1878
    %v1880 = vrot.slane %v1859, %v1879
    %v1881 = vsel %vm414, %v1880, %v1876
    %v1882 = vsel %vm425, %v1881, %v1872
    %v1884 = vsel %vm428, %v1882, -inf
    %1885 = vmax.xlane.f32.xlu0 %v1884
    %v1886 = vpop.xlane.xlu0 %1885
    %v1888 = vlaneseq
    %v1889 = vshrl.u32 %v1888, 7
    %v1890 = vsub.s32 0, %v1889
    %v1891 = vrot.slane %v1886, %v1890
    %v1892 = vlaneseq
    %v1893 = vshrl.u32 %v1892, 7
    %v1894 = vsub.s32 1, %v1893
    %v1895 = vrot.slane %v1886, %v1894
    %v1898 = vsub.f32 %v1853, %v1891
    %v1899 = vsub.f32 %v1855, %v1891
    %v1900 = vsub.f32 %v1857, %v1895
    %v1901 = vsub.f32 %v1859, %v1895
    %v1902 = vmul.f32 %v1898, 1.442695
    %v1903 = vpow.pop %v1902
    %v1904 = vmul.f32 %v1899, 1.442695
    %v1905 = vpow.pop %v1904
    %v1906 = vmul.f32 %v1900, 1.442695
    %v1907 = vpow.pop %v1906
    %v1908 = vmul.f32 %v1901, 1.442695
    %v1909 = vpow.pop %v1908
    %1914 = vset.pattern.permute.xlu0 0
    %1915 = vperm.xlu0 %1914, %v1903
    %v1916 = vpop.permute.xlu0 %1915
    %1917 = vset.pattern.permute.xlu0 0
    %1918 = vperm.xlu0 %1917, %v1905
    %v1919 = vpop.permute.xlu0 %1918
    %1920 = vset.pattern.permute.xlu0 0
    %1921 = vperm.xlu0 %1920, %v1907
    %v1922 = vpop.permute.xlu0 %1921
    %1923 = vset.pattern.permute.xlu0 0
    %1924 = vperm.xlu0 %1923, %v1909
    %v1925 = vpop.permute.xlu0 %1924
    %v1926 = vlaneseq
    %v1927 = vshrl.u32 %v1926, 7
    %v1928 = vsub.s32 %v404, %v1927
    %v1929 = vrot.slane %v1916, %v1928
    %v1930 = vlaneseq
    %v1931 = vshrl.u32 %v1930, 7
    %v1932 = vsub.s32 %v409, %v1931
    %v1933 = vrot.slane %v1919, %v1932
    %v1934 = vsel %vm414, %v1933, %v1929
    %v1935 = vlaneseq
    %v1936 = vshrl.u32 %v1935, 7
    %v1937 = vsub.s32 %v404, %v1936
    %v1938 = vrot.slane %v1922, %v1937
    %v1939 = vlaneseq
    %v1940 = vshrl.u32 %v1939, 7
    %v1941 = vsub.s32 %v409, %v1940
    %v1942 = vrot.slane %v1925, %v1941
    %v1943 = vsel %vm414, %v1942, %v1938
    %v1944 = vsel %vm425, %v1943, %v1934
    %v1946 = vsel %vm428, %v1944, 0.0
    %1947 = vadd.xlane.f32.xlu0 %v1946
    %v1948 = vpop.xlane.xlu0 %1947
    %v1949 = vrcp.pop %v1948
    %v1951 = vlaneseq
    %v1952 = vshrl.u32 %v1951, 7
    %v1953 = vsub.s32 0, %v1952
    %v1954 = vrot.slane %v1949, %v1953
    %v1955 = vlaneseq
    %v1956 = vshrl.u32 %v1955, 7
    %v1957 = vsub.s32 1, %v1956
    %v1958 = vrot.slane %v1949, %v1957
    %v1961 = vmul.f32 %v1903, %v1954
    %v1962 = vmul.f32 %v1905, %v1954
    %v1963 = vmul.f32 %v1907, %v1958
    %v1964 = vmul.f32 %v1909, %v1958
    %v1965 = vld [vmem:[%s1] sm:$0xff]
    %v1966 = vld [vmem:[%s1 + $0x8] sm:$0xff]
    %v1967 = vld [vmem:[%s1 + $0x10] sm:$0xff]
    %v1968 = vld [vmem:[%s1 + $0x18] sm:$0xff]
    %v1969 = vld [vmem:[%s1 + $0x20] sm:$0xff]
    %v1970 = vld [vmem:[%s1 + $0x28] sm:$0xff]
    %v1971 = vld [vmem:[%s1 + $0x30] sm:$0xff]
    %v1972 = vld [vmem:[%s1 + $0x38] sm:$0xff]
    %v1973 = vld [vmem:[%s1 + $0x40] sm:$0xff]
    %v1974 = vld [vmem:[%s1 + $0x48] sm:$0xff]
    %v1975 = vld [vmem:[%s1 + $0x50] sm:$0xff]
    %v1976 = vld [vmem:[%s1 + $0x58] sm:$0xff]
    %v1977 = vld [vmem:[%s1 + $0x60] sm:$0xff]
    %v1978 = vld [vmem:[%s1 + $0x68] sm:$0xff]
    %v1979 = vld [vmem:[%s1 + $0x70] sm:$0xff]
    %v1980 = vld [vmem:[%s1 + $0x78] sm:$0xff]
    %1982 = vset.pattern.permute.xlu0 0
    %1983 = vperm.xlu0 %1982, %v1961
    %v1984 = vpop.permute.xlu0 %1983
    %1987 = vset.pattern.permute.xlu0 0
    %1988 = vperm.xlu0 %1987, %v1962
    %v1989 = vpop.permute.xlu0 %1988
    %1992 = vset.pattern.permute.xlu0 0
    %1993 = vperm.xlu0 %1992, %v1963
    %v1994 = vpop.permute.xlu0 %1993
    %1997 = vset.pattern.permute.xlu0 0
    %1998 = vperm.xlu0 %1997, %v1964
    %v1999 = vpop.permute.xlu0 %1998
    %v2001 = vmul.f32 %v1984, %v1965
    %v2002 = vmul.f32 %v1984, %v1966
    %v2003 = vmul.f32 %v1984, %v1967
    %v2004 = vmul.f32 %v1984, %v1968
    %v2005 = vmul.f32 %v1989, %v1969
    %v2006 = vmul.f32 %v1989, %v1970
    %v2007 = vmul.f32 %v1989, %v1971
    %v2008 = vmul.f32 %v1989, %v1972
    %v2009 = vmul.f32 %v1994, %v1973
    %v2010 = vmul.f32 %v1994, %v1974
    %v2011 = vmul.f32 %v1994, %v1975
    %v2012 = vmul.f32 %v1994, %v1976
    %v2013 = vmul.f32 %v1999, %v1977
    %v2014 = vmul.f32 %v1999, %v1978
    %v2015 = vmul.f32 %v1999, %v1979
    %v2016 = vmul.f32 %v1999, %v1980
    %v2017 = vadd.f32 %v2001, %v2005
    %v2018 = vrot.slane %v2017, 4
    %v2019 = vadd.f32 %v2017, %v2018
    %v2020 = vrot.slane %v2019, 2
    %v2021 = vadd.f32 %v2019, %v2020
    %v2022 = vrot.slane %v2021, 1
    %v2023 = vadd.f32 %v2021, %v2022
    %v2024 = vadd.f32 %v2002, %v2006
    %v2025 = vrot.slane %v2024, 4
    %v2026 = vadd.f32 %v2024, %v2025
    %v2027 = vrot.slane %v2026, 2
    %v2028 = vadd.f32 %v2026, %v2027
    %v2029 = vrot.slane %v2028, 1
    %v2030 = vadd.f32 %v2028, %v2029
    %v2031 = vadd.f32 %v2003, %v2007
    %v2032 = vrot.slane %v2031, 4
    %v2033 = vadd.f32 %v2031, %v2032
    %v2034 = vrot.slane %v2033, 2
    %v2035 = vadd.f32 %v2033, %v2034
    %v2036 = vrot.slane %v2035, 1
    %v2037 = vadd.f32 %v2035, %v2036
    %v2038 = vadd.f32 %v2004, %v2008
    %v2039 = vrot.slane %v2038, 4
    %v2040 = vadd.f32 %v2038, %v2039
    %v2041 = vrot.slane %v2040, 2
    %v2042 = vadd.f32 %v2040, %v2041
    %v2043 = vrot.slane %v2042, 1
    %v2044 = vadd.f32 %v2042, %v2043
    %v2045 = vadd.f32 %v2009, %v2013
    %v2046 = vrot.slane %v2045, 4
    %v2047 = vadd.f32 %v2045, %v2046
    %v2048 = vrot.slane %v2047, 2
    %v2049 = vadd.f32 %v2047, %v2048
    %v2050 = vrot.slane %v2049, 1
    %v2051 = vadd.f32 %v2049, %v2050
    %v2052 = vadd.f32 %v2010, %v2014
    %v2053 = vrot.slane %v2052, 4
    %v2054 = vadd.f32 %v2052, %v2053
    %v2055 = vrot.slane %v2054, 2
    %v2056 = vadd.f32 %v2054, %v2055
    %v2057 = vrot.slane %v2056, 1
    %v2058 = vadd.f32 %v2056, %v2057
    %v2059 = vadd.f32 %v2011, %v2015
    %v2060 = vrot.slane %v2059, 4
    %v2061 = vadd.f32 %v2059, %v2060
    %v2062 = vrot.slane %v2061, 2
    %v2063 = vadd.f32 %v2061, %v2062
    %v2064 = vrot.slane %v2063, 1
    %v2065 = vadd.f32 %v2063, %v2064
    %v2066 = vadd.f32 %v2012, %v2016
    %v2067 = vrot.slane %v2066, 4
    %v2068 = vadd.f32 %v2066, %v2067
    %v2069 = vrot.slane %v2068, 2
    %v2070 = vadd.f32 %v2068, %v2069
    %v2071 = vrot.slane %v2070, 1
    %v2072 = vadd.f32 %v2070, %v2071
    %s2073 = scalar_lea.vmem %s2, 16
    %v2074 = vld [vmem:[%s2073] sm:$0xff]
    %v2083 = vcombine.low %v2023, %v2030
    %v2084 = vcombine.low %v2037, %v2044
    %v2086 = vunpack.c.l.s4 1983009808
    %v2087 = vunpack.c.0.s8 %v2086
    %v2088 = vlaneseq
    %v2089 = vshrl.u32 %v2088, 7
    %v2090 = vsub.s32 %v2087, %v2089
    %v2091 = vrot.slane %v2083, %v2090
    %v2093 = vunpack.c.l.s4 1983009808
    %v2094 = vunpack.c.0.s8 %v2093
    %v2095 = vlaneseq
    %v2096 = vshrl.u32 %v2095, 7
    %v2097 = vsub.s32 %v2094, %v2096
    %v2098 = vrot.slane %v2084, %v2097
    %v2099 = vcombine.low %v2091, %v2098
    %v2100 = vcombine.low %v2051, %v2058
    %v2101 = vcombine.low %v2065, %v2072
    %v2103 = vunpack.c.l.s4 1983009808
    %v2104 = vunpack.c.0.s8 %v2103
    %v2105 = vlaneseq
    %v2106 = vshrl.u32 %v2105, 7
    %v2107 = vsub.s32 %v2104, %v2106
    %v2108 = vrot.slane %v2100, %v2107
    %v2110 = vunpack.c.l.s4 1983009808
    %v2111 = vunpack.c.0.s8 %v2110
    %v2112 = vlaneseq
    %v2113 = vshrl.u32 %v2112, 7
    %v2114 = vsub.s32 %v2111, %v2113
    %v2115 = vrot.slane %v2101, %v2114
    %v2116 = vcombine.low %v2108, %v2115
    %v2117 = vsel %vm661, %v2099, %v2099
    %v2118 = vsel %vm663, %v2099, %v2117
    %v2119 = vrot.slane %v2116, 7
    %v2120 = vsel %vm425, %v2119, %v2118
    %v2121 = vsel %vm667, %v2119, %v2120
    %v2122 = vsel %vm669, %v2119, %v2121
    %v2123 = vsel %vm671, %v2119, %v2122
    %v2125 = vadd.f32 %v2074, %v2123
    %v2130 = vcombine.low %v1642, %v1711
    %v2131 = vcombine.low %v1713, %v1782
    %v2133 = vunpack.c.l.s4 1983009808
    %v2134 = vunpack.c.0.s8 %v2133
    %v2135 = vlaneseq
    %v2136 = vshrl.u32 %v2135, 7
    %v2137 = vsub.s32 %v2134, %v2136
    %v2138 = vrot.slane %v2130, %v2137
    %v2140 = vunpack.c.l.s4 1983009808
    %v2141 = vunpack.c.0.s8 %v2140
    %v2142 = vlaneseq
    %v2143 = vshrl.u32 %v2142, 7
    %v2144 = vsub.s32 %v2141, %v2143
    %v2145 = vrot.slane %v2131, %v2144
    %v2146 = vcombine.low %v2138, %v2145
    %v2148 = vadd.f32 %v2125, %v2146
    %v2149 = vxor.u32 %v2148, 2147483648
    %v2150 = vmul.f32 %v2149, 1.442695
    %v2151 = vpow.pop %v2150
    %v2152 = vadd.f32 %v2151, 1.0
    %v2153 = vrcp.pop %v2152
    %v2154 = vmul.f32 1.0, %v2153
    %v2156 = vrot.slane %v2148, 2
    %v2158 = vxor.u32 %v2156, 2147483648
    %v2159 = vmul.f32 %v2158, 1.442695
    %v2160 = vpow.pop %v2159
    %v2161 = vadd.f32 %v2160, 1.0
    %v2162 = vrcp.pop %v2161
    %v2163 = vmul.f32 1.0, %v2162
    %v2164 = vrot.slane %v2148, 4
    %v2166 = vtanh.pop %v2164
    %v2167 = vrot.slane %v2148, 6
    %v2169 = vxor.u32 %v2167, 2147483648
    %v2170 = vmul.f32 %v2169, 1.442695
    %v2171 = vpow.pop %v2170
    %v2172 = vadd.f32 %v2171, 1.0
    %v2173 = vrcp.pop %v2172
    %v2174 = vmul.f32 1.0, %v2173
    %v2175 = vmul.f32 %v2163, %v1452
    %v2176 = vmul.f32 %v2154, %v2166
    %v2177 = vadd.f32 %v2175, %v2176
    %v2178 = vtanh.pop %v2177
    %v2179 = vmul.f32 %v2174, %v2178
    %v2180 = vlaneseq
    %v2181 = vshrl.u32 %v2180, 7
    %v2182 = vsub.s32 %v404, %v2181
    %v2183 = vrot.slane %v1984, %v2182
    %v2184 = vlaneseq
    %v2185 = vshrl.u32 %v2184, 7
    %v2186 = vsub.s32 %v409, %v2185
    %v2187 = vrot.slane %v1989, %v2186
    %v2188 = vsel %vm414, %v2187, %v2183
    %v2189 = vlaneseq
    %v2190 = vshrl.u32 %v2189, 7
    %v2191 = vsub.s32 %v404, %v2190
    %v2192 = vrot.slane %v1994, %v2191
    %v2193 = vlaneseq
    %v2194 = vshrl.u32 %v2193, 7
    %v2195 = vsub.s32 %v409, %v2194
    %v2196 = vrot.slane %v1999, %v2195
    %v2197 = vsel %vm414, %v2196, %v2192
    %v2198 = vsel %vm425, %v2197, %v2188
    %s2200 = scalar_lea.vmem [#allocation2], 4
    %2201 = vst.msk [vmem:[%s2200] sm:$0x3] %vm428, %v2198
    %v2202 = vld [vmem:[%s4] sm:$0xff]
    %v2203 = vld [vmem:[%s4 + $0x8] sm:$0xff]
    %v2204 = vld [vmem:[%s4 + $0x10] sm:$0xff]
    %v2205 = vld [vmem:[%s4 + $0x18] sm:$0xff]
    %v2206 = vld [vmem:[%s4 + $0x20] sm:$0xff]
    %v2207 = vld [vmem:[%s4 + $0x28] sm:$0xff]
    %v2208 = vld [vmem:[%s4 + $0x30] sm:$0xff]
    %v2209 = vld [vmem:[%s4 + $0x38] sm:$0xff]
    %v2210 = vld [vmem:[%s4 + $0x40] sm:$0xff]
    %v2211 = vld [vmem:[%s4 + $0x48] sm:$0xff]
    %v2212 = vld [vmem:[%s4 + $0x50] sm:$0xff]
    %v2213 = vld [vmem:[%s4 + $0x58] sm:$0xff]
    %v2214 = vld [vmem:[%s4 + $0x60] sm:$0xff]
    %v2215 = vld [vmem:[%s4 + $0x68] sm:$0xff]
    %v2216 = vld [vmem:[%s4 + $0x70] sm:$0xff]
    %v2217 = vld [vmem:[%s4 + $0x78] sm:$0xff]
    %v2218 = vld [vmem:[%s4 + $0x80] sm:$0xff]
    %v2219 = vld [vmem:[%s4 + $0x88] sm:$0xff]
    %v2220 = vld [vmem:[%s4 + $0x90] sm:$0xff]
    %v2221 = vld [vmem:[%s4 + $0x98] sm:$0xff]
    %v2222 = vld [vmem:[%s4 + $0xa0] sm:$0xff]
    %v2223 = vld [vmem:[%s4 + $0xa8] sm:$0xff]
    %v2224 = vld [vmem:[%s4 + $0xb0] sm:$0xff]
    %v2225 = vld [vmem:[%s4 + $0xb8] sm:$0xff]
    %v2226 = vld [vmem:[%s4 + $0xc0] sm:$0xff]
    %v2227 = vld [vmem:[%s4 + $0xc8] sm:$0xff]
    %v2228 = vld [vmem:[%s4 + $0xd0] sm:$0xff]
    %v2229 = vld [vmem:[%s4 + $0xd8] sm:$0xff]
    %v2230 = vld [vmem:[%s4 + $0xe0] sm:$0xff]
    %v2231 = vld [vmem:[%s4 + $0xe8] sm:$0xff]
    %v2232 = vld [vmem:[%s4 + $0xf0] sm:$0xff]
    %v2233 = vld [vmem:[%s4 + $0xf8] sm:$0xff]
    %v2234 = vld [vmem:[%s4 + $0x100] sm:$0xff]
    %v2235 = vld [vmem:[%s4 + $0x108] sm:$0xff]
    %v2236 = vld [vmem:[%s4 + $0x110] sm:$0xff]
    %v2237 = vld [vmem:[%s4 + $0x118] sm:$0xff]
    %v2238 = vld [vmem:[%s4 + $0x120] sm:$0xff]
    %v2239 = vld [vmem:[%s4 + $0x128] sm:$0xff]
    %v2240 = vld [vmem:[%s4 + $0x130] sm:$0xff]
    %v2241 = vld [vmem:[%s4 + $0x138] sm:$0xff]
    %v2242 = vld [vmem:[%s4 + $0x140] sm:$0xff]
    %v2243 = vld [vmem:[%s4 + $0x148] sm:$0xff]
    %v2244 = vld [vmem:[%s4 + $0x150] sm:$0xff]
    %v2245 = vld [vmem:[%s4 + $0x158] sm:$0xff]
    %v2246 = vld [vmem:[%s4 + $0x160] sm:$0xff]
    %v2247 = vld [vmem:[%s4 + $0x168] sm:$0xff]
    %v2248 = vld [vmem:[%s4 + $0x170] sm:$0xff]
    %v2249 = vld [vmem:[%s4 + $0x178] sm:$0xff]
    %v2250 = vld [vmem:[%s4 + $0x180] sm:$0xff]
    %v2251 = vld [vmem:[%s4 + $0x188] sm:$0xff]
    %v2252 = vld [vmem:[%s4 + $0x190] sm:$0xff]
    %v2253 = vld [vmem:[%s4 + $0x198] sm:$0xff]
    %v2254 = vld [vmem:[%s4 + $0x1a0] sm:$0xff]
    %v2255 = vld [vmem:[%s4 + $0x1a8] sm:$0xff]
    %v2256 = vld [vmem:[%s4 + $0x1b0] sm:$0xff]
    %v2257 = vld [vmem:[%s4 + $0x1b8] sm:$0xff]
    %v2258 = vld [vmem:[%s4 + $0x1c0] sm:$0xff]
    %v2259 = vld [vmem:[%s4 + $0x1c8] sm:$0xff]
    %v2260 = vld [vmem:[%s4 + $0x1d0] sm:$0xff]
    %v2261 = vld [vmem:[%s4 + $0x1d8] sm:$0xff]
    %v2262 = vld [vmem:[%s4 + $0x1e0] sm:$0xff]
    %v2263 = vld [vmem:[%s4 + $0x1e8] sm:$0xff]
    %v2264 = vld [vmem:[%s4 + $0x1f0] sm:$0xff]
    %v2265 = vld [vmem:[%s4 + $0x1f8] sm:$0xff]
    %v2266 = vld [vmem:[%s4 + $0x200] sm:$0xff]
    %v2267 = vld [vmem:[%s4 + $0x208] sm:$0xff]
    %v2268 = vld [vmem:[%s4 + $0x210] sm:$0xff]
    %v2269 = vld [vmem:[%s4 + $0x218] sm:$0xff]
    %v2270 = vld [vmem:[%s4 + $0x220] sm:$0xff]
    %v2271 = vld [vmem:[%s4 + $0x228] sm:$0xff]
    %v2272 = vld [vmem:[%s4 + $0x230] sm:$0xff]
    %v2273 = vld [vmem:[%s4 + $0x238] sm:$0xff]
    %v2274 = vld [vmem:[%s4 + $0x240] sm:$0xff]
    %v2275 = vld [vmem:[%s4 + $0x248] sm:$0xff]
    %v2276 = vld [vmem:[%s4 + $0x250] sm:$0xff]
    %v2277 = vld [vmem:[%s4 + $0x258] sm:$0xff]
    %v2278 = vld [vmem:[%s4 + $0x260] sm:$0xff]
    %v2279 = vld [vmem:[%s4 + $0x268] sm:$0xff]
    %v2280 = vld [vmem:[%s4 + $0x270] sm:$0xff]
    %v2281 = vld [vmem:[%s4 + $0x278] sm:$0xff]
    %v2282 = vld [vmem:[%s4 + $0x280] sm:$0xff]
    %v2283 = vld [vmem:[%s4 + $0x288] sm:$0xff]
    %v2284 = vld [vmem:[%s4 + $0x290] sm:$0xff]
    %v2285 = vld [vmem:[%s4 + $0x298] sm:$0xff]
    %v2286 = vld [vmem:[%s4 + $0x2a0] sm:$0xff]
    %v2287 = vld [vmem:[%s4 + $0x2a8] sm:$0xff]
    %v2288 = vld [vmem:[%s4 + $0x2b0] sm:$0xff]
    %v2289 = vld [vmem:[%s4 + $0x2b8] sm:$0xff]
    %v2290 = vld [vmem:[%s4 + $0x2c0] sm:$0xff]
    %v2291 = vld [vmem:[%s4 + $0x2c8] sm:$0xff]
    %v2292 = vld [vmem:[%s4 + $0x2d0] sm:$0xff]
    %v2293 = vld [vmem:[%s4 + $0x2d8] sm:$0xff]
    %v2294 = vld [vmem:[%s4 + $0x2e0] sm:$0xff]
    %v2295 = vld [vmem:[%s4 + $0x2e8] sm:$0xff]
    %v2296 = vld [vmem:[%s4 + $0x2f0] sm:$0xff]
    %v2297 = vld [vmem:[%s4 + $0x2f8] sm:$0xff]
    %2298 = vmatprep.subr.mxu0 %v2203
    %2299 = vmatpush1.msra.mxu0 %v2202
    %2300 = vmatprep.subr.mxu0 %v2209
    %2301 = vmatpush1.msra.mxu0 %v2208
    %2302 = vmatprep.subr.mxu0 %v2215
    %2303 = vmatpush1.msra.mxu0 %v2214
    %2304 = vmatprep.subr.mxu0 %v2221
    %2305 = vmatpush1.msra.mxu0 %v2220
    %2306 = vmatprep.subr.mxu0 %v2227
    %2307 = vmatpush1.msra.mxu0 %v2226
    %2308 = vmatprep.subr.mxu0 %v2233
    %2309 = vmatpush1.msra.mxu0 %v2232
    %2310 = vmatprep.subr.mxu0 %v2239
    %2311 = vmatpush1.msra.mxu0 %v2238
    %2312 = vmatprep.subr.mxu0 %v2245
    %2313 = vmatpush1.msra.mxu0 %v2244
    %2314 = vmatprep.subr.mxu0 %v2251
    %2315 = vmatpush1.msra.mxu0 %v2250
    %2316 = vmatprep.subr.mxu0 %v2257
    %2317 = vmatpush1.msra.mxu0 %v2256
    %2318 = vmatprep.subr.mxu0 %v2263
    %2319 = vmatpush1.msra.mxu0 %v2262
    %2320 = vmatprep.subr.mxu0 %v2269
    %2321 = vmatpush1.msra.mxu0 %v2268
    %2322 = vmatprep.subr.mxu0 %v2275
    %2323 = vmatpush1.msra.mxu0 %v2274
    %2324 = vmatprep.subr.mxu0 %v2281
    %2325 = vmatpush1.msra.mxu0 %v2280
    %2326 = vmatprep.subr.mxu0 %v2287
    %2327 = vmatpush1.msra.mxu0 %v2286
    %2328 = vmatprep.subr.mxu0 %v2293
    %2329 = vmatpush1.msra.mxu0 %v2292
    %2330 = vmatprep.subr.mxu0 0.0
    %2331 = vmatpush1.msra.mxu0 0.0
    %2332 = vmatprep.subr.mxu0 0.0
    %2333 = vmatpush1.msra.mxu0 0.0
    %2334 = vmatprep.subr.mxu0 0.0
    %2335 = vmatpush1.msra.mxu0 0.0
    %2336 = vmatprep.subr.mxu0 0.0
    %2337 = vmatpush1.msra.mxu0 0.0
    %2338 = vmatprep.subr.mxu0 0.0
    %2339 = vmatpush1.msra.mxu0 0.0
    %2340 = vmatprep.subr.mxu0 0.0
    %2341 = vmatpush1.msra.mxu0 0.0
    %2342 = vmatprep.subr.mxu0 0.0
    %2343 = vmatpush1.msra.mxu0 0.0
    %2344 = vmatprep.subr.mxu0 0.0
    %2345 = vmatpush1.msra.mxu0 0.0
    %2346 = vmatprep.subr.mxu0 0.0
    %2347 = vmatpush1.msra.mxu0 0.0
    %2348 = vmatprep.subr.mxu0 0.0
    %2349 = vmatpush1.msra.mxu0 0.0
    %2350 = vmatprep.subr.mxu0 0.0
    %2351 = vmatpush1.msra.mxu0 0.0
    %2352 = vmatprep.subr.mxu0 0.0
    %2353 = vmatpush1.msra.mxu0 0.0
    %2354 = vmatprep.subr.mxu0 0.0
    %2355 = vmatpush1.msra.mxu0 0.0
    %2356 = vmatprep.subr.mxu0 0.0
    %2357 = vmatpush1.msra.mxu0 0.0
    %2358 = vmatprep.subr.mxu0 0.0
    %2359 = vmatpush1.msra.mxu0 0.0
    %2360 = vmatprep.subr.mxu0 0.0
    %2361 = vmatpush1.msra.mxu0 0.0
    %2362 = vmatprep.mubr.f32.mxu0 0.0
    %2363 = vmatmul.mubr.f32.gmra.mrb[0].mxu0 %v2179
    %v2364 = vpop.f32.mrb[0].mxu0
    %v2365 = vadd.f32 0.0, %v2364
    %v2366 = vpop.f32.mrb[0].mxu0
    %v2367 = vadd.f32 0.0, %v2366
    %2368 = vdwg.mxu0
    %2369 = vmatprep.subr.mxu0 %v2205
    %2370 = vmatpush1.msra.mxu0 %v2204
    %2371 = vmatprep.subr.mxu0 %v2211
    %2372 = vmatpush1.msra.mxu0 %v2210
    %2373 = vmatprep.subr.mxu0 %v2217
    %2374 = vmatpush1.msra.mxu0 %v2216
    %2375 = vmatprep.subr.mxu0 %v2223
    %2376 = vmatpush1.msra.mxu0 %v2222
    %2377 = vmatprep.subr.mxu0 %v2229
    %2378 = vmatpush1.msra.mxu0 %v2228
    %2379 = vmatprep.subr.mxu0 %v2235
    %2380 = vmatpush1.msra.mxu0 %v2234
    %2381 = vmatprep.subr.mxu0 %v2241
    %2382 = vmatpush1.msra.mxu0 %v2240
    %2383 = vmatprep.subr.mxu0 %v2247
    %2384 = vmatpush1.msra.mxu0 %v2246
    %2385 = vmatprep.subr.mxu0 %v2253
    %2386 = vmatpush1.msra.mxu0 %v2252
    %2387 = vmatprep.subr.mxu0 %v2259
    %2388 = vmatpush1.msra.mxu0 %v2258
    %2389 = vmatprep.subr.mxu0 %v2265
    %2390 = vmatpush1.msra.mxu0 %v2264
    %2391 = vmatprep.subr.mxu0 %v2271
    %2392 = vmatpush1.msra.mxu0 %v2270
    %2393 = vmatprep.subr.mxu0 %v2277
    %2394 = vmatpush1.msra.mxu0 %v2276
    %2395 = vmatprep.subr.mxu0 %v2283
    %2396 = vmatpush1.msra.mxu0 %v2282
    %2397 = vmatprep.subr.mxu0 %v2289
    %2398 = vmatpush1.msra.mxu0 %v2288
    %2399 = vmatprep.subr.mxu0 %v2295
    %2400 = vmatpush1.msra.mxu0 %v2294
    %2401 = vmatprep.subr.mxu0 0.0
    %2402 = vmatpush1.msra.mxu0 0.0
    %2403 = vmatprep.subr.mxu0 0.0
    %2404 = vmatpush1.msra.mxu0 0.0
    %2405 = vmatprep.subr.mxu0 0.0
    %2406 = vmatpush1.msra.mxu0 0.0
    %2407 = vmatprep.subr.mxu0 0.0
    %2408 = vmatpush1.msra.mxu0 0.0
    %2409 = vmatprep.subr.mxu0 0.0
    %2410 = vmatpush1.msra.mxu0 0.0
    %2411 = vmatprep.subr.mxu0 0.0
    %2412 = vmatpush1.msra.mxu0 0.0
    %2413 = vmatprep.subr.mxu0 0.0
    %2414 = vmatpush1.msra.mxu0 0.0
    %2415 = vmatprep.subr.mxu0 0.0
    %2416 = vmatpush1.msra.mxu0 0.0
    %2417 = vmatprep.subr.mxu0 0.0
    %2418 = vmatpush1.msra.mxu0 0.0
    %2419 = vmatprep.subr.mxu0 0.0
    %2420 = vmatpush1.msra.mxu0 0.0
    %2421 = vmatprep.subr.mxu0 0.0
    %2422 = vmatpush1.msra.mxu0 0.0
    %2423 = vmatprep.subr.mxu0 0.0
    %2424 = vmatpush1.msra.mxu0 0.0
    %2425 = vmatprep.subr.mxu0 0.0
    %2426 = vmatpush1.msra.mxu0 0.0
    %2427 = vmatprep.subr.mxu0 0.0
    %2428 = vmatpush1.msra.mxu0 0.0
    %2429 = vmatprep.subr.mxu0 0.0
    %2430 = vmatpush1.msra.mxu0 0.0
    %2431 = vmatprep.subr.mxu0 0.0
    %2432 = vmatpush1.msra.mxu0 0.0
    %2433 = vmatprep.mubr.f32.mxu0 0.0
    %2434 = vmatmul.mubr.f32.gmra.mrb[0].mxu0 %v2179
    %v2435 = vpop.f32.mrb[0].mxu0
    %v2436 = vadd.f32 0.0, %v2435
    %v2437 = vpop.f32.mrb[0].mxu0
    %v2438 = vadd.f32 0.0, %v2437
    %2439 = vdwg.mxu0
    %2440 = vmatprep.subr.mxu0 %v2207
    %2441 = vmatpush1.msra.mxu0 %v2206
    %2442 = vmatprep.subr.mxu0 %v2213
    %2443 = vmatpush1.msra.mxu0 %v2212
    %2444 = vmatprep.subr.mxu0 %v2219
    %2445 = vmatpush1.msra.mxu0 %v2218
    %2446 = vmatprep.subr.mxu0 %v2225
    %2447 = vmatpush1.msra.mxu0 %v2224
    %2448 = vmatprep.subr.mxu0 %v2231
    %2449 = vmatpush1.msra.mxu0 %v2230
    %2450 = vmatprep.subr.mxu0 %v2237
    %2451 = vmatpush1.msra.mxu0 %v2236
    %2452 = vmatprep.subr.mxu0 %v2243
    %2453 = vmatpush1.msra.mxu0 %v2242
    %2454 = vmatprep.subr.mxu0 %v2249
    %2455 = vmatpush1.msra.mxu0 %v2248
    %2456 = vmatprep.subr.mxu0 %v2255
    %2457 = vmatpush1.msra.mxu0 %v2254
    %2458 = vmatprep.subr.mxu0 %v2261
    %2459 = vmatpush1.msra.mxu0 %v2260
    %2460 = vmatprep.subr.mxu0 %v2267
    %2461 = vmatpush1.msra.mxu0 %v2266
    %2462 = vmatprep.subr.mxu0 %v2273
    %2463 = vmatpush1.msra.mxu0 %v2272
    %2464 = vmatprep.subr.mxu0 %v2279
    %2465 = vmatpush1.msra.mxu0 %v2278
    %2466 = vmatprep.subr.mxu0 %v2285
    %2467 = vmatpush1.msra.mxu0 %v2284
    %2468 = vmatprep.subr.mxu0 %v2291
    %2469 = vmatpush1.msra.mxu0 %v2290
    %2470 = vmatprep.subr.mxu0 %v2297
    %2471 = vmatpush1.msra.mxu0 %v2296
    %2472 = vmatprep.subr.mxu0 0.0
    %2473 = vmatpush1.msra.mxu0 0.0
    %2474 = vmatprep.subr.mxu0 0.0
    %2475 = vmatpush1.msra.mxu0 0.0
    %2476 = vmatprep.subr.mxu0 0.0
    %2477 = vmatpush1.msra.mxu0 0.0
    %2478 = vmatprep.subr.mxu0 0.0
    %2479 = vmatpush1.msra.mxu0 0.0
    %2480 = vmatprep.subr.mxu0 0.0
    %2481 = vmatpush1.msra.mxu0 0.0
    %2482 = vmatprep.subr.mxu0 0.0
    %2483 = vmatpush1.msra.mxu0 0.0
    %2484 = vmatprep.subr.mxu0 0.0
    %2485 = vmatpush1.msra.mxu0 0.0
    %2486 = vmatprep.subr.mxu0 0.0
    %2487 = vmatpush1.msra.mxu0 0.0
    %2488 = vmatprep.subr.mxu0 0.0
    %2489 = vmatpush1.msra.mxu0 0.0
    %2490 = vmatprep.subr.mxu0 0.0
    %2491 = vmatpush1.msra.mxu0 0.0
    %2492 = vmatprep.subr.mxu0 0.0
    %2493 = vmatpush1.msra.mxu0 0.0
    %2494 = vmatprep.subr.mxu0 0.0
    %2495 = vmatpush1.msra.mxu0 0.0
    %2496 = vmatprep.subr.mxu0 0.0
    %2497 = vmatpush1.msra.mxu0 0.0
    %2498 = vmatprep.subr.mxu0 0.0
    %2499 = vmatpush1.msra.mxu0 0.0
    %2500 = vmatprep.subr.mxu0 0.0
    %2501 = vmatpush1.msra.mxu0 0.0
    %2502 = vmatprep.subr.mxu0 0.0
    %2503 = vmatpush1.msra.mxu0 0.0
    %2504 = vmatprep.mubr.f32.mxu0 0.0
    %2505 = vmatmul.mubr.f32.gmra.mrb[0].mxu0 %v2179
    %v2506 = vpop.f32.mrb[0].mxu0
    %v2507 = vadd.f32 0.0, %v2506
    %v2508 = vpop.f32.mrb[0].mxu0
    %v2509 = vadd.f32 0.0, %v2508
    %2510 = vdwg.mxu0
    %v2511 = vld [vmem:[%s5 + $0x1] sm:$0x1]
    %v2513 = vlaneseq
    %v2514 = vshrl.u32 %v2513, 7
    %v2515 = vsub.s32 0, %v2514
    %v2516 = vrot.slane %v2511, %v2515
    %v2518 = vadd.f32 %v2509, %v2516
    %s2519 = scalar_lea.vmem %s6, 4
    %2520 = vst [vmem:[%s2519] sm:$0x3] %v2518
    %v2521 = vld [vmem:[%s0] sm:$0xff]
    %v2522 = vld [vmem:[%s0 + $0x8] sm:$0xff]
    %v2523 = vld [vmem:[%s0 + $0x10] sm:$0xff]
    %v2524 = vld [vmem:[%s0 + $0x18] sm:$0xff]
    %v2527 = vunpack.c.l.s4 1966171168
    %v2528 = vunpack.c.0.s8 %v2527
    %v2529 = vlaneseq
    %v2530 = vshrl.u32 %v2529, 7
    %v2531 = vsub.s32 %v2528, %v2530
    %v2532 = vrot.slane %v2365, %v2531
    %v2533 = vcombine.high %v2532, %v2532
    %v2535 = vunpack.c.l.s4 1966171168
    %v2536 = vunpack.c.0.s8 %v2535
    %v2537 = vlaneseq
    %v2538 = vshrl.u32 %v2537, 7
    %v2539 = vsub.s32 %v2536, %v2538
    %v2540 = vrot.slane %v2532, %v2539
    %v2542 = vunpack.c.l.s4 1966171168
    %v2543 = vunpack.c.0.s8 %v2542
    %v2544 = vlaneseq
    %v2545 = vshrl.u32 %v2544, 7
    %v2546 = vsub.s32 %v2543, %v2545
    %v2547 = vrot.slane %v2533, %v2546
    %v2548 = vlaneseq
    %v2549 = vshrl.u32 %v2548, 7
    %v2550 = vsub.s32 0, %v2549
    %v2551 = vrot.slane %v2540, %v2550
    %v2552 = vlaneseq
    %v2553 = vshrl.u32 %v2552, 7
    %v2554 = vsub.s32 0, %v2553
    %v2555 = vrot.slane %v2547, %v2554
    %v2558 = vadd.f32 %v2521, %v2551
    %v2559 = vadd.f32 %v2522, %v2551
    %v2560 = vadd.f32 %v2523, %v2555
    %v2561 = vadd.f32 %v2524, %v2555
    %v2562 = vtanh.pop %v2558
    %v2563 = vtanh.pop %v2559
    %v2564 = vtanh.pop %v2560
    %v2565 = vtanh.pop %v2561
    %v2566 = vld [vmem:[%s5] sm:$0x1]
    %v2568 = vlaneseq
    %v2569 = vshrl.u32 %v2568, 7
    %v2570 = vsub.s32 0, %v2569
    %v2571 = vrot.slane %v2566, %v2570
    %v2573 = vmul.f32 %v2562, %v2571
    %v2574 = vmul.f32 %v2563, %v2571
    %v2575 = vmul.f32 %v2564, %v2571
    %v2576 = vmul.f32 %v2565, %v2571
    %2577 = vadd.xlane.f32.xlu0 %v2573
    %v2578 = vpop.xlane.xlu0 %2577
    %2579 = vadd.xlane.f32.xlu0 %v2574
    %v2580 = vpop.xlane.xlu0 %2579
    %2581 = vadd.xlane.f32.xlu0 %v2575
    %v2582 = vpop.xlane.xlu0 %2581
    %2583 = vadd.xlane.f32.xlu0 %v2576
    %v2584 = vpop.xlane.xlu0 %2583
    %v2589 = vlaneseq
    %v2590 = vshrl.u32 %v2589, 7
    %v2591 = vsub.s32 %v404, %v2590
    %v2592 = vrot.slane %v2578, %v2591
    %v2593 = vlaneseq
    %v2594 = vshrl.u32 %v2593, 7
    %v2595 = vsub.s32 %v409, %v2594
    %v2596 = vrot.slane %v2580, %v2595
    %v2597 = vsel %vm414, %v2596, %v2592
    %v2598 = vlaneseq
    %v2599 = vshrl.u32 %v2598, 7
    %v2600 = vsub.s32 %v404, %v2599
    %v2601 = vrot.slane %v2582, %v2600
    %v2602 = vlaneseq
    %v2603 = vshrl.u32 %v2602, 7
    %v2604 = vsub.s32 %v409, %v2603
    %v2605 = vrot.slane %v2584, %v2604
    %v2606 = vsel %vm414, %v2605, %v2601
    %v2607 = vsel %vm425, %v2606, %v2597
    %v2609 = vsel %vm428, %v2607, -inf
    %2610 = vmax.xlane.f32.xlu0 %v2609
    %v2611 = vpop.xlane.xlu0 %2610
    %v2613 = vlaneseq
    %v2614 = vshrl.u32 %v2613, 7
    %v2615 = vsub.s32 0, %v2614
    %v2616 = vrot.slane %v2611, %v2615
    %v2617 = vlaneseq
    %v2618 = vshrl.u32 %v2617, 7
    %v2619 = vsub.s32 1, %v2618
    %v2620 = vrot.slane %v2611, %v2619
    %v2623 = vsub.f32 %v2578, %v2616
    %v2624 = vsub.f32 %v2580, %v2616
    %v2625 = vsub.f32 %v2582, %v2620
    %v2626 = vsub.f32 %v2584, %v2620
    %v2627 = vmul.f32 %v2623, 1.442695
    %v2628 = vpow.pop %v2627
    %v2629 = vmul.f32 %v2624, 1.442695
    %v2630 = vpow.pop %v2629
    %v2631 = vmul.f32 %v2625, 1.442695
    %v2632 = vpow.pop %v2631
    %v2633 = vmul.f32 %v2626, 1.442695
    %v2634 = vpow.pop %v2633
    %2639 = vset.pattern.permute.xlu0 0
    %2640 = vperm.xlu0 %2639, %v2628
    %v2641 = vpop.permute.xlu0 %2640
    %2642 = vset.pattern.permute.xlu0 0
    %2643 = vperm.xlu0 %2642, %v2630
    %v2644 = vpop.permute.xlu0 %2643
    %2645 = vset.pattern.permute.xlu0 0
    %2646 = vperm.xlu0 %2645, %v2632
    %v2647 = vpop.permute.xlu0 %2646
    %2648 = vset.pattern.permute.xlu0 0
    %2649 = vperm.xlu0 %2648, %v2634
    %v2650 = vpop.permute.xlu0 %2649
    %v2651 = vlaneseq
    %v2652 = vshrl.u32 %v2651, 7
    %v2653 = vsub.s32 %v404, %v2652
    %v2654 = vrot.slane %v2641, %v2653
    %v2655 = vlaneseq
    %v2656 = vshrl.u32 %v2655, 7
    %v2657 = vsub.s32 %v409, %v2656
    %v2658 = vrot.slane %v2644, %v2657
    %v2659 = vsel %vm414, %v2658, %v2654
    %v2660 = vlaneseq
    %v2661 = vshrl.u32 %v2660, 7
    %v2662 = vsub.s32 %v404, %v2661
    %v2663 = vrot.slane %v2647, %v2662
    %v2664 = vlaneseq
    %v2665 = vshrl.u32 %v2664, 7
    %v2666 = vsub.s32 %v409, %v2665
    %v2667 = vrot.slane %v2650, %v2666
    %v2668 = vsel %vm414, %v2667, %v2663
    %v2669 = vsel %vm425, %v2668, %v2659
    %v2671 = vsel %vm428, %v2669, 0.0
    %2672 = vadd.xlane.f32.xlu0 %v2671
    %v2673 = vpop.xlane.xlu0 %2672
    %v2674 = vrcp.pop %v2673
    %v2676 = vlaneseq
    %v2677 = vshrl.u32 %v2676, 7
    %v2678 = vsub.s32 0, %v2677
    %v2679 = vrot.slane %v2674, %v2678
    %v2680 = vlaneseq
    %v2681 = vshrl.u32 %v2680, 7
    %v2682 = vsub.s32 1, %v2681
    %v2683 = vrot.slane %v2674, %v2682
    %v2686 = vmul.f32 %v2628, %v2679
    %v2687 = vmul.f32 %v2630, %v2679
    %v2688 = vmul.f32 %v2632, %v2683
    %v2689 = vmul.f32 %v2634, %v2683
    %v2690 = vld [vmem:[%s1] sm:$0xff]
    %v2691 = vld [vmem:[%s1 + $0x8] sm:$0xff]
    %v2692 = vld [vmem:[%s1 + $0x10] sm:$0xff]
    %v2693 = vld [vmem:[%s1 + $0x18] sm:$0xff]
    %v2694 = vld [vmem:[%s1 + $0x20] sm:$0xff]
    %v2695 = vld [vmem:[%s1 + $0x28] sm:$0xff]
    %v2696 = vld [vmem:[%s1 + $0x30] sm:$0xff]
    %v2697 = vld [vmem:[%s1 + $0x38] sm:$0xff]
    %v2698 = vld [vmem:[%s1 + $0x40] sm:$0xff]
    %v2699 = vld [vmem:[%s1 + $0x48] sm:$0xff]
    %v2700 = vld [vmem:[%s1 + $0x50] sm:$0xff]
    %v2701 = vld [vmem:[%s1 + $0x58] sm:$0xff]
    %v2702 = vld [vmem:[%s1 + $0x60] sm:$0xff]
    %v2703 = vld [vmem:[%s1 + $0x68] sm:$0xff]
    %v2704 = vld [vmem:[%s1 + $0x70] sm:$0xff]
    %v2705 = vld [vmem:[%s1 + $0x78] sm:$0xff]
    %2707 = vset.pattern.permute.xlu0 0
    %2708 = vperm.xlu0 %2707, %v2686
    %v2709 = vpop.permute.xlu0 %2708
    %2712 = vset.pattern.permute.xlu0 0
    %2713 = vperm.xlu0 %2712, %v2687
    %v2714 = vpop.permute.xlu0 %2713
    %2717 = vset.pattern.permute.xlu0 0
    %2718 = vperm.xlu0 %2717, %v2688
    %v2719 = vpop.permute.xlu0 %2718
    %2722 = vset.pattern.permute.xlu0 0
    %2723 = vperm.xlu0 %2722, %v2689
    %v2724 = vpop.permute.xlu0 %2723
    %v2726 = vmul.f32 %v2709, %v2690
    %v2727 = vmul.f32 %v2709, %v2691
    %v2728 = vmul.f32 %v2709, %v2692
    %v2729 = vmul.f32 %v2709, %v2693
    %v2730 = vmul.f32 %v2714, %v2694
    %v2731 = vmul.f32 %v2714, %v2695
    %v2732 = vmul.f32 %v2714, %v2696
    %v2733 = vmul.f32 %v2714, %v2697
    %v2734 = vmul.f32 %v2719, %v2698
    %v2735 = vmul.f32 %v2719, %v2699
    %v2736 = vmul.f32 %v2719, %v2700
    %v2737 = vmul.f32 %v2719, %v2701
    %v2738 = vmul.f32 %v2724, %v2702
    %v2739 = vmul.f32 %v2724, %v2703
    %v2740 = vmul.f32 %v2724, %v2704
    %v2741 = vmul.f32 %v2724, %v2705
    %v2742 = vadd.f32 %v2726, %v2730
    %v2743 = vrot.slane %v2742, 4
    %v2744 = vadd.f32 %v2742, %v2743
    %v2745 = vrot.slane %v2744, 2
    %v2746 = vadd.f32 %v2744, %v2745
    %v2747 = vrot.slane %v2746, 1
    %v2748 = vadd.f32 %v2746, %v2747
    %v2749 = vadd.f32 %v2727, %v2731
    %v2750 = vrot.slane %v2749, 4
    %v2751 = vadd.f32 %v2749, %v2750
    %v2752 = vrot.slane %v2751, 2
    %v2753 = vadd.f32 %v2751, %v2752
    %v2754 = vrot.slane %v2753, 1
    %v2755 = vadd.f32 %v2753, %v2754
    %v2756 = vadd.f32 %v2728, %v2732
    %v2757 = vrot.slane %v2756, 4
    %v2758 = vadd.f32 %v2756, %v2757
    %v2759 = vrot.slane %v2758, 2
    %v2760 = vadd.f32 %v2758, %v2759
    %v2761 = vrot.slane %v2760, 1
    %v2762 = vadd.f32 %v2760, %v2761
    %v2763 = vadd.f32 %v2729, %v2733
    %v2764 = vrot.slane %v2763, 4
    %v2765 = vadd.f32 %v2763, %v2764
    %v2766 = vrot.slane %v2765, 2
    %v2767 = vadd.f32 %v2765, %v2766
    %v2768 = vrot.slane %v2767, 1
    %v2769 = vadd.f32 %v2767, %v2768
    %v2770 = vadd.f32 %v2734, %v2738
    %v2771 = vrot.slane %v2770, 4
    %v2772 = vadd.f32 %v2770, %v2771
    %v2773 = vrot.slane %v2772, 2
    %v2774 = vadd.f32 %v2772, %v2773
    %v2775 = vrot.slane %v2774, 1
    %v2776 = vadd.f32 %v2774, %v2775
    %v2777 = vadd.f32 %v2735, %v2739
    %v2778 = vrot.slane %v2777, 4
    %v2779 = vadd.f32 %v2777, %v2778
    %v2780 = vrot.slane %v2779, 2
    %v2781 = vadd.f32 %v2779, %v2780
    %v2782 = vrot.slane %v2781, 1
    %v2783 = vadd.f32 %v2781, %v2782
    %v2784 = vadd.f32 %v2736, %v2740
    %v2785 = vrot.slane %v2784, 4
    %v2786 = vadd.f32 %v2784, %v2785
    %v2787 = vrot.slane %v2786, 2
    %v2788 = vadd.f32 %v2786, %v2787
    %v2789 = vrot.slane %v2788, 1
    %v2790 = vadd.f32 %v2788, %v2789
    %v2791 = vadd.f32 %v2737, %v2741
    %v2792 = vrot.slane %v2791, 4
    %v2793 = vadd.f32 %v2791, %v2792
    %v2794 = vrot.slane %v2793, 2
    %v2795 = vadd.f32 %v2793, %v2794
    %v2796 = vrot.slane %v2795, 1
    %v2797 = vadd.f32 %v2795, %v2796
    %s2798 = scalar_lea.vmem %s2, 24
    %v2799 = vld [vmem:[%s2798] sm:$0xff]
    %v2808 = vcombine.low %v2748, %v2755
    %v2809 = vcombine.low %v2762, %v2769
    %v2811 = vunpack.c.l.s4 1983009808
    %v2812 = vunpack.c.0.s8 %v2811
    %v2813 = vlaneseq
    %v2814 = vshrl.u32 %v2813, 7
    %v2815 = vsub.s32 %v2812, %v2814
    %v2816 = vrot.slane %v2808, %v2815
    %v2818 = vunpack.c.l.s4 1983009808
    %v2819 = vunpack.c.0.s8 %v2818
    %v2820 = vlaneseq
    %v2821 = vshrl.u32 %v2820, 7
    %v2822 = vsub.s32 %v2819, %v2821
    %v2823 = vrot.slane %v2809, %v2822
    %v2824 = vcombine.low %v2816, %v2823
    %v2825 = vcombine.low %v2776, %v2783
    %v2826 = vcombine.low %v2790, %v2797
    %v2828 = vunpack.c.l.s4 1983009808
    %v2829 = vunpack.c.0.s8 %v2828
    %v2830 = vlaneseq
    %v2831 = vshrl.u32 %v2830, 7
    %v2832 = vsub.s32 %v2829, %v2831
    %v2833 = vrot.slane %v2825, %v2832
    %v2835 = vunpack.c.l.s4 1983009808
    %v2836 = vunpack.c.0.s8 %v2835
    %v2837 = vlaneseq
    %v2838 = vshrl.u32 %v2837, 7
    %v2839 = vsub.s32 %v2836, %v2838
    %v2840 = vrot.slane %v2826, %v2839
    %v2841 = vcombine.low %v2833, %v2840
    %v2842 = vsel %vm661, %v2824, %v2824
    %v2843 = vsel %vm663, %v2824, %v2842
    %v2844 = vrot.slane %v2841, 7
    %v2845 = vsel %vm425, %v2844, %v2843
    %v2846 = vsel %vm667, %v2844, %v2845
    %v2847 = vsel %vm669, %v2844, %v2846
    %v2848 = vsel %vm671, %v2844, %v2847
    %v2850 = vadd.f32 %v2799, %v2848
    %v2855 = vcombine.low %v2367, %v2436
    %v2856 = vcombine.low %v2438, %v2507
    %v2858 = vunpack.c.l.s4 1983009808
    %v2859 = vunpack.c.0.s8 %v2858
    %v2860 = vlaneseq
    %v2861 = vshrl.u32 %v2860, 7
    %v2862 = vsub.s32 %v2859, %v2861
    %v2863 = vrot.slane %v2855, %v2862
    %v2865 = vunpack.c.l.s4 1983009808
    %v2866 = vunpack.c.0.s8 %v2865
    %v2867 = vlaneseq
    %v2868 = vshrl.u32 %v2867, 7
    %v2869 = vsub.s32 %v2866, %v2868
    %v2870 = vrot.slane %v2856, %v2869
    %v2871 = vcombine.low %v2863, %v2870
    %v2873 = vadd.f32 %v2850, %v2871
    %v2874 = vxor.u32 %v2873, 2147483648
    %v2875 = vmul.f32 %v2874, 1.442695
    %v2876 = vpow.pop %v2875
    %v2877 = vadd.f32 %v2876, 1.0
    %v2878 = vrcp.pop %v2877
    %v2879 = vmul.f32 1.0, %v2878
    %v2881 = vrot.slane %v2873, 2
    %v2883 = vxor.u32 %v2881, 2147483648
    %v2884 = vmul.f32 %v2883, 1.442695
    %v2885 = vpow.pop %v2884
    %v2886 = vadd.f32 %v2885, 1.0
    %v2887 = vrcp.pop %v2886
    %v2888 = vmul.f32 1.0, %v2887
    %v2889 = vrot.slane %v2873, 4
    %v2891 = vtanh.pop %v2889
    %v2892 = vrot.slane %v2873, 6
    %v2894 = vxor.u32 %v2892, 2147483648
    %v2895 = vmul.f32 %v2894, 1.442695
    %v2896 = vpow.pop %v2895
    %v2897 = vadd.f32 %v2896, 1.0
    %v2898 = vrcp.pop %v2897
    %v2899 = vmul.f32 1.0, %v2898
    %v2900 = vmul.f32 %v2888, %v2177
    %v2901 = vmul.f32 %v2879, %v2891
    %v2902 = vadd.f32 %v2900, %v2901
    %v2903 = vtanh.pop %v2902
    %v2904 = vmul.f32 %v2899, %v2903
    %v2905 = vlaneseq
    %v2906 = vshrl.u32 %v2905, 7
    %v2907 = vsub.s32 %v404, %v2906
    %v2908 = vrot.slane %v2709, %v2907
    %v2909 = vlaneseq
    %v2910 = vshrl.u32 %v2909, 7
    %v2911 = vsub.s32 %v409, %v2910
    %v2912 = vrot.slane %v2714, %v2911
    %v2913 = vsel %vm414, %v2912, %v2908
    %v2914 = vlaneseq
    %v2915 = vshrl.u32 %v2914, 7
    %v2916 = vsub.s32 %v404, %v2915
    %v2917 = vrot.slane %v2719, %v2916
    %v2918 = vlaneseq
    %v2919 = vshrl.u32 %v2918, 7
    %v2920 = vsub.s32 %v409, %v2919
    %v2921 = vrot.slane %v2724, %v2920
    %v2922 = vsel %vm414, %v2921, %v2917
    %v2923 = vsel %vm425, %v2922, %v2913
    %s2925 = scalar_lea.vmem [#allocation2], 6
    %2926 = vst.msk [vmem:[%s2925] sm:$0x3] %vm428, %v2923
    %v2927 = vld [vmem:[%s4] sm:$0xff]
    %v2928 = vld [vmem:[%s4 + $0x8] sm:$0xff]
    %v2929 = vld [vmem:[%s4 + $0x10] sm:$0xff]
    %v2930 = vld [vmem:[%s4 + $0x18] sm:$0xff]
    %v2931 = vld [vmem:[%s4 + $0x20] sm:$0xff]
    %v2932 = vld [vmem:[%s4 + $0x28] sm:$0xff]
    %v2933 = vld [vmem:[%s4 + $0x30] sm:$0xff]
    %v2934 = vld [vmem:[%s4 + $0x38] sm:$0xff]
    %v2935 = vld [vmem:[%s4 + $0x40] sm:$0xff]
    %v2936 = vld [vmem:[%s4 + $0x48] sm:$0xff]
    %v2937 = vld [vmem:[%s4 + $0x50] sm:$0xff]
    %v2938 = vld [vmem:[%s4 + $0x58] sm:$0xff]
    %v2939 = vld [vmem:[%s4 + $0x60] sm:$0xff]
    %v2940 = vld [vmem:[%s4 + $0x68] sm:$0xff]
    %v2941 = vld [vmem:[%s4 + $0x70] sm:$0xff]
    %v2942 = vld [vmem:[%s4 + $0x78] sm:$0xff]
    %v2943 = vld [vmem:[%s4 + $0x80] sm:$0xff]
    %v2944 = vld [vmem:[%s4 + $0x88] sm:$0xff]
    %v2945 = vld [vmem:[%s4 + $0x90] sm:$0xff]
    %v2946 = vld [vmem:[%s4 + $0x98] sm:$0xff]
    %v2947 = vld [vmem:[%s4 + $0xa0] sm:$0xff]
    %v2948 = vld [vmem:[%s4 + $0xa8] sm:$0xff]
    %v2949 = vld [vmem:[%s4 + $0xb0] sm:$0xff]
    %v2950 = vld [vmem:[%s4 + $0xb8] sm:$0xff]
    %v2951 = vld [vmem:[%s4 + $0xc0] sm:$0xff]
    %v2952 = vld [vmem:[%s4 + $0xc8] sm:$0xff]
    %v2953 = vld [vmem:[%s4 + $0xd0] sm:$0xff]
    %v2954 = vld [vmem:[%s4 + $0xd8] sm:$0xff]
    %v2955 = vld [vmem:[%s4 + $0xe0] sm:$0xff]
    %v2956 = vld [vmem:[%s4 + $0xe8] sm:$0xff]
    %v2957 = vld [vmem:[%s4 + $0xf0] sm:$0xff]
    %v2958 = vld [vmem:[%s4 + $0xf8] sm:$0xff]
    %v2959 = vld [vmem:[%s4 + $0x100] sm:$0xff]
    %v2960 = vld [vmem:[%s4 + $0x108] sm:$0xff]
    %v2961 = vld [vmem:[%s4 + $0x110] sm:$0xff]
    %v2962 = vld [vmem:[%s4 + $0x118] sm:$0xff]
    %v2963 = vld [vmem:[%s4 + $0x120] sm:$0xff]
    %v2964 = vld [vmem:[%s4 + $0x128] sm:$0xff]
    %v2965 = vld [vmem:[%s4 + $0x130] sm:$0xff]
    %v2966 = vld [vmem:[%s4 + $0x138] sm:$0xff]
    %v2967 = vld [vmem:[%s4 + $0x140] sm:$0xff]
    %v2968 = vld [vmem:[%s4 + $0x148] sm:$0xff]
    %v2969 = vld [vmem:[%s4 + $0x150] sm:$0xff]
    %v2970 = vld [vmem:[%s4 + $0x158] sm:$0xff]
    %v2971 = vld [vmem:[%s4 + $0x160] sm:$0xff]
    %v2972 = vld [vmem:[%s4 + $0x168] sm:$0xff]
    %v2973 = vld [vmem:[%s4 + $0x170] sm:$0xff]
    %v2974 = vld [vmem:[%s4 + $0x178] sm:$0xff]
    %v2975 = vld [vmem:[%s4 + $0x180] sm:$0xff]
    %v2976 = vld [vmem:[%s4 + $0x188] sm:$0xff]
    %v2977 = vld [vmem:[%s4 + $0x190] sm:$0xff]
    %v2978 = vld [vmem:[%s4 + $0x198] sm:$0xff]
    %v2979 = vld [vmem:[%s4 + $0x1a0] sm:$0xff]
    %v2980 = vld [vmem:[%s4 + $0x1a8] sm:$0xff]
    %v2981 = vld [vmem:[%s4 + $0x1b0] sm:$0xff]
    %v2982 = vld [vmem:[%s4 + $0x1b8] sm:$0xff]
    %v2983 = vld [vmem:[%s4 + $0x1c0] sm:$0xff]
    %v2984 = vld [vmem:[%s4 + $0x1c8] sm:$0xff]
    %v2985 = vld [vmem:[%s4 + $0x1d0] sm:$0xff]
    %v2986 = vld [vmem:[%s4 + $0x1d8] sm:$0xff]
    %v2987 = vld [vmem:[%s4 + $0x1e0] sm:$0xff]
    %v2988 = vld [vmem:[%s4 + $0x1e8] sm:$0xff]
    %v2989 = vld [vmem:[%s4 + $0x1f0] sm:$0xff]
    %v2990 = vld [vmem:[%s4 + $0x1f8] sm:$0xff]
    %v2991 = vld [vmem:[%s4 + $0x200] sm:$0xff]
    %v2992 = vld [vmem:[%s4 + $0x208] sm:$0xff]
    %v2993 = vld [vmem:[%s4 + $0x210] sm:$0xff]
    %v2994 = vld [vmem:[%s4 + $0x218] sm:$0xff]
    %v2995 = vld [vmem:[%s4 + $0x220] sm:$0xff]
    %v2996 = vld [vmem:[%s4 + $0x228] sm:$0xff]
    %v2997 = vld [vmem:[%s4 + $0x230] sm:$0xff]
    %v2998 = vld [vmem:[%s4 + $0x238] sm:$0xff]
    %v2999 = vld [vmem:[%s4 + $0x240] sm:$0xff]
    %v3000 = vld [vmem:[%s4 + $0x248] sm:$0xff]
    %v3001 = vld [vmem:[%s4 + $0x250] sm:$0xff]
    %v3002 = vld [vmem:[%s4 + $0x258] sm:$0xff]
    %v3003 = vld [vmem:[%s4 + $0x260] sm:$0xff]
    %v3004 = vld [vmem:[%s4 + $0x268] sm:$0xff]
    %v3005 = vld [vmem:[%s4 + $0x270] sm:$0xff]
    %v3006 = vld [vmem:[%s4 + $0x278] sm:$0xff]
    %v3007 = vld [vmem:[%s4 + $0x280] sm:$0xff]
    %v3008 = vld [vmem:[%s4 + $0x288] sm:$0xff]
    %v3009 = vld [vmem:[%s4 + $0x290] sm:$0xff]
    %v3010 = vld [vmem:[%s4 + $0x298] sm:$0xff]
    %v3011 = vld [vmem:[%s4 + $0x2a0] sm:$0xff]
    %v3012 = vld [vmem:[%s4 + $0x2a8] sm:$0xff]
    %v3013 = vld [vmem:[%s4 + $0x2b0] sm:$0xff]
    %v3014 = vld [vmem:[%s4 + $0x2b8] sm:$0xff]
    %v3015 = vld [vmem:[%s4 + $0x2c0] sm:$0xff]
    %v3016 = vld [vmem:[%s4 + $0x2c8] sm:$0xff]
    %v3017 = vld [vmem:[%s4 + $0x2d0] sm:$0xff]
    %v3018 = vld [vmem:[%s4 + $0x2d8] sm:$0xff]
    %v3019 = vld [vmem:[%s4 + $0x2e0] sm:$0xff]
    %v3020 = vld [vmem:[%s4 + $0x2e8] sm:$0xff]
    %v3021 = vld [vmem:[%s4 + $0x2f0] sm:$0xff]
    %v3022 = vld [vmem:[%s4 + $0x2f8] sm:$0xff]
    %3023 = vmatprep.subr.mxu0 %v2928
    %3024 = vmatpush1.msra.mxu0 %v2927
    %3025 = vmatprep.subr.mxu0 %v2934
    %3026 = vmatpush1.msra.mxu0 %v2933
    %3027 = vmatprep.subr.mxu0 %v2940
    %3028 = vmatpush1.msra.mxu0 %v2939
    %3029 = vmatprep.subr.mxu0 %v2946
    %3030 = vmatpush1.msra.mxu0 %v2945
    %3031 = vmatprep.subr.mxu0 %v2952
    %3032 = vmatpush1.msra.mxu0 %v2951
    %3033 = vmatprep.subr.mxu0 %v2958
    %3034 = vmatpush1.msra.mxu0 %v2957
    %3035 = vmatprep.subr.mxu0 %v2964
    %3036 = vmatpush1.msra.mxu0 %v2963
    %3037 = vmatprep.subr.mxu0 %v2970
    %3038 = vmatpush1.msra.mxu0 %v2969
    %3039 = vmatprep.subr.mxu0 %v2976
    %3040 = vmatpush1.msra.mxu0 %v2975
    %3041 = vmatprep.subr.mxu0 %v2982
    %3042 = vmatpush1.msra.mxu0 %v2981
    %3043 = vmatprep.subr.mxu0 %v2988
    %3044 = vmatpush1.msra.mxu0 %v2987
    %3045 = vmatprep.subr.mxu0 %v2994
    %3046 = vmatpush1.msra.mxu0 %v2993
    %3047 = vmatprep.subr.mxu0 %v3000
    %3048 = vmatpush1.msra.mxu0 %v2999
    %3049 = vmatprep.subr.mxu0 %v3006
    %3050 = vmatpush1.msra.mxu0 %v3005
    %3051 = vmatprep.subr.mxu0 %v3012
    %3052 = vmatpush1.msra.mxu0 %v3011
    %3053 = vmatprep.subr.mxu0 %v3018
    %3054 = vmatpush1.msra.mxu0 %v3017
    %3055 = vmatprep.subr.mxu0 0.0
    %3056 = vmatpush1.msra.mxu0 0.0
    %3057 = vmatprep.subr.mxu0 0.0
    %3058 = vmatpush1.msra.mxu0 0.0
    %3059 = vmatprep.subr.mxu0 0.0
    %3060 = vmatpush1.msra.mxu0 0.0
    %3061 = vmatprep.subr.mxu0 0.0
    %3062 = vmatpush1.msra.mxu0 0.0
    %3063 = vmatprep.subr.mxu0 0.0
    %3064 = vmatpush1.msra.mxu0 0.0
    %3065 = vmatprep.subr.mxu0 0.0
    %3066 = vmatpush1.msra.mxu0 0.0
    %3067 = vmatprep.subr.mxu0 0.0
    %3068 = vmatpush1.msra.mxu0 0.0
    %3069 = vmatprep.subr.mxu0 0.0
    %3070 = vmatpush1.msra.mxu0 0.0
    %3071 = vmatprep.subr.mxu0 0.0
    %3072 = vmatpush1.msra.mxu0 0.0
    %3073 = vmatprep.subr.mxu0 0.0
    %3074 = vmatpush1.msra.mxu0 0.0
    %3075 = vmatprep.subr.mxu0 0.0
    %3076 = vmatpush1.msra.mxu0 0.0
    %3077 = vmatprep.subr.mxu0 0.0
    %3078 = vmatpush1.msra.mxu0 0.0
    %3079 = vmatprep.subr.mxu0 0.0
    %3080 = vmatpush1.msra.mxu0 0.0
    %3081 = vmatprep.subr.mxu0 0.0
    %3082 = vmatpush1.msra.mxu0 0.0
    %3083 = vmatprep.subr.mxu0 0.0
    %3084 = vmatpush1.msra.mxu0 0.0
    %3085 = vmatprep.subr.mxu0 0.0
    %3086 = vmatpush1.msra.mxu0 0.0
    %3087 = vmatprep.mubr.f32.mxu0 0.0
    %3088 = vmatmul.mubr.f32.gmra.mrb[0].mxu0 %v2904
    %v3089 = vpop.f32.mrb[0].mxu0
    %v3090 = vadd.f32 0.0, %v3089
    %v3091 = vpop.f32.mrb[0].mxu0
    %v3092 = vadd.f32 0.0, %v3091
    %3093 = vdwg.mxu0
    %3094 = vmatprep.subr.mxu0 %v2930
    %3095 = vmatpush1.msra.mxu0 %v2929
    %3096 = vmatprep.subr.mxu0 %v2936
    %3097 = vmatpush1.msra.mxu0 %v2935
    %3098 = vmatprep.subr.mxu0 %v2942
    %3099 = vmatpush1.msra.mxu0 %v2941
    %3100 = vmatprep.subr.mxu0 %v2948
    %3101 = vmatpush1.msra.mxu0 %v2947
    %3102 = vmatprep.subr.mxu0 %v2954
    %3103 = vmatpush1.msra.mxu0 %v2953
    %3104 = vmatprep.subr.mxu0 %v2960
    %3105 = vmatpush1.msra.mxu0 %v2959
    %3106 = vmatprep.subr.mxu0 %v2966
    %3107 = vmatpush1.msra.mxu0 %v2965
    %3108 = vmatprep.subr.mxu0 %v2972
    %3109 = vmatpush1.msra.mxu0 %v2971
    %3110 = vmatprep.subr.mxu0 %v2978
    %3111 = vmatpush1.msra.mxu0 %v2977
    %3112 = vmatprep.subr.mxu0 %v2984
    %3113 = vmatpush1.msra.mxu0 %v2983
    %3114 = vmatprep.subr.mxu0 %v2990
    %3115 = vmatpush1.msra.mxu0 %v2989
    %3116 = vmatprep.subr.mxu0 %v2996
    %3117 = vmatpush1.msra.mxu0 %v2995
    %3118 = vmatprep.subr.mxu0 %v3002
    %3119 = vmatpush1.msra.mxu0 %v3001
    %3120 = vmatprep.subr.mxu0 %v3008
    %3121 = vmatpush1.msra.mxu0 %v3007
    %3122 = vmatprep.subr.mxu0 %v3014
    %3123 = vmatpush1.msra.mxu0 %v3013
    %3124 = vmatprep.subr.mxu0 %v3020
    %3125 = vmatpush1.msra.mxu0 %v3019
    %3126 = vmatprep.subr.mxu0 0.0
    %3127 = vmatpush1.msra.mxu0 0.0
    %3128 = vmatprep.subr.mxu0 0.0
    %3129 = vmatpush1.msra.mxu0 0.0
    %3130 = vmatprep.subr.mxu0 0.0
    %3131 = vmatpush1.msra.mxu0 0.0
    %3132 = vmatprep.subr.mxu0 0.0
    %3133 = vmatpush1.msra.mxu0 0.0
    %3134 = vmatprep.subr.mxu0 0.0
    %3135 = vmatpush1.msra.mxu0 0.0
    %3136 = vmatprep.subr.mxu0 0.0
    %3137 = vmatpush1.msra.mxu0 0.0
    %3138 = vmatprep.subr.mxu0 0.0
    %3139 = vmatpush1.msra.mxu0 0.0
    %3140 = vmatprep.subr.mxu0 0.0
    %3141 = vmatpush1.msra.mxu0 0.0
    %3142 = vmatprep.subr.mxu0 0.0
    %3143 = vmatpush1.msra.mxu0 0.0
    %3144 = vmatprep.subr.mxu0 0.0
    %3145 = vmatpush1.msra.mxu0 0.0
    %3146 = vmatprep.subr.mxu0 0.0
    %3147 = vmatpush1.msra.mxu0 0.0
    %3148 = vmatprep.subr.mxu0 0.0
    %3149 = vmatpush1.msra.mxu0 0.0
    %3150 = vmatprep.subr.mxu0 0.0
    %3151 = vmatpush1.msra.mxu0 0.0
    %3152 = vmatprep.subr.mxu0 0.0
    %3153 = vmatpush1.msra.mxu0 0.0
    %3154 = vmatprep.subr.mxu0 0.0
    %3155 = vmatpush1.msra.mxu0 0.0
    %3156 = vmatprep.subr.mxu0 0.0
    %3157 = vmatpush1.msra.mxu0 0.0
    %3158 = vmatprep.mubr.f32.mxu0 0.0
    %3159 = vmatmul.mubr.f32.gmra.mrb[0].mxu0 %v2904
    %v3160 = vpop.f32.mrb[0].mxu0
    %v3161 = vadd.f32 0.0, %v3160
    %v3162 = vpop.f32.mrb[0].mxu0
    %v3163 = vadd.f32 0.0, %v3162
    %3164 = vdwg.mxu0
    %3165 = vmatprep.subr.mxu0 %v2932
    %3166 = vmatpush1.msra.mxu0 %v2931
    %3167 = vmatprep.subr.mxu0 %v2938
    %3168 = vmatpush1.msra.mxu0 %v2937
    %3169 = vmatprep.subr.mxu0 %v2944
    %3170 = vmatpush1.msra.mxu0 %v2943
    %3171 = vmatprep.subr.mxu0 %v2950
    %3172 = vmatpush1.msra.mxu0 %v2949
    %3173 = vmatprep.subr.mxu0 %v2956
    %3174 = vmatpush1.msra.mxu0 %v2955
    %3175 = vmatprep.subr.mxu0 %v2962
    %3176 = vmatpush1.msra.mxu0 %v2961
    %3177 = vmatprep.subr.mxu0 %v2968
    %3178 = vmatpush1.msra.mxu0 %v2967
    %3179 = vmatprep.subr.mxu0 %v2974
    %3180 = vmatpush1.msra.mxu0 %v2973
    %3181 = vmatprep.subr.mxu0 %v2980
    %3182 = vmatpush1.msra.mxu0 %v2979
    %3183 = vmatprep.subr.mxu0 %v2986
    %3184 = vmatpush1.msra.mxu0 %v2985
    %3185 = vmatprep.subr.mxu0 %v2992
    %3186 = vmatpush1.msra.mxu0 %v2991
    %3187 = vmatprep.subr.mxu0 %v2998
    %3188 = vmatpush1.msra.mxu0 %v2997
    %3189 = vmatprep.subr.mxu0 %v3004
    %3190 = vmatpush1.msra.mxu0 %v3003
    %3191 = vmatprep.subr.mxu0 %v3010
    %3192 = vmatpush1.msra.mxu0 %v3009
    %3193 = vmatprep.subr.mxu0 %v3016
    %3194 = vmatpush1.msra.mxu0 %v3015
    %3195 = vmatprep.subr.mxu0 %v3022
    %3196 = vmatpush1.msra.mxu0 %v3021
    %3197 = vmatprep.subr.mxu0 0.0
    %3198 = vmatpush1.msra.mxu0 0.0
    %3199 = vmatprep.subr.mxu0 0.0
    %3200 = vmatpush1.msra.mxu0 0.0
    %3201 = vmatprep.subr.mxu0 0.0
    %3202 = vmatpush1.msra.mxu0 0.0
    %3203 = vmatprep.subr.mxu0 0.0
    %3204 = vmatpush1.msra.mxu0 0.0
    %3205 = vmatprep.subr.mxu0 0.0
    %3206 = vmatpush1.msra.mxu0 0.0
    %3207 = vmatprep.subr.mxu0 0.0
    %3208 = vmatpush1.msra.mxu0 0.0
    %3209 = vmatprep.subr.mxu0 0.0
    %3210 = vmatpush1.msra.mxu0 0.0
    %3211 = vmatprep.subr.mxu0 0.0
    %3212 = vmatpush1.msra.mxu0 0.0
    %3213 = vmatprep.subr.mxu0 0.0
    %3214 = vmatpush1.msra.mxu0 0.0
    %3215 = vmatprep.subr.mxu0 0.0
    %3216 = vmatpush1.msra.mxu0 0.0
    %3217 = vmatprep.subr.mxu0 0.0
    %3218 = vmatpush1.msra.mxu0 0.0
    %3219 = vmatprep.subr.mxu0 0.0
    %3220 = vmatpush1.msra.mxu0 0.0
    %3221 = vmatprep.subr.mxu0 0.0
    %3222 = vmatpush1.msra.mxu0 0.0
    %3223 = vmatprep.subr.mxu0 0.0
    %3224 = vmatpush1.msra.mxu0 0.0
    %3225 = vmatprep.subr.mxu0 0.0
    %3226 = vmatpush1.msra.mxu0 0.0
    %3227 = vmatprep.subr.mxu0 0.0
    %3228 = vmatpush1.msra.mxu0 0.0
    %3229 = vmatprep.mubr.f32.mxu0 0.0
    %3230 = vmatmul.mubr.f32.gmra.mrb[0].mxu0 %v2904
    %v3231 = vpop.f32.mrb[0].mxu0
    %v3232 = vadd.f32 0.0, %v3231
    %v3233 = vpop.f32.mrb[0].mxu0
    %v3234 = vadd.f32 0.0, %v3233
    %3235 = vdwg.mxu0
    %v3236 = vld [vmem:[%s5 + $0x1] sm:$0x1]
    %v3238 = vlaneseq
    %v3239 = vshrl.u32 %v3238, 7
    %v3240 = vsub.s32 0, %v3239
    %v3241 = vrot.slane %v3236, %v3240
    %v3243 = vadd.f32 %v3234, %v3241
    %s3244 = scalar_lea.vmem %s6, 6
    %3245 = vst [vmem:[%s3244] sm:$0x3] %v3243
    %v3246 = vld [vmem:[%s0] sm:$0xff]
    %v3247 = vld [vmem:[%s0 + $0x8] sm:$0xff]
    %v3248 = vld [vmem:[%s0 + $0x10] sm:$0xff]
    %v3249 = vld [vmem:[%s0 + $0x18] sm:$0xff]
    %v3252 = vunpack.c.l.s4 1966171168
    %v3253 = vunpack.c.0.s8 %v3252
    %v3254 = vlaneseq
    %v3255 = vshrl.u32 %v3254, 7
    %v3256 = vsub.s32 %v3253, %v3255
    %v3257 = vrot.slane %v3090, %v3256
    %v3258 = vcombine.high %v3257, %v3257
    %v3260 = vunpack.c.l.s4 1966171168
    %v3261 = vunpack.c.0.s8 %v3260
    %v3262 = vlaneseq
    %v3263 = vshrl.u32 %v3262, 7
    %v3264 = vsub.s32 %v3261, %v3263
    %v3265 = vrot.slane %v3257, %v3264
    %v3267 = vunpack.c.l.s4 1966171168
    %v3268 = vunpack.c.0.s8 %v3267
    %v3269 = vlaneseq
    %v3270 = vshrl.u32 %v3269, 7
    %v3271 = vsub.s32 %v3268, %v3270
    %v3272 = vrot.slane %v3258, %v3271
    %v3273 = vlaneseq
    %v3274 = vshrl.u32 %v3273, 7
    %v3275 = vsub.s32 0, %v3274
    %v3276 = vrot.slane %v3265, %v3275
    %v3277 = vlaneseq
    %v3278 = vshrl.u32 %v3277, 7
    %v3279 = vsub.s32 0, %v3278
    %v3280 = vrot.slane %v3272, %v3279
    %v3283 = vadd.f32 %v3246, %v3276
    %v3284 = vadd.f32 %v3247, %v3276
    %v3285 = vadd.f32 %v3248, %v3280
    %v3286 = vadd.f32 %v3249, %v3280
    %v3287 = vtanh.pop %v3283
    %v3288 = vtanh.pop %v3284
    %v3289 = vtanh.pop %v3285
    %v3290 = vtanh.pop %v3286
    %v3291 = vld [vmem:[%s5] sm:$0x1]
    %v3293 = vlaneseq
    %v3294 = vshrl.u32 %v3293, 7
    %v3295 = vsub.s32 0, %v3294
    %v3296 = vrot.slane %v3291, %v3295
    %v3298 = vmul.f32 %v3287, %v3296
    %v3299 = vmul.f32 %v3288, %v3296
    %v3300 = vmul.f32 %v3289, %v3296
    %v3301 = vmul.f32 %v3290, %v3296
    %3302 = vadd.xlane.f32.xlu0 %v3298
    %v3303 = vpop.xlane.xlu0 %3302
    %3304 = vadd.xlane.f32.xlu0 %v3299
    %v3305 = vpop.xlane.xlu0 %3304
    %3306 = vadd.xlane.f32.xlu0 %v3300
    %v3307 = vpop.xlane.xlu0 %3306
    %3308 = vadd.xlane.f32.xlu0 %v3301
    %v3309 = vpop.xlane.xlu0 %3308
    %v3314 = vlaneseq
    %v3315 = vshrl.u32 %v3314, 7
    %v3316 = vsub.s32 %v404, %v3315
    %v3317 = vrot.slane %v3303, %v3316
    %v3318 = vlaneseq
    %v3319 = vshrl.u32 %v3318, 7
    %v3320 = vsub.s32 %v409, %v3319
    %v3321 = vrot.slane %v3305, %v3320
    %v3322 = vsel %vm414, %v3321, %v3317
    %v3323 = vlaneseq
    %v3324 = vshrl.u32 %v3323, 7
    %v3325 = vsub.s32 %v404, %v3324
    %v3326 = vrot.slane %v3307, %v3325
    %v3327 = vlaneseq
    %v3328 = vshrl.u32 %v3327, 7
    %v3329 = vsub.s32 %v409, %v3328
    %v3330 = vrot.slane %v3309, %v3329
    %v3331 = vsel %vm414, %v3330, %v3326
    %v3332 = vsel %vm425, %v3331, %v3322
    %v3334 = vsel %vm428, %v3332, -inf
    %3335 = vmax.xlane.f32.xlu0 %v3334
    %v3336 = vpop.xlane.xlu0 %3335
    %v3338 = vlaneseq
    %v3339 = vshrl.u32 %v3338, 7
    %v3340 = vsub.s32 0, %v3339
    %v3341 = vrot.slane %v3336, %v3340
    %v3342 = vlaneseq
    %v3343 = vshrl.u32 %v3342, 7
    %v3344 = vsub.s32 1, %v3343
    %v3345 = vrot.slane %v3336, %v3344
    %v3348 = vsub.f32 %v3303, %v3341
    %v3349 = vsub.f32 %v3305, %v3341
    %v3350 = vsub.f32 %v3307, %v3345
    %v3351 = vsub.f32 %v3309, %v3345
    %v3352 = vmul.f32 %v3348, 1.442695
    %v3353 = vpow.pop %v3352
    %v3354 = vmul.f32 %v3349, 1.442695
    %v3355 = vpow.pop %v3354
    %v3356 = vmul.f32 %v3350, 1.442695
    %v3357 = vpow.pop %v3356
    %v3358 = vmul.f32 %v3351, 1.442695
    %v3359 = vpow.pop %v3358
    %3364 = vset.pattern.permute.xlu0 0
    %3365 = vperm.xlu0 %3364, %v3353
    %v3366 = vpop.permute.xlu0 %3365
    %3367 = vset.pattern.permute.xlu0 0
    %3368 = vperm.xlu0 %3367, %v3355
    %v3369 = vpop.permute.xlu0 %3368
    %3370 = vset.pattern.permute.xlu0 0
    %3371 = vperm.xlu0 %3370, %v3357
    %v3372 = vpop.permute.xlu0 %3371
    %3373 = vset.pattern.permute.xlu0 0
    %3374 = vperm.xlu0 %3373, %v3359
    %v3375 = vpop.permute.xlu0 %3374
    %v3376 = vlaneseq
    %v3377 = vshrl.u32 %v3376, 7
    %v3378 = vsub.s32 %v404, %v3377
    %v3379 = vrot.slane %v3366, %v3378
    %v3380 = vlaneseq
    %v3381 = vshrl.u32 %v3380, 7
    %v3382 = vsub.s32 %v409, %v3381
    %v3383 = vrot.slane %v3369, %v3382
    %v3384 = vsel %vm414, %v3383, %v3379
    %v3385 = vlaneseq
    %v3386 = vshrl.u32 %v3385, 7
    %v3387 = vsub.s32 %v404, %v3386
    %v3388 = vrot.slane %v3372, %v3387
    %v3389 = vlaneseq
    %v3390 = vshrl.u32 %v3389, 7
    %v3391 = vsub.s32 %v409, %v3390
    %v3392 = vrot.slane %v3375, %v3391
    %v3393 = vsel %vm414, %v3392, %v3388
    %v3394 = vsel %vm425, %v3393, %v3384
    %v3396 = vsel %vm428, %v3394, 0.0
    %3397 = vadd.xlane.f32.xlu0 %v3396
    %v3398 = vpop.xlane.xlu0 %3397
    %v3399 = vrcp.pop %v3398
    %v3401 = vlaneseq
    %v3402 = vshrl.u32 %v3401, 7
    %v3403 = vsub.s32 0, %v3402
    %v3404 = vrot.slane %v3399, %v3403
    %v3405 = vlaneseq
    %v3406 = vshrl.u32 %v3405, 7
    %v3407 = vsub.s32 1, %v3406
    %v3408 = vrot.slane %v3399, %v3407
    %v3411 = vmul.f32 %v3353, %v3404
    %v3412 = vmul.f32 %v3355, %v3404
    %v3413 = vmul.f32 %v3357, %v3408
    %v3414 = vmul.f32 %v3359, %v3408
    %v3415 = vld [vmem:[%s1] sm:$0xff]
    %v3416 = vld [vmem:[%s1 + $0x8] sm:$0xff]
    %v3417 = vld [vmem:[%s1 + $0x10] sm:$0xff]
    %v3418 = vld [vmem:[%s1 + $0x18] sm:$0xff]
    %v3419 = vld [vmem:[%s1 + $0x20] sm:$0xff]
    %v3420 = vld [vmem:[%s1 + $0x28] sm:$0xff]
    %v3421 = vld [vmem:[%s1 + $0x30] sm:$0xff]
    %v3422 = vld [vmem:[%s1 + $0x38] sm:$0xff]
    %v3423 = vld [vmem:[%s1 + $0x40] sm:$0xff]
    %v3424 = vld [vmem:[%s1 + $0x48] sm:$0xff]
    %v3425 = vld [vmem:[%s1 + $0x50] sm:$0xff]
    %v3426 = vld [vmem:[%s1 + $0x58] sm:$0xff]
    %v3427 = vld [vmem:[%s1 + $0x60] sm:$0xff]
    %v3428 = vld [vmem:[%s1 + $0x68] sm:$0xff]
    %v3429 = vld [vmem:[%s1 + $0x70] sm:$0xff]
    %v3430 = vld [vmem:[%s1 + $0x78] sm:$0xff]
    %3432 = vset.pattern.permute.xlu0 0
    %3433 = vperm.xlu0 %3432, %v3411
    %v3434 = vpop.permute.xlu0 %3433
    %3437 = vset.pattern.permute.xlu0 0
    %3438 = vperm.xlu0 %3437, %v3412
    %v3439 = vpop.permute.xlu0 %3438
    %3442 = vset.pattern.permute.xlu0 0
    %3443 = vperm.xlu0 %3442, %v3413
    %v3444 = vpop.permute.xlu0 %3443
    %3447 = vset.pattern.permute.xlu0 0
    %3448 = vperm.xlu0 %3447, %v3414
    %v3449 = vpop.permute.xlu0 %3448
    %v3451 = vmul.f32 %v3434, %v3415
    %v3452 = vmul.f32 %v3434, %v3416
    %v3453 = vmul.f32 %v3434, %v3417
    %v3454 = vmul.f32 %v3434, %v3418
    %v3455 = vmul.f32 %v3439, %v3419
    %v3456 = vmul.f32 %v3439, %v3420
    %v3457 = vmul.f32 %v3439, %v3421
    %v3458 = vmul.f32 %v3439, %v3422
    %v3459 = vmul.f32 %v3444, %v3423
    %v3460 = vmul.f32 %v3444, %v3424
    %v3461 = vmul.f32 %v3444, %v3425
    %v3462 = vmul.f32 %v3444, %v3426
    %v3463 = vmul.f32 %v3449, %v3427
    %v3464 = vmul.f32 %v3449, %v3428
    %v3465 = vmul.f32 %v3449, %v3429
    %v3466 = vmul.f32 %v3449, %v3430
    %v3467 = vadd.f32 %v3451, %v3455
    %v3468 = vrot.slane %v3467, 4
    %v3469 = vadd.f32 %v3467, %v3468
    %v3470 = vrot.slane %v3469, 2
    %v3471 = vadd.f32 %v3469, %v3470
    %v3472 = vrot.slane %v3471, 1
    %v3473 = vadd.f32 %v3471, %v3472
    %v3474 = vadd.f32 %v3452, %v3456
    %v3475 = vrot.slane %v3474, 4
    %v3476 = vadd.f32 %v3474, %v3475
    %v3477 = vrot.slane %v3476, 2
    %v3478 = vadd.f32 %v3476, %v3477
    %v3479 = vrot.slane %v3478, 1
    %v3480 = vadd.f32 %v3478, %v3479
    %v3481 = vadd.f32 %v3453, %v3457
    %v3482 = vrot.slane %v3481, 4
    %v3483 = vadd.f32 %v3481, %v3482
    %v3484 = vrot.slane %v3483, 2
    %v3485 = vadd.f32 %v3483, %v3484
    %v3486 = vrot.slane %v3485, 1
    %v3487 = vadd.f32 %v3485, %v3486
    %v3488 = vadd.f32 %v3454, %v3458
    %v3489 = vrot.slane %v3488, 4
    %v3490 = vadd.f32 %v3488, %v3489
    %v3491 = vrot.slane %v3490, 2
    %v3492 = vadd.f32 %v3490, %v3491
    %v3493 = vrot.slane %v3492, 1
    %v3494 = vadd.f32 %v3492, %v3493
    %v3495 = vadd.f32 %v3459, %v3463
    %v3496 = vrot.slane %v3495, 4
    %v3497 = vadd.f32 %v3495, %v3496
    %v3498 = vrot.slane %v3497, 2
    %v3499 = vadd.f32 %v3497, %v3498
    %v3500 = vrot.slane %v3499, 1
    %v3501 = vadd.f32 %v3499, %v3500
    %v3502 = vadd.f32 %v3460, %v3464
    %v3503 = vrot.slane %v3502, 4
    %v3504 = vadd.f32 %v3502, %v3503
    %v3505 = vrot.slane %v3504, 2
    %v3506 = vadd.f32 %v3504, %v3505
    %v3507 = vrot.slane %v3506, 1
    %v3508 = vadd.f32 %v3506, %v3507
    %v3509 = vadd.f32 %v3461, %v3465
    %v3510 = vrot.slane %v3509, 4
    %v3511 = vadd.f32 %v3509, %v3510
    %v3512 = vrot.slane %v3511, 2
    %v3513 = vadd.f32 %v3511, %v3512
    %v3514 = vrot.slane %v3513, 1
    %v3515 = vadd.f32 %v3513, %v3514
    %v3516 = vadd.f32 %v3462, %v3466
    %v3517 = vrot.slane %v3516, 4
    %v3518 = vadd.f32 %v3516, %v3517
    %v3519 = vrot.slane %v3518, 2
    %v3520 = vadd.f32 %v3518, %v3519
    %v3521 = vrot.slane %v3520, 1
    %v3522 = vadd.f32 %v3520, %v3521
    %s3523 = scalar_lea.vmem %s2, 32
    %v3524 = vld [vmem:[%s3523] sm:$0xff]
    %v3533 = vcombine.low %v3473, %v3480
    %v3534 = vcombine.low %v3487, %v3494
    %v3536 = vunpack.c.l.s4 1983009808
    %v3537 = vunpack.c.0.s8 %v3536
    %v3538 = vlaneseq
    %v3539 = vshrl.u32 %v3538, 7
    %v3540 = vsub.s32 %v3537, %v3539
    %v3541 = vrot.slane %v3533, %v3540
    %v3543 = vunpack.c.l.s4 1983009808
    %v3544 = vunpack.c.0.s8 %v3543
    %v3545 = vlaneseq
    %v3546 = vshrl.u32 %v3545, 7
    %v3547 = vsub.s32 %v3544, %v3546
    %v3548 = vrot.slane %v3534, %v3547
    %v3549 = vcombine.low %v3541, %v3548
    %v3550 = vcombine.low %v3501, %v3508
    %v3551 = vcombine.low %v3515, %v3522
    %v3553 = vunpack.c.l.s4 1983009808
    %v3554 = vunpack.c.0.s8 %v3553
    %v3555 = vlaneseq
    %v3556 = vshrl.u32 %v3555, 7
    %v3557 = vsub.s32 %v3554, %v3556
    %v3558 = vrot.slane %v3550, %v3557
    %v3560 = vunpack.c.l.s4 1983009808
    %v3561 = vunpack.c.0.s8 %v3560
    %v3562 = vlaneseq
    %v3563 = vshrl.u32 %v3562, 7
    %v3564 = vsub.s32 %v3561, %v3563
    %v3565 = vrot.slane %v3551, %v3564
    %v3566 = vcombine.low %v3558, %v3565
    %v3567 = vsel %vm661, %v3549, %v3549
    %v3568 = vsel %vm663, %v3549, %v3567
    %v3569 = vrot.slane %v3566, 7
    %v3570 = vsel %vm425, %v3569, %v3568
    %v3571 = vsel %vm667, %v3569, %v3570
    %v3572 = vsel %vm669, %v3569, %v3571
    %v3573 = vsel %vm671, %v3569, %v3572
    %v3575 = vadd.f32 %v3524, %v3573
    %v3580 = vcombine.low %v3092, %v3161
    %v3581 = vcombine.low %v3163, %v3232
    %v3583 = vunpack.c.l.s4 1983009808
    %v3584 = vunpack.c.0.s8 %v3583
    %v3585 = vlaneseq
    %v3586 = vshrl.u32 %v3585, 7
    %v3587 = vsub.s32 %v3584, %v3586
    %v3588 = vrot.slane %v3580, %v3587
    %v3590 = vunpack.c.l.s4 1983009808
    %v3591 = vunpack.c.0.s8 %v3590
    %v3592 = vlaneseq
    %v3593 = vshrl.u32 %v3592, 7
    %v3594 = vsub.s32 %v3591, %v3593
    %v3595 = vrot.slane %v3581, %v3594
    %v3596 = vcombine.low %v3588, %v3595
    %v3598 = vadd.f32 %v3575, %v3596
    %v3599 = vxor.u32 %v3598, 2147483648
    %v3600 = vmul.f32 %v3599, 1.442695
    %v3601 = vpow.pop %v3600
    %v3602 = vadd.f32 %v3601, 1.0
    %v3603 = vrcp.pop %v3602
    %v3604 = vmul.f32 1.0, %v3603
    %v3606 = vrot.slane %v3598, 2
    %v3608 = vxor.u32 %v3606, 2147483648
    %v3609 = vmul.f32 %v3608, 1.442695
    %v3610 = vpow.pop %v3609
    %v3611 = vadd.f32 %v3610, 1.0
    %v3612 = vrcp.pop %v3611
    %v3613 = vmul.f32 1.0, %v3612
    %v3614 = vrot.slane %v3598, 4
    %v3616 = vtanh.pop %v3614
    %v3617 = vrot.slane %v3598, 6
    %v3619 = vxor.u32 %v3617, 2147483648
    %v3620 = vmul.f32 %v3619, 1.442695
    %v3621 = vpow.pop %v3620
    %v3622 = vadd.f32 %v3621, 1.0
    %v3623 = vrcp.pop %v3622
    %v3624 = vmul.f32 1.0, %v3623
    %v3625 = vmul.f32 %v3613, %v2902
    %v3626 = vmul.f32 %v3604, %v3616
    %v3627 = vadd.f32 %v3625, %v3626
    %v3628 = vtanh.pop %v3627
    %v3629 = vmul.f32 %v3624, %v3628
    %v3630 = vlaneseq
    %v3631 = vshrl.u32 %v3630, 7
    %v3632 = vsub.s32 %v404, %v3631
    %v3633 = vrot.slane %v3434, %v3632
    %v3634 = vlaneseq
    %v3635 = vshrl.u32 %v3634, 7
    %v3636 = vsub.s32 %v409, %v3635
    %v3637 = vrot.slane %v3439, %v3636
    %v3638 = vsel %vm414, %v3637, %v3633
    %v3639 = vlaneseq
    %v3640 = vshrl.u32 %v3639, 7
    %v3641 = vsub.s32 %v404, %v3640
    %v3642 = vrot.slane %v3444, %v3641
    %v3643 = vlaneseq
    %v3644 = vshrl.u32 %v3643, 7
    %v3645 = vsub.s32 %v409, %v3644
    %v3646 = vrot.slane %v3449, %v3645
    %v3647 = vsel %vm414, %v3646, %v3642
    %v3648 = vsel %vm425, %v3647, %v3638
    %s3650 = scalar_lea.vmem [#allocation2], 8
    %3651 = vst.msk [vmem:[%s3650] sm:$0x3] %vm428, %v3648
    %v3652 = vld [vmem:[%s4] sm:$0xff]
    %v3653 = vld [vmem:[%s4 + $0x8] sm:$0xff]
    %v3654 = vld [vmem:[%s4 + $0x10] sm:$0xff]
    %v3655 = vld [vmem:[%s4 + $0x18] sm:$0xff]
    %v3656 = vld [vmem:[%s4 + $0x20] sm:$0xff]
    %v3657 = vld [vmem:[%s4 + $0x28] sm:$0xff]
    %v3658 = vld [vmem:[%s4 + $0x30] sm:$0xff]
    %v3659 = vld [vmem:[%s4 + $0x38] sm:$0xff]
    %v3660 = vld [vmem:[%s4 + $0x40] sm:$0xff]
    %v3661 = vld [vmem:[%s4 + $0x48] sm:$0xff]
    %v3662 = vld [vmem:[%s4 + $0x50] sm:$0xff]
    %v3663 = vld [vmem:[%s4 + $0x58] sm:$0xff]
    %v3664 = vld [vmem:[%s4 + $0x60] sm:$0xff]
    %v3665 = vld [vmem:[%s4 + $0x68] sm:$0xff]
    %v3666 = vld [vmem:[%s4 + $0x70] sm:$0xff]
    %v3667 = vld [vmem:[%s4 + $0x78] sm:$0xff]
    %v3668 = vld [vmem:[%s4 + $0x80] sm:$0xff]
    %v3669 = vld [vmem:[%s4 + $0x88] sm:$0xff]
    %v3670 = vld [vmem:[%s4 + $0x90] sm:$0xff]
    %v3671 = vld [vmem:[%s4 + $0x98] sm:$0xff]
    %v3672 = vld [vmem:[%s4 + $0xa0] sm:$0xff]
    %v3673 = vld [vmem:[%s4 + $0xa8] sm:$0xff]
    %v3674 = vld [vmem:[%s4 + $0xb0] sm:$0xff]
    %v3675 = vld [vmem:[%s4 + $0xb8] sm:$0xff]
    %v3676 = vld [vmem:[%s4 + $0xc0] sm:$0xff]
    %v3677 = vld [vmem:[%s4 + $0xc8] sm:$0xff]
    %v3678 = vld [vmem:[%s4 + $0xd0] sm:$0xff]
    %v3679 = vld [vmem:[%s4 + $0xd8] sm:$0xff]
    %v3680 = vld [vmem:[%s4 + $0xe0] sm:$0xff]
    %v3681 = vld [vmem:[%s4 + $0xe8] sm:$0xff]
    %v3682 = vld [vmem:[%s4 + $0xf0] sm:$0xff]
    %v3683 = vld [vmem:[%s4 + $0xf8] sm:$0xff]
    %v3684 = vld [vmem:[%s4 + $0x100] sm:$0xff]
    %v3685 = vld [vmem:[%s4 + $0x108] sm:$0xff]
    %v3686 = vld [vmem:[%s4 + $0x110] sm:$0xff]
    %v3687 = vld [vmem:[%s4 + $0x118] sm:$0xff]
    %v3688 = vld [vmem:[%s4 + $0x120] sm:$0xff]
    %v3689 = vld [vmem:[%s4 + $0x128] sm:$0xff]
    %v3690 = vld [vmem:[%s4 + $0x130] sm:$0xff]
    %v3691 = vld [vmem:[%s4 + $0x138] sm:$0xff]
    %v3692 = vld [vmem:[%s4 + $0x140] sm:$0xff]
    %v3693 = vld [vmem:[%s4 + $0x148] sm:$0xff]
    %v3694 = vld [vmem:[%s4 + $0x150] sm:$0xff]
    %v3695 = vld [vmem:[%s4 + $0x158] sm:$0xff]
    %v3696 = vld [vmem:[%s4 + $0x160] sm:$0xff]
    %v3697 = vld [vmem:[%s4 + $0x168] sm:$0xff]
    %v3698 = vld [vmem:[%s4 + $0x170] sm:$0xff]
    %v3699 = vld [vmem:[%s4 + $0x178] sm:$0xff]
    %v3700 = vld [vmem:[%s4 + $0x180] sm:$0xff]
    %v3701 = vld [vmem:[%s4 + $0x188] sm:$0xff]
    %v3702 = vld [vmem:[%s4 + $0x190] sm:$0xff]
    %v3703 = vld [vmem:[%s4 + $0x198] sm:$0xff]
    %v3704 = vld [vmem:[%s4 + $0x1a0] sm:$0xff]
    %v3705 = vld [vmem:[%s4 + $0x1a8] sm:$0xff]
    %v3706 = vld [vmem:[%s4 + $0x1b0] sm:$0xff]
    %v3707 = vld [vmem:[%s4 + $0x1b8] sm:$0xff]
    %v3708 = vld [vmem:[%s4 + $0x1c0] sm:$0xff]
    %v3709 = vld [vmem:[%s4 + $0x1c8] sm:$0xff]
    %v3710 = vld [vmem:[%s4 + $0x1d0] sm:$0xff]
    %v3711 = vld [vmem:[%s4 + $0x1d8] sm:$0xff]
    %v3712 = vld [vmem:[%s4 + $0x1e0] sm:$0xff]
    %v3713 = vld [vmem:[%s4 + $0x1e8] sm:$0xff]
    %v3714 = vld [vmem:[%s4 + $0x1f0] sm:$0xff]
    %v3715 = vld [vmem:[%s4 + $0x1f8] sm:$0xff]
    %v3716 = vld [vmem:[%s4 + $0x200] sm:$0xff]
    %v3717 = vld [vmem:[%s4 + $0x208] sm:$0xff]
    %v3718 = vld [vmem:[%s4 + $0x210] sm:$0xff]
    %v3719 = vld [vmem:[%s4 + $0x218] sm:$0xff]
    %v3720 = vld [vmem:[%s4 + $0x220] sm:$0xff]
    %v3721 = vld [vmem:[%s4 + $0x228] sm:$0xff]
    %v3722 = vld [vmem:[%s4 + $0x230] sm:$0xff]
    %v3723 = vld [vmem:[%s4 + $0x238] sm:$0xff]
    %v3724 = vld [vmem:[%s4 + $0x240] sm:$0xff]
    %v3725 = vld [vmem:[%s4 + $0x248] sm:$0xff]
    %v3726 = vld [vmem:[%s4 + $0x250] sm:$0xff]
    %v3727 = vld [vmem:[%s4 + $0x258] sm:$0xff]
    %v3728 = vld [vmem:[%s4 + $0x260] sm:$0xff]
    %v3729 = vld [vmem:[%s4 + $0x268] sm:$0xff]
    %v3730 = vld [vmem:[%s4 + $0x270] sm:$0xff]
    %v3731 = vld [vmem:[%s4 + $0x278] sm:$0xff]
    %v3732 = vld [vmem:[%s4 + $0x280] sm:$0xff]
    %v3733 = vld [vmem:[%s4 + $0x288] sm:$0xff]
    %v3734 = vld [vmem:[%s4 + $0x290] sm:$0xff]
    %v3735 = vld [vmem:[%s4 + $0x298] sm:$0xff]
    %v3736 = vld [vmem:[%s4 + $0x2a0] sm:$0xff]
    %v3737 = vld [vmem:[%s4 + $0x2a8] sm:$0xff]
    %v3738 = vld [vmem:[%s4 + $0x2b0] sm:$0xff]
    %v3739 = vld [vmem:[%s4 + $0x2b8] sm:$0xff]
    %v3740 = vld [vmem:[%s4 + $0x2c0] sm:$0xff]
    %v3741 = vld [vmem:[%s4 + $0x2c8] sm:$0xff]
    %v3742 = vld [vmem:[%s4 + $0x2d0] sm:$0xff]
    %v3743 = vld [vmem:[%s4 + $0x2d8] sm:$0xff]
    %v3744 = vld [vmem:[%s4 + $0x2e0] sm:$0xff]
    %v3745 = vld [vmem:[%s4 + $0x2e8] sm:$0xff]
    %v3746 = vld [vmem:[%s4 + $0x2f0] sm:$0xff]
    %v3747 = vld [vmem:[%s4 + $0x2f8] sm:$0xff]
    %3748 = vmatprep.subr.mxu0 %v3653
    %3749 = vmatpush1.msra.mxu0 %v3652
    %3750 = vmatprep.subr.mxu0 %v3659
    %3751 = vmatpush1.msra.mxu0 %v3658
    %3752 = vmatprep.subr.mxu0 %v3665
    %3753 = vmatpush1.msra.mxu0 %v3664
    %3754 = vmatprep.subr.mxu0 %v3671
    %3755 = vmatpush1.msra.mxu0 %v3670
    %3756 = vmatprep.subr.mxu0 %v3677
    %3757 = vmatpush1.msra.mxu0 %v3676
    %3758 = vmatprep.subr.mxu0 %v3683
    %3759 = vmatpush1.msra.mxu0 %v3682
    %3760 = vmatprep.subr.mxu0 %v3689
    %3761 = vmatpush1.msra.mxu0 %v3688
    %3762 = vmatprep.subr.mxu0 %v3695
    %3763 = vmatpush1.msra.mxu0 %v3694
    %3764 = vmatprep.subr.mxu0 %v3701
    %3765 = vmatpush1.msra.mxu0 %v3700
    %3766 = vmatprep.subr.mxu0 %v3707
    %3767 = vmatpush1.msra.mxu0 %v3706
    %3768 = vmatprep.subr.mxu0 %v3713
    %3769 = vmatpush1.msra.mxu0 %v3712
    %3770 = vmatprep.subr.mxu0 %v3719
    %3771 = vmatpush1.msra.mxu0 %v3718
    %3772 = vmatprep.subr.mxu0 %v3725
    %3773 = vmatpush1.msra.mxu0 %v3724
    %3774 = vmatprep.subr.mxu0 %v3731
    %3775 = vmatpush1.msra.mxu0 %v3730
    %3776 = vmatprep.subr.mxu0 %v3737
    %3777 = vmatpush1.msra.mxu0 %v3736
    %3778 = vmatprep.subr.mxu0 %v3743
    %3779 = vmatpush1.msra.mxu0 %v3742
    %3780 = vmatprep.subr.mxu0 0.0
    %3781 = vmatpush1.msra.mxu0 0.0
    %3782 = vmatprep.subr.mxu0 0.0
    %3783 = vmatpush1.msra.mxu0 0.0
    %3784 = vmatprep.subr.mxu0 0.0
    %3785 = vmatpush1.msra.mxu0 0.0
    %3786 = vmatprep.subr.mxu0 0.0
    %3787 = vmatpush1.msra.mxu0 0.0
    %3788 = vmatprep.subr.mxu0 0.0
    %3789 = vmatpush1.msra.mxu0 0.0
    %3790 = vmatprep.subr.mxu0 0.0
    %3791 = vmatpush1.msra.mxu0 0.0
    %3792 = vmatprep.subr.mxu0 0.0
    %3793 = vmatpush1.msra.mxu0 0.0
    %3794 = vmatprep.subr.mxu0 0.0
    %3795 = vmatpush1.msra.mxu0 0.0
    %3796 = vmatprep.subr.mxu0 0.0
    %3797 = vmatpush1.msra.mxu0 0.0
    %3798 = vmatprep.subr.mxu0 0.0
    %3799 = vmatpush1.msra.mxu0 0.0
    %3800 = vmatprep.subr.mxu0 0.0
    %3801 = vmatpush1.msra.mxu0 0.0
    %3802 = vmatprep.subr.mxu0 0.0
    %3803 = vmatpush1.msra.mxu0 0.0
    %3804 = vmatprep.subr.mxu0 0.0
    %3805 = vmatpush1.msra.mxu0 0.0
    %3806 = vmatprep.subr.mxu0 0.0
    %3807 = vmatpush1.msra.mxu0 0.0
    %3808 = vmatprep.subr.mxu0 0.0
    %3809 = vmatpush1.msra.mxu0 0.0
    %3810 = vmatprep.subr.mxu0 0.0
    %3811 = vmatpush1.msra.mxu0 0.0
    %3812 = vmatprep.mubr.f32.mxu0 0.0
    %3813 = vmatmul.mubr.f32.gmra.mrb[0].mxu0 %v3629
    %v3814 = vpop.f32.mrb[0].mxu0
    %v3815 = vadd.f32 0.0, %v3814
    %v3816 = vpop.f32.mrb[0].mxu0
    %v3817 = vadd.f32 0.0, %v3816
    %3818 = vdwg.mxu0
    %3819 = vmatprep.subr.mxu0 %v3655
    %3820 = vmatpush1.msra.mxu0 %v3654
    %3821 = vmatprep.subr.mxu0 %v3661
    %3822 = vmatpush1.msra.mxu0 %v3660
    %3823 = vmatprep.subr.mxu0 %v3667
    %3824 = vmatpush1.msra.mxu0 %v3666
    %3825 = vmatprep.subr.mxu0 %v3673
    %3826 = vmatpush1.msra.mxu0 %v3672
    %3827 = vmatprep.subr.mxu0 %v3679
    %3828 = vmatpush1.msra.mxu0 %v3678
    %3829 = vmatprep.subr.mxu0 %v3685
    %3830 = vmatpush1.msra.mxu0 %v3684
    %3831 = vmatprep.subr.mxu0 %v3691
    %3832 = vmatpush1.msra.mxu0 %v3690
    %3833 = vmatprep.subr.mxu0 %v3697
    %3834 = vmatpush1.msra.mxu0 %v3696
    %3835 = vmatprep.subr.mxu0 %v3703
    %3836 = vmatpush1.msra.mxu0 %v3702
    %3837 = vmatprep.subr.mxu0 %v3709
    %3838 = vmatpush1.msra.mxu0 %v3708
    %3839 = vmatprep.subr.mxu0 %v3715
    %3840 = vmatpush1.msra.mxu0 %v3714
    %3841 = vmatprep.subr.mxu0 %v3721
    %3842 = vmatpush1.msra.mxu0 %v3720
    %3843 = vmatprep.subr.mxu0 %v3727
    %3844 = vmatpush1.msra.mxu0 %v3726
    %3845 = vmatprep.subr.mxu0 %v3733
    %3846 = vmatpush1.msra.mxu0 %v3732
    %3847 = vmatprep.subr.mxu0 %v3739
    %3848 = vmatpush1.msra.mxu0 %v3738
    %3849 = vmatprep.subr.mxu0 %v3745
    %3850 = vmatpush1.msra.mxu0 %v3744
    %3851 = vmatprep.subr.mxu0 0.0
    %3852 = vmatpush1.msra.mxu0 0.0
    %3853 = vmatprep.subr.mxu0 0.0
    %3854 = vmatpush1.msra.mxu0 0.0
    %3855 = vmatprep.subr.mxu0 0.0
    %3856 = vmatpush1.msra.mxu0 0.0
    %3857 = vmatprep.subr.mxu0 0.0
    %3858 = vmatpush1.msra.mxu0 0.0
    %3859 = vmatprep.subr.mxu0 0.0
    %3860 = vmatpush1.msra.mxu0 0.0
    %3861 = vmatprep.subr.mxu0 0.0
    %3862 = vmatpush1.msra.mxu0 0.0
    %3863 = vmatprep.subr.mxu0 0.0
    %3864 = vmatpush1.msra.mxu0 0.0
    %3865 = vmatprep.subr.mxu0 0.0
    %3866 = vmatpush1.msra.mxu0 0.0
    %3867 = vmatprep.subr.mxu0 0.0
    %3868 = vmatpush1.msra.mxu0 0.0
    %3869 = vmatprep.subr.mxu0 0.0
    %3870 = vmatpush1.msra.mxu0 0.0
    %3871 = vmatprep.subr.mxu0 0.0
    %3872 = vmatpush1.msra.mxu0 0.0
    %3873 = vmatprep.subr.mxu0 0.0
    %3874 = vmatpush1.msra.mxu0 0.0
    %3875 = vmatprep.subr.mxu0 0.0
    %3876 = vmatpush1.msra.mxu0 0.0
    %3877 = vmatprep.subr.mxu0 0.0
    %3878 = vmatpush1.msra.mxu0 0.0
    %3879 = vmatprep.subr.mxu0 0.0
    %3880 = vmatpush1.msra.mxu0 0.0
    %3881 = vmatprep.subr.mxu0 0.0
    %3882 = vmatpush1.msra.mxu0 0.0
    %3883 = vmatprep.mubr.f32.mxu0 0.0
    %3884 = vmatmul.mubr.f32.gmra.mrb[0].mxu0 %v3629
    %v3885 = vpop.f32.mrb[0].mxu0
    %v3886 = vadd.f32 0.0, %v3885
    %v3887 = vpop.f32.mrb[0].mxu0
    %v3888 = vadd.f32 0.0, %v3887
    %3889 = vdwg.mxu0
    %3890 = vmatprep.subr.mxu0 %v3657
    %3891 = vmatpush1.msra.mxu0 %v3656
    %3892 = vmatprep.subr.mxu0 %v3663
    %3893 = vmatpush1.msra.mxu0 %v3662
    %3894 = vmatprep.subr.mxu0 %v3669
    %3895 = vmatpush1.msra.mxu0 %v3668
    %3896 = vmatprep.subr.mxu0 %v3675
    %3897 = vmatpush1.msra.mxu0 %v3674
    %3898 = vmatprep.subr.mxu0 %v3681
    %3899 = vmatpush1.msra.mxu0 %v3680
    %3900 = vmatprep.subr.mxu0 %v3687
    %3901 = vmatpush1.msra.mxu0 %v3686
    %3902 = vmatprep.subr.mxu0 %v3693
    %3903 = vmatpush1.msra.mxu0 %v3692
    %3904 = vmatprep.subr.mxu0 %v3699
    %3905 = vmatpush1.msra.mxu0 %v3698
    %3906 = vmatprep.subr.mxu0 %v3705
    %3907 = vmatpush1.msra.mxu0 %v3704
    %3908 = vmatprep.subr.mxu0 %v3711
    %3909 = vmatpush1.msra.mxu0 %v3710
    %3910 = vmatprep.subr.mxu0 %v3717
    %3911 = vmatpush1.msra.mxu0 %v3716
    %3912 = vmatprep.subr.mxu0 %v3723
    %3913 = vmatpush1.msra.mxu0 %v3722
    %3914 = vmatprep.subr.mxu0 %v3729
    %3915 = vmatpush1.msra.mxu0 %v3728
    %3916 = vmatprep.subr.mxu0 %v3735
    %3917 = vmatpush1.msra.mxu0 %v3734
    %3918 = vmatprep.subr.mxu0 %v3741
    %3919 = vmatpush1.msra.mxu0 %v3740
    %3920 = vmatprep.subr.mxu0 %v3747
    %3921 = vmatpush1.msra.mxu0 %v3746
    %3922 = vmatprep.subr.mxu0 0.0
    %3923 = vmatpush1.msra.mxu0 0.0
    %3924 = vmatprep.subr.mxu0 0.0
    %3925 = vmatpush1.msra.mxu0 0.0
    %3926 = vmatprep.subr.mxu0 0.0
    %3927 = vmatpush1.msra.mxu0 0.0
    %3928 = vmatprep.subr.mxu0 0.0
    %3929 = vmatpush1.msra.mxu0 0.0
    %3930 = vmatprep.subr.mxu0 0.0
    %3931 = vmatpush1.msra.mxu0 0.0
    %3932 = vmatprep.subr.mxu0 0.0
    %3933 = vmatpush1.msra.mxu0 0.0
    %3934 = vmatprep.subr.mxu0 0.0
    %3935 = vmatpush1.msra.mxu0 0.0
    %3936 = vmatprep.subr.mxu0 0.0
    %3937 = vmatpush1.msra.mxu0 0.0
    %3938 = vmatprep.subr.mxu0 0.0
    %3939 = vmatpush1.msra.mxu0 0.0
    %3940 = vmatprep.subr.mxu0 0.0
    %3941 = vmatpush1.msra.mxu0 0.0
    %3942 = vmatprep.subr.mxu0 0.0
    %3943 = vmatpush1.msra.mxu0 0.0
    %3944 = vmatprep.subr.mxu0 0.0
    %3945 = vmatpush1.msra.mxu0 0.0
    %3946 = vmatprep.subr.mxu0 0.0
    %3947 = vmatpush1.msra.mxu0 0.0
    %3948 = vmatprep.subr.mxu0 0.0
    %3949 = vmatpush1.msra.mxu0 0.0
    %3950 = vmatprep.subr.mxu0 0.0
    %3951 = vmatpush1.msra.mxu0 0.0
    %3952 = vmatprep.subr.mxu0 0.0
    %3953 = vmatpush1.msra.mxu0 0.0
    %3954 = vmatprep.mubr.f32.mxu0 0.0
    %3955 = vmatmul.mubr.f32.gmra.mrb[0].mxu0 %v3629
    %v3956 = vpop.f32.mrb[0].mxu0
    %v3957 = vadd.f32 0.0, %v3956
    %v3958 = vpop.f32.mrb[0].mxu0
    %v3959 = vadd.f32 0.0, %v3958
    %3960 = vdwg.mxu0
    %v3961 = vld [vmem:[%s5 + $0x1] sm:$0x1]
    %v3963 = vlaneseq
    %v3964 = vshrl.u32 %v3963, 7
    %v3965 = vsub.s32 0, %v3964
    %v3966 = vrot.slane %v3961, %v3965
    %v3968 = vadd.f32 %v3959, %v3966
    %s3969 = scalar_lea.vmem %s6, 8
    %3970 = vst [vmem:[%s3969] sm:$0x3] %v3968
    %v3971 = vld [vmem:[%s0] sm:$0xff]
    %v3972 = vld [vmem:[%s0 + $0x8] sm:$0xff]
    %v3973 = vld [vmem:[%s0 + $0x10] sm:$0xff]
    %v3974 = vld [vmem:[%s0 + $0x18] sm:$0xff]
    %v3977 = vunpack.c.l.s4 1966171168
    %v3978 = vunpack.c.0.s8 %v3977
    %v3979 = vlaneseq
    %v3980 = vshrl.u32 %v3979, 7
    %v3981 = vsub.s32 %v3978, %v3980
    %v3982 = vrot.slane %v3815, %v3981
    %v3983 = vcombine.high %v3982, %v3982
    %v3985 = vunpack.c.l.s4 1966171168
    %v3986 = vunpack.c.0.s8 %v3985
    %v3987 = vlaneseq
    %v3988 = vshrl.u32 %v3987, 7
    %v3989 = vsub.s32 %v3986, %v3988
    %v3990 = vrot.slane %v3982, %v3989
    %v3992 = vunpack.c.l.s4 1966171168
    %v3993 = vunpack.c.0.s8 %v3992
    %v3994 = vlaneseq
    %v3995 = vshrl.u32 %v3994, 7
    %v3996 = vsub.s32 %v3993, %v3995
    %v3997 = vrot.slane %v3983, %v3996
    %v3998 = vlaneseq
    %v3999 = vshrl.u32 %v3998, 7
    %v4000 = vsub.s32 0, %v3999
    %v4001 = vrot.slane %v3990, %v4000
    %v4002 = vlaneseq
    %v4003 = vshrl.u32 %v4002, 7
    %v4004 = vsub.s32 0, %v4003
    %v4005 = vrot.slane %v3997, %v4004
    %v4008 = vadd.f32 %v3971, %v4001
    %v4009 = vadd.f32 %v3972, %v4001
    %v4010 = vadd.f32 %v3973, %v4005
    %v4011 = vadd.f32 %v3974, %v4005
    %v4012 = vtanh.pop %v4008
    %v4013 = vtanh.pop %v4009
    %v4014 = vtanh.pop %v4010
    %v4015 = vtanh.pop %v4011
    %v4016 = vld [vmem:[%s5] sm:$0x1]
    %v4018 = vlaneseq
    %v4019 = vshrl.u32 %v4018, 7
    %v4020 = vsub.s32 0, %v4019
    %v4021 = vrot.slane %v4016, %v4020
    %v4023 = vmul.f32 %v4012, %v4021
    %v4024 = vmul.f32 %v4013, %v4021
    %v4025 = vmul.f32 %v4014, %v4021
    %v4026 = vmul.f32 %v4015, %v4021
    %4027 = vadd.xlane.f32.xlu0 %v4023
    %v4028 = vpop.xlane.xlu0 %4027
    %4029 = vadd.xlane.f32.xlu0 %v4024
    %v4030 = vpop.xlane.xlu0 %4029
    %4031 = vadd.xlane.f32.xlu0 %v4025
    %v4032 = vpop.xlane.xlu0 %4031
    %4033 = vadd.xlane.f32.xlu0 %v4026
    %v4034 = vpop.xlane.xlu0 %4033
    %v4039 = vlaneseq
    %v4040 = vshrl.u32 %v4039, 7
    %v4041 = vsub.s32 %v404, %v4040
    %v4042 = vrot.slane %v4028, %v4041
    %v4043 = vlaneseq
    %v4044 = vshrl.u32 %v4043, 7
    %v4045 = vsub.s32 %v409, %v4044
    %v4046 = vrot.slane %v4030, %v4045
    %v4047 = vsel %vm414, %v4046, %v4042
    %v4048 = vlaneseq
    %v4049 = vshrl.u32 %v4048, 7
    %v4050 = vsub.s32 %v404, %v4049
    %v4051 = vrot.slane %v4032, %v4050
    %v4052 = vlaneseq
    %v4053 = vshrl.u32 %v4052, 7
    %v4054 = vsub.s32 %v409, %v4053
    %v4055 = vrot.slane %v4034, %v4054
    %v4056 = vsel %vm414, %v4055, %v4051
    %v4057 = vsel %vm425, %v4056, %v4047
    %v4059 = vsel %vm428, %v4057, -inf
    %4060 = vmax.xlane.f32.xlu0 %v4059
    %v4061 = vpop.xlane.xlu0 %4060
    %v4063 = vlaneseq
    %v4064 = vshrl.u32 %v4063, 7
    %v4065 = vsub.s32 0, %v4064
    %v4066 = vrot.slane %v4061, %v4065
    %v4067 = vlaneseq
    %v4068 = vshrl.u32 %v4067, 7
    %v4069 = vsub.s32 1, %v4068
    %v4070 = vrot.slane %v4061, %v4069
    %v4073 = vsub.f32 %v4028, %v4066
    %v4074 = vsub.f32 %v4030, %v4066
    %v4075 = vsub.f32 %v4032, %v4070
    %v4076 = vsub.f32 %v4034, %v4070
    %v4077 = vmul.f32 %v4073, 1.442695
    %v4078 = vpow.pop %v4077
    %v4079 = vmul.f32 %v4074, 1.442695
    %v4080 = vpow.pop %v4079
    %v4081 = vmul.f32 %v4075, 1.442695
    %v4082 = vpow.pop %v4081
    %v4083 = vmul.f32 %v4076, 1.442695
    %v4084 = vpow.pop %v4083
    %4089 = vset.pattern.permute.xlu0 0
    %4090 = vperm.xlu0 %4089, %v4078
    %v4091 = vpop.permute.xlu0 %4090
    %4092 = vset.pattern.permute.xlu0 0
    %4093 = vperm.xlu0 %4092, %v4080
    %v4094 = vpop.permute.xlu0 %4093
    %4095 = vset.pattern.permute.xlu0 0
    %4096 = vperm.xlu0 %4095, %v4082
    %v4097 = vpop.permute.xlu0 %4096
    %4098 = vset.pattern.permute.xlu0 0
    %4099 = vperm.xlu0 %4098, %v4084
    %v4100 = vpop.permute.xlu0 %4099
    %v4101 = vlaneseq
    %v4102 = vshrl.u32 %v4101, 7
    %v4103 = vsub.s32 %v404, %v4102
    %v4104 = vrot.slane %v4091, %v4103
    %v4105 = vlaneseq
    %v4106 = vshrl.u32 %v4105, 7
    %v4107 = vsub.s32 %v409, %v4106
    %v4108 = vrot.slane %v4094, %v4107
    %v4109 = vsel %vm414, %v4108, %v4104
    %v4110 = vlaneseq
    %v4111 = vshrl.u32 %v4110, 7
    %v4112 = vsub.s32 %v404, %v4111
    %v4113 = vrot.slane %v4097, %v4112
    %v4114 = vlaneseq
    %v4115 = vshrl.u32 %v4114, 7
    %v4116 = vsub.s32 %v409, %v4115
    %v4117 = vrot.slane %v4100, %v4116
    %v4118 = vsel %vm414, %v4117, %v4113
    %v4119 = vsel %vm425, %v4118, %v4109
    %v4121 = vsel %vm428, %v4119, 0.0
    %4122 = vadd.xlane.f32.xlu0 %v4121
    %v4123 = vpop.xlane.xlu0 %4122
    %v4124 = vrcp.pop %v4123
    %v4126 = vlaneseq
    %v4127 = vshrl.u32 %v4126, 7
    %v4128 = vsub.s32 0, %v4127
    %v4129 = vrot.slane %v4124, %v4128
    %v4130 = vlaneseq
    %v4131 = vshrl.u32 %v4130, 7
    %v4132 = vsub.s32 1, %v4131
    %v4133 = vrot.slane %v4124, %v4132
    %v4136 = vmul.f32 %v4078, %v4129
    %v4137 = vmul.f32 %v4080, %v4129
    %v4138 = vmul.f32 %v4082, %v4133
    %v4139 = vmul.f32 %v4084, %v4133
    %v4140 = vld [vmem:[%s1] sm:$0xff]
    %v4141 = vld [vmem:[%s1 + $0x8] sm:$0xff]
    %v4142 = vld [vmem:[%s1 + $0x10] sm:$0xff]
    %v4143 = vld [vmem:[%s1 + $0x18] sm:$0xff]
    %v4144 = vld [vmem:[%s1 + $0x20] sm:$0xff]
    %v4145 = vld [vmem:[%s1 + $0x28] sm:$0xff]
    %v4146 = vld [vmem:[%s1 + $0x30] sm:$0xff]
    %v4147 = vld [vmem:[%s1 + $0x38] sm:$0xff]
    %v4148 = vld [vmem:[%s1 + $0x40] sm:$0xff]
    %v4149 = vld [vmem:[%s1 + $0x48] sm:$0xff]
    %v4150 = vld [vmem:[%s1 + $0x50] sm:$0xff]
    %v4151 = vld [vmem:[%s1 + $0x58] sm:$0xff]
    %v4152 = vld [vmem:[%s1 + $0x60] sm:$0xff]
    %v4153 = vld [vmem:[%s1 + $0x68] sm:$0xff]
    %v4154 = vld [vmem:[%s1 + $0x70] sm:$0xff]
    %v4155 = vld [vmem:[%s1 + $0x78] sm:$0xff]
    %4157 = vset.pattern.permute.xlu0 0
    %4158 = vperm.xlu0 %4157, %v4136
    %v4159 = vpop.permute.xlu0 %4158
    %4162 = vset.pattern.permute.xlu0 0
    %4163 = vperm.xlu0 %4162, %v4137
    %v4164 = vpop.permute.xlu0 %4163
    %4167 = vset.pattern.permute.xlu0 0
    %4168 = vperm.xlu0 %4167, %v4138
    %v4169 = vpop.permute.xlu0 %4168
    %4172 = vset.pattern.permute.xlu0 0
    %4173 = vperm.xlu0 %4172, %v4139
    %v4174 = vpop.permute.xlu0 %4173
    %v4176 = vmul.f32 %v4159, %v4140
    %v4177 = vmul.f32 %v4159, %v4141
    %v4178 = vmul.f32 %v4159, %v4142
    %v4179 = vmul.f32 %v4159, %v4143
    %v4180 = vmul.f32 %v4164, %v4144
    %v4181 = vmul.f32 %v4164, %v4145
    %v4182 = vmul.f32 %v4164, %v4146
    %v4183 = vmul.f32 %v4164, %v4147
    %v4184 = vmul.f32 %v4169, %v4148
    %v4185 = vmul.f32 %v4169, %v4149
    %v4186 = vmul.f32 %v4169, %v4150
    %v4187 = vmul.f32 %v4169, %v4151
    %v4188 = vmul.f32 %v4174, %v4152
    %v4189 = vmul.f32 %v4174, %v4153
    %v4190 = vmul.f32 %v4174, %v4154
    %v4191 = vmul.f32 %v4174, %v4155
    %v4192 = vadd.f32 %v4176, %v4180
    %v4193 = vrot.slane %v4192, 4
    %v4194 = vadd.f32 %v4192, %v4193
    %v4195 = vrot.slane %v4194, 2
    %v4196 = vadd.f32 %v4194, %v4195
    %v4197 = vrot.slane %v4196, 1
    %v4198 = vadd.f32 %v4196, %v4197
    %v4199 = vadd.f32 %v4177, %v4181
    %v4200 = vrot.slane %v4199, 4
    %v4201 = vadd.f32 %v4199, %v4200
    %v4202 = vrot.slane %v4201, 2
    %v4203 = vadd.f32 %v4201, %v4202
    %v4204 = vrot.slane %v4203, 1
    %v4205 = vadd.f32 %v4203, %v4204
    %v4206 = vadd.f32 %v4178, %v4182
    %v4207 = vrot.slane %v4206, 4
    %v4208 = vadd.f32 %v4206, %v4207
    %v4209 = vrot.slane %v4208, 2
    %v4210 = vadd.f32 %v4208, %v4209
    %v4211 = vrot.slane %v4210, 1
    %v4212 = vadd.f32 %v4210, %v4211
    %v4213 = vadd.f32 %v4179, %v4183
    %v4214 = vrot.slane %v4213, 4
    %v4215 = vadd.f32 %v4213, %v4214
    %v4216 = vrot.slane %v4215, 2
    %v4217 = vadd.f32 %v4215, %v4216
    %v4218 = vrot.slane %v4217, 1
    %v4219 = vadd.f32 %v4217, %v4218
    %v4220 = vadd.f32 %v4184, %v4188
    %v4221 = vrot.slane %v4220, 4
    %v4222 = vadd.f32 %v4220, %v4221
    %v4223 = vrot.slane %v4222, 2
    %v4224 = vadd.f32 %v4222, %v4223
    %v4225 = vrot.slane %v4224, 1
    %v4226 = vadd.f32 %v4224, %v4225
    %v4227 = vadd.f32 %v4185, %v4189
    %v4228 = vrot.slane %v4227, 4
    %v4229 = vadd.f32 %v4227, %v4228
    %v4230 = vrot.slane %v4229, 2
    %v4231 = vadd.f32 %v4229, %v4230
    %v4232 = vrot.slane %v4231, 1
    %v4233 = vadd.f32 %v4231, %v4232
    %v4234 = vadd.f32 %v4186, %v4190
    %v4235 = vrot.slane %v4234, 4
    %v4236 = vadd.f32 %v4234, %v4235
    %v4237 = vrot.slane %v4236, 2
    %v4238 = vadd.f32 %v4236, %v4237
    %v4239 = vrot.slane %v4238, 1
    %v4240 = vadd.f32 %v4238, %v4239
    %v4241 = vadd.f32 %v4187, %v4191
    %v4242 = vrot.slane %v4241, 4
    %v4243 = vadd.f32 %v4241, %v4242
    %v4244 = vrot.slane %v4243, 2
    %v4245 = vadd.f32 %v4243, %v4244
    %v4246 = vrot.slane %v4245, 1
    %v4247 = vadd.f32 %v4245, %v4246
    %s4248 = scalar_lea.vmem %s2, 40
    %v4249 = vld [vmem:[%s4248] sm:$0xff]
    %v4258 = vcombine.low %v4198, %v4205
    %v4259 = vcombine.low %v4212, %v4219
    %v4261 = vunpack.c.l.s4 1983009808
    %v4262 = vunpack.c.0.s8 %v4261
    %v4263 = vlaneseq
    %v4264 = vshrl.u32 %v4263, 7
    %v4265 = vsub.s32 %v4262, %v4264
    %v4266 = vrot.slane %v4258, %v4265
    %v4268 = vunpack.c.l.s4 1983009808
    %v4269 = vunpack.c.0.s8 %v4268
    %v4270 = vlaneseq
    %v4271 = vshrl.u32 %v4270, 7
    %v4272 = vsub.s32 %v4269, %v4271
    %v4273 = vrot.slane %v4259, %v4272
    %v4274 = vcombine.low %v4266, %v4273
    %v4275 = vcombine.low %v4226, %v4233
    %v4276 = vcombine.low %v4240, %v4247
    %v4278 = vunpack.c.l.s4 1983009808
    %v4279 = vunpack.c.0.s8 %v4278
    %v4280 = vlaneseq
    %v4281 = vshrl.u32 %v4280, 7
    %v4282 = vsub.s32 %v4279, %v4281
    %v4283 = vrot.slane %v4275, %v4282
    %v4285 = vunpack.c.l.s4 1983009808
    %v4286 = vunpack.c.0.s8 %v4285
    %v4287 = vlaneseq
    %v4288 = vshrl.u32 %v4287, 7
    %v4289 = vsub.s32 %v4286, %v4288
    %v4290 = vrot.slane %v4276, %v4289
    %v4291 = vcombine.low %v4283, %v4290
    %v4292 = vsel %vm661, %v4274, %v4274
    %v4293 = vsel %vm663, %v4274, %v4292
    %v4294 = vrot.slane %v4291, 7
    %v4295 = vsel %vm425, %v4294, %v4293
    %v4296 = vsel %vm667, %v4294, %v4295
    %v4297 = vsel %vm669, %v4294, %v4296
    %v4298 = vsel %vm671, %v4294, %v4297
    %v4300 = vadd.f32 %v4249, %v4298
    %v4305 = vcombine.low %v3817, %v3886
    %v4306 = vcombine.low %v3888, %v3957
    %v4308 = vunpack.c.l.s4 1983009808
    %v4309 = vunpack.c.0.s8 %v4308
    %v4310 = vlaneseq
    %v4311 = vshrl.u32 %v4310, 7
    %v4312 = vsub.s32 %v4309, %v4311
    %v4313 = vrot.slane %v4305, %v4312
    %v4315 = vunpack.c.l.s4 1983009808
    %v4316 = vunpack.c.0.s8 %v4315
    %v4317 = vlaneseq
    %v4318 = vshrl.u32 %v4317, 7
    %v4319 = vsub.s32 %v4316, %v4318
    %v4320 = vrot.slane %v4306, %v4319
    %v4321 = vcombine.low %v4313, %v4320
    %v4323 = vadd.f32 %v4300, %v4321
    %v4324 = vxor.u32 %v4323, 2147483648
    %v4325 = vmul.f32 %v4324, 1.442695
    %v4326 = vpow.pop %v4325
    %v4327 = vadd.f32 %v4326, 1.0
    %v4328 = vrcp.pop %v4327
    %v4329 = vmul.f32 1.0, %v4328
    %v4331 = vrot.slane %v4323, 2
    %v4333 = vxor.u32 %v4331, 2147483648
    %v4334 = vmul.f32 %v4333, 1.442695
    %v4335 = vpow.pop %v4334
    %v4336 = vadd.f32 %v4335, 1.0
    %v4337 = vrcp.pop %v4336
    %v4338 = vmul.f32 1.0, %v4337
    %v4339 = vrot.slane %v4323, 4
    %v4341 = vtanh.pop %v4339
    %v4342 = vrot.slane %v4323, 6
    %v4344 = vxor.u32 %v4342, 2147483648
    %v4345 = vmul.f32 %v4344, 1.442695
    %v4346 = vpow.pop %v4345
    %v4347 = vadd.f32 %v4346, 1.0
    %v4348 = vrcp.pop %v4347
    %v4349 = vmul.f32 1.0, %v4348
    %v4350 = vmul.f32 %v4338, %v3627
    %v4351 = vmul.f32 %v4329, %v4341
    %v4352 = vadd.f32 %v4350, %v4351
    %v4353 = vtanh.pop %v4352
    %v4354 = vmul.f32 %v4349, %v4353
    %v4355 = vlaneseq
    %v4356 = vshrl.u32 %v4355, 7
    %v4357 = vsub.s32 %v404, %v4356
    %v4358 = vrot.slane %v4159, %v4357
    %v4359 = vlaneseq
    %v4360 = vshrl.u32 %v4359, 7
    %v4361 = vsub.s32 %v409, %v4360
    %v4362 = vrot.slane %v4164, %v4361
    %v4363 = vsel %vm414, %v4362, %v4358
    %v4364 = vlaneseq
    %v4365 = vshrl.u32 %v4364, 7
    %v4366 = vsub.s32 %v404, %v4365
    %v4367 = vrot.slane %v4169, %v4366
    %v4368 = vlaneseq
    %v4369 = vshrl.u32 %v4368, 7
    %v4370 = vsub.s32 %v409, %v4369
    %v4371 = vrot.slane %v4174, %v4370
    %v4372 = vsel %vm414, %v4371, %v4367
    %v4373 = vsel %vm425, %v4372, %v4363
    %s4375 = scalar_lea.vmem [#allocation2], 10
    %4376 = vst.msk [vmem:[%s4375] sm:$0x3] %vm428, %v4373
    %v4377 = vld [vmem:[%s4] sm:$0xff]
    %v4378 = vld [vmem:[%s4 + $0x8] sm:$0xff]
    %v4379 = vld [vmem:[%s4 + $0x10] sm:$0xff]
    %v4380 = vld [vmem:[%s4 + $0x18] sm:$0xff]
    %v4381 = vld [vmem:[%s4 + $0x20] sm:$0xff]
    %v4382 = vld [vmem:[%s4 + $0x28] sm:$0xff]
    %v4383 = vld [vmem:[%s4 + $0x30] sm:$0xff]
    %v4384 = vld [vmem:[%s4 + $0x38] sm:$0xff]
    %v4385 = vld [vmem:[%s4 + $0x40] sm:$0xff]
    %v4386 = vld [vmem:[%s4 + $0x48] sm:$0xff]
    %v4387 = vld [vmem:[%s4 + $0x50] sm:$0xff]
    %v4388 = vld [vmem:[%s4 + $0x58] sm:$0xff]
    %v4389 = vld [vmem:[%s4 + $0x60] sm:$0xff]
    %v4390 = vld [vmem:[%s4 + $0x68] sm:$0xff]
    %v4391 = vld [vmem:[%s4 + $0x70] sm:$0xff]
    %v4392 = vld [vmem:[%s4 + $0x78] sm:$0xff]
    %v4393 = vld [vmem:[%s4 + $0x80] sm:$0xff]
    %v4394 = vld [vmem:[%s4 + $0x88] sm:$0xff]
    %v4395 = vld [vmem:[%s4 + $0x90] sm:$0xff]
    %v4396 = vld [vmem:[%s4 + $0x98] sm:$0xff]
    %v4397 = vld [vmem:[%s4 + $0xa0] sm:$0xff]
    %v4398 = vld [vmem:[%s4 + $0xa8] sm:$0xff]
    %v4399 = vld [vmem:[%s4 + $0xb0] sm:$0xff]
    %v4400 = vld [vmem:[%s4 + $0xb8] sm:$0xff]
    %v4401 = vld [vmem:[%s4 + $0xc0] sm:$0xff]
    %v4402 = vld [vmem:[%s4 + $0xc8] sm:$0xff]
    %v4403 = vld [vmem:[%s4 + $0xd0] sm:$0xff]
    %v4404 = vld [vmem:[%s4 + $0xd8] sm:$0xff]
    %v4405 = vld [vmem:[%s4 + $0xe0] sm:$0xff]
    %v4406 = vld [vmem:[%s4 + $0xe8] sm:$0xff]
    %v4407 = vld [vmem:[%s4 + $0xf0] sm:$0xff]
    %v4408 = vld [vmem:[%s4 + $0xf8] sm:$0xff]
    %v4409 = vld [vmem:[%s4 + $0x100] sm:$0xff]
    %v4410 = vld [vmem:[%s4 + $0x108] sm:$0xff]
    %v4411 = vld [vmem:[%s4 + $0x110] sm:$0xff]
    %v4412 = vld [vmem:[%s4 + $0x118] sm:$0xff]
    %v4413 = vld [vmem:[%s4 + $0x120] sm:$0xff]
    %v4414 = vld [vmem:[%s4 + $0x128] sm:$0xff]
    %v4415 = vld [vmem:[%s4 + $0x130] sm:$0xff]
    %v4416 = vld [vmem:[%s4 + $0x138] sm:$0xff]
    %v4417 = vld [vmem:[%s4 + $0x140] sm:$0xff]
    %v4418 = vld [vmem:[%s4 + $0x148] sm:$0xff]
    %v4419 = vld [vmem:[%s4 + $0x150] sm:$0xff]
    %v4420 = vld [vmem:[%s4 + $0x158] sm:$0xff]
    %v4421 = vld [vmem:[%s4 + $0x160] sm:$0xff]
    %v4422 = vld [vmem:[%s4 + $0x168] sm:$0xff]
    %v4423 = vld [vmem:[%s4 + $0x170] sm:$0xff]
    %v4424 = vld [vmem:[%s4 + $0x178] sm:$0xff]
    %v4425 = vld [vmem:[%s4 + $0x180] sm:$0xff]
    %v4426 = vld [vmem:[%s4 + $0x188] sm:$0xff]
    %v4427 = vld [vmem:[%s4 + $0x190] sm:$0xff]
    %v4428 = vld [vmem:[%s4 + $0x198] sm:$0xff]
    %v4429 = vld [vmem:[%s4 + $0x1a0] sm:$0xff]
    %v4430 = vld [vmem:[%s4 + $0x1a8] sm:$0xff]
    %v4431 = vld [vmem:[%s4 + $0x1b0] sm:$0xff]
    %v4432 = vld [vmem:[%s4 + $0x1b8] sm:$0xff]
    %v4433 = vld [vmem:[%s4 + $0x1c0] sm:$0xff]
    %v4434 = vld [vmem:[%s4 + $0x1c8] sm:$0xff]
    %v4435 = vld [vmem:[%s4 + $0x1d0] sm:$0xff]
    %v4436 = vld [vmem:[%s4 + $0x1d8] sm:$0xff]
    %v4437 = vld [vmem:[%s4 + $0x1e0] sm:$0xff]
    %v4438 = vld [vmem:[%s4 + $0x1e8] sm:$0xff]
    %v4439 = vld [vmem:[%s4 + $0x1f0] sm:$0xff]
    %v4440 = vld [vmem:[%s4 + $0x1f8] sm:$0xff]
    %v4441 = vld [vmem:[%s4 + $0x200] sm:$0xff]
    %v4442 = vld [vmem:[%s4 + $0x208] sm:$0xff]
    %v4443 = vld [vmem:[%s4 + $0x210] sm:$0xff]
    %v4444 = vld [vmem:[%s4 + $0x218] sm:$0xff]
    %v4445 = vld [vmem:[%s4 + $0x220] sm:$0xff]
    %v4446 = vld [vmem:[%s4 + $0x228] sm:$0xff]
    %v4447 = vld [vmem:[%s4 + $0x230] sm:$0xff]
    %v4448 = vld [vmem:[%s4 + $0x238] sm:$0xff]
    %v4449 = vld [vmem:[%s4 + $0x240] sm:$0xff]
    %v4450 = vld [vmem:[%s4 + $0x248] sm:$0xff]
    %v4451 = vld [vmem:[%s4 + $0x250] sm:$0xff]
    %v4452 = vld [vmem:[%s4 + $0x258] sm:$0xff]
    %v4453 = vld [vmem:[%s4 + $0x260] sm:$0xff]
    %v4454 = vld [vmem:[%s4 + $0x268] sm:$0xff]
    %v4455 = vld [vmem:[%s4 + $0x270] sm:$0xff]
    %v4456 = vld [vmem:[%s4 + $0x278] sm:$0xff]
    %v4457 = vld [vmem:[%s4 + $0x280] sm:$0xff]
    %v4458 = vld [vmem:[%s4 + $0x288] sm:$0xff]
    %v4459 = vld [vmem:[%s4 + $0x290] sm:$0xff]
    %v4460 = vld [vmem:[%s4 + $0x298] sm:$0xff]
    %v4461 = vld [vmem:[%s4 + $0x2a0] sm:$0xff]
    %v4462 = vld [vmem:[%s4 + $0x2a8] sm:$0xff]
    %v4463 = vld [vmem:[%s4 + $0x2b0] sm:$0xff]
    %v4464 = vld [vmem:[%s4 + $0x2b8] sm:$0xff]
    %v4465 = vld [vmem:[%s4 + $0x2c0] sm:$0xff]
    %v4466 = vld [vmem:[%s4 + $0x2c8] sm:$0xff]
    %v4467 = vld [vmem:[%s4 + $0x2d0] sm:$0xff]
    %v4468 = vld [vmem:[%s4 + $0x2d8] sm:$0xff]
    %v4469 = vld [vmem:[%s4 + $0x2e0] sm:$0xff]
    %v4470 = vld [vmem:[%s4 + $0x2e8] sm:$0xff]
    %v4471 = vld [vmem:[%s4 + $0x2f0] sm:$0xff]
    %v4472 = vld [vmem:[%s4 + $0x2f8] sm:$0xff]
    %4473 = vmatprep.subr.mxu0 %v4378
    %4474 = vmatpush1.msra.mxu0 %v4377
    %4475 = vmatprep.subr.mxu0 %v4384
    %4476 = vmatpush1.msra.mxu0 %v4383
    %4477 = vmatprep.subr.mxu0 %v4390
    %4478 = vmatpush1.msra.mxu0 %v4389
    %4479 = vmatprep.subr.mxu0 %v4396
    %4480 = vmatpush1.msra.mxu0 %v4395
    %4481 = vmatprep.subr.mxu0 %v4402
    %4482 = vmatpush1.msra.mxu0 %v4401
    %4483 = vmatprep.subr.mxu0 %v4408
    %4484 = vmatpush1.msra.mxu0 %v4407
    %4485 = vmatprep.subr.mxu0 %v4414
    %4486 = vmatpush1.msra.mxu0 %v4413
    %4487 = vmatprep.subr.mxu0 %v4420
    %4488 = vmatpush1.msra.mxu0 %v4419
    %4489 = vmatprep.subr.mxu0 %v4426
    %4490 = vmatpush1.msra.mxu0 %v4425
    %4491 = vmatprep.subr.mxu0 %v4432
    %4492 = vmatpush1.msra.mxu0 %v4431
    %4493 = vmatprep.subr.mxu0 %v4438
    %4494 = vmatpush1.msra.mxu0 %v4437
    %4495 = vmatprep.subr.mxu0 %v4444
    %4496 = vmatpush1.msra.mxu0 %v4443
    %4497 = vmatprep.subr.mxu0 %v4450
    %4498 = vmatpush1.msra.mxu0 %v4449
    %4499 = vmatprep.subr.mxu0 %v4456
    %4500 = vmatpush1.msra.mxu0 %v4455
    %4501 = vmatprep.subr.mxu0 %v4462
    %4502 = vmatpush1.msra.mxu0 %v4461
    %4503 = vmatprep.subr.mxu0 %v4468
    %4504 = vmatpush1.msra.mxu0 %v4467
    %4505 = vmatprep.subr.mxu0 0.0
    %4506 = vmatpush1.msra.mxu0 0.0
    %4507 = vmatprep.subr.mxu0 0.0
    %4508 = vmatpush1.msra.mxu0 0.0
    %4509 = vmatprep.subr.mxu0 0.0
    %4510 = vmatpush1.msra.mxu0 0.0
    %4511 = vmatprep.subr.mxu0 0.0
    %4512 = vmatpush1.msra.mxu0 0.0
    %4513 = vmatprep.subr.mxu0 0.0
    %4514 = vmatpush1.msra.mxu0 0.0
    %4515 = vmatprep.subr.mxu0 0.0
    %4516 = vmatpush1.msra.mxu0 0.0
    %4517 = vmatprep.subr.mxu0 0.0
    %4518 = vmatpush1.msra.mxu0 0.0
    %4519 = vmatprep.subr.mxu0 0.0
    %4520 = vmatpush1.msra.mxu0 0.0
    %4521 = vmatprep.subr.mxu0 0.0
    %4522 = vmatpush1.msra.mxu0 0.0
    %4523 = vmatprep.subr.mxu0 0.0
    %4524 = vmatpush1.msra.mxu0 0.0
    %4525 = vmatprep.subr.mxu0 0.0
    %4526 = vmatpush1.msra.mxu0 0.0
    %4527 = vmatprep.subr.mxu0 0.0
    %4528 = vmatpush1.msra.mxu0 0.0
    %4529 = vmatprep.subr.mxu0 0.0
    %4530 = vmatpush1.msra.mxu0 0.0
    %4531 = vmatprep.subr.mxu0 0.0
    %4532 = vmatpush1.msra.mxu0 0.0
    %4533 = vmatprep.subr.mxu0 0.0
    %4534 = vmatpush1.msra.mxu0 0.0
    %4535 = vmatprep.subr.mxu0 0.0
    %4536 = vmatpush1.msra.mxu0 0.0
    %4537 = vmatprep.mubr.f32.mxu0 0.0
    %4538 = vmatmul.mubr.f32.gmra.mrb[0].mxu0 %v4354
    %v4539 = vpop.f32.mrb[0].mxu0
    %v4540 = vadd.f32 0.0, %v4539
    %v4541 = vpop.f32.mrb[0].mxu0
    %v4542 = vadd.f32 0.0, %v4541
    %4543 = vdwg.mxu0
    %4544 = vmatprep.subr.mxu0 %v4380
    %4545 = vmatpush1.msra.mxu0 %v4379
    %4546 = vmatprep.subr.mxu0 %v4386
    %4547 = vmatpush1.msra.mxu0 %v4385
    %4548 = vmatprep.subr.mxu0 %v4392
    %4549 = vmatpush1.msra.mxu0 %v4391
    %4550 = vmatprep.subr.mxu0 %v4398
    %4551 = vmatpush1.msra.mxu0 %v4397
    %4552 = vmatprep.subr.mxu0 %v4404
    %4553 = vmatpush1.msra.mxu0 %v4403
    %4554 = vmatprep.subr.mxu0 %v4410
    %4555 = vmatpush1.msra.mxu0 %v4409
    %4556 = vmatprep.subr.mxu0 %v4416
    %4557 = vmatpush1.msra.mxu0 %v4415
    %4558 = vmatprep.subr.mxu0 %v4422
    %4559 = vmatpush1.msra.mxu0 %v4421
    %4560 = vmatprep.subr.mxu0 %v4428
    %4561 = vmatpush1.msra.mxu0 %v4427
    %4562 = vmatprep.subr.mxu0 %v4434
    %4563 = vmatpush1.msra.mxu0 %v4433
    %4564 = vmatprep.subr.mxu0 %v4440
    %4565 = vmatpush1.msra.mxu0 %v4439
    %4566 = vmatprep.subr.mxu0 %v4446
    %4567 = vmatpush1.msra.mxu0 %v4445
    %4568 = vmatprep.subr.mxu0 %v4452
    %4569 = vmatpush1.msra.mxu0 %v4451
    %4570 = vmatprep.subr.mxu0 %v4458
    %4571 = vmatpush1.msra.mxu0 %v4457
    %4572 = vmatprep.subr.mxu0 %v4464
    %4573 = vmatpush1.msra.mxu0 %v4463
    %4574 = vmatprep.subr.mxu0 %v4470
    %4575 = vmatpush1.msra.mxu0 %v4469
    %4576 = vmatprep.subr.mxu0 0.0
    %4577 = vmatpush1.msra.mxu0 0.0
    %4578 = vmatprep.subr.mxu0 0.0
    %4579 = vmatpush1.msra.mxu0 0.0
    %4580 = vmatprep.subr.mxu0 0.0
    %4581 = vmatpush1.msra.mxu0 0.0
    %4582 = vmatprep.subr.mxu0 0.0
    %4583 = vmatpush1.msra.mxu0 0.0
    %4584 = vmatprep.subr.mxu0 0.0
    %4585 = vmatpush1.msra.mxu0 0.0
    %4586 = vmatprep.subr.mxu0 0.0
    %4587 = vmatpush1.msra.mxu0 0.0
    %4588 = vmatprep.subr.mxu0 0.0
    %4589 = vmatpush1.msra.mxu0 0.0
    %4590 = vmatprep.subr.mxu0 0.0
    %4591 = vmatpush1.msra.mxu0 0.0
    %4592 = vmatprep.subr.mxu0 0.0
    %4593 = vmatpush1.msra.mxu0 0.0
    %4594 = vmatprep.subr.mxu0 0.0
    %4595 = vmatpush1.msra.mxu0 0.0
    %4596 = vmatprep.subr.mxu0 0.0
    %4597 = vmatpush1.msra.mxu0 0.0
    %4598 = vmatprep.subr.mxu0 0.0
    %4599 = vmatpush1.msra.mxu0 0.0
    %4600 = vmatprep.subr.mxu0 0.0
    %4601 = vmatpush1.msra.mxu0 0.0
    %4602 = vmatprep.subr.mxu0 0.0
    %4603 = vmatpush1.msra.mxu0 0.0
    %4604 = vmatprep.subr.mxu0 0.0
    %4605 = vmatpush1.msra.mxu0 0.0
    %4606 = vmatprep.subr.mxu0 0.0
    %4607 = vmatpush1.msra.mxu0 0.0
    %4608 = vmatprep.mubr.f32.mxu0 0.0
    %4609 = vmatmul.mubr.f32.gmra.mrb[0].mxu0 %v4354
    %v4610 = vpop.f32.mrb[0].mxu0
    %v4611 = vadd.f32 0.0, %v4610
    %v4612 = vpop.f32.mrb[0].mxu0
    %v4613 = vadd.f32 0.0, %v4612
    %4614 = vdwg.mxu0
    %4615 = vmatprep.subr.mxu0 %v4382
    %4616 = vmatpush1.msra.mxu0 %v4381
    %4617 = vmatprep.subr.mxu0 %v4388
    %4618 = vmatpush1.msra.mxu0 %v4387
    %4619 = vmatprep.subr.mxu0 %v4394
    %4620 = vmatpush1.msra.mxu0 %v4393
    %4621 = vmatprep.subr.mxu0 %v4400
    %4622 = vmatpush1.msra.mxu0 %v4399
    %4623 = vmatprep.subr.mxu0 %v4406
    %4624 = vmatpush1.msra.mxu0 %v4405
    %4625 = vmatprep.subr.mxu0 %v4412
    %4626 = vmatpush1.msra.mxu0 %v4411
    %4627 = vmatprep.subr.mxu0 %v4418
    %4628 = vmatpush1.msra.mxu0 %v4417
    %4629 = vmatprep.subr.mxu0 %v4424
    %4630 = vmatpush1.msra.mxu0 %v4423
    %4631 = vmatprep.subr.mxu0 %v4430
    %4632 = vmatpush1.msra.mxu0 %v4429
    %4633 = vmatprep.subr.mxu0 %v4436
    %4634 = vmatpush1.msra.mxu0 %v4435
    %4635 = vmatprep.subr.mxu0 %v4442
    %4636 = vmatpush1.msra.mxu0 %v4441
    %4637 = vmatprep.subr.mxu0 %v4448
    %4638 = vmatpush1.msra.mxu0 %v4447
    %4639 = vmatprep.subr.mxu0 %v4454
    %4640 = vmatpush1.msra.mxu0 %v4453
    %4641 = vmatprep.subr.mxu0 %v4460
    %4642 = vmatpush1.msra.mxu0 %v4459
    %4643 = vmatprep.subr.mxu0 %v4466
    %4644 = vmatpush1.msra.mxu0 %v4465
    %4645 = vmatprep.subr.mxu0 %v4472
    %4646 = vmatpush1.msra.mxu0 %v4471
    %4647 = vmatprep.subr.mxu0 0.0
    %4648 = vmatpush1.msra.mxu0 0.0
    %4649 = vmatprep.subr.mxu0 0.0
    %4650 = vmatpush1.msra.mxu0 0.0
    %4651 = vmatprep.subr.mxu0 0.0
    %4652 = vmatpush1.msra.mxu0 0.0
    %4653 = vmatprep.subr.mxu0 0.0
    %4654 = vmatpush1.msra.mxu0 0.0
    %4655 = vmatprep.subr.mxu0 0.0
    %4656 = vmatpush1.msra.mxu0 0.0
    %4657 = vmatprep.subr.mxu0 0.0
    %4658 = vmatpush1.msra.mxu0 0.0
    %4659 = vmatprep.subr.mxu0 0.0
    %4660 = vmatpush1.msra.mxu0 0.0
    %4661 = vmatprep.subr.mxu0 0.0
    %4662 = vmatpush1.msra.mxu0 0.0
    %4663 = vmatprep.subr.mxu0 0.0
    %4664 = vmatpush1.msra.mxu0 0.0
    %4665 = vmatprep.subr.mxu0 0.0
    %4666 = vmatpush1.msra.mxu0 0.0
    %4667 = vmatprep.subr.mxu0 0.0
    %4668 = vmatpush1.msra.mxu0 0.0
    %4669 = vmatprep.subr.mxu0 0.0
    %4670 = vmatpush1.msra.mxu0 0.0
    %4671 = vmatprep.subr.mxu0 0.0
    %4672 = vmatpush1.msra.mxu0 0.0
    %4673 = vmatprep.subr.mxu0 0.0
    %4674 = vmatpush1.msra.mxu0 0.0
    %4675 = vmatprep.subr.mxu0 0.0
    %4676 = vmatpush1.msra.mxu0 0.0
    %4677 = vmatprep.subr.mxu0 0.0
    %4678 = vmatpush1.msra.mxu0 0.0
    %4679 = vmatprep.mubr.f32.mxu0 0.0
    %4680 = vmatmul.mubr.f32.gmra.mrb[0].mxu0 %v4354
    %v4681 = vpop.f32.mrb[0].mxu0
    %v4682 = vadd.f32 0.0, %v4681
    %v4683 = vpop.f32.mrb[0].mxu0
    %v4684 = vadd.f32 0.0, %v4683
    %4685 = vdwg.mxu0
    %v4686 = vld [vmem:[%s5 + $0x1] sm:$0x1]
    %v4688 = vlaneseq
    %v4689 = vshrl.u32 %v4688, 7
    %v4690 = vsub.s32 0, %v4689
    %v4691 = vrot.slane %v4686, %v4690
    %v4693 = vadd.f32 %v4684, %v4691
    %s4694 = scalar_lea.vmem %s6, 10
    %4695 = vst [vmem:[%s4694] sm:$0x3] %v4693
    %v4696 = vld [vmem:[%s0] sm:$0xff]
    %v4697 = vld [vmem:[%s0 + $0x8] sm:$0xff]
    %v4698 = vld [vmem:[%s0 + $0x10] sm:$0xff]
    %v4699 = vld [vmem:[%s0 + $0x18] sm:$0xff]
    %v4702 = vunpack.c.l.s4 1966171168
    %v4703 = vunpack.c.0.s8 %v4702
    %v4704 = vlaneseq
    %v4705 = vshrl.u32 %v4704, 7
    %v4706 = vsub.s32 %v4703, %v4705
    %v4707 = vrot.slane %v4540, %v4706
    %v4708 = vcombine.high %v4707, %v4707
    %v4710 = vunpack.c.l.s4 1966171168
    %v4711 = vunpack.c.0.s8 %v4710
    %v4712 = vlaneseq
    %v4713 = vshrl.u32 %v4712, 7
    %v4714 = vsub.s32 %v4711, %v4713
    %v4715 = vrot.slane %v4707, %v4714
    %v4717 = vunpack.c.l.s4 1966171168
    %v4718 = vunpack.c.0.s8 %v4717
    %v4719 = vlaneseq
    %v4720 = vshrl.u32 %v4719, 7
    %v4721 = vsub.s32 %v4718, %v4720
    %v4722 = vrot.slane %v4708, %v4721
    %v4723 = vlaneseq
    %v4724 = vshrl.u32 %v4723, 7
    %v4725 = vsub.s32 0, %v4724
    %v4726 = vrot.slane %v4715, %v4725
    %v4727 = vlaneseq
    %v4728 = vshrl.u32 %v4727, 7
    %v4729 = vsub.s32 0, %v4728
    %v4730 = vrot.slane %v4722, %v4729
    %v4733 = vadd.f32 %v4696, %v4726
    %v4734 = vadd.f32 %v4697, %v4726
    %v4735 = vadd.f32 %v4698, %v4730
    %v4736 = vadd.f32 %v4699, %v4730
    %v4737 = vtanh.pop %v4733
    %v4738 = vtanh.pop %v4734
    %v4739 = vtanh.pop %v4735
    %v4740 = vtanh.pop %v4736
    %v4741 = vld [vmem:[%s5] sm:$0x1]
    %v4743 = vlaneseq
    %v4744 = vshrl.u32 %v4743, 7
    %v4745 = vsub.s32 0, %v4744
    %v4746 = vrot.slane %v4741, %v4745
    %v4748 = vmul.f32 %v4737, %v4746
    %v4749 = vmul.f32 %v4738, %v4746
    %v4750 = vmul.f32 %v4739, %v4746
    %v4751 = vmul.f32 %v4740, %v4746
    %4752 = vadd.xlane.f32.xlu0 %v4748
    %v4753 = vpop.xlane.xlu0 %4752
    %4754 = vadd.xlane.f32.xlu0 %v4749
    %v4755 = vpop.xlane.xlu0 %4754
    %4756 = vadd.xlane.f32.xlu0 %v4750
    %v4757 = vpop.xlane.xlu0 %4756
    %4758 = vadd.xlane.f32.xlu0 %v4751
    %v4759 = vpop.xlane.xlu0 %4758
    %v4764 = vlaneseq
    %v4765 = vshrl.u32 %v4764, 7
    %v4766 = vsub.s32 %v404, %v4765
    %v4767 = vrot.slane %v4753, %v4766
    %v4768 = vlaneseq
    %v4769 = vshrl.u32 %v4768, 7
    %v4770 = vsub.s32 %v409, %v4769
    %v4771 = vrot.slane %v4755, %v4770
    %v4772 = vsel %vm414, %v4771, %v4767
    %v4773 = vlaneseq
    %v4774 = vshrl.u32 %v4773, 7
    %v4775 = vsub.s32 %v404, %v4774
    %v4776 = vrot.slane %v4757, %v4775
    %v4777 = vlaneseq
    %v4778 = vshrl.u32 %v4777, 7
    %v4779 = vsub.s32 %v409, %v4778
    %v4780 = vrot.slane %v4759, %v4779
    %v4781 = vsel %vm414, %v4780, %v4776
    %v4782 = vsel %vm425, %v4781, %v4772
    %v4784 = vsel %vm428, %v4782, -inf
    %4785 = vmax.xlane.f32.xlu0 %v4784
    %v4786 = vpop.xlane.xlu0 %4785
    %v4788 = vlaneseq
    %v4789 = vshrl.u32 %v4788, 7
    %v4790 = vsub.s32 0, %v4789
    %v4791 = vrot.slane %v4786, %v4790
    %v4792 = vlaneseq
    %v4793 = vshrl.u32 %v4792, 7
    %v4794 = vsub.s32 1, %v4793
    %v4795 = vrot.slane %v4786, %v4794
    %v4798 = vsub.f32 %v4753, %v4791
    %v4799 = vsub.f32 %v4755, %v4791
    %v4800 = vsub.f32 %v4757, %v4795
    %v4801 = vsub.f32 %v4759, %v4795
    %v4802 = vmul.f32 %v4798, 1.442695
    %v4803 = vpow.pop %v4802
    %v4804 = vmul.f32 %v4799, 1.442695
    %v4805 = vpow.pop %v4804
    %v4806 = vmul.f32 %v4800, 1.442695
    %v4807 = vpow.pop %v4806
    %v4808 = vmul.f32 %v4801, 1.442695
    %v4809 = vpow.pop %v4808
    %4814 = vset.pattern.permute.xlu0 0
    %4815 = vperm.xlu0 %4814, %v4803
    %v4816 = vpop.permute.xlu0 %4815
    %4817 = vset.pattern.permute.xlu0 0
    %4818 = vperm.xlu0 %4817, %v4805
    %v4819 = vpop.permute.xlu0 %4818
    %4820 = vset.pattern.permute.xlu0 0
    %4821 = vperm.xlu0 %4820, %v4807
    %v4822 = vpop.permute.xlu0 %4821
    %4823 = vset.pattern.permute.xlu0 0
    %4824 = vperm.xlu0 %4823, %v4809
    %v4825 = vpop.permute.xlu0 %4824
    %v4826 = vlaneseq
    %v4827 = vshrl.u32 %v4826, 7
    %v4828 = vsub.s32 %v404, %v4827
    %v4829 = vrot.slane %v4816, %v4828
    %v4830 = vlaneseq
    %v4831 = vshrl.u32 %v4830, 7
    %v4832 = vsub.s32 %v409, %v4831
    %v4833 = vrot.slane %v4819, %v4832
    %v4834 = vsel %vm414, %v4833, %v4829
    %v4835 = vlaneseq
    %v4836 = vshrl.u32 %v4835, 7
    %v4837 = vsub.s32 %v404, %v4836
    %v4838 = vrot.slane %v4822, %v4837
    %v4839 = vlaneseq
    %v4840 = vshrl.u32 %v4839, 7
    %v4841 = vsub.s32 %v409, %v4840
    %v4842 = vrot.slane %v4825, %v4841
    %v4843 = vsel %vm414, %v4842, %v4838
    %v4844 = vsel %vm425, %v4843, %v4834
    %v4846 = vsel %vm428, %v4844, 0.0
    %4847 = vadd.xlane.f32.xlu0 %v4846
    %v4848 = vpop.xlane.xlu0 %4847
    %v4849 = vrcp.pop %v4848
    %v4851 = vlaneseq
    %v4852 = vshrl.u32 %v4851, 7
    %v4853 = vsub.s32 0, %v4852
    %v4854 = vrot.slane %v4849, %v4853
    %v4855 = vlaneseq
    %v4856 = vshrl.u32 %v4855, 7
    %v4857 = vsub.s32 1, %v4856
    %v4858 = vrot.slane %v4849, %v4857
    %v4861 = vmul.f32 %v4803, %v4854
    %v4862 = vmul.f32 %v4805, %v4854
    %v4863 = vmul.f32 %v4807, %v4858
    %v4864 = vmul.f32 %v4809, %v4858
    %v4865 = vld [vmem:[%s1] sm:$0xff]
    %v4866 = vld [vmem:[%s1 + $0x8] sm:$0xff]
    %v4867 = vld [vmem:[%s1 + $0x10] sm:$0xff]
    %v4868 = vld [vmem:[%s1 + $0x18] sm:$0xff]
    %v4869 = vld [vmem:[%s1 + $0x20] sm:$0xff]
    %v4870 = vld [vmem:[%s1 + $0x28] sm:$0xff]
    %v4871 = vld [vmem:[%s1 + $0x30] sm:$0xff]
    %v4872 = vld [vmem:[%s1 + $0x38] sm:$0xff]
    %v4873 = vld [vmem:[%s1 + $0x40] sm:$0xff]
    %v4874 = vld [vmem:[%s1 + $0x48] sm:$0xff]
    %v4875 = vld [vmem:[%s1 + $0x50] sm:$0xff]
    %v4876 = vld [vmem:[%s1 + $0x58] sm:$0xff]
    %v4877 = vld [vmem:[%s1 + $0x60] sm:$0xff]
    %v4878 = vld [vmem:[%s1 + $0x68] sm:$0xff]
    %v4879 = vld [vmem:[%s1 + $0x70] sm:$0xff]
    %v4880 = vld [vmem:[%s1 + $0x78] sm:$0xff]
    %4882 = vset.pattern.permute.xlu0 0
    %4883 = vperm.xlu0 %4882, %v4861
    %v4884 = vpop.permute.xlu0 %4883
    %4887 = vset.pattern.permute.xlu0 0
    %4888 = vperm.xlu0 %4887, %v4862
    %v4889 = vpop.permute.xlu0 %4888
    %4892 = vset.pattern.permute.xlu0 0
    %4893 = vperm.xlu0 %4892, %v4863
    %v4894 = vpop.permute.xlu0 %4893
    %4897 = vset.pattern.permute.xlu0 0
    %4898 = vperm.xlu0 %4897, %v4864
    %v4899 = vpop.permute.xlu0 %4898
    %v4901 = vmul.f32 %v4884, %v4865
    %v4902 = vmul.f32 %v4884, %v4866
    %v4903 = vmul.f32 %v4884, %v4867
    %v4904 = vmul.f32 %v4884, %v4868
    %v4905 = vmul.f32 %v4889, %v4869
    %v4906 = vmul.f32 %v4889, %v4870
    %v4907 = vmul.f32 %v4889, %v4871
    %v4908 = vmul.f32 %v4889, %v4872
    %v4909 = vmul.f32 %v4894, %v4873
    %v4910 = vmul.f32 %v4894, %v4874
    %v4911 = vmul.f32 %v4894, %v4875
    %v4912 = vmul.f32 %v4894, %v4876
    %v4913 = vmul.f32 %v4899, %v4877
    %v4914 = vmul.f32 %v4899, %v4878
    %v4915 = vmul.f32 %v4899, %v4879
    %v4916 = vmul.f32 %v4899, %v4880
    %v4917 = vadd.f32 %v4901, %v4905
    %v4918 = vrot.slane %v4917, 4
    %v4919 = vadd.f32 %v4917, %v4918
    %v4920 = vrot.slane %v4919, 2
    %v4921 = vadd.f32 %v4919, %v4920
    %v4922 = vrot.slane %v4921, 1
    %v4923 = vadd.f32 %v4921, %v4922
    %v4924 = vadd.f32 %v4902, %v4906
    %v4925 = vrot.slane %v4924, 4
    %v4926 = vadd.f32 %v4924, %v4925
    %v4927 = vrot.slane %v4926, 2
    %v4928 = vadd.f32 %v4926, %v4927
    %v4929 = vrot.slane %v4928, 1
    %v4930 = vadd.f32 %v4928, %v4929
    %v4931 = vadd.f32 %v4903, %v4907
    %v4932 = vrot.slane %v4931, 4
    %v4933 = vadd.f32 %v4931, %v4932
    %v4934 = vrot.slane %v4933, 2
    %v4935 = vadd.f32 %v4933, %v4934
    %v4936 = vrot.slane %v4935, 1
    %v4937 = vadd.f32 %v4935, %v4936
    %v4938 = vadd.f32 %v4904, %v4908
    %v4939 = vrot.slane %v4938, 4
    %v4940 = vadd.f32 %v4938, %v4939
    %v4941 = vrot.slane %v4940, 2
    %v4942 = vadd.f32 %v4940, %v4941
    %v4943 = vrot.slane %v4942, 1
    %v4944 = vadd.f32 %v4942, %v4943
    %v4945 = vadd.f32 %v4909, %v4913
    %v4946 = vrot.slane %v4945, 4
    %v4947 = vadd.f32 %v4945, %v4946
    %v4948 = vrot.slane %v4947, 2
    %v4949 = vadd.f32 %v4947, %v4948
    %v4950 = vrot.slane %v4949, 1
    %v4951 = vadd.f32 %v4949, %v4950
    %v4952 = vadd.f32 %v4910, %v4914
    %v4953 = vrot.slane %v4952, 4
    %v4954 = vadd.f32 %v4952, %v4953
    %v4955 = vrot.slane %v4954, 2
    %v4956 = vadd.f32 %v4954, %v4955
    %v4957 = vrot.slane %v4956, 1
    %v4958 = vadd.f32 %v4956, %v4957
    %v4959 = vadd.f32 %v4911, %v4915
    %v4960 = vrot.slane %v4959, 4
    %v4961 = vadd.f32 %v4959, %v4960
    %v4962 = vrot.slane %v4961, 2
    %v4963 = vadd.f32 %v4961, %v4962
    %v4964 = vrot.slane %v4963, 1
    %v4965 = vadd.f32 %v4963, %v4964
    %v4966 = vadd.f32 %v4912, %v4916
    %v4967 = vrot.slane %v4966, 4
    %v4968 = vadd.f32 %v4966, %v4967
    %v4969 = vrot.slane %v4968, 2
    %v4970 = vadd.f32 %v4968, %v4969
    %v4971 = vrot.slane %v4970, 1
    %v4972 = vadd.f32 %v4970, %v4971
    %s4973 = scalar_lea.vmem %s2, 48
    %v4974 = vld [vmem:[%s4973] sm:$0xff]
    %v4983 = vcombine.low %v4923, %v4930
    %v4984 = vcombine.low %v4937, %v4944
    %v4986 = vunpack.c.l.s4 1983009808
    %v4987 = vunpack.c.0.s8 %v4986
    %v4988 = vlaneseq
    %v4989 = vshrl.u32 %v4988, 7
    %v4990 = vsub.s32 %v4987, %v4989
    %v4991 = vrot.slane %v4983, %v4990
    %v4993 = vunpack.c.l.s4 1983009808
    %v4994 = vunpack.c.0.s8 %v4993
    %v4995 = vlaneseq
    %v4996 = vshrl.u32 %v4995, 7
    %v4997 = vsub.s32 %v4994, %v4996
    %v4998 = vrot.slane %v4984, %v4997
    %v4999 = vcombine.low %v4991, %v4998
    %v5000 = vcombine.low %v4951, %v4958
    %v5001 = vcombine.low %v4965, %v4972
    %v5003 = vunpack.c.l.s4 1983009808
    %v5004 = vunpack.c.0.s8 %v5003
    %v5005 = vlaneseq
    %v5006 = vshrl.u32 %v5005, 7
    %v5007 = vsub.s32 %v5004, %v5006
    %v5008 = vrot.slane %v5000, %v5007
    %v5010 = vunpack.c.l.s4 1983009808
    %v5011 = vunpack.c.0.s8 %v5010
    %v5012 = vlaneseq
    %v5013 = vshrl.u32 %v5012, 7
    %v5014 = vsub.s32 %v5011, %v5013
    %v5015 = vrot.slane %v5001, %v5014
    %v5016 = vcombine.low %v5008, %v5015
    %v5017 = vsel %vm661, %v4999, %v4999
    %v5018 = vsel %vm663, %v4999, %v5017
    %v5019 = vrot.slane %v5016, 7
    %v5020 = vsel %vm425, %v5019, %v5018
    %v5021 = vsel %vm667, %v5019, %v5020
    %v5022 = vsel %vm669, %v5019, %v5021
    %v5023 = vsel %vm671, %v5019, %v5022
    %v5025 = vadd.f32 %v4974, %v5023
    %v5030 = vcombine.low %v4542, %v4611
    %v5031 = vcombine.low %v4613, %v4682
    %v5033 = vunpack.c.l.s4 1983009808
    %v5034 = vunpack.c.0.s8 %v5033
    %v5035 = vlaneseq
    %v5036 = vshrl.u32 %v5035, 7
    %v5037 = vsub.s32 %v5034, %v5036
    %v5038 = vrot.slane %v5030, %v5037
    %v5040 = vunpack.c.l.s4 1983009808
    %v5041 = vunpack.c.0.s8 %v5040
    %v5042 = vlaneseq
    %v5043 = vshrl.u32 %v5042, 7
    %v5044 = vsub.s32 %v5041, %v5043
    %v5045 = vrot.slane %v5031, %v5044
    %v5046 = vcombine.low %v5038, %v5045
    %v5048 = vadd.f32 %v5025, %v5046
    %v5049 = vxor.u32 %v5048, 2147483648
    %v5050 = vmul.f32 %v5049, 1.442695
    %v5051 = vpow.pop %v5050
    %v5052 = vadd.f32 %v5051, 1.0
    %v5053 = vrcp.pop %v5052
    %v5054 = vmul.f32 1.0, %v5053
    %v5056 = vrot.slane %v5048, 2
    %v5058 = vxor.u32 %v5056, 2147483648
    %v5059 = vmul.f32 %v5058, 1.442695
    %v5060 = vpow.pop %v5059
    %v5061 = vadd.f32 %v5060, 1.0
    %v5062 = vrcp.pop %v5061
    %v5063 = vmul.f32 1.0, %v5062
    %v5064 = vrot.slane %v5048, 4
    %v5066 = vtanh.pop %v5064
    %v5067 = vrot.slane %v5048, 6
    %v5069 = vxor.u32 %v5067, 2147483648
    %v5070 = vmul.f32 %v5069, 1.442695
    %v5071 = vpow.pop %v5070
    %v5072 = vadd.f32 %v5071, 1.0
    %v5073 = vrcp.pop %v5072
    %v5074 = vmul.f32 1.0, %v5073
    %v5075 = vmul.f32 %v5063, %v4352
    %v5076 = vmul.f32 %v5054, %v5066
    %v5077 = vadd.f32 %v5075, %v5076
    %v5078 = vtanh.pop %v5077
    %v5079 = vmul.f32 %v5074, %v5078
    %v5080 = vlaneseq
    %v5081 = vshrl.u32 %v5080, 7
    %v5082 = vsub.s32 %v404, %v5081
    %v5083 = vrot.slane %v4884, %v5082
    %v5084 = vlaneseq
    %v5085 = vshrl.u32 %v5084, 7
    %v5086 = vsub.s32 %v409, %v5085
    %v5087 = vrot.slane %v4889, %v5086
    %v5088 = vsel %vm414, %v5087, %v5083
    %v5089 = vlaneseq
    %v5090 = vshrl.u32 %v5089, 7
    %v5091 = vsub.s32 %v404, %v5090
    %v5092 = vrot.slane %v4894, %v5091
    %v5093 = vlaneseq
    %v5094 = vshrl.u32 %v5093, 7
    %v5095 = vsub.s32 %v409, %v5094
    %v5096 = vrot.slane %v4899, %v5095
    %v5097 = vsel %vm414, %v5096, %v5092
    %v5098 = vsel %vm425, %v5097, %v5088
    %s5100 = scalar_lea.vmem [#allocation2], 12
    %5101 = vst.msk [vmem:[%s5100] sm:$0x3] %vm428, %v5098
    %v5102 = vld [vmem:[%s4 + $0x28] sm:$0xff]
    %v5103 = vld [vmem:[%s4 + $0x58] sm:$0xff]
    %v5104 = vld [vmem:[%s4 + $0x88] sm:$0xff]
    %v5105 = vld [vmem:[%s4 + $0xb8] sm:$0xff]
    %v5106 = vld [vmem:[%s4 + $0xe8] sm:$0xff]
    %v5107 = vld [vmem:[%s4 + $0x118] sm:$0xff]
    %v5108 = vld [vmem:[%s4 + $0x148] sm:$0xff]
    %v5109 = vld [vmem:[%s4 + $0x178] sm:$0xff]
    %v5110 = vld [vmem:[%s4 + $0x1a8] sm:$0xff]
    %v5111 = vld [vmem:[%s4 + $0x1d8] sm:$0xff]
    %v5112 = vld [vmem:[%s4 + $0x208] sm:$0xff]
    %v5113 = vld [vmem:[%s4 + $0x238] sm:$0xff]
    %v5114 = vld [vmem:[%s4 + $0x268] sm:$0xff]
    %v5115 = vld [vmem:[%s4 + $0x298] sm:$0xff]
    %v5116 = vld [vmem:[%s4 + $0x2c8] sm:$0xff]
    %v5117 = vld [vmem:[%s4 + $0x2f8] sm:$0xff]
    %v5118 = vld [vmem:[%s5 + $0x1] sm:$0x1]
    %v5120 = vlaneseq
    %v5121 = vshrl.u32 %v5120, 7
    %v5122 = vsub.s32 0, %v5121
    %v5123 = vrot.slane %v5118, %v5122
    %5125 = vmatprep.subr.mxu0 0.0
    %5126 = vmatpush1.msra.mxu0 %v5102
    %5127 = vmatprep.subr.mxu0 0.0
    %5128 = vmatpush1.msra.mxu0 %v5103
    %5129 = vmatprep.subr.mxu0 0.0
    %5130 = vmatpush1.msra.mxu0 %v5104
    %5131 = vmatprep.subr.mxu0 0.0
    %5132 = vmatpush1.msra.mxu0 %v5105
    %5133 = vmatprep.subr.mxu0 0.0
    %5134 = vmatpush1.msra.mxu0 %v5106
    %5135 = vmatprep.subr.mxu0 0.0
    %5136 = vmatpush1.msra.mxu0 %v5107
    %5137 = vmatprep.subr.mxu0 0.0
    %5138 = vmatpush1.msra.mxu0 %v5108
    %5139 = vmatprep.subr.mxu0 0.0
    %5140 = vmatpush1.msra.mxu0 %v5109
    %5141 = vmatprep.subr.mxu0 0.0
    %5142 = vmatpush1.msra.mxu0 %v5110
    %5143 = vmatprep.subr.mxu0 0.0
    %5144 = vmatpush1.msra.mxu0 %v5111
    %5145 = vmatprep.subr.mxu0 0.0
    %5146 = vmatpush1.msra.mxu0 %v5112
    %5147 = vmatprep.subr.mxu0 0.0
    %5148 = vmatpush1.msra.mxu0 %v5113
    %5149 = vmatprep.subr.mxu0 0.0
    %5150 = vmatpush1.msra.mxu0 %v5114
    %5151 = vmatprep.subr.mxu0 0.0
    %5152 = vmatpush1.msra.mxu0 %v5115
    %5153 = vmatprep.subr.mxu0 0.0
    %5154 = vmatpush1.msra.mxu0 %v5116
    %5155 = vmatprep.subr.mxu0 0.0
    %5156 = vmatpush1.msra.mxu0 %v5117
    %5157 = vmatprep.subr.mxu0 0.0
    %5158 = vmatpush1.msra.mxu0 0.0
    %5159 = vmatprep.subr.mxu0 0.0
    %5160 = vmatpush1.msra.mxu0 0.0
    %5161 = vmatprep.subr.mxu0 0.0
    %5162 = vmatpush1.msra.mxu0 0.0
    %5163 = vmatprep.subr.mxu0 0.0
    %5164 = vmatpush1.msra.mxu0 0.0
    %5165 = vmatprep.subr.mxu0 0.0
    %5166 = vmatpush1.msra.mxu0 0.0
    %5167 = vmatprep.subr.mxu0 0.0
    %5168 = vmatpush1.msra.mxu0 0.0
    %5169 = vmatprep.subr.mxu0 0.0
    %5170 = vmatpush1.msra.mxu0 0.0
    %5171 = vmatprep.subr.mxu0 0.0
    %5172 = vmatpush1.msra.mxu0 0.0
    %5173 = vmatprep.subr.mxu0 0.0
    %5174 = vmatpush1.msra.mxu0 0.0
    %5175 = vmatprep.subr.mxu0 0.0
    %5176 = vmatpush1.msra.mxu0 0.0
    %5177 = vmatprep.subr.mxu0 0.0
    %5178 = vmatpush1.msra.mxu0 0.0
    %5179 = vmatprep.subr.mxu0 0.0
    %5180 = vmatpush1.msra.mxu0 0.0
    %5181 = vmatprep.subr.mxu0 0.0
    %5182 = vmatpush1.msra.mxu0 0.0
    %5183 = vmatprep.subr.mxu0 0.0
    %5184 = vmatpush1.msra.mxu0 0.0
    %5185 = vmatprep.subr.mxu0 0.0
    %5186 = vmatpush1.msra.mxu0 0.0
    %5187 = vmatprep.subr.mxu0 0.0
    %5188 = vmatpush1.msra.mxu0 0.0
    %5189 = vmatprep.mubr.f32.mxu0 0.0
    %5190 = vmatmul.mubr.f32.gmra.mrb[0].mxu0 %v5079
    %v5191 = vpop.f32.mrb[0].mxu0
    %v5192 = vadd.f32 %v5123, %v5191
    %v5193 = vpop.f32.mrb[0].mxu0
    %5194 = vdwg.mxu0
    %s5195 = scalar_lea.vmem %s6, 12
    %5196 = vst [vmem:[%s5195] sm:$0x3] %v5192
    // Predicated region
    $region26: #{encoder_decoder_forward.5} parent=1 // pred_check
      _
    $region27: #{encoder_decoder_forward.5} parent=1 // pred_check_branch
      %5198 = sbr.rel (0) target = $region29
    $region28: #{encoder_decoder_forward.5} parent=1 // pred_region
      _
    $region29: #{encoder_decoder_forward.5} parent=1 // pred_fallthru
      _
    // Predicated region
    $region30: #{encoder_decoder_forward.5} parent=1 // pred_check
      _
    $region31: #{encoder_decoder_forward.5} parent=1 // pred_check_branch
      %5200 = sbr.rel (0) target = $region33
    $region32: #{encoder_decoder_forward.5} parent=1 // pred_region
      %s5202 = ssub.s32 224, 224
      %5203 = vsyncadd [#allocation3], %s5202
      %s5204 = sshll.u32 [#allocation2], 4
      %s5205 = int_to_ptr.vmem [resolvable:$true] %s5204
      %5210 = dma.vmem_to_hbm [thread:$0]  %s5205, 224, %s7, [#allocation3], 32, 32, 2
    $region33: #{encoder_decoder_forward.5} parent=1 // pred_fallthru
      _
    // Predicated region
    $region34: #{encoder_decoder_forward.5} parent=1 // pred_check
      _
    $region35: #{encoder_decoder_forward.5} parent=1 // pred_check_branch
      %5212 = sbr.rel (0) target = $region37
    $region36: #{encoder_decoder_forward.5} parent=1 // pred_region
      _
    $region37: #{encoder_decoder_forward.5} parent=1 // pred_fallthru
      _
    // Predicated region
    $region38: #{encoder_decoder_forward.5} parent=1 // pred_check
      _
    $region39: #{encoder_decoder_forward.5} parent=1 // pred_check_branch
      %5214 = sbr.rel (0) target = $region41
    $region40: #{encoder_decoder_forward.5} parent=1 // pred_region
      %5215 = dma.done [#allocation3], 224
    $region41: #{encoder_decoder_forward.5} parent=1 // pred_fallthru
      _
    %5216 = vsyncpa [#allocation3], 1

</llo_original>
